<compile_context>
chip_gen: v5e
topology: v5e:2x2
jax: 0.10.0
libtpu: 0.0.40
codegen_flags: <defaults>
</compile_context>

<pallas_src>
import functools

import jax
import jax.numpy as jnp
from jax.experimental import pallas as pl
from jax.experimental.pallas import tpu as pltpu

EMBED_POS_L = 10
EMBED_DIR_L = 4
HIDDEN_1 = 256
HIDDEN_2 = 128
POS_SHAPE = 3 + EMBED_POS_L * 3 * 2      # 63
DIR_SHAPE = 3 + EMBED_DIR_L * 3 * 2      # 27


def position_encoding(x, L):
    """Matches the PyTorch position_encoding: cat([x, sin(2^j x), cos(2^j x)...], dim=1)."""
    out = [x]
    for j in range(L):
        out.append(jnp.sin((2.0 ** j) * x))
        out.append(jnp.cos((2.0 ** j) * x))
    return jnp.concatenate(out, axis=1)


def _round_up(x, m):
    return (x + m - 1) // m * m


def _nerf_kernel(ep_ref, ed_ref,
                 w_in, b_in,
                 w_b1a, b_b1a, w_b1b, b_b1b, w_b1c, b_b1c,
                 w_skip_x, w_skip_ep, b_skip,
                 w_b2a, b_b2a, w_b2b, b_b2b, w_b2c, b_b2c,
                 w_sig_f, b_sig_f, w_sig_s, b_sig_s,
                 w_dir_f, w_dir_e, b_dir,
                 w_out, b_out,
                 out_ref):
    ep = ep_ref[...]          # (tm, 63)  encoded positions (weight dtype)
    ed = ed_ref[...]          # (tm, 27)  encoded directions (weight dtype)

    relu = lambda v: jnp.maximum(v, 0.0)

    def lin(x, w_ref, b_ref):
        w = w_ref[...]
        return (jnp.dot(x.astype(w.dtype), w, preferred_element_type=jnp.float32)
                + b_ref[...])

    def lin2(x1, w1_ref, x2, w2_ref, b_ref):
        # Split-K replacement for concat([x1, x2]) @ [w1; w2] + b.
        w1 = w1_ref[...]
        w2 = w2_ref[...]
        return (jnp.dot(x1.astype(w1.dtype), w1, preferred_element_type=jnp.float32)
                + jnp.dot(x2.astype(w2.dtype), w2, preferred_element_type=jnp.float32)
                + b_ref[...])

    # input layer + block_1
    x = relu(lin(ep, w_in, b_in))
    x = relu(lin(x, w_b1a, b_b1a))
    x = relu(lin(x, w_b1b, b_b1b))
    x = relu(lin(x, w_b1c, b_b1c))

    # skip connection (concat replaced by split-K matmuls): 256 + 63 -> 256
    x = relu(lin2(x, w_skip_x, ep, w_skip_ep, b_skip))

    # block_2 (last layer has no ReLU)
    x = relu(lin(x, w_b2a, b_b2a))
    x = relu(lin(x, w_b2b, b_b2b))
    x = lin(x, w_b2c, b_b2c)

    # sigma head split: 256 -> 256 feats and 256 -> 1 sigma (no slicing)
    feats = lin(x, w_sig_f, b_sig_f)               # (tm, 256), no ReLU
    sigma = relu(lin(x, w_sig_s, b_sig_s))         # (tm, 1)

    # direction branch (concat replaced by split-K matmuls): 256 + 27 -> 128
    h = relu(lin2(feats, w_dir_f, ed, w_dir_e, b_dir))
    rgb = jax.nn.sigmoid(lin(h, w_out, b_out))     # (tm, 3)

    # packed output slab: lanes [0:3] rgb, lane [3] sigma
    out_ref[:, 0:3] = rgb
    out_ref[:, 3:4] = sigma


def init_params(key):
    """Deterministic synthetic parameters (canonical nn.Module shapes, (in, out))."""
    layer_dims = [
        (POS_SHAPE, HIDDEN_1),                # input_layer
        (HIDDEN_1, HIDDEN_1),                 # block_1[0]
        (HIDDEN_1, HIDDEN_1),                 # block_1[2]
        (HIDDEN_1, HIDDEN_1),                 # block_1[4]
        (HIDDEN_1 + POS_SHAPE, HIDDEN_1),     # skip_layer
        (HIDDEN_1, HIDDEN_1),                 # block_2[0]
        (HIDDEN_1, HIDDEN_1),                 # block_2[2]
        (HIDDEN_1, HIDDEN_1),                 # block_2[4]
        (HIDDEN_1, HIDDEN_1 + 1),             # sigma_layer
        (HIDDEN_1 + DIR_SHAPE, HIDDEN_2),     # dir_layer
        (HIDDEN_2, 3),                        # output_layer
    ]
    params = []
    for (din, dout) in layer_dims:
        key, kw, kb = jax.random.split(key, 3)
        scale = 1.0 / jnp.sqrt(jnp.float32(din))
        w = jax.random.normal(kw, (din, dout), jnp.float32) * scale
        b = jax.random.normal(kb, (1, dout), jnp.float32) * 0.01
        params.append(w)
        params.append(b)
    return params


@functools.partial(jax.jit, static_argnames=("tm", "use_bf16"))
def nerf_forward(pos, direction, params, *, tm=512, use_bf16=True):
    assert tm % 8 == 0
    n = pos.shape[0]

    # Row tiling: cap the tile at the (8-rounded) batch size and pad N so the
    # grid divides evenly.  For large N pick tm so n//tm >= 2 (v7x dual-TC).
    tm_eff = min(tm, _round_up(n, 8))
    n_pad = _round_up(n, tm_eff)

    wdt = jnp.bfloat16 if use_bf16 else jnp.float32
    cast_w = lambda w: w.astype(wdt)

    (w_in, b_in, w_b1a, b_b1a, w_b1b, b_b1b, w_b1c, b_b1c,
     w_skip, b_skip, w_b2a, b_b2a, w_b2b, b_b2b, w_b2c, b_b2c,
     w_sig, b_sig, w_dir, b_dir, w_out, b_out) = params

    # Split concatenation / sigma-head weights (bit-compatible reordering).
    w_skip_x, w_skip_ep = w_skip[:HIDDEN_1], w_skip[HIDDEN_1:]
    w_sig_f, w_sig_s = w_sig[:, :HIDDEN_1], w_sig[:, HIDDEN_1:]
    b_sig_f, b_sig_s = b_sig[:, :HIDDEN_1], b_sig[:, HIDDEN_1:]
    w_dir_f, w_dir_e = w_dir[:HIDDEN_1], w_dir[HIDDEN_1:]

    kernel_params = [
        cast_w(w_in), b_in,
        cast_w(w_b1a), b_b1a, cast_w(w_b1b), b_b1b, cast_w(w_b1c), b_b1c,
        cast_w(w_skip_x), cast_w(w_skip_ep), b_skip,
        cast_w(w_b2a), b_b2a, cast_w(w_b2b), b_b2b, cast_w(w_b2c), b_b2c,
        cast_w(w_sig_f), b_sig_f, cast_w(w_sig_s), b_sig_s,
        cast_w(w_dir_f), cast_w(w_dir_e), b_dir,
        cast_w(w_out), b_out,
    ]

    encoded_pos = position_encoding(pos, EMBED_POS_L).astype(wdt)        # (N, 63)
    encoded_dir = position_encoding(direction, EMBED_DIR_L).astype(wdt)  # (N, 27)
    if n_pad != n:
        encoded_pos = jnp.pad(encoded_pos, ((0, n_pad - n), (0, 0)))
        encoded_dir = jnp.pad(encoded_dir, ((0, n_pad - n), (0, 0)))

    act_specs = [
        pl.BlockSpec((tm_eff, POS_SHAPE), lambda i: (i, 0)),
        pl.BlockSpec((tm_eff, DIR_SHAPE), lambda i: (i, 0)),
    ]
    # Weights/biases passed as full blocks with a constant index map.
    # (They get double-buffered by default; ~2.4 MiB total in bf16, well
    #  within scoped VMEM even with tm up to ~1024.)
    param_specs = [pl.BlockSpec(p.shape, lambda i: (0, 0)) for p in kernel_params]

    out = pl.pallas_call(
        _nerf_kernel,
        out_shape=jax.ShapeDtypeStruct((n_pad, 4), jnp.float32),
        grid=(n_pad // tm_eff,),
        in_specs=act_specs + param_specs,
        out_specs=pl.BlockSpec((tm_eff, 4), lambda i: (i, 0)),
        compiler_params=pltpu.CompilerParams(
            dimension_semantics=("parallel",)),
    )(encoded_pos, encoded_dir, *kernel_params)

    rgb = out[:n, :3]
    sigma = out[:n, 3]
    return rgb, sigma


def nerf_forward_ref(pos, direction, params, *, use_bf16=False):
    """Pure-JAX reference.  With use_bf16=True it mimics the kernel's
    bf16-operand / f32-accumulation matmuls for a tight comparison."""
    wdt = jnp.bfloat16 if use_bf16 else jnp.float32
    cast = lambda a: a.astype(wdt)
    ep = position_encoding(pos, EMBED_POS_L)
    ed = position_encoding(direction, EMBED_DIR_L)
    p = params
    lin = lambda x, w, b: jnp.dot(cast(x), cast(w),
                                  preferred_element_type=jnp.float32) + b
    relu = lambda v: jnp.maximum(v, 0.0)
    x = relu(lin(ep, p[0], p[1]))
    x = relu(lin(x, p[2], p[3]))
    x = relu(lin(x, p[4], p[5]))
    x = relu(lin(x, p[6], p[7]))
    x = relu(lin(jnp.concatenate([x, ep], -1), p[8], p[9]))
    x = relu(lin(x, p[10], p[11]))
    x = relu(lin(x, p[12], p[13]))
    x = lin(x, p[14], p[15])
    x = lin(x, p[16], p[17])
    sigma = relu(x[:, -1])
    feats = x[:, :-1]
    h = relu(lin(jnp.concatenate([feats, ed], -1), p[18], p[19]))
    rgb = jax.nn.sigmoid(lin(h, p[20], p[21]))
    return rgb, sigma


if __name__ == "__main__":
    key = jax.random.PRNGKey(0)
    kp, kd, kparams = jax.random.split(key, 3)

    N = 256  # small batch of rays
    pos = jax.random.uniform(kp, (N, 3), jnp.float32, -1.0, 1.0)
    direction = jax.random.uniform(kd, (N, 3), jnp.float32, -1.0, 1.0)
    params = init_params(kparams)

    rgb, sigma = nerf_forward(pos, direction, params)
    jax.block_until_ready((rgb, sigma))

    assert rgb.shape == (N, 3) and sigma.shape == (N,)

    # Tight check against a reference using the same bf16-matmul precision.
    rgb_m, sigma_m = nerf_forward_ref(pos, direction, params, use_bf16=True)
    assert jnp.allclose(rgb, rgb_m, atol=5e-3, rtol=5e-3)
    assert jnp.allclose(sigma, sigma_m, atol=5e-3, rtol=5e-3)

    # Loose check against the full-f32 reference (bf16 MXU precision deviation).
    rgb_f, sigma_f = nerf_forward_ref(pos, direction, params, use_bf16=False)
    assert jnp.allclose(rgb, rgb_f, atol=8e-2, rtol=8e-2)
    assert jnp.allclose(sigma, sigma_f, atol=8e-2, rtol=8e-2)

    print("KERNEL_OK")
</pallas_src>

<mosaic_0001>
module attributes {stable_mosaic.version = 11 : i64} {
  func.func @_nerf_kernel(%arg0: i32, %arg1: memref<256x63xbf16, #tpu.memory_space<vmem>>, %arg2: memref<256x27xbf16, #tpu.memory_space<vmem>>, %arg3: memref<63x256xbf16, #tpu.memory_space<vmem>>, %arg4: memref<1x256xf32, #tpu.memory_space<vmem>>, %arg5: memref<256x256xbf16, #tpu.memory_space<vmem>>, %arg6: memref<1x256xf32, #tpu.memory_space<vmem>>, %arg7: memref<256x256xbf16, #tpu.memory_space<vmem>>, %arg8: memref<1x256xf32, #tpu.memory_space<vmem>>, %arg9: memref<256x256xbf16, #tpu.memory_space<vmem>>, %arg10: memref<1x256xf32, #tpu.memory_space<vmem>>, %arg11: memref<256x256xbf16, #tpu.memory_space<vmem>>, %arg12: memref<63x256xbf16, #tpu.memory_space<vmem>>, %arg13: memref<1x256xf32, #tpu.memory_space<vmem>>, %arg14: memref<256x256xbf16, #tpu.memory_space<vmem>>, %arg15: memref<1x256xf32, #tpu.memory_space<vmem>>, %arg16: memref<256x256xbf16, #tpu.memory_space<vmem>>, %arg17: memref<1x256xf32, #tpu.memory_space<vmem>>, %arg18: memref<256x256xbf16, #tpu.memory_space<vmem>>, %arg19: memref<1x256xf32, #tpu.memory_space<vmem>>, %arg20: memref<256x256xbf16, #tpu.memory_space<vmem>>, %arg21: memref<1x256xf32, #tpu.memory_space<vmem>>, %arg22: memref<256x1xbf16, #tpu.memory_space<vmem>>, %arg23: memref<1x1xf32, #tpu.memory_space<vmem>>, %arg24: memref<256x128xbf16, #tpu.memory_space<vmem>>, %arg25: memref<27x128xbf16, #tpu.memory_space<vmem>>, %arg26: memref<1x128xf32, #tpu.memory_space<vmem>>, %arg27: memref<128x3xbf16, #tpu.memory_space<vmem>>, %arg28: memref<1x3xf32, #tpu.memory_space<vmem>>, %arg29: memref<256x4xf32, #tpu.memory_space<vmem>>) attributes {dimension_semantics = [#tpu.dimension_semantics<parallel>], iteration_bounds = array<i64: 1>, scalar_prefetch = 0 : i64, scratch_operands = 0 : i64, tpu.core_type = #tpu.core_type<tc>, window_params = [{transform_indices = @transform_0, window_bounds = array<i64: 256, 63>}, {transform_indices = @transform_1, window_bounds = array<i64: 256, 27>}, {pipeline_mode = #tpu.pipeline_mode<synchronous>, transform_indices = @transform_2, window_bounds = array<i64: 63, 256>}, {pipeline_mode = #tpu.pipeline_mode<synchronous>, transform_indices = @transform_3, window_bounds = array<i64: 1, 256>}, {pipeline_mode = #tpu.pipeline_mode<synchronous>, transform_indices = @transform_4, window_bounds = array<i64: 256, 256>}, {pipeline_mode = #tpu.pipeline_mode<synchronous>, transform_indices = @transform_5, window_bounds = array<i64: 1, 256>}, {pipeline_mode = #tpu.pipeline_mode<synchronous>, transform_indices = @transform_6, window_bounds = array<i64: 256, 256>}, {pipeline_mode = #tpu.pipeline_mode<synchronous>, transform_indices = @transform_7, window_bounds = array<i64: 1, 256>}, {pipeline_mode = #tpu.pipeline_mode<synchronous>, transform_indices = @transform_8, window_bounds = array<i64: 256, 256>}, {pipeline_mode = #tpu.pipeline_mode<synchronous>, transform_indices = @transform_9, window_bounds = array<i64: 1, 256>}, {pipeline_mode = #tpu.pipeline_mode<synchronous>, transform_indices = @transform_10, window_bounds = array<i64: 256, 256>}, {pipeline_mode = #tpu.pipeline_mode<synchronous>, transform_indices = @transform_11, window_bounds = array<i64: 63, 256>}, {pipeline_mode = #tpu.pipeline_mode<synchronous>, transform_indices = @transform_12, window_bounds = array<i64: 1, 256>}, {pipeline_mode = #tpu.pipeline_mode<synchronous>, transform_indices = @transform_13, window_bounds = array<i64: 256, 256>}, {pipeline_mode = #tpu.pipeline_mode<synchronous>, transform_indices = @transform_14, window_bounds = array<i64: 1, 256>}, {pipeline_mode = #tpu.pipeline_mode<synchronous>, transform_indices = @transform_15, window_bounds = array<i64: 256, 256>}, {pipeline_mode = #tpu.pipeline_mode<synchronous>, transform_indices = @transform_16, window_bounds = array<i64: 1, 256>}, {pipeline_mode = #tpu.pipeline_mode<synchronous>, transform_indices = @transform_17, window_bounds = array<i64: 256, 256>}, {pipeline_mode = #tpu.pipeline_mode<synchronous>, transform_indices = @transform_18, window_bounds = array<i64: 1, 256>}, {pipeline_mode = #tpu.pipeline_mode<synchronous>, transform_indices = @transform_19, window_bounds = array<i64: 256, 256>}, {pipeline_mode = #tpu.pipeline_mode<synchronous>, transform_indices = @transform_20, window_bounds = array<i64: 1, 256>}, {pipeline_mode = #tpu.pipeline_mode<synchronous>, transform_indices = @transform_21, window_bounds = array<i64: 256, 1>}, {pipeline_mode = #tpu.pipeline_mode<synchronous>, transform_indices = @transform_22, window_bounds = array<i64: 1, 1>}, {pipeline_mode = #tpu.pipeline_mode<synchronous>, transform_indices = @transform_23, window_bounds = array<i64: 256, 128>}, {pipeline_mode = #tpu.pipeline_mode<synchronous>, transform_indices = @transform_24, window_bounds = array<i64: 27, 128>}, {pipeline_mode = #tpu.pipeline_mode<synchronous>, transform_indices = @transform_25, window_bounds = array<i64: 1, 128>}, {pipeline_mode = #tpu.pipeline_mode<synchronous>, transform_indices = @transform_26, window_bounds = array<i64: 128, 3>}, {pipeline_mode = #tpu.pipeline_mode<synchronous>, transform_indices = @transform_27, window_bounds = array<i64: 1, 3>}, {transform_indices = @transform_28, window_bounds = array<i64: 256, 4>}]} {
    %c0 = arith.constant 0 : index
    %c0_0 = arith.constant 0 : index
    %0 = vector.load %arg1[%c0, %c0_0] : memref<256x63xbf16, #tpu.memory_space<vmem>>, vector<256x63xbf16>
    %c0_1 = arith.constant 0 : index
    %c0_2 = arith.constant 0 : index
    %1 = vector.load %arg2[%c0_1, %c0_2] : memref<256x27xbf16, #tpu.memory_space<vmem>>, vector<256x27xbf16>
    %c0_3 = arith.constant 0 : index
    %c0_4 = arith.constant 0 : index
    %2 = vector.load %arg3[%c0_3, %c0_4] : memref<63x256xbf16, #tpu.memory_space<vmem>>, vector<63x256xbf16>
    %cst = arith.constant dense<0.000000e+00> : vector<256x256xf32>
    %3 = tpu.matmul %0, %2, %cst {dimension_numbers = #tpu.dot_dimension_numbers<[1], [0], [0], [1], [0, 0, 1, 1], [], []>} : vector<256x63xbf16>, vector<63x256xbf16>, vector<256x256xf32> -> vector<256x256xf32>
    %c0_5 = arith.constant 0 : index
    %c0_6 = arith.constant 0 : index
    %4 = vector.load %arg4[%c0_5, %c0_6] : memref<1x256xf32, #tpu.memory_space<vmem>>, vector<1x256xf32>
    %5 = vector.broadcast %4 : vector<1x256xf32> to vector<256x256xf32>
    %6 = arith.addf %3, %5 : vector<256x256xf32>
    %cst_7 = arith.constant 0.000000e+00 : f32
    %7 = vector.broadcast %cst_7 : f32 to vector<256x256xf32>
    %8 = arith.maximumf %6, %7 : vector<256x256xf32>
    %c0_8 = arith.constant 0 : index
    %c0_9 = arith.constant 0 : index
    %9 = vector.load %arg5[%c0_8, %c0_9] : memref<256x256xbf16, #tpu.memory_space<vmem>>, vector<256x256xbf16>
    %10 = arith.truncf %8 : vector<256x256xf32> to vector<256x256xbf16>
    %cst_10 = arith.constant dense<0.000000e+00> : vector<256x256xf32>
    %11 = tpu.matmul %10, %9, %cst_10 {dimension_numbers = #tpu.dot_dimension_numbers<[1], [0], [0], [1], [0, 0, 1, 1], [], []>} : vector<256x256xbf16>, vector<256x256xbf16>, vector<256x256xf32> -> vector<256x256xf32>
    %c0_11 = arith.constant 0 : index
    %c0_12 = arith.constant 0 : index
    %12 = vector.load %arg6[%c0_11, %c0_12] : memref<1x256xf32, #tpu.memory_space<vmem>>, vector<1x256xf32>
    %13 = vector.broadcast %12 : vector<1x256xf32> to vector<256x256xf32>
    %14 = arith.addf %11, %13 : vector<256x256xf32>
    %cst_13 = arith.constant 0.000000e+00 : f32
    %15 = vector.broadcast %cst_13 : f32 to vector<256x256xf32>
    %16 = arith.maximumf %14, %15 : vector<256x256xf32>
    %c0_14 = arith.constant 0 : index
    %c0_15 = arith.constant 0 : index
    %17 = vector.load %arg7[%c0_14, %c0_15] : memref<256x256xbf16, #tpu.memory_space<vmem>>, vector<256x256xbf16>
    %18 = arith.truncf %16 : vector<256x256xf32> to vector<256x256xbf16>
    %cst_16 = arith.constant dense<0.000000e+00> : vector<256x256xf32>
    %19 = tpu.matmul %18, %17, %cst_16 {dimension_numbers = #tpu.dot_dimension_numbers<[1], [0], [0], [1], [0, 0, 1, 1], [], []>} : vector<256x256xbf16>, vector<256x256xbf16>, vector<256x256xf32> -> vector<256x256xf32>
    %c0_17 = arith.constant 0 : index
    %c0_18 = arith.constant 0 : index
    %20 = vector.load %arg8[%c0_17, %c0_18] : memref<1x256xf32, #tpu.memory_space<vmem>>, vector<1x256xf32>
    %21 = vector.broadcast %20 : vector<1x256xf32> to vector<256x256xf32>
    %22 = arith.addf %19, %21 : vector<256x256xf32>
    %cst_19 = arith.constant 0.000000e+00 : f32
    %23 = vector.broadcast %cst_19 : f32 to vector<256x256xf32>
    %24 = arith.maximumf %22, %23 : vector<256x256xf32>
    %c0_20 = arith.constant 0 : index
    %c0_21 = arith.constant 0 : index
    %25 = vector.load %arg9[%c0_20, %c0_21] : memref<256x256xbf16, #tpu.memory_space<vmem>>, vector<256x256xbf16>
    %26 = arith.truncf %24 : vector<256x256xf32> to vector<256x256xbf16>
    %cst_22 = arith.constant dense<0.000000e+00> : vector<256x256xf32>
    %27 = tpu.matmul %26, %25, %cst_22 {dimension_numbers = #tpu.dot_dimension_numbers<[1], [0], [0], [1], [0, 0, 1, 1], [], []>} : vector<256x256xbf16>, vector<256x256xbf16>, vector<256x256xf32> -> vector<256x256xf32>
    %c0_23 = arith.constant 0 : index
    %c0_24 = arith.constant 0 : index
    %28 = vector.load %arg10[%c0_23, %c0_24] : memref<1x256xf32, #tpu.memory_space<vmem>>, vector<1x256xf32>
    %29 = vector.broadcast %28 : vector<1x256xf32> to vector<256x256xf32>
    %30 = arith.addf %27, %29 : vector<256x256xf32>
    %cst_25 = arith.constant 0.000000e+00 : f32
    %31 = vector.broadcast %cst_25 : f32 to vector<256x256xf32>
    %32 = arith.maximumf %30, %31 : vector<256x256xf32>
    %c0_26 = arith.constant 0 : index
    %c0_27 = arith.constant 0 : index
    %33 = vector.load %arg11[%c0_26, %c0_27] : memref<256x256xbf16, #tpu.memory_space<vmem>>, vector<256x256xbf16>
    %c0_28 = arith.constant 0 : index
    %c0_29 = arith.constant 0 : index
    %34 = vector.load %arg12[%c0_28, %c0_29] : memref<63x256xbf16, #tpu.memory_space<vmem>>, vector<63x256xbf16>
    %35 = arith.truncf %32 : vector<256x256xf32> to vector<256x256xbf16>
    %cst_30 = arith.constant dense<0.000000e+00> : vector<256x256xf32>
    %36 = tpu.matmul %35, %33, %cst_30 {dimension_numbers = #tpu.dot_dimension_numbers<[1], [0], [0], [1], [0, 0, 1, 1], [], []>} : vector<256x256xbf16>, vector<256x256xbf16>, vector<256x256xf32> -> vector<256x256xf32>
    %cst_31 = arith.constant dense<0.000000e+00> : vector<256x256xf32>
    %37 = tpu.matmul %0, %34, %cst_31 {dimension_numbers = #tpu.dot_dimension_numbers<[1], [0], [0], [1], [0, 0, 1, 1], [], []>} : vector<256x63xbf16>, vector<63x256xbf16>, vector<256x256xf32> -> vector<256x256xf32>
    %38 = arith.addf %36, %37 : vector<256x256xf32>
    %c0_32 = arith.constant 0 : index
    %c0_33 = arith.constant 0 : index
    %39 = vector.load %arg13[%c0_32, %c0_33] : memref<1x256xf32, #tpu.memory_space<vmem>>, vector<1x256xf32>
    %40 = vector.broadcast %39 : vector<1x256xf32> to vector<256x256xf32>
    %41 = arith.addf %38, %40 : vector<256x256xf32>
    %cst_34 = arith.constant 0.000000e+00 : f32
    %42 = vector.broadcast %cst_34 : f32 to vector<256x256xf32>
    %43 = arith.maximumf %41, %42 : vector<256x256xf32>
    %c0_35 = arith.constant 0 : index
    %c0_36 = arith.constant 0 : index
    %44 = vector.load %arg14[%c0_35, %c0_36] : memref<256x256xbf16, #tpu.memory_space<vmem>>, vector<256x256xbf16>
    %45 = arith.truncf %43 : vector<256x256xf32> to vector<256x256xbf16>
    %cst_37 = arith.constant dense<0.000000e+00> : vector<256x256xf32>
    %46 = tpu.matmul %45, %44, %cst_37 {dimension_numbers = #tpu.dot_dimension_numbers<[1], [0], [0], [1], [0, 0, 1, 1], [], []>} : vector<256x256xbf16>, vector<256x256xbf16>, vector<256x256xf32> -> vector<256x256xf32>
    %c0_38 = arith.constant 0 : index
    %c0_39 = arith.constant 0 : index
    %47 = vector.load %arg15[%c0_38, %c0_39] : memref<1x256xf32, #tpu.memory_space<vmem>>, vector<1x256xf32>
    %48 = vector.broadcast %47 : vector<1x256xf32> to vector<256x256xf32>
    %49 = arith.addf %46, %48 : vector<256x256xf32>
    %cst_40 = arith.constant 0.000000e+00 : f32
    %50 = vector.broadcast %cst_40 : f32 to vector<256x256xf32>
    %51 = arith.maximumf %49, %50 : vector<256x256xf32>
    %c0_41 = arith.constant 0 : index
    %c0_42 = arith.constant 0 : index
    %52 = vector.load %arg16[%c0_41, %c0_42] : memref<256x256xbf16, #tpu.memory_space<vmem>>, vector<256x256xbf16>
    %53 = arith.truncf %51 : vector<256x256xf32> to vector<256x256xbf16>
    %cst_43 = arith.constant dense<0.000000e+00> : vector<256x256xf32>
    %54 = tpu.matmul %53, %52, %cst_43 {dimension_numbers = #tpu.dot_dimension_numbers<[1], [0], [0], [1], [0, 0, 1, 1], [], []>} : vector<256x256xbf16>, vector<256x256xbf16>, vector<256x256xf32> -> vector<256x256xf32>
    %c0_44 = arith.constant 0 : index
    %c0_45 = arith.constant 0 : index
    %55 = vector.load %arg17[%c0_44, %c0_45] : memref<1x256xf32, #tpu.memory_space<vmem>>, vector<1x256xf32>
    %56 = vector.broadcast %55 : vector<1x256xf32> to vector<256x256xf32>
    %57 = arith.addf %54, %56 : vector<256x256xf32>
    %cst_46 = arith.constant 0.000000e+00 : f32
    %58 = vector.broadcast %cst_46 : f32 to vector<256x256xf32>
    %59 = arith.maximumf %57, %58 : vector<256x256xf32>
    %c0_47 = arith.constant 0 : index
    %c0_48 = arith.constant 0 : index
    %60 = vector.load %arg18[%c0_47, %c0_48] : memref<256x256xbf16, #tpu.memory_space<vmem>>, vector<256x256xbf16>
    %61 = arith.truncf %59 : vector<256x256xf32> to vector<256x256xbf16>
    %cst_49 = arith.constant dense<0.000000e+00> : vector<256x256xf32>
    %62 = tpu.matmul %61, %60, %cst_49 {dimension_numbers = #tpu.dot_dimension_numbers<[1], [0], [0], [1], [0, 0, 1, 1], [], []>} : vector<256x256xbf16>, vector<256x256xbf16>, vector<256x256xf32> -> vector<256x256xf32>
    %c0_50 = arith.constant 0 : index
    %c0_51 = arith.constant 0 : index
    %63 = vector.load %arg19[%c0_50, %c0_51] : memref<1x256xf32, #tpu.memory_space<vmem>>, vector<1x256xf32>
    %64 = vector.broadcast %63 : vector<1x256xf32> to vector<256x256xf32>
    %65 = arith.addf %62, %64 : vector<256x256xf32>
    %c0_52 = arith.constant 0 : index
    %c0_53 = arith.constant 0 : index
    %66 = vector.load %arg20[%c0_52, %c0_53] : memref<256x256xbf16, #tpu.memory_space<vmem>>, vector<256x256xbf16>
    %67 = arith.truncf %65 : vector<256x256xf32> to vector<256x256xbf16>
    %cst_54 = arith.constant dense<0.000000e+00> : vector<256x256xf32>
    %68 = tpu.matmul %67, %66, %cst_54 {dimension_numbers = #tpu.dot_dimension_numbers<[1], [0], [0], [1], [0, 0, 1, 1], [], []>} : vector<256x256xbf16>, vector<256x256xbf16>, vector<256x256xf32> -> vector<256x256xf32>
    %c0_55 = arith.constant 0 : index
    %c0_56 = arith.constant 0 : index
    %69 = vector.load %arg21[%c0_55, %c0_56] : memref<1x256xf32, #tpu.memory_space<vmem>>, vector<1x256xf32>
    %70 = vector.broadcast %69 : vector<1x256xf32> to vector<256x256xf32>
    %71 = arith.addf %68, %70 : vector<256x256xf32>
    %c0_57 = arith.constant 0 : index
    %c0_58 = arith.constant 0 : index
    %72 = vector.load %arg22[%c0_57, %c0_58] : memref<256x1xbf16, #tpu.memory_space<vmem>>, vector<256x1xbf16>
    %73 = arith.truncf %65 : vector<256x256xf32> to vector<256x256xbf16>
    %cst_59 = arith.constant dense<0.000000e+00> : vector<256x1xf32>
    %74 = tpu.matmul %73, %72, %cst_59 {dimension_numbers = #tpu.dot_dimension_numbers<[1], [0], [0], [1], [0, 0, 1, 1], [], []>} : vector<256x256xbf16>, vector<256x1xbf16>, vector<256x1xf32> -> vector<256x1xf32>
    %c0_60 = arith.constant 0 : index
    %c0_61 = arith.constant 0 : index
    %75 = vector.load %arg23[%c0_60, %c0_61] : memref<1x1xf32, #tpu.memory_space<vmem>>, vector<1x1xf32>
    %76 = vector.broadcast %75 : vector<1x1xf32> to vector<256x1xf32>
    %77 = arith.addf %74, %76 : vector<256x1xf32>
    %cst_62 = arith.constant 0.000000e+00 : f32
    %78 = vector.broadcast %cst_62 : f32 to vector<256x1xf32>
    %79 = arith.maximumf %77, %78 : vector<256x1xf32>
    %c0_63 = arith.constant 0 : index
    %c0_64 = arith.constant 0 : index
    %80 = vector.load %arg24[%c0_63, %c0_64] : memref<256x128xbf16, #tpu.memory_space<vmem>>, vector<256x128xbf16>
    %c0_65 = arith.constant 0 : index
    %c0_66 = arith.constant 0 : index
    %81 = vector.load %arg25[%c0_65, %c0_66] : memref<27x128xbf16, #tpu.memory_space<vmem>>, vector<27x128xbf16>
    %82 = arith.truncf %71 : vector<256x256xf32> to vector<256x256xbf16>
    %cst_67 = arith.constant dense<0.000000e+00> : vector<256x128xf32>
    %83 = tpu.matmul %82, %80, %cst_67 {dimension_numbers = #tpu.dot_dimension_numbers<[1], [0], [0], [1], [0, 0, 1, 1], [], []>} : vector<256x256xbf16>, vector<256x128xbf16>, vector<256x128xf32> -> vector<256x128xf32>
    %cst_68 = arith.constant dense<0.000000e+00> : vector<256x128xf32>
    %84 = tpu.matmul %1, %81, %cst_68 {dimension_numbers = #tpu.dot_dimension_numbers<[1], [0], [0], [1], [0, 0, 1, 1], [], []>} : vector<256x27xbf16>, vector<27x128xbf16>, vector<256x128xf32> -> vector<256x128xf32>
    %85 = arith.addf %83, %84 : vector<256x128xf32>
    %c0_69 = arith.constant 0 : index
    %c0_70 = arith.constant 0 : index
    %86 = vector.load %arg26[%c0_69, %c0_70] : memref<1x128xf32, #tpu.memory_space<vmem>>, vector<1x128xf32>
    %87 = vector.broadcast %86 : vector<1x128xf32> to vector<256x128xf32>
    %88 = arith.addf %85, %87 : vector<256x128xf32>
    %cst_71 = arith.constant 0.000000e+00 : f32
    %89 = vector.broadcast %cst_71 : f32 to vector<256x128xf32>
    %90 = arith.maximumf %88, %89 : vector<256x128xf32>
    %c0_72 = arith.constant 0 : index
    %c0_73 = arith.constant 0 : index
    %91 = vector.load %arg27[%c0_72, %c0_73] : memref<128x3xbf16, #tpu.memory_space<vmem>>, vector<128x3xbf16>
    %92 = arith.truncf %90 : vector<256x128xf32> to vector<256x128xbf16>
    %cst_74 = arith.constant dense<0.000000e+00> : vector<256x3xf32>
    %93 = tpu.matmul %92, %91, %cst_74 {dimension_numbers = #tpu.dot_dimension_numbers<[1], [0], [0], [1], [0, 0, 1, 1], [], []>} : vector<256x128xbf16>, vector<128x3xbf16>, vector<256x3xf32> -> vector<256x3xf32>
    %c0_75 = arith.constant 0 : index
    %c0_76 = arith.constant 0 : index
    %94 = vector.load %arg28[%c0_75, %c0_76] : memref<1x3xf32, #tpu.memory_space<vmem>>, vector<1x3xf32>
    %95 = vector.broadcast %94 : vector<1x3xf32> to vector<256x3xf32>
    %96 = arith.addf %93, %95 : vector<256x3xf32>
    %97 = arith.negf %96 : vector<256x3xf32>
    %98 = math.exp %97 : vector<256x3xf32>
    %cst_77 = arith.constant 1.000000e+00 : f32
    %99 = vector.broadcast %cst_77 : f32 to vector<256x3xf32>
    %100 = arith.addf %99, %98 : vector<256x3xf32>
    %101 = arith.divf %99, %100 : vector<256x3xf32>
    %c0_78 = arith.constant 0 : index
    %c0_79 = arith.constant 0 : index
    %102 = vector.load %arg29[%c0_78, %c0_79] : memref<256x4xf32, #tpu.memory_space<vmem>>, vector<256x3xf32>
    tpu.vector_store %arg29[%c0_78, %c0_79], %101 {strides = array<i32>} : memref<256x4xf32, #tpu.memory_space<vmem>>, vector<256x3xf32>,
    %c0_80 = arith.constant 0 : index
    %c3 = arith.constant 3 : index
    %103 = vector.load %arg29[%c0_80, %c3] : memref<256x4xf32, #tpu.memory_space<vmem>>, vector<256x1xf32>
    tpu.vector_store %arg29[%c0_80, %c3], %79 {strides = array<i32>} : memref<256x4xf32, #tpu.memory_space<vmem>>, vector<256x1xf32>,
    return
  }
  func.func @transform_0(%arg0: i32) -> (i32, i32) {
    %c0_i32 = arith.constant 0 : i32
    %c0_i32_0 = arith.constant 0 : i32
    return %arg0, %c0_i32 : i32, i32
  }
  func.func @transform_1(%arg0: i32) -> (i32, i32) {
    %c0_i32 = arith.constant 0 : i32
    %c0_i32_0 = arith.constant 0 : i32
    return %arg0, %c0_i32 : i32, i32
  }
  func.func @transform_2(%arg0: i32) -> (i32, i32) {
    %c0_i32 = arith.constant 0 : i32
    %c0_i32_0 = arith.constant 0 : i32
    %c0_i32_1 = arith.constant 0 : i32
    return %c0_i32, %c0_i32_0 : i32, i32
  }
  func.func @transform_3(%arg0: i32) -> (i32, i32) {
    %c0_i32 = arith.constant 0 : i32
    %c0_i32_0 = arith.constant 0 : i32
    %c0_i32_1 = arith.constant 0 : i32
    return %c0_i32, %c0_i32_0 : i32, i32
  }
  func.func @transform_4(%arg0: i32) -> (i32, i32) {
    %c0_i32 = arith.constant 0 : i32
    %c0_i32_0 = arith.constant 0 : i32
    %c0_i32_1 = arith.constant 0 : i32
    return %c0_i32, %c0_i32_0 : i32, i32
  }
  func.func @transform_5(%arg0: i32) -> (i32, i32) {
    %c0_i32 = arith.constant 0 : i32
    %c0_i32_0 = arith.constant 0 : i32
    %c0_i32_1 = arith.constant 0 : i32
    return %c0_i32, %c0_i32_0 : i32, i32
  }
  func.func @transform_6(%arg0: i32) -> (i32, i32) {
    %c0_i32 = arith.constant 0 : i32
    %c0_i32_0 = arith.constant 0 : i32
    %c0_i32_1 = arith.constant 0 : i32
    return %c0_i32, %c0_i32_0 : i32, i32
  }
  func.func @transform_7(%arg0: i32) -> (i32, i32) {
    %c0_i32 = arith.constant 0 : i32
    %c0_i32_0 = arith.constant 0 : i32
    %c0_i32_1 = arith.constant 0 : i32
    return %c0_i32, %c0_i32_0 : i32, i32
  }
  func.func @transform_8(%arg0: i32) -> (i32, i32) {
    %c0_i32 = arith.constant 0 : i32
    %c0_i32_0 = arith.constant 0 : i32
    %c0_i32_1 = arith.constant 0 : i32
    return %c0_i32, %c0_i32_0 : i32, i32
  }
  func.func @transform_9(%arg0: i32) -> (i32, i32) {
    %c0_i32 = arith.constant 0 : i32
    %c0_i32_0 = arith.constant 0 : i32
    %c0_i32_1 = arith.constant 0 : i32
    return %c0_i32, %c0_i32_0 : i32, i32
  }
  func.func @transform_10(%arg0: i32) -> (i32, i32) {
    %c0_i32 = arith.constant 0 : i32
    %c0_i32_0 = arith.constant 0 : i32
    %c0_i32_1 = arith.constant 0 : i32
    return %c0_i32, %c0_i32_0 : i32, i32
  }
  func.func @transform_11(%arg0: i32) -> (i32, i32) {
    %c0_i32 = arith.constant 0 : i32
    %c0_i32_0 = arith.constant 0 : i32
    %c0_i32_1 = arith.constant 0 : i32
    return %c0_i32, %c0_i32_0 : i32, i32
  }
  func.func @transform_12(%arg0: i32) -> (i32, i32) {
    %c0_i32 = arith.constant 0 : i32
    %c0_i32_0 = arith.constant 0 : i32
    %c0_i32_1 = arith.constant 0 : i32
    return %c0_i32, %c0_i32_0 : i32, i32
  }
  func.func @transform_13(%arg0: i32) -> (i32, i32) {
    %c0_i32 = arith.constant 0 : i32
    %c0_i32_0 = arith.constant 0 : i32
    %c0_i32_1 = arith.constant 0 : i32
    return %c0_i32, %c0_i32_0 : i32, i32
  }
  func.func @transform_14(%arg0: i32) -> (i32, i32) {
    %c0_i32 = arith.constant 0 : i32
    %c0_i32_0 = arith.constant 0 : i32
    %c0_i32_1 = arith.constant 0 : i32
    return %c0_i32, %c0_i32_0 : i32, i32
  }
  func.func @transform_15(%arg0: i32) -> (i32, i32) {
    %c0_i32 = arith.constant 0 : i32
    %c0_i32_0 = arith.constant 0 : i32
    %c0_i32_1 = arith.constant 0 : i32
    return %c0_i32, %c0_i32_0 : i32, i32
  }
  func.func @transform_16(%arg0: i32) -> (i32, i32) {
    %c0_i32 = arith.constant 0 : i32
    %c0_i32_0 = arith.constant 0 : i32
    %c0_i32_1 = arith.constant 0 : i32
    return %c0_i32, %c0_i32_0 : i32, i32
  }
  func.func @transform_17(%arg0: i32) -> (i32, i32) {
    %c0_i32 = arith.constant 0 : i32
    %c0_i32_0 = arith.constant 0 : i32
    %c0_i32_1 = arith.constant 0 : i32
    return %c0_i32, %c0_i32_0 : i32, i32
  }
  func.func @transform_18(%arg0: i32) -> (i32, i32) {
    %c0_i32 = arith.constant 0 : i32
    %c0_i32_0 = arith.constant 0 : i32
    %c0_i32_1 = arith.constant 0 : i32
    return %c0_i32, %c0_i32_0 : i32, i32
  }
  func.func @transform_19(%arg0: i32) -> (i32, i32) {
    %c0_i32 = arith.constant 0 : i32
    %c0_i32_0 = arith.constant 0 : i32
    %c0_i32_1 = arith.constant 0 : i32
    return %c0_i32, %c0_i32_0 : i32, i32
  }
  func.func @transform_20(%arg0: i32) -> (i32, i32) {
    %c0_i32 = arith.constant 0 : i32
    %c0_i32_0 = arith.constant 0 : i32
    %c0_i32_1 = arith.constant 0 : i32
    return %c0_i32, %c0_i32_0 : i32, i32
  }
  func.func @transform_21(%arg0: i32) -> (i32, i32) {
    %c0_i32 = arith.constant 0 : i32
    %c0_i32_0 = arith.constant 0 : i32
    %c0_i32_1 = arith.constant 0 : i32
    return %c0_i32, %c0_i32_0 : i32, i32
  }
  func.func @transform_22(%arg0: i32) -> (i32, i32) {
    %c0_i32 = arith.constant 0 : i32
    %c0_i32_0 = arith.constant 0 : i32
    %c0_i32_1 = arith.constant 0 : i32
    return %c0_i32, %c0_i32_0 : i32, i32
  }
  func.func @transform_23(%arg0: i32) -> (i32, i32) {
    %c0_i32 = arith.constant 0 : i32
    %c0_i32_0 = arith.constant 0 : i32
    %c0_i32_1 = arith.constant 0 : i32
    return %c0_i32, %c0_i32_0 : i32, i32
  }
  func.func @transform_24(%arg0: i32) -> (i32, i32) {
    %c0_i32 = arith.constant 0 : i32
    %c0_i32_0 = arith.constant 0 : i32
    %c0_i32_1 = arith.constant 0 : i32
    return %c0_i32, %c0_i32_0 : i32, i32
  }
  func.func @transform_25(%arg0: i32) -> (i32, i32) {
    %c0_i32 = arith.constant 0 : i32
    %c0_i32_0 = arith.constant 0 : i32
    %c0_i32_1 = arith.constant 0 : i32
    return %c0_i32, %c0_i32_0 : i32, i32
  }
  func.func @transform_26(%arg0: i32) -> (i32, i32) {
    %c0_i32 = arith.constant 0 : i32
    %c0_i32_0 = arith.constant 0 : i32
    %c0_i32_1 = arith.constant 0 : i32
    return %c0_i32, %c0_i32_0 : i32, i32
  }
  func.func @transform_27(%arg0: i32) -> (i32, i32) {
    %c0_i32 = arith.constant 0 : i32
    %c0_i32_0 = arith.constant 0 : i32
    %c0_i32_1 = arith.constant 0 : i32
    return %c0_i32, %c0_i32_0 : i32, i32
  }
  func.func @transform_28(%arg0: i32) -> (i32, i32) {
    %c0_i32 = arith.constant 0 : i32
    %c0_i32_0 = arith.constant 0 : i32
    return %arg0, %c0_i32 : i32, i32
  }
}

</mosaic_0001>

<llo_original>
// kernel: nerf_forward.1
$region0: #{nerf_forward.1}
  #allocation0 [shape = 'u32[]', space=smem, size = 0x4, offset = 0x4, fixed_abs, tag = 'smem constant byte address 0x4 - core index']
  #allocation1 [shape = 'u32[72,128]{1,0:T(1,128)}', space=vmem, size = 0x9000, scoped, tag = 'internal scratch']
  #allocation2 [shape = 'f32[1,1]{1,0:T(1,128)S(1)}', space=vmem, size = 0x200, scoped, tag = 'scoped memory for nerf_forward.1']
  %s0 = inlined_call_operand.vmem [shape: bf16[256,63], index: 0, kind: input, shape index: {}]
  %s1 = inlined_call_operand.vmem [shape: bf16[256,27], index: 1, kind: input, shape index: {}]
  %s2 = inlined_call_operand.vmem [shape: bf16[63,256], index: 2, kind: input, shape index: {}]
  %s3 = inlined_call_operand.vmem [shape: f32[1,256], index: 3, kind: input, shape index: {}]
  %s4 = inlined_call_operand.vmem [shape: bf16[256,256], index: 4, kind: input, shape index: {}]
  %s5 = inlined_call_operand.vmem [shape: f32[1,256], index: 5, kind: input, shape index: {}]
  %s6 = inlined_call_operand.vmem [shape: bf16[256,256], index: 6, kind: input, shape index: {}]
  %s7 = inlined_call_operand.vmem [shape: f32[1,256], index: 7, kind: input, shape index: {}]
  %s8 = inlined_call_operand.vmem [shape: bf16[256,256], index: 8, kind: input, shape index: {}]
  %s9 = inlined_call_operand.vmem [shape: f32[1,256], index: 9, kind: input, shape index: {}]
  %s10 = inlined_call_operand.vmem [shape: bf16[256,256], index: 10, kind: input, shape index: {}]
  %s11 = inlined_call_operand.vmem [shape: bf16[63,256], index: 11, kind: input, shape index: {}]
  %s12 = inlined_call_operand.vmem [shape: f32[1,256], index: 12, kind: input, shape index: {}]
  %s13 = inlined_call_operand.vmem [shape: bf16[256,256], index: 13, kind: input, shape index: {}]
  %s14 = inlined_call_operand.vmem [shape: f32[1,256], index: 14, kind: input, shape index: {}]
  %s15 = inlined_call_operand.vmem [shape: bf16[256,256], index: 15, kind: input, shape index: {}]
  %s16 = inlined_call_operand.vmem [shape: f32[1,256], index: 16, kind: input, shape index: {}]
  %s17 = inlined_call_operand.vmem [shape: bf16[256,256], index: 17, kind: input, shape index: {}]
  %s18 = inlined_call_operand.vmem [shape: f32[1,256], index: 18, kind: input, shape index: {}]
  %s19 = inlined_call_operand.vmem [shape: bf16[256,256], index: 19, kind: input, shape index: {}]
  %s20 = inlined_call_operand.vmem [shape: f32[1,256], index: 20, kind: input, shape index: {}]
  %s21 = inlined_call_operand.vmem [shape: bf16[256,1], index: 21, kind: input, shape index: {}]
  %s22 = inlined_call_operand.<no memory space> [shape: f32[1,1], index: 22, kind: input, shape index: {}]
  %s23 = inlined_call_operand.vmem [shape: bf16[256,128], index: 23, kind: input, shape index: {}]
  %s24 = inlined_call_operand.vmem [shape: bf16[27,128], index: 24, kind: input, shape index: {}]
  %s25 = inlined_call_operand.vmem [shape: f32[1,128], index: 25, kind: input, shape index: {}]
  %s26 = inlined_call_operand.vmem [shape: bf16[128,3], index: 26, kind: input, shape index: {}]
  %s27 = inlined_call_operand.vmem [shape: f32[1,3], index: 27, kind: input, shape index: {}]
  %s28 = inlined_call_operand.vmem [shape: f32[256,4], index: 28, kind: output, shape index: {}]
  %s29 = sld [smem:[#allocation0]]
  $region122: #{nerf_forward.1} parent=0
    _
  %s31 = ssub.s32 1, %s29
  %s32 = scalar_select 0, %s31, %s29
  %v33 = vstv %s22
  %34 = vst [vmem:[#allocation2] sm:$0x1] %v33
  // Predicated region
  $region2: #{nerf_forward.1} parent=0 // pred_check
    _
  $region3: #{nerf_forward.1} parent=0 // pred_check_branch
    %36 = sbr.rel (0) target = $region5
  $region4: #{nerf_forward.1} parent=0 // pred_region
    _
  $region5: #{nerf_forward.1} parent=0 // pred_fallthru
    _
  // Predicated region
  $region6: #{nerf_forward.1} parent=0 // pred_check
    _
  $region7: #{nerf_forward.1} parent=0 // pred_check_branch
    %38 = sbr.rel (0) target = $region9
  $region8: #{nerf_forward.1} parent=0 // pred_region
    _
  $region9: #{nerf_forward.1} parent=0 // pred_fallthru
    _
  // Predicated region
  $region10: #{nerf_forward.1} parent=0 // pred_check
    _
  $region11: #{nerf_forward.1} parent=0 // pred_check_branch
    %40 = sbr.rel (0) target = $region13
  $region12: #{nerf_forward.1} parent=0 // pred_region
    _
  $region13: #{nerf_forward.1} parent=0 // pred_fallthru
    _
  // Predicated region
  $region14: #{nerf_forward.1} parent=0 // pred_check
    _
  $region15: #{nerf_forward.1} parent=0 // pred_check_branch
    %42 = sbr.rel (0) target = $region17
  $region16: #{nerf_forward.1} parent=0 // pred_region
    _
  $region17: #{nerf_forward.1} parent=0 // pred_fallthru
    _
  // Predicated region
  $region18: #{nerf_forward.1} parent=0 // pred_check
    _
  $region19: #{nerf_forward.1} parent=0 // pred_check_branch
    %44 = sbr.rel (0) target = $region21
  $region20: #{nerf_forward.1} parent=0 // pred_region
    _
  $region21: #{nerf_forward.1} parent=0 // pred_fallthru
    _
  // Predicated region
  $region22: #{nerf_forward.1} parent=0 // pred_check
    _
  $region23: #{nerf_forward.1} parent=0 // pred_check_branch
    %46 = sbr.rel (0) target = $region25
  $region24: #{nerf_forward.1} parent=0 // pred_region
    _
  $region25: #{nerf_forward.1} parent=0 // pred_fallthru
    _
  // Predicated region
  $region26: #{nerf_forward.1} parent=0 // pred_check
    _
  $region27: #{nerf_forward.1} parent=0 // pred_check_branch
    %48 = sbr.rel (0) target = $region29
  $region28: #{nerf_forward.1} parent=0 // pred_region
    _
  $region29: #{nerf_forward.1} parent=0 // pred_fallthru
    _
  // Predicated region
  $region30: #{nerf_forward.1} parent=0 // pred_check
    _
  $region31: #{nerf_forward.1} parent=0 // pred_check_branch
    %50 = sbr.rel (0) target = $region33
  $region32: #{nerf_forward.1} parent=0 // pred_region
    _
  $region33: #{nerf_forward.1} parent=0 // pred_fallthru
    _
  // Predicated region
  $region34: #{nerf_forward.1} parent=0 // pred_check
    _
  $region35: #{nerf_forward.1} parent=0 // pred_check_branch
    %52 = sbr.rel (0) target = $region37
  $region36: #{nerf_forward.1} parent=0 // pred_region
    _
  $region37: #{nerf_forward.1} parent=0 // pred_fallthru
    _
  // Predicated region
  $region38: #{nerf_forward.1} parent=0 // pred_check
    _
  $region39: #{nerf_forward.1} parent=0 // pred_check_branch
    %54 = sbr.rel (0) target = $region41
  $region40: #{nerf_forward.1} parent=0 // pred_region
    _
  $region41: #{nerf_forward.1} parent=0 // pred_fallthru
    _
  // Predicated region
  $region42: #{nerf_forward.1} parent=0 // pred_check
    _
  $region43: #{nerf_forward.1} parent=0 // pred_check_branch
    %56 = sbr.rel (0) target = $region45
  $region44: #{nerf_forward.1} parent=0 // pred_region
    _
  $region45: #{nerf_forward.1} parent=0 // pred_fallthru
    _
  // Predicated region
  $region46: #{nerf_forward.1} parent=0 // pred_check
    _
  $region47: #{nerf_forward.1} parent=0 // pred_check_branch
    %58 = sbr.rel (0) target = $region49
  $region48: #{nerf_forward.1} parent=0 // pred_region
    _
  $region49: #{nerf_forward.1} parent=0 // pred_fallthru
    _
  // Predicated region
  $region50: #{nerf_forward.1} parent=0 // pred_check
    _
  $region51: #{nerf_forward.1} parent=0 // pred_check_branch
    %60 = sbr.rel (0) target = $region53
  $region52: #{nerf_forward.1} parent=0 // pred_region
    _
  $region53: #{nerf_forward.1} parent=0 // pred_fallthru
    _
  // Predicated region
  $region54: #{nerf_forward.1} parent=0 // pred_check
    _
  $region55: #{nerf_forward.1} parent=0 // pred_check_branch
    %62 = sbr.rel (0) target = $region57
  $region56: #{nerf_forward.1} parent=0 // pred_region
    _
  $region57: #{nerf_forward.1} parent=0 // pred_fallthru
    _
  // Predicated region
  $region58: #{nerf_forward.1} parent=0 // pred_check
    _
  $region59: #{nerf_forward.1} parent=0 // pred_check_branch
    %64 = sbr.rel (0) target = $region61
  $region60: #{nerf_forward.1} parent=0 // pred_region
    _
  $region61: #{nerf_forward.1} parent=0 // pred_fallthru
    _
  // Predicated region
  $region62: #{nerf_forward.1} parent=0 // pred_check
    _
  $region63: #{nerf_forward.1} parent=0 // pred_check_branch
    %66 = sbr.rel (0) target = $region65
  $region64: #{nerf_forward.1} parent=0 // pred_region
    _
  $region65: #{nerf_forward.1} parent=0 // pred_fallthru
    _
  // Predicated region
  $region66: #{nerf_forward.1} parent=0 // pred_check
    _
  $region67: #{nerf_forward.1} parent=0 // pred_check_branch
    %68 = sbr.rel (0) target = $region69
  $region68: #{nerf_forward.1} parent=0 // pred_region
    _
  $region69: #{nerf_forward.1} parent=0 // pred_fallthru
    _
  // Predicated region
  $region70: #{nerf_forward.1} parent=0 // pred_check
    _
  $region71: #{nerf_forward.1} parent=0 // pred_check_branch
    %70 = sbr.rel (0) target = $region73
  $region72: #{nerf_forward.1} parent=0 // pred_region
    _
  $region73: #{nerf_forward.1} parent=0 // pred_fallthru
    _
  // Predicated region
  $region74: #{nerf_forward.1} parent=0 // pred_check
    _
  $region75: #{nerf_forward.1} parent=0 // pred_check_branch
    %72 = sbr.rel (0) target = $region77
  $region76: #{nerf_forward.1} parent=0 // pred_region
    _
  $region77: #{nerf_forward.1} parent=0 // pred_fallthru
    _
  // Predicated region
  $region78: #{nerf_forward.1} parent=0 // pred_check
    _
  $region79: #{nerf_forward.1} parent=0 // pred_check_branch
    %74 = sbr.rel (0) target = $region81
  $region80: #{nerf_forward.1} parent=0 // pred_region
    _
  $region81: #{nerf_forward.1} parent=0 // pred_fallthru
    _
  // Predicated region
  $region82: #{nerf_forward.1} parent=0 // pred_check
    _
  $region83: #{nerf_forward.1} parent=0 // pred_check_branch
    %76 = sbr.rel (0) target = $region85
  $region84: #{nerf_forward.1} parent=0 // pred_region
    _
  $region85: #{nerf_forward.1} parent=0 // pred_fallthru
    _
  // Predicated region
  $region86: #{nerf_forward.1} parent=0 // pred_check
    _
  $region87: #{nerf_forward.1} parent=0 // pred_check_branch
    %78 = sbr.rel (0) target = $region89
  $region88: #{nerf_forward.1} parent=0 // pred_region
    _
  $region89: #{nerf_forward.1} parent=0 // pred_fallthru
    _
  // Predicated region
  $region90: #{nerf_forward.1} parent=0 // pred_check
    _
  $region91: #{nerf_forward.1} parent=0 // pred_check_branch
    %80 = sbr.rel (0) target = $region93
  $region92: #{nerf_forward.1} parent=0 // pred_region
    _
  $region93: #{nerf_forward.1} parent=0 // pred_fallthru
    _
  // Predicated region
  $region94: #{nerf_forward.1} parent=0 // pred_check
    _
  $region95: #{nerf_forward.1} parent=0 // pred_check_branch
    %82 = sbr.rel (0) target = $region97
  $region96: #{nerf_forward.1} parent=0 // pred_region
    _
  $region97: #{nerf_forward.1} parent=0 // pred_fallthru
    _
  // Predicated region
  $region98: #{nerf_forward.1} parent=0 // pred_check
    _
  $region99: #{nerf_forward.1} parent=0 // pred_check_branch
    %84 = sbr.rel (0) target = $region101
  $region100: #{nerf_forward.1} parent=0 // pred_region
    _
  $region101: #{nerf_forward.1} parent=0 // pred_fallthru
    _
  // Predicated region
  $region102: #{nerf_forward.1} parent=0 // pred_check
    _
  $region103: #{nerf_forward.1} parent=0 // pred_check_branch
    %86 = sbr.rel (0) target = $region105
  $region104: #{nerf_forward.1} parent=0 // pred_region
    _
  $region105: #{nerf_forward.1} parent=0 // pred_fallthru
    _
  // Predicated region
  $region106: #{nerf_forward.1} parent=0 // pred_check
    _
  $region107: #{nerf_forward.1} parent=0 // pred_check_branch
    %88 = sbr.rel (0) target = $region109
  $region108: #{nerf_forward.1} parent=0 // pred_region
    _
  $region109: #{nerf_forward.1} parent=0 // pred_fallthru
    _
  // Predicated region
  $region110: #{nerf_forward.1} parent=0 // pred_check
    _
  $region111: #{nerf_forward.1} parent=0 // pred_check_branch
    %90 = sbr.rel (0) target = $region113
  $region112: #{nerf_forward.1} parent=0 // pred_region
    _
  $region113: #{nerf_forward.1} parent=0 // pred_fallthru
    _
  %v92 = vld [vmem:[%s0] sm:$0xf]
  %v93 = vld [vmem:[%s0 + $0x4] sm:$0xf]
  %v94 = vld [vmem:[%s0 + $0x8] sm:$0xf]
  %v95 = vld [vmem:[%s0 + $0xc] sm:$0xf]
  %v96 = vld [vmem:[%s0 + $0x10] sm:$0xf]
  %v97 = vld [vmem:[%s0 + $0x14] sm:$0xf]
  %v98 = vld [vmem:[%s0 + $0x18] sm:$0xf]
  %v99 = vld [vmem:[%s0 + $0x1c] sm:$0xf]
  %v100 = vld [vmem:[%s0 + $0x20] sm:$0xf]
  %v101 = vld [vmem:[%s0 + $0x24] sm:$0xf]
  %v102 = vld [vmem:[%s0 + $0x28] sm:$0xf]
  %v103 = vld [vmem:[%s0 + $0x2c] sm:$0xf]
  %v104 = vld [vmem:[%s0 + $0x30] sm:$0xf]
  %v105 = vld [vmem:[%s0 + $0x34] sm:$0xf]
  %v106 = vld [vmem:[%s0 + $0x38] sm:$0xf]
  %v107 = vld [vmem:[%s0 + $0x3c] sm:$0xf]
  %v108 = vld [vmem:[%s0 + $0x40] sm:$0xf]
  %v109 = vld [vmem:[%s0 + $0x44] sm:$0xf]
  %v110 = vld [vmem:[%s0 + $0x48] sm:$0xf]
  %v111 = vld [vmem:[%s0 + $0x4c] sm:$0xf]
  %v112 = vld [vmem:[%s0 + $0x50] sm:$0xf]
  %v113 = vld [vmem:[%s0 + $0x54] sm:$0xf]
  %v114 = vld [vmem:[%s0 + $0x58] sm:$0xf]
  %v115 = vld [vmem:[%s0 + $0x5c] sm:$0xf]
  %v116 = vld [vmem:[%s0 + $0x60] sm:$0xf]
  %v117 = vld [vmem:[%s0 + $0x64] sm:$0xf]
  %v118 = vld [vmem:[%s0 + $0x68] sm:$0xf]
  %v119 = vld [vmem:[%s0 + $0x6c] sm:$0xf]
  %v120 = vld [vmem:[%s0 + $0x70] sm:$0xf]
  %v121 = vld [vmem:[%s0 + $0x74] sm:$0xf]
  %v122 = vld [vmem:[%s0 + $0x78] sm:$0xf]
  %v123 = vld [vmem:[%s0 + $0x7c] sm:$0xf]
  %v124 = vld [vmem:[%s1] sm:$0xf]
  %v125 = vld [vmem:[%s1 + $0x4] sm:$0xf]
  %v126 = vld [vmem:[%s1 + $0x8] sm:$0xf]
  %v127 = vld [vmem:[%s1 + $0xc] sm:$0xf]
  %v128 = vld [vmem:[%s1 + $0x10] sm:$0xf]
  %v129 = vld [vmem:[%s1 + $0x14] sm:$0xf]
  %v130 = vld [vmem:[%s1 + $0x18] sm:$0xf]
  %v131 = vld [vmem:[%s1 + $0x1c] sm:$0xf]
  %v132 = vld [vmem:[%s1 + $0x20] sm:$0xf]
  %v133 = vld [vmem:[%s1 + $0x24] sm:$0xf]
  %v134 = vld [vmem:[%s1 + $0x28] sm:$0xf]
  %v135 = vld [vmem:[%s1 + $0x2c] sm:$0xf]
  %v136 = vld [vmem:[%s1 + $0x30] sm:$0xf]
  %v137 = vld [vmem:[%s1 + $0x34] sm:$0xf]
  %v138 = vld [vmem:[%s1 + $0x38] sm:$0xf]
  %v139 = vld [vmem:[%s1 + $0x3c] sm:$0xf]
  %v140 = vld [vmem:[%s1 + $0x40] sm:$0xf]
  %v141 = vld [vmem:[%s1 + $0x44] sm:$0xf]
  %v142 = vld [vmem:[%s1 + $0x48] sm:$0xf]
  %v143 = vld [vmem:[%s1 + $0x4c] sm:$0xf]
  %v144 = vld [vmem:[%s1 + $0x50] sm:$0xf]
  %v145 = vld [vmem:[%s1 + $0x54] sm:$0xf]
  %v146 = vld [vmem:[%s1 + $0x58] sm:$0xf]
  %v147 = vld [vmem:[%s1 + $0x5c] sm:$0xf]
  %v148 = vld [vmem:[%s1 + $0x60] sm:$0xf]
  %v149 = vld [vmem:[%s1 + $0x64] sm:$0xf]
  %v150 = vld [vmem:[%s1 + $0x68] sm:$0xf]
  %v151 = vld [vmem:[%s1 + $0x6c] sm:$0xf]
  %v152 = vld [vmem:[%s1 + $0x70] sm:$0xf]
  %v153 = vld [vmem:[%s1 + $0x74] sm:$0xf]
  %v154 = vld [vmem:[%s1 + $0x78] sm:$0xf]
  %v155 = vld [vmem:[%s1 + $0x7c] sm:$0xf]
  %v156 = vld [vmem:[%s2] sm:$0xff]
  %v157 = vld [vmem:[%s2 + $0x8] sm:$0xff]
  %v158 = vld [vmem:[%s2 + $0x10] sm:$0xff]
  %v159 = vld [vmem:[%s2 + $0x18] sm:$0xff]
  %v160 = vld [vmem:[%s2 + $0x20] sm:$0xff]
  %v161 = vld [vmem:[%s2 + $0x28] sm:$0xff]
  %v162 = vld [vmem:[%s2 + $0x30] sm:$0xff]
  %v163 = vld [vmem:[%s2 + $0x38] sm:$0xff]
  %v164 = vld [vmem:[%s3] sm:$0x3]
  %v166 = vperm.slane %v164, 0
  %v167 = vperm.slane %v164, 1
  %v202 = vunpack.c.l.b16 %v92
  %v203 = vunpack.c.l.b16 %v93
  %v204 = vunpack.c.l.b16 %v94
  %v205 = vunpack.c.l.b16 %v95
  %v206 = vunpack.c.l.b16 %v96
  %v207 = vunpack.c.l.b16 %v97
  %v208 = vunpack.c.l.b16 %v98
  %v209 = vunpack.c.l.b16 %v99
  %v210 = vunpack.c.l.b16 %v100
  %v211 = vunpack.c.l.b16 %v101
  %v212 = vunpack.c.l.b16 %v102
  %v213 = vunpack.c.l.b16 %v103
  %v214 = vunpack.c.l.b16 %v104
  %v215 = vunpack.c.l.b16 %v105
  %v216 = vunpack.c.l.b16 %v106
  %v217 = vunpack.c.l.b16 %v107
  %v218 = vunpack.c.l.b16 %v108
  %v219 = vunpack.c.l.b16 %v109
  %v220 = vunpack.c.l.b16 %v110
  %v221 = vunpack.c.l.b16 %v111
  %v222 = vunpack.c.l.b16 %v112
  %v223 = vunpack.c.l.b16 %v113
  %v224 = vunpack.c.l.b16 %v114
  %v225 = vunpack.c.l.b16 %v115
  %v226 = vunpack.c.l.b16 %v116
  %v227 = vunpack.c.l.b16 %v117
  %v228 = vunpack.c.l.b16 %v118
  %v229 = vunpack.c.l.b16 %v119
  %v230 = vunpack.c.l.b16 %v120
  %v231 = vunpack.c.l.b16 %v121
  %v232 = vunpack.c.l.b16 %v122
  %v233 = vunpack.c.l.b16 %v123
  %v234 = vpack.c.b16 %v203, %v202
  %v235 = vpack.c.b16 %v205, %v204
  %v236 = vpack.c.b16 %v207, %v206
  %v237 = vpack.c.b16 %v209, %v208
  %v238 = vpack.c.b16 %v211, %v210
  %v239 = vpack.c.b16 %v213, %v212
  %v240 = vpack.c.b16 %v215, %v214
  %v241 = vpack.c.b16 %v217, %v216
  %v242 = vpack.c.b16 %v219, %v218
  %v243 = vpack.c.b16 %v221, %v220
  %v244 = vpack.c.b16 %v223, %v222
  %v245 = vpack.c.b16 %v225, %v224
  %v246 = vpack.c.b16 %v227, %v226
  %v247 = vpack.c.b16 %v229, %v228
  %v248 = vpack.c.b16 %v231, %v230
  %v249 = vpack.c.b16 %v233, %v232
  %v258 = vunpack.c.l.b16 %v156
  %v259 = vunpack.c.h.b16 %v156
  %v260 = vunpack.c.l.b16 %v157
  %v261 = vunpack.c.h.b16 %v157
  %v262 = vunpack.c.l.b16 %v158
  %v263 = vunpack.c.h.b16 %v158
  %v264 = vunpack.c.l.b16 %v159
  %v265 = vunpack.c.h.b16 %v159
  %v266 = vunpack.c.l.b16 %v160
  %v267 = vunpack.c.h.b16 %v160
  %v268 = vunpack.c.l.b16 %v161
  %v269 = vunpack.c.h.b16 %v161
  %v270 = vunpack.c.l.b16 %v162
  %v271 = vunpack.c.h.b16 %v162
  %v272 = vunpack.c.l.b16 %v163
  %v273 = vunpack.c.h.b16 %v163
  %v274 = vpack.c.b16 %v260, %v258
  %v275 = vpack.c.b16 %v261, %v259
  %v276 = vpack.c.b16 %v264, %v262
  %v277 = vpack.c.b16 %v265, %v263
  %v278 = vpack.c.b16 %v268, %v266
  %v279 = vpack.c.b16 %v269, %v267
  %v280 = vpack.c.b16 %v272, %v270
  %v281 = vpack.c.b16 %v273, %v271
  %vm288 = vcmask 515072
  %v290 = vsel %vm288, %v234, 0
  %v293 = vsel %vm288, %v235, 0
  %v296 = vsel %vm288, %v236, 0
  %v299 = vsel %vm288, %v237, 0
  %v302 = vsel %vm288, %v238, 0
  %v305 = vsel %vm288, %v239, 0
  %v308 = vsel %vm288, %v240, 0
  %v311 = vsel %vm288, %v241, 0
  %v314 = vsel %vm288, %v242, 0
  %v317 = vsel %vm288, %v243, 0
  %v320 = vsel %vm288, %v244, 0
  %v323 = vsel %vm288, %v245, 0
  %v326 = vsel %vm288, %v246, 0
  %v329 = vsel %vm288, %v247, 0
  %v332 = vsel %vm288, %v248, 0
  %v335 = vsel %vm288, %v249, 0
  %vm337 = vcmask 1046528
  %vm338 = vcmask 1047552
  %v339 = vsel %vm337, 4294967295, 65535
  %v340 = vsel %vm338, %v339, 0
  %v342 = vand.u32 %v280, %v340
  %v345 = vand.u32 %v281, %v340
  %347 = vmatpush.bf16.msra.mxu0 0
  %348 = vmatpush.bf16.msra.mxu0 0
  %349 = vmatpush.bf16.msra.mxu0 0
  %350 = vmatpush.bf16.msra.mxu0 0
  %351 = vmatpush.bf16.msra.mxu0 %v342
  %352 = vmatpush.bf16.msra.mxu0 %v278
  %353 = vmatpush.bf16.msra.mxu0 %v276
  %354 = vmatpush.bf16.msra.mxu0 %v274
  %355 = vmatmul.bf16.gmra.mxu0 %v290
  %v356 = vpop.f32.mrf.mxu0
  %v357 = vadd.f32 %v166, %v356
  %v358 = vpop.f32.mrf.mxu0
  %v359 = vadd.f32 %v166, %v358
  %360 = vmatmul.bf16.gmra.mxu0 %v293
  %v361 = vpop.f32.mrf.mxu0
  %v362 = vadd.f32 %v166, %v361
  %v363 = vpop.f32.mrf.mxu0
  %v364 = vadd.f32 %v166, %v363
  %365 = vmatmul.bf16.gmra.mxu0 %v296
  %v366 = vpop.f32.mrf.mxu0
  %v367 = vadd.f32 %v166, %v366
  %v368 = vpop.f32.mrf.mxu0
  %v369 = vadd.f32 %v166, %v368
  %370 = vmatmul.bf16.gmra.mxu0 %v299
  %v371 = vpop.f32.mrf.mxu0
  %v372 = vadd.f32 %v166, %v371
  %v373 = vpop.f32.mrf.mxu0
  %v374 = vadd.f32 %v166, %v373
  %375 = vmatmul.bf16.gmra.mxu0 %v302
  %v376 = vpop.f32.mrf.mxu0
  %v377 = vadd.f32 %v166, %v376
  %v378 = vpop.f32.mrf.mxu0
  %v379 = vadd.f32 %v166, %v378
  %380 = vmatmul.bf16.gmra.mxu0 %v305
  %v381 = vpop.f32.mrf.mxu0
  %v382 = vadd.f32 %v166, %v381
  %v383 = vpop.f32.mrf.mxu0
  %v384 = vadd.f32 %v166, %v383
  %385 = vmatmul.bf16.gmra.mxu0 %v308
  %v386 = vpop.f32.mrf.mxu0
  %v387 = vadd.f32 %v166, %v386
  %v388 = vpop.f32.mrf.mxu0
  %v389 = vadd.f32 %v166, %v388
  %390 = vmatmul.bf16.gmra.mxu0 %v311
  %v391 = vpop.f32.mrf.mxu0
  %v392 = vadd.f32 %v166, %v391
  %v393 = vpop.f32.mrf.mxu0
  %v394 = vadd.f32 %v166, %v393
  %395 = vmatmul.bf16.gmra.mxu0 %v314
  %v396 = vpop.f32.mrf.mxu0
  %v397 = vadd.f32 %v166, %v396
  %v398 = vpop.f32.mrf.mxu0
  %v399 = vadd.f32 %v166, %v398
  %400 = vmatmul.bf16.gmra.mxu0 %v317
  %v401 = vpop.f32.mrf.mxu0
  %v402 = vadd.f32 %v166, %v401
  %v403 = vpop.f32.mrf.mxu0
  %v404 = vadd.f32 %v166, %v403
  %405 = vmatmul.bf16.gmra.mxu0 %v320
  %v406 = vpop.f32.mrf.mxu0
  %v407 = vadd.f32 %v166, %v406
  %v408 = vpop.f32.mrf.mxu0
  %v409 = vadd.f32 %v166, %v408
  %410 = vmatmul.bf16.gmra.mxu0 %v323
  %v411 = vpop.f32.mrf.mxu0
  %v412 = vadd.f32 %v166, %v411
  %v413 = vpop.f32.mrf.mxu0
  %v414 = vadd.f32 %v166, %v413
  %415 = vmatmul.bf16.gmra.mxu0 %v326
  %v416 = vpop.f32.mrf.mxu0
  %v417 = vadd.f32 %v166, %v416
  %v418 = vpop.f32.mrf.mxu0
  %v419 = vadd.f32 %v166, %v418
  %420 = vmatmul.bf16.gmra.mxu0 %v329
  %v421 = vpop.f32.mrf.mxu0
  %v422 = vadd.f32 %v166, %v421
  %v423 = vpop.f32.mrf.mxu0
  %v424 = vadd.f32 %v166, %v423
  %425 = vmatmul.bf16.gmra.mxu0 %v332
  %v426 = vpop.f32.mrf.mxu0
  %v427 = vadd.f32 %v166, %v426
  %v428 = vpop.f32.mrf.mxu0
  %v429 = vadd.f32 %v166, %v428
  %430 = vmatmul.bf16.gmra.mxu0 %v335
  %v431 = vpop.f32.mrf.mxu0
  %v432 = vadd.f32 %v166, %v431
  %v433 = vpop.f32.mrf.mxu0
  %v434 = vadd.f32 %v166, %v433
  %435 = vdwg.mxu0
  %436 = vmatpush.bf16.msra.mxu0 0
  %437 = vmatpush.bf16.msra.mxu0 0
  %438 = vmatpush.bf16.msra.mxu0 0
  %439 = vmatpush.bf16.msra.mxu0 0
  %440 = vmatpush.bf16.msra.mxu0 %v345
  %441 = vmatpush.bf16.msra.mxu0 %v279
  %442 = vmatpush.bf16.msra.mxu0 %v277
  %443 = vmatpush.bf16.msra.mxu0 %v275
  %444 = vmatmul.bf16.gmra.mxu0 %v290
  %v445 = vpop.f32.mrf.mxu0
  %v446 = vadd.f32 %v167, %v445
  %v447 = vpop.f32.mrf.mxu0
  %v448 = vadd.f32 %v167, %v447
  %449 = vmatmul.bf16.gmra.mxu0 %v293
  %v450 = vpop.f32.mrf.mxu0
  %v451 = vadd.f32 %v167, %v450
  %v452 = vpop.f32.mrf.mxu0
  %v453 = vadd.f32 %v167, %v452
  %454 = vmatmul.bf16.gmra.mxu0 %v296
  %v455 = vpop.f32.mrf.mxu0
  %v456 = vadd.f32 %v167, %v455
  %v457 = vpop.f32.mrf.mxu0
  %v458 = vadd.f32 %v167, %v457
  %459 = vmatmul.bf16.gmra.mxu0 %v299
  %v460 = vpop.f32.mrf.mxu0
  %v461 = vadd.f32 %v167, %v460
  %v462 = vpop.f32.mrf.mxu0
  %v463 = vadd.f32 %v167, %v462
  %464 = vmatmul.bf16.gmra.mxu0 %v302
  %v465 = vpop.f32.mrf.mxu0
  %v466 = vadd.f32 %v167, %v465
  %v467 = vpop.f32.mrf.mxu0
  %v468 = vadd.f32 %v167, %v467
  %469 = vmatmul.bf16.gmra.mxu0 %v305
  %v470 = vpop.f32.mrf.mxu0
  %v471 = vadd.f32 %v167, %v470
  %v472 = vpop.f32.mrf.mxu0
  %v473 = vadd.f32 %v167, %v472
  %474 = vmatmul.bf16.gmra.mxu0 %v308
  %v475 = vpop.f32.mrf.mxu0
  %v476 = vadd.f32 %v167, %v475
  %v477 = vpop.f32.mrf.mxu0
  %v478 = vadd.f32 %v167, %v477
  %479 = vmatmul.bf16.gmra.mxu0 %v311
  %v480 = vpop.f32.mrf.mxu0
  %v481 = vadd.f32 %v167, %v480
  %v482 = vpop.f32.mrf.mxu0
  %v483 = vadd.f32 %v167, %v482
  %484 = vmatmul.bf16.gmra.mxu0 %v314
  %v485 = vpop.f32.mrf.mxu0
  %v486 = vadd.f32 %v167, %v485
  %v487 = vpop.f32.mrf.mxu0
  %v488 = vadd.f32 %v167, %v487
  %489 = vmatmul.bf16.gmra.mxu0 %v317
  %v490 = vpop.f32.mrf.mxu0
  %v491 = vadd.f32 %v167, %v490
  %v492 = vpop.f32.mrf.mxu0
  %v493 = vadd.f32 %v167, %v492
  %494 = vmatmul.bf16.gmra.mxu0 %v320
  %v495 = vpop.f32.mrf.mxu0
  %v496 = vadd.f32 %v167, %v495
  %v497 = vpop.f32.mrf.mxu0
  %v498 = vadd.f32 %v167, %v497
  %499 = vmatmul.bf16.gmra.mxu0 %v323
  %v500 = vpop.f32.mrf.mxu0
  %v501 = vadd.f32 %v167, %v500
  %v502 = vpop.f32.mrf.mxu0
  %v503 = vadd.f32 %v167, %v502
  %504 = vmatmul.bf16.gmra.mxu0 %v326
  %v505 = vpop.f32.mrf.mxu0
  %v506 = vadd.f32 %v167, %v505
  %v507 = vpop.f32.mrf.mxu0
  %v508 = vadd.f32 %v167, %v507
  %509 = vmatmul.bf16.gmra.mxu0 %v329
  %v510 = vpop.f32.mrf.mxu0
  %v511 = vadd.f32 %v167, %v510
  %v512 = vpop.f32.mrf.mxu0
  %v513 = vadd.f32 %v167, %v512
  %514 = vmatmul.bf16.gmra.mxu0 %v332
  %v515 = vpop.f32.mrf.mxu0
  %v516 = vadd.f32 %v167, %v515
  %v517 = vpop.f32.mrf.mxu0
  %v518 = vadd.f32 %v167, %v517
  %519 = vmatmul.bf16.gmra.mxu0 %v335
  %v520 = vpop.f32.mrf.mxu0
  %v521 = vadd.f32 %v167, %v520
  %v522 = vpop.f32.mrf.mxu0
  %v523 = vadd.f32 %v167, %v522
  %524 = vdwg.mxu0
  %v525 = vmax.f32 %v357, 0.0
  %v526 = vmax.f32 %v446, 0.0
  %v527 = vmax.f32 %v359, 0.0
  %v528 = vmax.f32 %v448, 0.0
  %v529 = vmax.f32 %v362, 0.0
  %v530 = vmax.f32 %v451, 0.0
  %v531 = vmax.f32 %v364, 0.0
  %v532 = vmax.f32 %v453, 0.0
  %v533 = vmax.f32 %v367, 0.0
  %v534 = vmax.f32 %v456, 0.0
  %v535 = vmax.f32 %v369, 0.0
  %v536 = vmax.f32 %v458, 0.0
  %v537 = vmax.f32 %v372, 0.0
  %v538 = vmax.f32 %v461, 0.0
  %v539 = vmax.f32 %v374, 0.0
  %v540 = vmax.f32 %v463, 0.0
  %v541 = vmax.f32 %v377, 0.0
  %v542 = vmax.f32 %v466, 0.0
  %v543 = vmax.f32 %v379, 0.0
  %v544 = vmax.f32 %v468, 0.0
  %v545 = vmax.f32 %v382, 0.0
  %v546 = vmax.f32 %v471, 0.0
  %v547 = vmax.f32 %v384, 0.0
  %v548 = vmax.f32 %v473, 0.0
  %v549 = vmax.f32 %v387, 0.0
  %v550 = vmax.f32 %v476, 0.0
  %v551 = vmax.f32 %v389, 0.0
  %v552 = vmax.f32 %v478, 0.0
  %v553 = vmax.f32 %v392, 0.0
  %v554 = vmax.f32 %v481, 0.0
  %v555 = vmax.f32 %v394, 0.0
  %v556 = vmax.f32 %v483, 0.0
  %v557 = vmax.f32 %v397, 0.0
  %v558 = vmax.f32 %v486, 0.0
  %v559 = vmax.f32 %v399, 0.0
  %v560 = vmax.f32 %v488, 0.0
  %v561 = vmax.f32 %v402, 0.0
  %v562 = vmax.f32 %v491, 0.0
  %v563 = vmax.f32 %v404, 0.0
  %v564 = vmax.f32 %v493, 0.0
  %v565 = vmax.f32 %v407, 0.0
  %v566 = vmax.f32 %v496, 0.0
  %v567 = vmax.f32 %v409, 0.0
  %v568 = vmax.f32 %v498, 0.0
  %v569 = vmax.f32 %v412, 0.0
  %v570 = vmax.f32 %v501, 0.0
  %v571 = vmax.f32 %v414, 0.0
  %v572 = vmax.f32 %v503, 0.0
  %v573 = vmax.f32 %v417, 0.0
  %v574 = vmax.f32 %v506, 0.0
  %v575 = vmax.f32 %v419, 0.0
  %v576 = vmax.f32 %v508, 0.0
  %v577 = vmax.f32 %v422, 0.0
  %v578 = vmax.f32 %v511, 0.0
  %v579 = vmax.f32 %v424, 0.0
  %v580 = vmax.f32 %v513, 0.0
  %v581 = vmax.f32 %v427, 0.0
  %v582 = vmax.f32 %v516, 0.0
  %v583 = vmax.f32 %v429, 0.0
  %v584 = vmax.f32 %v518, 0.0
  %v585 = vmax.f32 %v432, 0.0
  %v586 = vmax.f32 %v521, 0.0
  %v587 = vmax.f32 %v434, 0.0
  %v588 = vmax.f32 %v523, 0.0
  %v589 = vld [vmem:[%s4] sm:$0xff]
  %v590 = vld [vmem:[%s4 + $0x8] sm:$0xff]
  %v591 = vld [vmem:[%s4 + $0x10] sm:$0xff]
  %v592 = vld [vmem:[%s4 + $0x18] sm:$0xff]
  %v593 = vld [vmem:[%s4 + $0x20] sm:$0xff]
  %v594 = vld [vmem:[%s4 + $0x28] sm:$0xff]
  %v595 = vld [vmem:[%s4 + $0x30] sm:$0xff]
  %v596 = vld [vmem:[%s4 + $0x38] sm:$0xff]
  %v597 = vld [vmem:[%s4 + $0x40] sm:$0xff]
  %v598 = vld [vmem:[%s4 + $0x48] sm:$0xff]
  %v599 = vld [vmem:[%s4 + $0x50] sm:$0xff]
  %v600 = vld [vmem:[%s4 + $0x58] sm:$0xff]
  %v601 = vld [vmem:[%s4 + $0x60] sm:$0xff]
  %v602 = vld [vmem:[%s4 + $0x68] sm:$0xff]
  %v603 = vld [vmem:[%s4 + $0x70] sm:$0xff]
  %v604 = vld [vmem:[%s4 + $0x78] sm:$0xff]
  %v605 = vld [vmem:[%s4 + $0x80] sm:$0xff]
  %v606 = vld [vmem:[%s4 + $0x88] sm:$0xff]
  %v607 = vld [vmem:[%s4 + $0x90] sm:$0xff]
  %v608 = vld [vmem:[%s4 + $0x98] sm:$0xff]
  %v609 = vld [vmem:[%s4 + $0xa0] sm:$0xff]
  %v610 = vld [vmem:[%s4 + $0xa8] sm:$0xff]
  %v611 = vld [vmem:[%s4 + $0xb0] sm:$0xff]
  %v612 = vld [vmem:[%s4 + $0xb8] sm:$0xff]
  %v613 = vld [vmem:[%s4 + $0xc0] sm:$0xff]
  %v614 = vld [vmem:[%s4 + $0xc8] sm:$0xff]
  %v615 = vld [vmem:[%s4 + $0xd0] sm:$0xff]
  %v616 = vld [vmem:[%s4 + $0xd8] sm:$0xff]
  %v617 = vld [vmem:[%s4 + $0xe0] sm:$0xff]
  %v618 = vld [vmem:[%s4 + $0xe8] sm:$0xff]
  %v619 = vld [vmem:[%s4 + $0xf0] sm:$0xff]
  %v620 = vld [vmem:[%s4 + $0xf8] sm:$0xff]
  %v621 = vpack.c.bf16 %v527, %v525
  %v622 = vpack.c.bf16 %v528, %v526
  %v623 = vpack.c.bf16 %v531, %v529
  %v624 = vpack.c.bf16 %v532, %v530
  %v625 = vpack.c.bf16 %v535, %v533
  %v626 = vpack.c.bf16 %v536, %v534
  %v627 = vpack.c.bf16 %v539, %v537
  %v628 = vpack.c.bf16 %v540, %v538
  %v629 = vpack.c.bf16 %v543, %v541
  %v630 = vpack.c.bf16 %v544, %v542
  %v631 = vpack.c.bf16 %v547, %v545
  %v632 = vpack.c.bf16 %v548, %v546
  %v633 = vpack.c.bf16 %v551, %v549
  %v634 = vpack.c.bf16 %v552, %v550
  %v635 = vpack.c.bf16 %v555, %v553
  %v636 = vpack.c.bf16 %v556, %v554
  %v637 = vpack.c.bf16 %v559, %v557
  %v638 = vpack.c.bf16 %v560, %v558
  %v639 = vpack.c.bf16 %v563, %v561
  %v640 = vpack.c.bf16 %v564, %v562
  %v641 = vpack.c.bf16 %v567, %v565
  %v642 = vpack.c.bf16 %v568, %v566
  %v643 = vpack.c.bf16 %v571, %v569
  %v644 = vpack.c.bf16 %v572, %v570
  %v645 = vpack.c.bf16 %v575, %v573
  %v646 = vpack.c.bf16 %v576, %v574
  %v647 = vpack.c.bf16 %v579, %v577
  %v648 = vpack.c.bf16 %v580, %v578
  %v649 = vpack.c.bf16 %v583, %v581
  %v650 = vpack.c.bf16 %v584, %v582
  %v651 = vpack.c.bf16 %v587, %v585
  %v652 = vpack.c.bf16 %v588, %v586
  %v653 = vld [vmem:[%s5] sm:$0x3]
  %v655 = vperm.slane %v653, 0
  %v656 = vperm.slane %v653, 1
  %v691 = vunpack.c.l.b16 %v589
  %v692 = vunpack.c.h.b16 %v589
  %v693 = vunpack.c.l.b16 %v590
  %v694 = vunpack.c.h.b16 %v590
  %v695 = vunpack.c.l.b16 %v591
  %v696 = vunpack.c.h.b16 %v591
  %v697 = vunpack.c.l.b16 %v592
  %v698 = vunpack.c.h.b16 %v592
  %v699 = vunpack.c.l.b16 %v593
  %v700 = vunpack.c.h.b16 %v593
  %v701 = vunpack.c.l.b16 %v594
  %v702 = vunpack.c.h.b16 %v594
  %v703 = vunpack.c.l.b16 %v595
  %v704 = vunpack.c.h.b16 %v595
  %v705 = vunpack.c.l.b16 %v596
  %v706 = vunpack.c.h.b16 %v596
  %v707 = vunpack.c.l.b16 %v597
  %v708 = vunpack.c.h.b16 %v597
  %v709 = vunpack.c.l.b16 %v598
  %v710 = vunpack.c.h.b16 %v598
  %v711 = vunpack.c.l.b16 %v599
  %v712 = vunpack.c.h.b16 %v599
  %v713 = vunpack.c.l.b16 %v600
  %v714 = vunpack.c.h.b16 %v600
  %v715 = vunpack.c.l.b16 %v601
  %v716 = vunpack.c.h.b16 %v601
  %v717 = vunpack.c.l.b16 %v602
  %v718 = vunpack.c.h.b16 %v602
  %v719 = vunpack.c.l.b16 %v603
  %v720 = vunpack.c.h.b16 %v603
  %v721 = vunpack.c.l.b16 %v604
  %v722 = vunpack.c.h.b16 %v604
  %v723 = vunpack.c.l.b16 %v605
  %v724 = vunpack.c.h.b16 %v605
  %v725 = vunpack.c.l.b16 %v606
  %v726 = vunpack.c.h.b16 %v606
  %v727 = vunpack.c.l.b16 %v607
  %v728 = vunpack.c.h.b16 %v607
  %v729 = vunpack.c.l.b16 %v608
  %v730 = vunpack.c.h.b16 %v608
  %v731 = vunpack.c.l.b16 %v609
  %v732 = vunpack.c.h.b16 %v609
  %v733 = vunpack.c.l.b16 %v610
  %v734 = vunpack.c.h.b16 %v610
  %v735 = vunpack.c.l.b16 %v611
  %v736 = vunpack.c.h.b16 %v611
  %v737 = vunpack.c.l.b16 %v612
  %v738 = vunpack.c.h.b16 %v612
  %v739 = vunpack.c.l.b16 %v613
  %v740 = vunpack.c.h.b16 %v613
  %v741 = vunpack.c.l.b16 %v614
  %v742 = vunpack.c.h.b16 %v614
  %v743 = vunpack.c.l.b16 %v615
  %v744 = vunpack.c.h.b16 %v615
  %v745 = vunpack.c.l.b16 %v616
  %v746 = vunpack.c.h.b16 %v616
  %v747 = vunpack.c.l.b16 %v617
  %v748 = vunpack.c.h.b16 %v617
  %v749 = vunpack.c.l.b16 %v618
  %v750 = vunpack.c.h.b16 %v618
  %v751 = vunpack.c.l.b16 %v619
  %v752 = vunpack.c.h.b16 %v619
  %v753 = vunpack.c.l.b16 %v620
  %v754 = vunpack.c.h.b16 %v620
  %v755 = vpack.c.b16 %v693, %v691
  %v756 = vpack.c.b16 %v694, %v692
  %v757 = vpack.c.b16 %v697, %v695
  %v758 = vpack.c.b16 %v698, %v696
  %v759 = vpack.c.b16 %v701, %v699
  %v760 = vpack.c.b16 %v702, %v700
  %v761 = vpack.c.b16 %v705, %v703
  %v762 = vpack.c.b16 %v706, %v704
  %v763 = vpack.c.b16 %v709, %v707
  %v764 = vpack.c.b16 %v710, %v708
  %v765 = vpack.c.b16 %v713, %v711
  %v766 = vpack.c.b16 %v714, %v712
  %v767 = vpack.c.b16 %v717, %v715
  %v768 = vpack.c.b16 %v718, %v716
  %v769 = vpack.c.b16 %v721, %v719
  %v770 = vpack.c.b16 %v722, %v720
  %v771 = vpack.c.b16 %v725, %v723
  %v772 = vpack.c.b16 %v726, %v724
  %v773 = vpack.c.b16 %v729, %v727
  %v774 = vpack.c.b16 %v730, %v728
  %v775 = vpack.c.b16 %v733, %v731
  %v776 = vpack.c.b16 %v734, %v732
  %v777 = vpack.c.b16 %v737, %v735
  %v778 = vpack.c.b16 %v738, %v736
  %v779 = vpack.c.b16 %v741, %v739
  %v780 = vpack.c.b16 %v742, %v740
  %v781 = vpack.c.b16 %v745, %v743
  %v782 = vpack.c.b16 %v746, %v744
  %v783 = vpack.c.b16 %v749, %v747
  %v784 = vpack.c.b16 %v750, %v748
  %v785 = vpack.c.b16 %v753, %v751
  %v786 = vpack.c.b16 %v754, %v752
  %819 = vmatpush.bf16.msra.mxu0 %v769
  %820 = vmatpush.bf16.msra.mxu0 %v767
  %821 = vmatpush.bf16.msra.mxu0 %v765
  %822 = vmatpush.bf16.msra.mxu0 %v763
  %823 = vmatpush.bf16.msra.mxu0 %v761
  %824 = vmatpush.bf16.msra.mxu0 %v759
  %825 = vmatpush.bf16.msra.mxu0 %v757
  %826 = vmatpush.bf16.msra.mxu0 %v755
  %827 = vmatmul.bf16.gmra.mxu0 %v621
  %v828 = vpop.f32.mrf.mxu0
  %v829 = vadd.f32 %v655, %v828
  %v830 = vpop.f32.mrf.mxu0
  %v831 = vadd.f32 %v655, %v830
  %832 = vmatmul.bf16.gmra.mxu0 %v623
  %v833 = vpop.f32.mrf.mxu0
  %v834 = vadd.f32 %v655, %v833
  %v835 = vpop.f32.mrf.mxu0
  %v836 = vadd.f32 %v655, %v835
  %837 = vmatmul.bf16.gmra.mxu0 %v625
  %v838 = vpop.f32.mrf.mxu0
  %v839 = vadd.f32 %v655, %v838
  %v840 = vpop.f32.mrf.mxu0
  %v841 = vadd.f32 %v655, %v840
  %842 = vmatmul.bf16.gmra.mxu0 %v627
  %v843 = vpop.f32.mrf.mxu0
  %v844 = vadd.f32 %v655, %v843
  %v845 = vpop.f32.mrf.mxu0
  %v846 = vadd.f32 %v655, %v845
  %847 = vmatmul.bf16.gmra.mxu0 %v629
  %v848 = vpop.f32.mrf.mxu0
  %v849 = vadd.f32 %v655, %v848
  %v850 = vpop.f32.mrf.mxu0
  %v851 = vadd.f32 %v655, %v850
  %852 = vmatmul.bf16.gmra.mxu0 %v631
  %v853 = vpop.f32.mrf.mxu0
  %v854 = vadd.f32 %v655, %v853
  %v855 = vpop.f32.mrf.mxu0
  %v856 = vadd.f32 %v655, %v855
  %857 = vmatmul.bf16.gmra.mxu0 %v633
  %v858 = vpop.f32.mrf.mxu0
  %v859 = vadd.f32 %v655, %v858
  %v860 = vpop.f32.mrf.mxu0
  %v861 = vadd.f32 %v655, %v860
  %862 = vmatmul.bf16.gmra.mxu0 %v635
  %v863 = vpop.f32.mrf.mxu0
  %v864 = vadd.f32 %v655, %v863
  %v865 = vpop.f32.mrf.mxu0
  %v866 = vadd.f32 %v655, %v865
  %867 = vmatmul.bf16.gmra.mxu0 %v637
  %v868 = vpop.f32.mrf.mxu0
  %v869 = vadd.f32 %v655, %v868
  %v870 = vpop.f32.mrf.mxu0
  %v871 = vadd.f32 %v655, %v870
  %872 = vmatmul.bf16.gmra.mxu0 %v639
  %v873 = vpop.f32.mrf.mxu0
  %v874 = vadd.f32 %v655, %v873
  %v875 = vpop.f32.mrf.mxu0
  %v876 = vadd.f32 %v655, %v875
  %877 = vmatmul.bf16.gmra.mxu0 %v641
  %v878 = vpop.f32.mrf.mxu0
  %v879 = vadd.f32 %v655, %v878
  %v880 = vpop.f32.mrf.mxu0
  %v881 = vadd.f32 %v655, %v880
  %882 = vmatmul.bf16.gmra.mxu0 %v643
  %v883 = vpop.f32.mrf.mxu0
  %v884 = vadd.f32 %v655, %v883
  %v885 = vpop.f32.mrf.mxu0
  %v886 = vadd.f32 %v655, %v885
  %887 = vmatmul.bf16.gmra.mxu0 %v645
  %v888 = vpop.f32.mrf.mxu0
  %v889 = vadd.f32 %v655, %v888
  %v890 = vpop.f32.mrf.mxu0
  %v891 = vadd.f32 %v655, %v890
  %892 = vmatmul.bf16.gmra.mxu0 %v647
  %v893 = vpop.f32.mrf.mxu0
  %v894 = vadd.f32 %v655, %v893
  %v895 = vpop.f32.mrf.mxu0
  %v896 = vadd.f32 %v655, %v895
  %897 = vmatmul.bf16.gmra.mxu0 %v649
  %v898 = vpop.f32.mrf.mxu0
  %v899 = vadd.f32 %v655, %v898
  %v900 = vpop.f32.mrf.mxu0
  %v901 = vadd.f32 %v655, %v900
  %902 = vmatmul.bf16.gmra.mxu0 %v651
  %v903 = vpop.f32.mrf.mxu0
  %v904 = vadd.f32 %v655, %v903
  %v905 = vpop.f32.mrf.mxu0
  %v906 = vadd.f32 %v655, %v905
  %907 = vdwg.mxu0
  %908 = vmatpush.bf16.msra.mxu0 %v785
  %909 = vmatpush.bf16.msra.mxu0 %v783
  %910 = vmatpush.bf16.msra.mxu0 %v781
  %911 = vmatpush.bf16.msra.mxu0 %v779
  %912 = vmatpush.bf16.msra.mxu0 %v777
  %913 = vmatpush.bf16.msra.mxu0 %v775
  %914 = vmatpush.bf16.msra.mxu0 %v773
  %915 = vmatpush.bf16.msra.mxu0 %v771
  %916 = vmatmul.bf16.gmra.mxu0 %v622
  %v917 = vpop.f32.mrf.mxu0
  %v918 = vadd.f32 %v829, %v917
  %v919 = vpop.f32.mrf.mxu0
  %v920 = vadd.f32 %v831, %v919
  %921 = vmatmul.bf16.gmra.mxu0 %v624
  %v922 = vpop.f32.mrf.mxu0
  %v923 = vadd.f32 %v834, %v922
  %v924 = vpop.f32.mrf.mxu0
  %v925 = vadd.f32 %v836, %v924
  %926 = vmatmul.bf16.gmra.mxu0 %v626
  %v927 = vpop.f32.mrf.mxu0
  %v928 = vadd.f32 %v839, %v927
  %v929 = vpop.f32.mrf.mxu0
  %v930 = vadd.f32 %v841, %v929
  %931 = vmatmul.bf16.gmra.mxu0 %v628
  %v932 = vpop.f32.mrf.mxu0
  %v933 = vadd.f32 %v844, %v932
  %v934 = vpop.f32.mrf.mxu0
  %v935 = vadd.f32 %v846, %v934
  %936 = vmatmul.bf16.gmra.mxu0 %v630
  %v937 = vpop.f32.mrf.mxu0
  %v938 = vadd.f32 %v849, %v937
  %v939 = vpop.f32.mrf.mxu0
  %v940 = vadd.f32 %v851, %v939
  %941 = vmatmul.bf16.gmra.mxu0 %v632
  %v942 = vpop.f32.mrf.mxu0
  %v943 = vadd.f32 %v854, %v942
  %v944 = vpop.f32.mrf.mxu0
  %v945 = vadd.f32 %v856, %v944
  %946 = vmatmul.bf16.gmra.mxu0 %v634
  %v947 = vpop.f32.mrf.mxu0
  %v948 = vadd.f32 %v859, %v947
  %v949 = vpop.f32.mrf.mxu0
  %v950 = vadd.f32 %v861, %v949
  %951 = vmatmul.bf16.gmra.mxu0 %v636
  %v952 = vpop.f32.mrf.mxu0
  %v953 = vadd.f32 %v864, %v952
  %v954 = vpop.f32.mrf.mxu0
  %v955 = vadd.f32 %v866, %v954
  %956 = vmatmul.bf16.gmra.mxu0 %v638
  %v957 = vpop.f32.mrf.mxu0
  %v958 = vadd.f32 %v869, %v957
  %v959 = vpop.f32.mrf.mxu0
  %v960 = vadd.f32 %v871, %v959
  %961 = vmatmul.bf16.gmra.mxu0 %v640
  %v962 = vpop.f32.mrf.mxu0
  %v963 = vadd.f32 %v874, %v962
  %v964 = vpop.f32.mrf.mxu0
  %v965 = vadd.f32 %v876, %v964
  %966 = vmatmul.bf16.gmra.mxu0 %v642
  %v967 = vpop.f32.mrf.mxu0
  %v968 = vadd.f32 %v879, %v967
  %v969 = vpop.f32.mrf.mxu0
  %v970 = vadd.f32 %v881, %v969
  %971 = vmatmul.bf16.gmra.mxu0 %v644
  %v972 = vpop.f32.mrf.mxu0
  %v973 = vadd.f32 %v884, %v972
  %v974 = vpop.f32.mrf.mxu0
  %v975 = vadd.f32 %v886, %v974
  %976 = vmatmul.bf16.gmra.mxu0 %v646
  %v977 = vpop.f32.mrf.mxu0
  %v978 = vadd.f32 %v889, %v977
  %v979 = vpop.f32.mrf.mxu0
  %v980 = vadd.f32 %v891, %v979
  %981 = vmatmul.bf16.gmra.mxu0 %v648
  %v982 = vpop.f32.mrf.mxu0
  %v983 = vadd.f32 %v894, %v982
  %v984 = vpop.f32.mrf.mxu0
  %v985 = vadd.f32 %v896, %v984
  %986 = vmatmul.bf16.gmra.mxu0 %v650
  %v987 = vpop.f32.mrf.mxu0
  %v988 = vadd.f32 %v899, %v987
  %v989 = vpop.f32.mrf.mxu0
  %v990 = vadd.f32 %v901, %v989
  %991 = vmatmul.bf16.gmra.mxu0 %v652
  %v992 = vpop.f32.mrf.mxu0
  %v993 = vadd.f32 %v904, %v992
  %v994 = vpop.f32.mrf.mxu0
  %v995 = vadd.f32 %v906, %v994
  %996 = vdwg.mxu0
  %997 = vmatpush.bf16.msra.mxu0 %v770
  %998 = vmatpush.bf16.msra.mxu0 %v768
  %999 = vmatpush.bf16.msra.mxu0 %v766
  %1000 = vmatpush.bf16.msra.mxu0 %v764
  %1001 = vmatpush.bf16.msra.mxu0 %v762
  %1002 = vmatpush.bf16.msra.mxu0 %v760
  %1003 = vmatpush.bf16.msra.mxu0 %v758
  %1004 = vmatpush.bf16.msra.mxu0 %v756
  %1005 = vmatmul.bf16.gmra.mxu0 %v621
  %v1006 = vpop.f32.mrf.mxu0
  %v1007 = vadd.f32 %v656, %v1006
  %v1008 = vpop.f32.mrf.mxu0
  %v1009 = vadd.f32 %v656, %v1008
  %1010 = vmatmul.bf16.gmra.mxu0 %v623
  %v1011 = vpop.f32.mrf.mxu0
  %v1012 = vadd.f32 %v656, %v1011
  %v1013 = vpop.f32.mrf.mxu0
  %v1014 = vadd.f32 %v656, %v1013
  %1015 = vmatmul.bf16.gmra.mxu0 %v625
  %v1016 = vpop.f32.mrf.mxu0
  %v1017 = vadd.f32 %v656, %v1016
  %v1018 = vpop.f32.mrf.mxu0
  %v1019 = vadd.f32 %v656, %v1018
  %1020 = vmatmul.bf16.gmra.mxu0 %v627
  %v1021 = vpop.f32.mrf.mxu0
  %v1022 = vadd.f32 %v656, %v1021
  %v1023 = vpop.f32.mrf.mxu0
  %v1024 = vadd.f32 %v656, %v1023
  %1025 = vmatmul.bf16.gmra.mxu0 %v629
  %v1026 = vpop.f32.mrf.mxu0
  %v1027 = vadd.f32 %v656, %v1026
  %v1028 = vpop.f32.mrf.mxu0
  %v1029 = vadd.f32 %v656, %v1028
  %1030 = vmatmul.bf16.gmra.mxu0 %v631
  %v1031 = vpop.f32.mrf.mxu0
  %v1032 = vadd.f32 %v656, %v1031
  %v1033 = vpop.f32.mrf.mxu0
  %v1034 = vadd.f32 %v656, %v1033
  %1035 = vmatmul.bf16.gmra.mxu0 %v633
  %v1036 = vpop.f32.mrf.mxu0
  %v1037 = vadd.f32 %v656, %v1036
  %v1038 = vpop.f32.mrf.mxu0
  %v1039 = vadd.f32 %v656, %v1038
  %1040 = vmatmul.bf16.gmra.mxu0 %v635
  %v1041 = vpop.f32.mrf.mxu0
  %v1042 = vadd.f32 %v656, %v1041
  %v1043 = vpop.f32.mrf.mxu0
  %v1044 = vadd.f32 %v656, %v1043
  %1045 = vmatmul.bf16.gmra.mxu0 %v637
  %v1046 = vpop.f32.mrf.mxu0
  %v1047 = vadd.f32 %v656, %v1046
  %v1048 = vpop.f32.mrf.mxu0
  %v1049 = vadd.f32 %v656, %v1048
  %1050 = vmatmul.bf16.gmra.mxu0 %v639
  %v1051 = vpop.f32.mrf.mxu0
  %v1052 = vadd.f32 %v656, %v1051
  %v1053 = vpop.f32.mrf.mxu0
  %v1054 = vadd.f32 %v656, %v1053
  %1055 = vmatmul.bf16.gmra.mxu0 %v641
  %v1056 = vpop.f32.mrf.mxu0
  %v1057 = vadd.f32 %v656, %v1056
  %v1058 = vpop.f32.mrf.mxu0
  %v1059 = vadd.f32 %v656, %v1058
  %1060 = vmatmul.bf16.gmra.mxu0 %v643
  %v1061 = vpop.f32.mrf.mxu0
  %v1062 = vadd.f32 %v656, %v1061
  %v1063 = vpop.f32.mrf.mxu0
  %v1064 = vadd.f32 %v656, %v1063
  %1065 = vmatmul.bf16.gmra.mxu0 %v645
  %v1066 = vpop.f32.mrf.mxu0
  %v1067 = vadd.f32 %v656, %v1066
  %v1068 = vpop.f32.mrf.mxu0
  %v1069 = vadd.f32 %v656, %v1068
  %1070 = vmatmul.bf16.gmra.mxu0 %v647
  %v1071 = vpop.f32.mrf.mxu0
  %v1072 = vadd.f32 %v656, %v1071
  %v1073 = vpop.f32.mrf.mxu0
  %v1074 = vadd.f32 %v656, %v1073
  %1075 = vmatmul.bf16.gmra.mxu0 %v649
  %v1076 = vpop.f32.mrf.mxu0
  %v1077 = vadd.f32 %v656, %v1076
  %v1078 = vpop.f32.mrf.mxu0
  %v1079 = vadd.f32 %v656, %v1078
  %1080 = vmatmul.bf16.gmra.mxu0 %v651
  %v1081 = vpop.f32.mrf.mxu0
  %v1082 = vadd.f32 %v656, %v1081
  %v1083 = vpop.f32.mrf.mxu0
  %v1084 = vadd.f32 %v656, %v1083
  %1085 = vdwg.mxu0
  %1086 = vmatpush.bf16.msra.mxu0 %v786
  %1087 = vmatpush.bf16.msra.mxu0 %v784
  %1088 = vmatpush.bf16.msra.mxu0 %v782
  %1089 = vmatpush.bf16.msra.mxu0 %v780
  %1090 = vmatpush.bf16.msra.mxu0 %v778
  %1091 = vmatpush.bf16.msra.mxu0 %v776
  %1092 = vmatpush.bf16.msra.mxu0 %v774
  %1093 = vmatpush.bf16.msra.mxu0 %v772
  %1094 = vmatmul.bf16.gmra.mxu0 %v622
  %v1095 = vpop.f32.mrf.mxu0
  %v1096 = vadd.f32 %v1007, %v1095
  %v1097 = vpop.f32.mrf.mxu0
  %v1098 = vadd.f32 %v1009, %v1097
  %1099 = vmatmul.bf16.gmra.mxu0 %v624
  %v1100 = vpop.f32.mrf.mxu0
  %v1101 = vadd.f32 %v1012, %v1100
  %v1102 = vpop.f32.mrf.mxu0
  %v1103 = vadd.f32 %v1014, %v1102
  %1104 = vmatmul.bf16.gmra.mxu0 %v626
  %v1105 = vpop.f32.mrf.mxu0
  %v1106 = vadd.f32 %v1017, %v1105
  %v1107 = vpop.f32.mrf.mxu0
  %v1108 = vadd.f32 %v1019, %v1107
  %1109 = vmatmul.bf16.gmra.mxu0 %v628
  %v1110 = vpop.f32.mrf.mxu0
  %v1111 = vadd.f32 %v1022, %v1110
  %v1112 = vpop.f32.mrf.mxu0
  %v1113 = vadd.f32 %v1024, %v1112
  %1114 = vmatmul.bf16.gmra.mxu0 %v630
  %v1115 = vpop.f32.mrf.mxu0
  %v1116 = vadd.f32 %v1027, %v1115
  %v1117 = vpop.f32.mrf.mxu0
  %v1118 = vadd.f32 %v1029, %v1117
  %1119 = vmatmul.bf16.gmra.mxu0 %v632
  %v1120 = vpop.f32.mrf.mxu0
  %v1121 = vadd.f32 %v1032, %v1120
  %v1122 = vpop.f32.mrf.mxu0
  %v1123 = vadd.f32 %v1034, %v1122
  %1124 = vmatmul.bf16.gmra.mxu0 %v634
  %v1125 = vpop.f32.mrf.mxu0
  %v1126 = vadd.f32 %v1037, %v1125
  %v1127 = vpop.f32.mrf.mxu0
  %v1128 = vadd.f32 %v1039, %v1127
  %1129 = vmatmul.bf16.gmra.mxu0 %v636
  %v1130 = vpop.f32.mrf.mxu0
  %v1131 = vadd.f32 %v1042, %v1130
  %v1132 = vpop.f32.mrf.mxu0
  %v1133 = vadd.f32 %v1044, %v1132
  %1134 = vmatmul.bf16.gmra.mxu0 %v638
  %v1135 = vpop.f32.mrf.mxu0
  %v1136 = vadd.f32 %v1047, %v1135
  %v1137 = vpop.f32.mrf.mxu0
  %v1138 = vadd.f32 %v1049, %v1137
  %1139 = vmatmul.bf16.gmra.mxu0 %v640
  %v1140 = vpop.f32.mrf.mxu0
  %v1141 = vadd.f32 %v1052, %v1140
  %v1142 = vpop.f32.mrf.mxu0
  %v1143 = vadd.f32 %v1054, %v1142
  %1144 = vmatmul.bf16.gmra.mxu0 %v642
  %v1145 = vpop.f32.mrf.mxu0
  %v1146 = vadd.f32 %v1057, %v1145
  %v1147 = vpop.f32.mrf.mxu0
  %v1148 = vadd.f32 %v1059, %v1147
  %1149 = vmatmul.bf16.gmra.mxu0 %v644
  %v1150 = vpop.f32.mrf.mxu0
  %v1151 = vadd.f32 %v1062, %v1150
  %v1152 = vpop.f32.mrf.mxu0
  %v1153 = vadd.f32 %v1064, %v1152
  %1154 = vmatmul.bf16.gmra.mxu0 %v646
  %v1155 = vpop.f32.mrf.mxu0
  %v1156 = vadd.f32 %v1067, %v1155
  %v1157 = vpop.f32.mrf.mxu0
  %v1158 = vadd.f32 %v1069, %v1157
  %1159 = vmatmul.bf16.gmra.mxu0 %v648
  %v1160 = vpop.f32.mrf.mxu0
  %v1161 = vadd.f32 %v1072, %v1160
  %v1162 = vpop.f32.mrf.mxu0
  %v1163 = vadd.f32 %v1074, %v1162
  %1164 = vmatmul.bf16.gmra.mxu0 %v650
  %v1165 = vpop.f32.mrf.mxu0
  %v1166 = vadd.f32 %v1077, %v1165
  %v1167 = vpop.f32.mrf.mxu0
  %v1168 = vadd.f32 %v1079, %v1167
  %1169 = vmatmul.bf16.gmra.mxu0 %v652
  %v1170 = vpop.f32.mrf.mxu0
  %v1171 = vadd.f32 %v1082, %v1170
  %v1172 = vpop.f32.mrf.mxu0
  %v1173 = vadd.f32 %v1084, %v1172
  %1174 = vdwg.mxu0
  %v1175 = vmax.f32 %v918, 0.0
  %v1176 = vmax.f32 %v1096, 0.0
  %v1177 = vmax.f32 %v920, 0.0
  %v1178 = vmax.f32 %v1098, 0.0
  %v1179 = vmax.f32 %v923, 0.0
  %v1180 = vmax.f32 %v1101, 0.0
  %v1181 = vmax.f32 %v925, 0.0
  %v1182 = vmax.f32 %v1103, 0.0
  %v1183 = vmax.f32 %v928, 0.0
  %v1184 = vmax.f32 %v1106, 0.0
  %v1185 = vmax.f32 %v930, 0.0
  %v1186 = vmax.f32 %v1108, 0.0
  %v1187 = vmax.f32 %v933, 0.0
  %v1188 = vmax.f32 %v1111, 0.0
  %v1189 = vmax.f32 %v935, 0.0
  %v1190 = vmax.f32 %v1113, 0.0
  %v1191 = vmax.f32 %v938, 0.0
  %v1192 = vmax.f32 %v1116, 0.0
  %v1193 = vmax.f32 %v940, 0.0
  %v1194 = vmax.f32 %v1118, 0.0
  %v1195 = vmax.f32 %v943, 0.0
  %v1196 = vmax.f32 %v1121, 0.0
  %v1197 = vmax.f32 %v945, 0.0
  %v1198 = vmax.f32 %v1123, 0.0
  %v1199 = vmax.f32 %v948, 0.0
  %v1200 = vmax.f32 %v1126, 0.0
  %v1201 = vmax.f32 %v950, 0.0
  %v1202 = vmax.f32 %v1128, 0.0
  %v1203 = vmax.f32 %v953, 0.0
  %v1204 = vmax.f32 %v1131, 0.0
  %v1205 = vmax.f32 %v955, 0.0
  %v1206 = vmax.f32 %v1133, 0.0
  %v1207 = vmax.f32 %v958, 0.0
  %v1208 = vmax.f32 %v1136, 0.0
  %v1209 = vmax.f32 %v960, 0.0
  %v1210 = vmax.f32 %v1138, 0.0
  %v1211 = vmax.f32 %v963, 0.0
  %v1212 = vmax.f32 %v1141, 0.0
  %v1213 = vmax.f32 %v965, 0.0
  %v1214 = vmax.f32 %v1143, 0.0
  %v1215 = vmax.f32 %v968, 0.0
  %v1216 = vmax.f32 %v1146, 0.0
  %v1217 = vmax.f32 %v970, 0.0
  %v1218 = vmax.f32 %v1148, 0.0
  %v1219 = vmax.f32 %v973, 0.0
  %v1220 = vmax.f32 %v1151, 0.0
  %v1221 = vmax.f32 %v975, 0.0
  %v1222 = vmax.f32 %v1153, 0.0
  %v1223 = vmax.f32 %v978, 0.0
  %v1224 = vmax.f32 %v1156, 0.0
  %v1225 = vmax.f32 %v980, 0.0
  %v1226 = vmax.f32 %v1158, 0.0
  %v1227 = vmax.f32 %v983, 0.0
  %v1228 = vmax.f32 %v1161, 0.0
  %v1229 = vmax.f32 %v985, 0.0
  %v1230 = vmax.f32 %v1163, 0.0
  %v1231 = vmax.f32 %v988, 0.0
  %v1232 = vmax.f32 %v1166, 0.0
  %v1233 = vmax.f32 %v990, 0.0
  %v1234 = vmax.f32 %v1168, 0.0
  %v1235 = vmax.f32 %v993, 0.0
  %v1236 = vmax.f32 %v1171, 0.0
  %v1237 = vmax.f32 %v995, 0.0
  %v1238 = vmax.f32 %v1173, 0.0
  %v1239 = vld [vmem:[%s6] sm:$0xff]
  %v1240 = vld [vmem:[%s6 + $0x8] sm:$0xff]
  %v1241 = vld [vmem:[%s6 + $0x10] sm:$0xff]
  %v1242 = vld [vmem:[%s6 + $0x18] sm:$0xff]
  %v1243 = vld [vmem:[%s6 + $0x20] sm:$0xff]
  %v1244 = vld [vmem:[%s6 + $0x28] sm:$0xff]
  %v1245 = vld [vmem:[%s6 + $0x30] sm:$0xff]
  %v1246 = vld [vmem:[%s6 + $0x38] sm:$0xff]
  %v1247 = vld [vmem:[%s6 + $0x40] sm:$0xff]
  %v1248 = vld [vmem:[%s6 + $0x48] sm:$0xff]
  %v1249 = vld [vmem:[%s6 + $0x50] sm:$0xff]
  %v1250 = vld [vmem:[%s6 + $0x58] sm:$0xff]
  %v1251 = vld [vmem:[%s6 + $0x60] sm:$0xff]
  %v1252 = vld [vmem:[%s6 + $0x68] sm:$0xff]
  %v1253 = vld [vmem:[%s6 + $0x70] sm:$0xff]
  %v1254 = vld [vmem:[%s6 + $0x78] sm:$0xff]
  %v1255 = vld [vmem:[%s6 + $0x80] sm:$0xff]
  %v1256 = vld [vmem:[%s6 + $0x88] sm:$0xff]
  %v1257 = vld [vmem:[%s6 + $0x90] sm:$0xff]
  %v1258 = vld [vmem:[%s6 + $0x98] sm:$0xff]
  %v1259 = vld [vmem:[%s6 + $0xa0] sm:$0xff]
  %v1260 = vld [vmem:[%s6 + $0xa8] sm:$0xff]
  %v1261 = vld [vmem:[%s6 + $0xb0] sm:$0xff]
  %v1262 = vld [vmem:[%s6 + $0xb8] sm:$0xff]
  %v1263 = vld [vmem:[%s6 + $0xc0] sm:$0xff]
  %v1264 = vld [vmem:[%s6 + $0xc8] sm:$0xff]
  %v1265 = vld [vmem:[%s6 + $0xd0] sm:$0xff]
  %v1266 = vld [vmem:[%s6 + $0xd8] sm:$0xff]
  %v1267 = vld [vmem:[%s6 + $0xe0] sm:$0xff]
  %v1268 = vld [vmem:[%s6 + $0xe8] sm:$0xff]
  %v1269 = vld [vmem:[%s6 + $0xf0] sm:$0xff]
  %v1270 = vld [vmem:[%s6 + $0xf8] sm:$0xff]
  %v1271 = vpack.c.bf16 %v1177, %v1175
  %v1272 = vpack.c.bf16 %v1178, %v1176
  %v1273 = vpack.c.bf16 %v1181, %v1179
  %v1274 = vpack.c.bf16 %v1182, %v1180
  %v1275 = vpack.c.bf16 %v1185, %v1183
  %v1276 = vpack.c.bf16 %v1186, %v1184
  %v1277 = vpack.c.bf16 %v1189, %v1187
  %v1278 = vpack.c.bf16 %v1190, %v1188
  %v1279 = vpack.c.bf16 %v1193, %v1191
  %v1280 = vpack.c.bf16 %v1194, %v1192
  %v1281 = vpack.c.bf16 %v1197, %v1195
  %v1282 = vpack.c.bf16 %v1198, %v1196
  %v1283 = vpack.c.bf16 %v1201, %v1199
  %v1284 = vpack.c.bf16 %v1202, %v1200
  %v1285 = vpack.c.bf16 %v1205, %v1203
  %v1286 = vpack.c.bf16 %v1206, %v1204
  %v1287 = vpack.c.bf16 %v1209, %v1207
  %v1288 = vpack.c.bf16 %v1210, %v1208
  %v1289 = vpack.c.bf16 %v1213, %v1211
  %v1290 = vpack.c.bf16 %v1214, %v1212
  %v1291 = vpack.c.bf16 %v1217, %v1215
  %v1292 = vpack.c.bf16 %v1218, %v1216
  %v1293 = vpack.c.bf16 %v1221, %v1219
  %v1294 = vpack.c.bf16 %v1222, %v1220
  %v1295 = vpack.c.bf16 %v1225, %v1223
  %v1296 = vpack.c.bf16 %v1226, %v1224
  %v1297 = vpack.c.bf16 %v1229, %v1227
  %v1298 = vpack.c.bf16 %v1230, %v1228
  %v1299 = vpack.c.bf16 %v1233, %v1231
  %v1300 = vpack.c.bf16 %v1234, %v1232
  %v1301 = vpack.c.bf16 %v1237, %v1235
  %v1302 = vpack.c.bf16 %v1238, %v1236
  %v1303 = vld [vmem:[%s7] sm:$0x3]
  %v1305 = vperm.slane %v1303, 0
  %v1306 = vperm.slane %v1303, 1
  %v1341 = vunpack.c.l.b16 %v1239
  %v1342 = vunpack.c.h.b16 %v1239
  %v1343 = vunpack.c.l.b16 %v1240
  %v1344 = vunpack.c.h.b16 %v1240
  %v1345 = vunpack.c.l.b16 %v1241
  %v1346 = vunpack.c.h.b16 %v1241
  %v1347 = vunpack.c.l.b16 %v1242
  %v1348 = vunpack.c.h.b16 %v1242
  %v1349 = vunpack.c.l.b16 %v1243
  %v1350 = vunpack.c.h.b16 %v1243
  %v1351 = vunpack.c.l.b16 %v1244
  %v1352 = vunpack.c.h.b16 %v1244
  %v1353 = vunpack.c.l.b16 %v1245
  %v1354 = vunpack.c.h.b16 %v1245
  %v1355 = vunpack.c.l.b16 %v1246
  %v1356 = vunpack.c.h.b16 %v1246
  %v1357 = vunpack.c.l.b16 %v1247
  %v1358 = vunpack.c.h.b16 %v1247
  %v1359 = vunpack.c.l.b16 %v1248
  %v1360 = vunpack.c.h.b16 %v1248
  %v1361 = vunpack.c.l.b16 %v1249
  %v1362 = vunpack.c.h.b16 %v1249
  %v1363 = vunpack.c.l.b16 %v1250
  %v1364 = vunpack.c.h.b16 %v1250
  %v1365 = vunpack.c.l.b16 %v1251
  %v1366 = vunpack.c.h.b16 %v1251
  %v1367 = vunpack.c.l.b16 %v1252
  %v1368 = vunpack.c.h.b16 %v1252
  %v1369 = vunpack.c.l.b16 %v1253
  %v1370 = vunpack.c.h.b16 %v1253
  %v1371 = vunpack.c.l.b16 %v1254
  %v1372 = vunpack.c.h.b16 %v1254
  %v1373 = vunpack.c.l.b16 %v1255
  %v1374 = vunpack.c.h.b16 %v1255
  %v1375 = vunpack.c.l.b16 %v1256
  %v1376 = vunpack.c.h.b16 %v1256
  %v1377 = vunpack.c.l.b16 %v1257
  %v1378 = vunpack.c.h.b16 %v1257
  %v1379 = vunpack.c.l.b16 %v1258
  %v1380 = vunpack.c.h.b16 %v1258
  %v1381 = vunpack.c.l.b16 %v1259
  %v1382 = vunpack.c.h.b16 %v1259
  %v1383 = vunpack.c.l.b16 %v1260
  %v1384 = vunpack.c.h.b16 %v1260
  %v1385 = vunpack.c.l.b16 %v1261
  %v1386 = vunpack.c.h.b16 %v1261
  %v1387 = vunpack.c.l.b16 %v1262
  %v1388 = vunpack.c.h.b16 %v1262
  %v1389 = vunpack.c.l.b16 %v1263
  %v1390 = vunpack.c.h.b16 %v1263
  %v1391 = vunpack.c.l.b16 %v1264
  %v1392 = vunpack.c.h.b16 %v1264
  %v1393 = vunpack.c.l.b16 %v1265
  %v1394 = vunpack.c.h.b16 %v1265
  %v1395 = vunpack.c.l.b16 %v1266
  %v1396 = vunpack.c.h.b16 %v1266
  %v1397 = vunpack.c.l.b16 %v1267
  %v1398 = vunpack.c.h.b16 %v1267
  %v1399 = vunpack.c.l.b16 %v1268
  %v1400 = vunpack.c.h.b16 %v1268
  %v1401 = vunpack.c.l.b16 %v1269
  %v1402 = vunpack.c.h.b16 %v1269
  %v1403 = vunpack.c.l.b16 %v1270
  %v1404 = vunpack.c.h.b16 %v1270
  %v1405 = vpack.c.b16 %v1343, %v1341
  %v1406 = vpack.c.b16 %v1344, %v1342
  %v1407 = vpack.c.b16 %v1347, %v1345
  %v1408 = vpack.c.b16 %v1348, %v1346
  %v1409 = vpack.c.b16 %v1351, %v1349
  %v1410 = vpack.c.b16 %v1352, %v1350
  %v1411 = vpack.c.b16 %v1355, %v1353
  %v1412 = vpack.c.b16 %v1356, %v1354
  %v1413 = vpack.c.b16 %v1359, %v1357
  %v1414 = vpack.c.b16 %v1360, %v1358
  %v1415 = vpack.c.b16 %v1363, %v1361
  %v1416 = vpack.c.b16 %v1364, %v1362
  %v1417 = vpack.c.b16 %v1367, %v1365
  %v1418 = vpack.c.b16 %v1368, %v1366
  %v1419 = vpack.c.b16 %v1371, %v1369
  %v1420 = vpack.c.b16 %v1372, %v1370
  %v1421 = vpack.c.b16 %v1375, %v1373
  %v1422 = vpack.c.b16 %v1376, %v1374
  %v1423 = vpack.c.b16 %v1379, %v1377
  %v1424 = vpack.c.b16 %v1380, %v1378
  %v1425 = vpack.c.b16 %v1383, %v1381
  %v1426 = vpack.c.b16 %v1384, %v1382
  %v1427 = vpack.c.b16 %v1387, %v1385
  %v1428 = vpack.c.b16 %v1388, %v1386
  %v1429 = vpack.c.b16 %v1391, %v1389
  %v1430 = vpack.c.b16 %v1392, %v1390
  %v1431 = vpack.c.b16 %v1395, %v1393
  %v1432 = vpack.c.b16 %v1396, %v1394
  %v1433 = vpack.c.b16 %v1399, %v1397
  %v1434 = vpack.c.b16 %v1400, %v1398
  %v1435 = vpack.c.b16 %v1403, %v1401
  %v1436 = vpack.c.b16 %v1404, %v1402
  %1469 = vmatpush.bf16.msra.mxu0 %v1419
  %1470 = vmatpush.bf16.msra.mxu0 %v1417
  %1471 = vmatpush.bf16.msra.mxu0 %v1415
  %1472 = vmatpush.bf16.msra.mxu0 %v1413
  %1473 = vmatpush.bf16.msra.mxu0 %v1411
  %1474 = vmatpush.bf16.msra.mxu0 %v1409
  %1475 = vmatpush.bf16.msra.mxu0 %v1407
  %1476 = vmatpush.bf16.msra.mxu0 %v1405
  %1477 = vmatmul.bf16.gmra.mxu0 %v1271
  %v1478 = vpop.f32.mrf.mxu0
  %v1479 = vadd.f32 %v1305, %v1478
  %v1480 = vpop.f32.mrf.mxu0
  %v1481 = vadd.f32 %v1305, %v1480
  %1482 = vmatmul.bf16.gmra.mxu0 %v1273
  %v1483 = vpop.f32.mrf.mxu0
  %v1484 = vadd.f32 %v1305, %v1483
  %v1485 = vpop.f32.mrf.mxu0
  %v1486 = vadd.f32 %v1305, %v1485
  %1487 = vmatmul.bf16.gmra.mxu0 %v1275
  %v1488 = vpop.f32.mrf.mxu0
  %v1489 = vadd.f32 %v1305, %v1488
  %v1490 = vpop.f32.mrf.mxu0
  %v1491 = vadd.f32 %v1305, %v1490
  %1492 = vmatmul.bf16.gmra.mxu0 %v1277
  %v1493 = vpop.f32.mrf.mxu0
  %v1494 = vadd.f32 %v1305, %v1493
  %v1495 = vpop.f32.mrf.mxu0
  %v1496 = vadd.f32 %v1305, %v1495
  %1497 = vmatmul.bf16.gmra.mxu0 %v1279
  %v1498 = vpop.f32.mrf.mxu0
  %v1499 = vadd.f32 %v1305, %v1498
  %v1500 = vpop.f32.mrf.mxu0
  %v1501 = vadd.f32 %v1305, %v1500
  %1502 = vmatmul.bf16.gmra.mxu0 %v1281
  %v1503 = vpop.f32.mrf.mxu0
  %v1504 = vadd.f32 %v1305, %v1503
  %v1505 = vpop.f32.mrf.mxu0
  %v1506 = vadd.f32 %v1305, %v1505
  %1507 = vmatmul.bf16.gmra.mxu0 %v1283
  %v1508 = vpop.f32.mrf.mxu0
  %v1509 = vadd.f32 %v1305, %v1508
  %v1510 = vpop.f32.mrf.mxu0
  %v1511 = vadd.f32 %v1305, %v1510
  %1512 = vmatmul.bf16.gmra.mxu0 %v1285
  %v1513 = vpop.f32.mrf.mxu0
  %v1514 = vadd.f32 %v1305, %v1513
  %v1515 = vpop.f32.mrf.mxu0
  %v1516 = vadd.f32 %v1305, %v1515
  %1517 = vmatmul.bf16.gmra.mxu0 %v1287
  %v1518 = vpop.f32.mrf.mxu0
  %v1519 = vadd.f32 %v1305, %v1518
  %v1520 = vpop.f32.mrf.mxu0
  %v1521 = vadd.f32 %v1305, %v1520
  %1522 = vmatmul.bf16.gmra.mxu0 %v1289
  %v1523 = vpop.f32.mrf.mxu0
  %v1524 = vadd.f32 %v1305, %v1523
  %v1525 = vpop.f32.mrf.mxu0
  %v1526 = vadd.f32 %v1305, %v1525
  %1527 = vmatmul.bf16.gmra.mxu0 %v1291
  %v1528 = vpop.f32.mrf.mxu0
  %v1529 = vadd.f32 %v1305, %v1528
  %v1530 = vpop.f32.mrf.mxu0
  %v1531 = vadd.f32 %v1305, %v1530
  %1532 = vmatmul.bf16.gmra.mxu0 %v1293
  %v1533 = vpop.f32.mrf.mxu0
  %v1534 = vadd.f32 %v1305, %v1533
  %v1535 = vpop.f32.mrf.mxu0
  %v1536 = vadd.f32 %v1305, %v1535
  %1537 = vmatmul.bf16.gmra.mxu0 %v1295
  %v1538 = vpop.f32.mrf.mxu0
  %v1539 = vadd.f32 %v1305, %v1538
  %v1540 = vpop.f32.mrf.mxu0
  %v1541 = vadd.f32 %v1305, %v1540
  %1542 = vmatmul.bf16.gmra.mxu0 %v1297
  %v1543 = vpop.f32.mrf.mxu0
  %v1544 = vadd.f32 %v1305, %v1543
  %v1545 = vpop.f32.mrf.mxu0
  %v1546 = vadd.f32 %v1305, %v1545
  %1547 = vmatmul.bf16.gmra.mxu0 %v1299
  %v1548 = vpop.f32.mrf.mxu0
  %v1549 = vadd.f32 %v1305, %v1548
  %v1550 = vpop.f32.mrf.mxu0
  %v1551 = vadd.f32 %v1305, %v1550
  %1552 = vmatmul.bf16.gmra.mxu0 %v1301
  %v1553 = vpop.f32.mrf.mxu0
  %v1554 = vadd.f32 %v1305, %v1553
  %v1555 = vpop.f32.mrf.mxu0
  %v1556 = vadd.f32 %v1305, %v1555
  %1557 = vdwg.mxu0
  %1558 = vmatpush.bf16.msra.mxu0 %v1435
  %1559 = vmatpush.bf16.msra.mxu0 %v1433
  %1560 = vmatpush.bf16.msra.mxu0 %v1431
  %1561 = vmatpush.bf16.msra.mxu0 %v1429
  %1562 = vmatpush.bf16.msra.mxu0 %v1427
  %1563 = vmatpush.bf16.msra.mxu0 %v1425
  %1564 = vmatpush.bf16.msra.mxu0 %v1423
  %1565 = vmatpush.bf16.msra.mxu0 %v1421
  %1566 = vmatmul.bf16.gmra.mxu0 %v1272
  %v1567 = vpop.f32.mrf.mxu0
  %v1568 = vadd.f32 %v1479, %v1567
  %v1569 = vpop.f32.mrf.mxu0
  %v1570 = vadd.f32 %v1481, %v1569
  %1571 = vmatmul.bf16.gmra.mxu0 %v1274
  %v1572 = vpop.f32.mrf.mxu0
  %v1573 = vadd.f32 %v1484, %v1572
  %v1574 = vpop.f32.mrf.mxu0
  %v1575 = vadd.f32 %v1486, %v1574
  %1576 = vmatmul.bf16.gmra.mxu0 %v1276
  %v1577 = vpop.f32.mrf.mxu0
  %v1578 = vadd.f32 %v1489, %v1577
  %v1579 = vpop.f32.mrf.mxu0
  %v1580 = vadd.f32 %v1491, %v1579
  %1581 = vmatmul.bf16.gmra.mxu0 %v1278
  %v1582 = vpop.f32.mrf.mxu0
  %v1583 = vadd.f32 %v1494, %v1582
  %v1584 = vpop.f32.mrf.mxu0
  %v1585 = vadd.f32 %v1496, %v1584
  %1586 = vmatmul.bf16.gmra.mxu0 %v1280
  %v1587 = vpop.f32.mrf.mxu0
  %v1588 = vadd.f32 %v1499, %v1587
  %v1589 = vpop.f32.mrf.mxu0
  %v1590 = vadd.f32 %v1501, %v1589
  %1591 = vmatmul.bf16.gmra.mxu0 %v1282
  %v1592 = vpop.f32.mrf.mxu0
  %v1593 = vadd.f32 %v1504, %v1592
  %v1594 = vpop.f32.mrf.mxu0
  %v1595 = vadd.f32 %v1506, %v1594
  %1596 = vmatmul.bf16.gmra.mxu0 %v1284
  %v1597 = vpop.f32.mrf.mxu0
  %v1598 = vadd.f32 %v1509, %v1597
  %v1599 = vpop.f32.mrf.mxu0
  %v1600 = vadd.f32 %v1511, %v1599
  %1601 = vmatmul.bf16.gmra.mxu0 %v1286
  %v1602 = vpop.f32.mrf.mxu0
  %v1603 = vadd.f32 %v1514, %v1602
  %v1604 = vpop.f32.mrf.mxu0
  %v1605 = vadd.f32 %v1516, %v1604
  %1606 = vmatmul.bf16.gmra.mxu0 %v1288
  %v1607 = vpop.f32.mrf.mxu0
  %v1608 = vadd.f32 %v1519, %v1607
  %v1609 = vpop.f32.mrf.mxu0
  %v1610 = vadd.f32 %v1521, %v1609
  %1611 = vmatmul.bf16.gmra.mxu0 %v1290
  %v1612 = vpop.f32.mrf.mxu0
  %v1613 = vadd.f32 %v1524, %v1612
  %v1614 = vpop.f32.mrf.mxu0
  %v1615 = vadd.f32 %v1526, %v1614
  %1616 = vmatmul.bf16.gmra.mxu0 %v1292
  %v1617 = vpop.f32.mrf.mxu0
  %v1618 = vadd.f32 %v1529, %v1617
  %v1619 = vpop.f32.mrf.mxu0
  %v1620 = vadd.f32 %v1531, %v1619
  %1621 = vmatmul.bf16.gmra.mxu0 %v1294
  %v1622 = vpop.f32.mrf.mxu0
  %v1623 = vadd.f32 %v1534, %v1622
  %v1624 = vpop.f32.mrf.mxu0
  %v1625 = vadd.f32 %v1536, %v1624
  %1626 = vmatmul.bf16.gmra.mxu0 %v1296
  %v1627 = vpop.f32.mrf.mxu0
  %v1628 = vadd.f32 %v1539, %v1627
  %v1629 = vpop.f32.mrf.mxu0
  %v1630 = vadd.f32 %v1541, %v1629
  %1631 = vmatmul.bf16.gmra.mxu0 %v1298
  %v1632 = vpop.f32.mrf.mxu0
  %v1633 = vadd.f32 %v1544, %v1632
  %v1634 = vpop.f32.mrf.mxu0
  %v1635 = vadd.f32 %v1546, %v1634
  %1636 = vmatmul.bf16.gmra.mxu0 %v1300
  %v1637 = vpop.f32.mrf.mxu0
  %v1638 = vadd.f32 %v1549, %v1637
  %v1639 = vpop.f32.mrf.mxu0
  %v1640 = vadd.f32 %v1551, %v1639
  %1641 = vmatmul.bf16.gmra.mxu0 %v1302
  %v1642 = vpop.f32.mrf.mxu0
  %v1643 = vadd.f32 %v1554, %v1642
  %v1644 = vpop.f32.mrf.mxu0
  %v1645 = vadd.f32 %v1556, %v1644
  %1646 = vdwg.mxu0
  %1647 = vmatpush.bf16.msra.mxu0 %v1420
  %1648 = vmatpush.bf16.msra.mxu0 %v1418
  %1649 = vmatpush.bf16.msra.mxu0 %v1416
  %1650 = vmatpush.bf16.msra.mxu0 %v1414
  %1651 = vmatpush.bf16.msra.mxu0 %v1412
  %1652 = vmatpush.bf16.msra.mxu0 %v1410
  %1653 = vmatpush.bf16.msra.mxu0 %v1408
  %1654 = vmatpush.bf16.msra.mxu0 %v1406
  %1655 = vmatmul.bf16.gmra.mxu0 %v1271
  %v1656 = vpop.f32.mrf.mxu0
  %v1657 = vadd.f32 %v1306, %v1656
  %v1658 = vpop.f32.mrf.mxu0
  %v1659 = vadd.f32 %v1306, %v1658
  %1660 = vmatmul.bf16.gmra.mxu0 %v1273
  %v1661 = vpop.f32.mrf.mxu0
  %v1662 = vadd.f32 %v1306, %v1661
  %v1663 = vpop.f32.mrf.mxu0
  %v1664 = vadd.f32 %v1306, %v1663
  %1665 = vmatmul.bf16.gmra.mxu0 %v1275
  %v1666 = vpop.f32.mrf.mxu0
  %v1667 = vadd.f32 %v1306, %v1666
  %v1668 = vpop.f32.mrf.mxu0
  %v1669 = vadd.f32 %v1306, %v1668
  %1670 = vmatmul.bf16.gmra.mxu0 %v1277
  %v1671 = vpop.f32.mrf.mxu0
  %v1672 = vadd.f32 %v1306, %v1671
  %v1673 = vpop.f32.mrf.mxu0
  %v1674 = vadd.f32 %v1306, %v1673
  %1675 = vmatmul.bf16.gmra.mxu0 %v1279
  %v1676 = vpop.f32.mrf.mxu0
  %v1677 = vadd.f32 %v1306, %v1676
  %v1678 = vpop.f32.mrf.mxu0
  %v1679 = vadd.f32 %v1306, %v1678
  %1680 = vmatmul.bf16.gmra.mxu0 %v1281
  %v1681 = vpop.f32.mrf.mxu0
  %v1682 = vadd.f32 %v1306, %v1681
  %v1683 = vpop.f32.mrf.mxu0
  %v1684 = vadd.f32 %v1306, %v1683
  %1685 = vmatmul.bf16.gmra.mxu0 %v1283
  %v1686 = vpop.f32.mrf.mxu0
  %v1687 = vadd.f32 %v1306, %v1686
  %v1688 = vpop.f32.mrf.mxu0
  %v1689 = vadd.f32 %v1306, %v1688
  %1690 = vmatmul.bf16.gmra.mxu0 %v1285
  %v1691 = vpop.f32.mrf.mxu0
  %v1692 = vadd.f32 %v1306, %v1691
  %v1693 = vpop.f32.mrf.mxu0
  %v1694 = vadd.f32 %v1306, %v1693
  %1695 = vmatmul.bf16.gmra.mxu0 %v1287
  %v1696 = vpop.f32.mrf.mxu0
  %v1697 = vadd.f32 %v1306, %v1696
  %v1698 = vpop.f32.mrf.mxu0
  %v1699 = vadd.f32 %v1306, %v1698
  %1700 = vmatmul.bf16.gmra.mxu0 %v1289
  %v1701 = vpop.f32.mrf.mxu0
  %v1702 = vadd.f32 %v1306, %v1701
  %v1703 = vpop.f32.mrf.mxu0
  %v1704 = vadd.f32 %v1306, %v1703
  %1705 = vmatmul.bf16.gmra.mxu0 %v1291
  %v1706 = vpop.f32.mrf.mxu0
  %v1707 = vadd.f32 %v1306, %v1706
  %v1708 = vpop.f32.mrf.mxu0
  %v1709 = vadd.f32 %v1306, %v1708
  %1710 = vmatmul.bf16.gmra.mxu0 %v1293
  %v1711 = vpop.f32.mrf.mxu0
  %v1712 = vadd.f32 %v1306, %v1711
  %v1713 = vpop.f32.mrf.mxu0
  %v1714 = vadd.f32 %v1306, %v1713
  %1715 = vmatmul.bf16.gmra.mxu0 %v1295
  %v1716 = vpop.f32.mrf.mxu0
  %v1717 = vadd.f32 %v1306, %v1716
  %v1718 = vpop.f32.mrf.mxu0
  %v1719 = vadd.f32 %v1306, %v1718
  %1720 = vmatmul.bf16.gmra.mxu0 %v1297
  %v1721 = vpop.f32.mrf.mxu0
  %v1722 = vadd.f32 %v1306, %v1721
  %v1723 = vpop.f32.mrf.mxu0
  %v1724 = vadd.f32 %v1306, %v1723
  %1725 = vmatmul.bf16.gmra.mxu0 %v1299
  %v1726 = vpop.f32.mrf.mxu0
  %v1727 = vadd.f32 %v1306, %v1726
  %v1728 = vpop.f32.mrf.mxu0
  %v1729 = vadd.f32 %v1306, %v1728
  %1730 = vmatmul.bf16.gmra.mxu0 %v1301
  %v1731 = vpop.f32.mrf.mxu0
  %v1732 = vadd.f32 %v1306, %v1731
  %v1733 = vpop.f32.mrf.mxu0
  %v1734 = vadd.f32 %v1306, %v1733
  %1735 = vdwg.mxu0
  %1736 = vmatpush.bf16.msra.mxu0 %v1436
  %1737 = vmatpush.bf16.msra.mxu0 %v1434
  %1738 = vmatpush.bf16.msra.mxu0 %v1432
  %1739 = vmatpush.bf16.msra.mxu0 %v1430
  %1740 = vmatpush.bf16.msra.mxu0 %v1428
  %1741 = vmatpush.bf16.msra.mxu0 %v1426
  %1742 = vmatpush.bf16.msra.mxu0 %v1424
  %1743 = vmatpush.bf16.msra.mxu0 %v1422
  %1744 = vmatmul.bf16.gmra.mxu0 %v1272
  %v1745 = vpop.f32.mrf.mxu0
  %v1746 = vadd.f32 %v1657, %v1745
  %v1747 = vpop.f32.mrf.mxu0
  %v1748 = vadd.f32 %v1659, %v1747
  %1749 = vmatmul.bf16.gmra.mxu0 %v1274
  %v1750 = vpop.f32.mrf.mxu0
  %v1751 = vadd.f32 %v1662, %v1750
  %v1752 = vpop.f32.mrf.mxu0
  %v1753 = vadd.f32 %v1664, %v1752
  %1754 = vmatmul.bf16.gmra.mxu0 %v1276
  %v1755 = vpop.f32.mrf.mxu0
  %v1756 = vadd.f32 %v1667, %v1755
  %v1757 = vpop.f32.mrf.mxu0
  %v1758 = vadd.f32 %v1669, %v1757
  %1759 = vmatmul.bf16.gmra.mxu0 %v1278
  %v1760 = vpop.f32.mrf.mxu0
  %v1761 = vadd.f32 %v1672, %v1760
  %v1762 = vpop.f32.mrf.mxu0
  %v1763 = vadd.f32 %v1674, %v1762
  %1764 = vmatmul.bf16.gmra.mxu0 %v1280
  %v1765 = vpop.f32.mrf.mxu0
  %v1766 = vadd.f32 %v1677, %v1765
  %v1767 = vpop.f32.mrf.mxu0
  %v1768 = vadd.f32 %v1679, %v1767
  %1769 = vmatmul.bf16.gmra.mxu0 %v1282
  %v1770 = vpop.f32.mrf.mxu0
  %v1771 = vadd.f32 %v1682, %v1770
  %v1772 = vpop.f32.mrf.mxu0
  %v1773 = vadd.f32 %v1684, %v1772
  %1774 = vmatmul.bf16.gmra.mxu0 %v1284
  %v1775 = vpop.f32.mrf.mxu0
  %v1776 = vadd.f32 %v1687, %v1775
  %v1777 = vpop.f32.mrf.mxu0
  %v1778 = vadd.f32 %v1689, %v1777
  %1779 = vmatmul.bf16.gmra.mxu0 %v1286
  %v1780 = vpop.f32.mrf.mxu0
  %v1781 = vadd.f32 %v1692, %v1780
  %v1782 = vpop.f32.mrf.mxu0
  %v1783 = vadd.f32 %v1694, %v1782
  %1784 = vmatmul.bf16.gmra.mxu0 %v1288
  %v1785 = vpop.f32.mrf.mxu0
  %v1786 = vadd.f32 %v1697, %v1785
  %v1787 = vpop.f32.mrf.mxu0
  %v1788 = vadd.f32 %v1699, %v1787
  %1789 = vmatmul.bf16.gmra.mxu0 %v1290
  %v1790 = vpop.f32.mrf.mxu0
  %v1791 = vadd.f32 %v1702, %v1790
  %v1792 = vpop.f32.mrf.mxu0
  %v1793 = vadd.f32 %v1704, %v1792
  %1794 = vmatmul.bf16.gmra.mxu0 %v1292
  %v1795 = vpop.f32.mrf.mxu0
  %v1796 = vadd.f32 %v1707, %v1795
  %v1797 = vpop.f32.mrf.mxu0
  %v1798 = vadd.f32 %v1709, %v1797
  %1799 = vmatmul.bf16.gmra.mxu0 %v1294
  %v1800 = vpop.f32.mrf.mxu0
  %v1801 = vadd.f32 %v1712, %v1800
  %v1802 = vpop.f32.mrf.mxu0
  %v1803 = vadd.f32 %v1714, %v1802
  %1804 = vmatmul.bf16.gmra.mxu0 %v1296
  %v1805 = vpop.f32.mrf.mxu0
  %v1806 = vadd.f32 %v1717, %v1805
  %v1807 = vpop.f32.mrf.mxu0
  %v1808 = vadd.f32 %v1719, %v1807
  %1809 = vmatmul.bf16.gmra.mxu0 %v1298
  %v1810 = vpop.f32.mrf.mxu0
  %v1811 = vadd.f32 %v1722, %v1810
  %v1812 = vpop.f32.mrf.mxu0
  %v1813 = vadd.f32 %v1724, %v1812
  %1814 = vmatmul.bf16.gmra.mxu0 %v1300
  %v1815 = vpop.f32.mrf.mxu0
  %v1816 = vadd.f32 %v1727, %v1815
  %v1817 = vpop.f32.mrf.mxu0
  %v1818 = vadd.f32 %v1729, %v1817
  %1819 = vmatmul.bf16.gmra.mxu0 %v1302
  %v1820 = vpop.f32.mrf.mxu0
  %v1821 = vadd.f32 %v1732, %v1820
  %v1822 = vpop.f32.mrf.mxu0
  %v1823 = vadd.f32 %v1734, %v1822
  %1824 = vdwg.mxu0
  %v1825 = vmax.f32 %v1568, 0.0
  %v1826 = vmax.f32 %v1746, 0.0
  %v1827 = vmax.f32 %v1570, 0.0
  %v1828 = vmax.f32 %v1748, 0.0
  %v1829 = vmax.f32 %v1573, 0.0
  %v1830 = vmax.f32 %v1751, 0.0
  %v1831 = vmax.f32 %v1575, 0.0
  %v1832 = vmax.f32 %v1753, 0.0
  %v1833 = vmax.f32 %v1578, 0.0
  %v1834 = vmax.f32 %v1756, 0.0
  %v1835 = vmax.f32 %v1580, 0.0
  %v1836 = vmax.f32 %v1758, 0.0
  %v1837 = vmax.f32 %v1583, 0.0
  %v1838 = vmax.f32 %v1761, 0.0
  %v1839 = vmax.f32 %v1585, 0.0
  %v1840 = vmax.f32 %v1763, 0.0
  %v1841 = vmax.f32 %v1588, 0.0
  %v1842 = vmax.f32 %v1766, 0.0
  %v1843 = vmax.f32 %v1590, 0.0
  %v1844 = vmax.f32 %v1768, 0.0
  %v1845 = vmax.f32 %v1593, 0.0
  %v1846 = vmax.f32 %v1771, 0.0
  %v1847 = vmax.f32 %v1595, 0.0
  %v1848 = vmax.f32 %v1773, 0.0
  %v1849 = vmax.f32 %v1598, 0.0
  %v1850 = vmax.f32 %v1776, 0.0
  %v1851 = vmax.f32 %v1600, 0.0
  %v1852 = vmax.f32 %v1778, 0.0
  %v1853 = vmax.f32 %v1603, 0.0
  %v1854 = vmax.f32 %v1781, 0.0
  %v1855 = vmax.f32 %v1605, 0.0
  %v1856 = vmax.f32 %v1783, 0.0
  %v1857 = vmax.f32 %v1608, 0.0
  %v1858 = vmax.f32 %v1786, 0.0
  %v1859 = vmax.f32 %v1610, 0.0
  %v1860 = vmax.f32 %v1788, 0.0
  %v1861 = vmax.f32 %v1613, 0.0
  %v1862 = vmax.f32 %v1791, 0.0
  %v1863 = vmax.f32 %v1615, 0.0
  %v1864 = vmax.f32 %v1793, 0.0
  %v1865 = vmax.f32 %v1618, 0.0
  %v1866 = vmax.f32 %v1796, 0.0
  %v1867 = vmax.f32 %v1620, 0.0
  %v1868 = vmax.f32 %v1798, 0.0
  %v1869 = vmax.f32 %v1623, 0.0
  %v1870 = vmax.f32 %v1801, 0.0
  %v1871 = vmax.f32 %v1625, 0.0
  %v1872 = vmax.f32 %v1803, 0.0
  %v1873 = vmax.f32 %v1628, 0.0
  %v1874 = vmax.f32 %v1806, 0.0
  %v1875 = vmax.f32 %v1630, 0.0
  %v1876 = vmax.f32 %v1808, 0.0
  %v1877 = vmax.f32 %v1633, 0.0
  %v1878 = vmax.f32 %v1811, 0.0
  %v1879 = vmax.f32 %v1635, 0.0
  %v1880 = vmax.f32 %v1813, 0.0
  %v1881 = vmax.f32 %v1638, 0.0
  %v1882 = vmax.f32 %v1816, 0.0
  %v1883 = vmax.f32 %v1640, 0.0
  %v1884 = vmax.f32 %v1818, 0.0
  %v1885 = vmax.f32 %v1643, 0.0
  %v1886 = vmax.f32 %v1821, 0.0
  %v1887 = vmax.f32 %v1645, 0.0
  %v1888 = vmax.f32 %v1823, 0.0
  %v1889 = vld [vmem:[%s8] sm:$0xff]
  %v1890 = vld [vmem:[%s8 + $0x8] sm:$0xff]
  %v1891 = vld [vmem:[%s8 + $0x10] sm:$0xff]
  %v1892 = vld [vmem:[%s8 + $0x18] sm:$0xff]
  %v1893 = vld [vmem:[%s8 + $0x20] sm:$0xff]
  %v1894 = vld [vmem:[%s8 + $0x28] sm:$0xff]
  %v1895 = vld [vmem:[%s8 + $0x30] sm:$0xff]
  %v1896 = vld [vmem:[%s8 + $0x38] sm:$0xff]
  %v1897 = vld [vmem:[%s8 + $0x40] sm:$0xff]
  %v1898 = vld [vmem:[%s8 + $0x48] sm:$0xff]
  %v1899 = vld [vmem:[%s8 + $0x50] sm:$0xff]
  %v1900 = vld [vmem:[%s8 + $0x58] sm:$0xff]
  %v1901 = vld [vmem:[%s8 + $0x60] sm:$0xff]
  %v1902 = vld [vmem:[%s8 + $0x68] sm:$0xff]
  %v1903 = vld [vmem:[%s8 + $0x70] sm:$0xff]
  %v1904 = vld [vmem:[%s8 + $0x78] sm:$0xff]
  %v1905 = vld [vmem:[%s8 + $0x80] sm:$0xff]
  %v1906 = vld [vmem:[%s8 + $0x88] sm:$0xff]
  %v1907 = vld [vmem:[%s8 + $0x90] sm:$0xff]
  %v1908 = vld [vmem:[%s8 + $0x98] sm:$0xff]
  %v1909 = vld [vmem:[%s8 + $0xa0] sm:$0xff]
  %v1910 = vld [vmem:[%s8 + $0xa8] sm:$0xff]
  %v1911 = vld [vmem:[%s8 + $0xb0] sm:$0xff]
  %v1912 = vld [vmem:[%s8 + $0xb8] sm:$0xff]
  %v1913 = vld [vmem:[%s8 + $0xc0] sm:$0xff]
  %v1914 = vld [vmem:[%s8 + $0xc8] sm:$0xff]
  %v1915 = vld [vmem:[%s8 + $0xd0] sm:$0xff]
  %v1916 = vld [vmem:[%s8 + $0xd8] sm:$0xff]
  %v1917 = vld [vmem:[%s8 + $0xe0] sm:$0xff]
  %v1918 = vld [vmem:[%s8 + $0xe8] sm:$0xff]
  %v1919 = vld [vmem:[%s8 + $0xf0] sm:$0xff]
  %v1920 = vld [vmem:[%s8 + $0xf8] sm:$0xff]
  %v1921 = vpack.c.bf16 %v1827, %v1825
  %v1922 = vpack.c.bf16 %v1828, %v1826
  %v1923 = vpack.c.bf16 %v1831, %v1829
  %v1924 = vpack.c.bf16 %v1832, %v1830
  %v1925 = vpack.c.bf16 %v1835, %v1833
  %v1926 = vpack.c.bf16 %v1836, %v1834
  %v1927 = vpack.c.bf16 %v1839, %v1837
  %v1928 = vpack.c.bf16 %v1840, %v1838
  %v1929 = vpack.c.bf16 %v1843, %v1841
  %v1930 = vpack.c.bf16 %v1844, %v1842
  %v1931 = vpack.c.bf16 %v1847, %v1845
  %v1932 = vpack.c.bf16 %v1848, %v1846
  %v1933 = vpack.c.bf16 %v1851, %v1849
  %v1934 = vpack.c.bf16 %v1852, %v1850
  %v1935 = vpack.c.bf16 %v1855, %v1853
  %v1936 = vpack.c.bf16 %v1856, %v1854
  %v1937 = vpack.c.bf16 %v1859, %v1857
  %v1938 = vpack.c.bf16 %v1860, %v1858
  %v1939 = vpack.c.bf16 %v1863, %v1861
  %v1940 = vpack.c.bf16 %v1864, %v1862
  %v1941 = vpack.c.bf16 %v1867, %v1865
  %v1942 = vpack.c.bf16 %v1868, %v1866
  %v1943 = vpack.c.bf16 %v1871, %v1869
  %v1944 = vpack.c.bf16 %v1872, %v1870
  %v1945 = vpack.c.bf16 %v1875, %v1873
  %v1946 = vpack.c.bf16 %v1876, %v1874
  %v1947 = vpack.c.bf16 %v1879, %v1877
  %v1948 = vpack.c.bf16 %v1880, %v1878
  %v1949 = vpack.c.bf16 %v1883, %v1881
  %v1950 = vpack.c.bf16 %v1884, %v1882
  %v1951 = vpack.c.bf16 %v1887, %v1885
  %v1952 = vpack.c.bf16 %v1888, %v1886
  %v1953 = vld [vmem:[%s9] sm:$0x3]
  %v1955 = vperm.slane %v1953, 0
  %v1956 = vperm.slane %v1953, 1
  %v1991 = vunpack.c.l.b16 %v1889
  %v1992 = vunpack.c.h.b16 %v1889
  %v1993 = vunpack.c.l.b16 %v1890
  %v1994 = vunpack.c.h.b16 %v1890
  %v1995 = vunpack.c.l.b16 %v1891
  %v1996 = vunpack.c.h.b16 %v1891
  %v1997 = vunpack.c.l.b16 %v1892
  %v1998 = vunpack.c.h.b16 %v1892
  %v1999 = vunpack.c.l.b16 %v1893
  %v2000 = vunpack.c.h.b16 %v1893
  %v2001 = vunpack.c.l.b16 %v1894
  %v2002 = vunpack.c.h.b16 %v1894
  %v2003 = vunpack.c.l.b16 %v1895
  %v2004 = vunpack.c.h.b16 %v1895
  %v2005 = vunpack.c.l.b16 %v1896
  %v2006 = vunpack.c.h.b16 %v1896
  %v2007 = vunpack.c.l.b16 %v1897
  %v2008 = vunpack.c.h.b16 %v1897
  %v2009 = vunpack.c.l.b16 %v1898
  %v2010 = vunpack.c.h.b16 %v1898
  %v2011 = vunpack.c.l.b16 %v1899
  %v2012 = vunpack.c.h.b16 %v1899
  %v2013 = vunpack.c.l.b16 %v1900
  %v2014 = vunpack.c.h.b16 %v1900
  %v2015 = vunpack.c.l.b16 %v1901
  %v2016 = vunpack.c.h.b16 %v1901
  %v2017 = vunpack.c.l.b16 %v1902
  %v2018 = vunpack.c.h.b16 %v1902
  %v2019 = vunpack.c.l.b16 %v1903
  %v2020 = vunpack.c.h.b16 %v1903
  %v2021 = vunpack.c.l.b16 %v1904
  %v2022 = vunpack.c.h.b16 %v1904
  %v2023 = vunpack.c.l.b16 %v1905
  %v2024 = vunpack.c.h.b16 %v1905
  %v2025 = vunpack.c.l.b16 %v1906
  %v2026 = vunpack.c.h.b16 %v1906
  %v2027 = vunpack.c.l.b16 %v1907
  %v2028 = vunpack.c.h.b16 %v1907
  %v2029 = vunpack.c.l.b16 %v1908
  %v2030 = vunpack.c.h.b16 %v1908
  %v2031 = vunpack.c.l.b16 %v1909
  %v2032 = vunpack.c.h.b16 %v1909
  %v2033 = vunpack.c.l.b16 %v1910
  %v2034 = vunpack.c.h.b16 %v1910
  %v2035 = vunpack.c.l.b16 %v1911
  %v2036 = vunpack.c.h.b16 %v1911
  %v2037 = vunpack.c.l.b16 %v1912
  %v2038 = vunpack.c.h.b16 %v1912
  %v2039 = vunpack.c.l.b16 %v1913
  %v2040 = vunpack.c.h.b16 %v1913
  %v2041 = vunpack.c.l.b16 %v1914
  %v2042 = vunpack.c.h.b16 %v1914
  %v2043 = vunpack.c.l.b16 %v1915
  %v2044 = vunpack.c.h.b16 %v1915
  %v2045 = vunpack.c.l.b16 %v1916
  %v2046 = vunpack.c.h.b16 %v1916
  %v2047 = vunpack.c.l.b16 %v1917
  %v2048 = vunpack.c.h.b16 %v1917
  %v2049 = vunpack.c.l.b16 %v1918
  %v2050 = vunpack.c.h.b16 %v1918
  %v2051 = vunpack.c.l.b16 %v1919
  %v2052 = vunpack.c.h.b16 %v1919
  %v2053 = vunpack.c.l.b16 %v1920
  %v2054 = vunpack.c.h.b16 %v1920
  %v2055 = vpack.c.b16 %v1993, %v1991
  %v2056 = vpack.c.b16 %v1994, %v1992
  %v2057 = vpack.c.b16 %v1997, %v1995
  %v2058 = vpack.c.b16 %v1998, %v1996
  %v2059 = vpack.c.b16 %v2001, %v1999
  %v2060 = vpack.c.b16 %v2002, %v2000
  %v2061 = vpack.c.b16 %v2005, %v2003
  %v2062 = vpack.c.b16 %v2006, %v2004
  %v2063 = vpack.c.b16 %v2009, %v2007
  %v2064 = vpack.c.b16 %v2010, %v2008
  %v2065 = vpack.c.b16 %v2013, %v2011
  %v2066 = vpack.c.b16 %v2014, %v2012
  %v2067 = vpack.c.b16 %v2017, %v2015
  %v2068 = vpack.c.b16 %v2018, %v2016
  %v2069 = vpack.c.b16 %v2021, %v2019
  %v2070 = vpack.c.b16 %v2022, %v2020
  %v2071 = vpack.c.b16 %v2025, %v2023
  %v2072 = vpack.c.b16 %v2026, %v2024
  %v2073 = vpack.c.b16 %v2029, %v2027
  %v2074 = vpack.c.b16 %v2030, %v2028
  %v2075 = vpack.c.b16 %v2033, %v2031
  %v2076 = vpack.c.b16 %v2034, %v2032
  %v2077 = vpack.c.b16 %v2037, %v2035
  %v2078 = vpack.c.b16 %v2038, %v2036
  %v2079 = vpack.c.b16 %v2041, %v2039
  %v2080 = vpack.c.b16 %v2042, %v2040
  %v2081 = vpack.c.b16 %v2045, %v2043
  %v2082 = vpack.c.b16 %v2046, %v2044
  %v2083 = vpack.c.b16 %v2049, %v2047
  %v2084 = vpack.c.b16 %v2050, %v2048
  %v2085 = vpack.c.b16 %v2053, %v2051
  %v2086 = vpack.c.b16 %v2054, %v2052
  %2119 = vmatpush.bf16.msra.mxu0 %v2069
  %2120 = vmatpush.bf16.msra.mxu0 %v2067
  %2121 = vmatpush.bf16.msra.mxu0 %v2065
  %2122 = vmatpush.bf16.msra.mxu0 %v2063
  %2123 = vmatpush.bf16.msra.mxu0 %v2061
  %2124 = vmatpush.bf16.msra.mxu0 %v2059
  %2125 = vmatpush.bf16.msra.mxu0 %v2057
  %2126 = vmatpush.bf16.msra.mxu0 %v2055
  %2127 = vmatmul.bf16.gmra.mxu0 %v1921
  %v2128 = vpop.f32.mrf.mxu0
  %v2129 = vadd.f32 %v1955, %v2128
  %v2130 = vpop.f32.mrf.mxu0
  %v2131 = vadd.f32 %v1955, %v2130
  %2132 = vmatmul.bf16.gmra.mxu0 %v1923
  %v2133 = vpop.f32.mrf.mxu0
  %v2134 = vadd.f32 %v1955, %v2133
  %v2135 = vpop.f32.mrf.mxu0
  %v2136 = vadd.f32 %v1955, %v2135
  %2137 = vmatmul.bf16.gmra.mxu0 %v1925
  %v2138 = vpop.f32.mrf.mxu0
  %v2139 = vadd.f32 %v1955, %v2138
  %v2140 = vpop.f32.mrf.mxu0
  %v2141 = vadd.f32 %v1955, %v2140
  %2142 = vmatmul.bf16.gmra.mxu0 %v1927
  %v2143 = vpop.f32.mrf.mxu0
  %v2144 = vadd.f32 %v1955, %v2143
  %v2145 = vpop.f32.mrf.mxu0
  %v2146 = vadd.f32 %v1955, %v2145
  %2147 = vmatmul.bf16.gmra.mxu0 %v1929
  %v2148 = vpop.f32.mrf.mxu0
  %v2149 = vadd.f32 %v1955, %v2148
  %v2150 = vpop.f32.mrf.mxu0
  %v2151 = vadd.f32 %v1955, %v2150
  %2152 = vmatmul.bf16.gmra.mxu0 %v1931
  %v2153 = vpop.f32.mrf.mxu0
  %v2154 = vadd.f32 %v1955, %v2153
  %v2155 = vpop.f32.mrf.mxu0
  %v2156 = vadd.f32 %v1955, %v2155
  %2157 = vmatmul.bf16.gmra.mxu0 %v1933
  %v2158 = vpop.f32.mrf.mxu0
  %v2159 = vadd.f32 %v1955, %v2158
  %v2160 = vpop.f32.mrf.mxu0
  %v2161 = vadd.f32 %v1955, %v2160
  %2162 = vmatmul.bf16.gmra.mxu0 %v1935
  %v2163 = vpop.f32.mrf.mxu0
  %v2164 = vadd.f32 %v1955, %v2163
  %v2165 = vpop.f32.mrf.mxu0
  %v2166 = vadd.f32 %v1955, %v2165
  %2167 = vmatmul.bf16.gmra.mxu0 %v1937
  %v2168 = vpop.f32.mrf.mxu0
  %v2169 = vadd.f32 %v1955, %v2168
  %v2170 = vpop.f32.mrf.mxu0
  %v2171 = vadd.f32 %v1955, %v2170
  %2172 = vmatmul.bf16.gmra.mxu0 %v1939
  %v2173 = vpop.f32.mrf.mxu0
  %v2174 = vadd.f32 %v1955, %v2173
  %v2175 = vpop.f32.mrf.mxu0
  %v2176 = vadd.f32 %v1955, %v2175
  %2177 = vmatmul.bf16.gmra.mxu0 %v1941
  %v2178 = vpop.f32.mrf.mxu0
  %v2179 = vadd.f32 %v1955, %v2178
  %v2180 = vpop.f32.mrf.mxu0
  %v2181 = vadd.f32 %v1955, %v2180
  %2182 = vmatmul.bf16.gmra.mxu0 %v1943
  %v2183 = vpop.f32.mrf.mxu0
  %v2184 = vadd.f32 %v1955, %v2183
  %v2185 = vpop.f32.mrf.mxu0
  %v2186 = vadd.f32 %v1955, %v2185
  %2187 = vmatmul.bf16.gmra.mxu0 %v1945
  %v2188 = vpop.f32.mrf.mxu0
  %v2189 = vadd.f32 %v1955, %v2188
  %v2190 = vpop.f32.mrf.mxu0
  %v2191 = vadd.f32 %v1955, %v2190
  %2192 = vmatmul.bf16.gmra.mxu0 %v1947
  %v2193 = vpop.f32.mrf.mxu0
  %v2194 = vadd.f32 %v1955, %v2193
  %v2195 = vpop.f32.mrf.mxu0
  %v2196 = vadd.f32 %v1955, %v2195
  %2197 = vmatmul.bf16.gmra.mxu0 %v1949
  %v2198 = vpop.f32.mrf.mxu0
  %v2199 = vadd.f32 %v1955, %v2198
  %v2200 = vpop.f32.mrf.mxu0
  %v2201 = vadd.f32 %v1955, %v2200
  %2202 = vmatmul.bf16.gmra.mxu0 %v1951
  %v2203 = vpop.f32.mrf.mxu0
  %v2204 = vadd.f32 %v1955, %v2203
  %v2205 = vpop.f32.mrf.mxu0
  %v2206 = vadd.f32 %v1955, %v2205
  %2207 = vdwg.mxu0
  %2208 = vmatpush.bf16.msra.mxu0 %v2085
  %2209 = vmatpush.bf16.msra.mxu0 %v2083
  %2210 = vmatpush.bf16.msra.mxu0 %v2081
  %2211 = vmatpush.bf16.msra.mxu0 %v2079
  %2212 = vmatpush.bf16.msra.mxu0 %v2077
  %2213 = vmatpush.bf16.msra.mxu0 %v2075
  %2214 = vmatpush.bf16.msra.mxu0 %v2073
  %2215 = vmatpush.bf16.msra.mxu0 %v2071
  %2216 = vmatmul.bf16.gmra.mxu0 %v1922
  %v2217 = vpop.f32.mrf.mxu0
  %v2218 = vadd.f32 %v2129, %v2217
  %v2219 = vpop.f32.mrf.mxu0
  %v2220 = vadd.f32 %v2131, %v2219
  %2221 = vmatmul.bf16.gmra.mxu0 %v1924
  %v2222 = vpop.f32.mrf.mxu0
  %v2223 = vadd.f32 %v2134, %v2222
  %v2224 = vpop.f32.mrf.mxu0
  %v2225 = vadd.f32 %v2136, %v2224
  %2226 = vmatmul.bf16.gmra.mxu0 %v1926
  %v2227 = vpop.f32.mrf.mxu0
  %v2228 = vadd.f32 %v2139, %v2227
  %v2229 = vpop.f32.mrf.mxu0
  %v2230 = vadd.f32 %v2141, %v2229
  %2231 = vmatmul.bf16.gmra.mxu0 %v1928
  %v2232 = vpop.f32.mrf.mxu0
  %v2233 = vadd.f32 %v2144, %v2232
  %v2234 = vpop.f32.mrf.mxu0
  %v2235 = vadd.f32 %v2146, %v2234
  %2236 = vmatmul.bf16.gmra.mxu0 %v1930
  %v2237 = vpop.f32.mrf.mxu0
  %v2238 = vadd.f32 %v2149, %v2237
  %v2239 = vpop.f32.mrf.mxu0
  %v2240 = vadd.f32 %v2151, %v2239
  %2241 = vmatmul.bf16.gmra.mxu0 %v1932
  %v2242 = vpop.f32.mrf.mxu0
  %v2243 = vadd.f32 %v2154, %v2242
  %v2244 = vpop.f32.mrf.mxu0
  %v2245 = vadd.f32 %v2156, %v2244
  %2246 = vmatmul.bf16.gmra.mxu0 %v1934
  %v2247 = vpop.f32.mrf.mxu0
  %v2248 = vadd.f32 %v2159, %v2247
  %v2249 = vpop.f32.mrf.mxu0
  %v2250 = vadd.f32 %v2161, %v2249
  %2251 = vmatmul.bf16.gmra.mxu0 %v1936
  %v2252 = vpop.f32.mrf.mxu0
  %v2253 = vadd.f32 %v2164, %v2252
  %v2254 = vpop.f32.mrf.mxu0
  %v2255 = vadd.f32 %v2166, %v2254
  %2256 = vmatmul.bf16.gmra.mxu0 %v1938
  %v2257 = vpop.f32.mrf.mxu0
  %v2258 = vadd.f32 %v2169, %v2257
  %v2259 = vpop.f32.mrf.mxu0
  %v2260 = vadd.f32 %v2171, %v2259
  %2261 = vmatmul.bf16.gmra.mxu0 %v1940
  %v2262 = vpop.f32.mrf.mxu0
  %v2263 = vadd.f32 %v2174, %v2262
  %v2264 = vpop.f32.mrf.mxu0
  %v2265 = vadd.f32 %v2176, %v2264
  %2266 = vmatmul.bf16.gmra.mxu0 %v1942
  %v2267 = vpop.f32.mrf.mxu0
  %v2268 = vadd.f32 %v2179, %v2267
  %v2269 = vpop.f32.mrf.mxu0
  %v2270 = vadd.f32 %v2181, %v2269
  %2271 = vmatmul.bf16.gmra.mxu0 %v1944
  %v2272 = vpop.f32.mrf.mxu0
  %v2273 = vadd.f32 %v2184, %v2272
  %v2274 = vpop.f32.mrf.mxu0
  %v2275 = vadd.f32 %v2186, %v2274
  %2276 = vmatmul.bf16.gmra.mxu0 %v1946
  %v2277 = vpop.f32.mrf.mxu0
  %v2278 = vadd.f32 %v2189, %v2277
  %v2279 = vpop.f32.mrf.mxu0
  %v2280 = vadd.f32 %v2191, %v2279
  %2281 = vmatmul.bf16.gmra.mxu0 %v1948
  %v2282 = vpop.f32.mrf.mxu0
  %v2283 = vadd.f32 %v2194, %v2282
  %v2284 = vpop.f32.mrf.mxu0
  %v2285 = vadd.f32 %v2196, %v2284
  %2286 = vmatmul.bf16.gmra.mxu0 %v1950
  %v2287 = vpop.f32.mrf.mxu0
  %v2288 = vadd.f32 %v2199, %v2287
  %v2289 = vpop.f32.mrf.mxu0
  %v2290 = vadd.f32 %v2201, %v2289
  %2291 = vmatmul.bf16.gmra.mxu0 %v1952
  %v2292 = vpop.f32.mrf.mxu0
  %v2293 = vadd.f32 %v2204, %v2292
  %v2294 = vpop.f32.mrf.mxu0
  %v2295 = vadd.f32 %v2206, %v2294
  %2296 = vdwg.mxu0
  %2297 = vmatpush.bf16.msra.mxu0 %v2070
  %2298 = vmatpush.bf16.msra.mxu0 %v2068
  %2299 = vmatpush.bf16.msra.mxu0 %v2066
  %2300 = vmatpush.bf16.msra.mxu0 %v2064
  %2301 = vmatpush.bf16.msra.mxu0 %v2062
  %2302 = vmatpush.bf16.msra.mxu0 %v2060
  %2303 = vmatpush.bf16.msra.mxu0 %v2058
  %2304 = vmatpush.bf16.msra.mxu0 %v2056
  %2305 = vmatmul.bf16.gmra.mxu0 %v1921
  %v2306 = vpop.f32.mrf.mxu0
  %v2307 = vadd.f32 %v1956, %v2306
  %v2308 = vpop.f32.mrf.mxu0
  %v2309 = vadd.f32 %v1956, %v2308
  %2310 = vmatmul.bf16.gmra.mxu0 %v1923
  %v2311 = vpop.f32.mrf.mxu0
  %v2312 = vadd.f32 %v1956, %v2311
  %v2313 = vpop.f32.mrf.mxu0
  %v2314 = vadd.f32 %v1956, %v2313
  %2315 = vmatmul.bf16.gmra.mxu0 %v1925
  %v2316 = vpop.f32.mrf.mxu0
  %v2317 = vadd.f32 %v1956, %v2316
  %v2318 = vpop.f32.mrf.mxu0
  %v2319 = vadd.f32 %v1956, %v2318
  %2320 = vmatmul.bf16.gmra.mxu0 %v1927
  %v2321 = vpop.f32.mrf.mxu0
  %v2322 = vadd.f32 %v1956, %v2321
  %v2323 = vpop.f32.mrf.mxu0
  %v2324 = vadd.f32 %v1956, %v2323
  %2325 = vmatmul.bf16.gmra.mxu0 %v1929
  %v2326 = vpop.f32.mrf.mxu0
  %v2327 = vadd.f32 %v1956, %v2326
  %v2328 = vpop.f32.mrf.mxu0
  %v2329 = vadd.f32 %v1956, %v2328
  %2330 = vmatmul.bf16.gmra.mxu0 %v1931
  %v2331 = vpop.f32.mrf.mxu0
  %v2332 = vadd.f32 %v1956, %v2331
  %v2333 = vpop.f32.mrf.mxu0
  %v2334 = vadd.f32 %v1956, %v2333
  %2335 = vmatmul.bf16.gmra.mxu0 %v1933
  %v2336 = vpop.f32.mrf.mxu0
  %v2337 = vadd.f32 %v1956, %v2336
  %v2338 = vpop.f32.mrf.mxu0
  %v2339 = vadd.f32 %v1956, %v2338
  %2340 = vmatmul.bf16.gmra.mxu0 %v1935
  %v2341 = vpop.f32.mrf.mxu0
  %v2342 = vadd.f32 %v1956, %v2341
  %v2343 = vpop.f32.mrf.mxu0
  %v2344 = vadd.f32 %v1956, %v2343
  %2345 = vmatmul.bf16.gmra.mxu0 %v1937
  %v2346 = vpop.f32.mrf.mxu0
  %v2347 = vadd.f32 %v1956, %v2346
  %v2348 = vpop.f32.mrf.mxu0
  %v2349 = vadd.f32 %v1956, %v2348
  %2350 = vmatmul.bf16.gmra.mxu0 %v1939
  %v2351 = vpop.f32.mrf.mxu0
  %v2352 = vadd.f32 %v1956, %v2351
  %v2353 = vpop.f32.mrf.mxu0
  %v2354 = vadd.f32 %v1956, %v2353
  %2355 = vmatmul.bf16.gmra.mxu0 %v1941
  %v2356 = vpop.f32.mrf.mxu0
  %v2357 = vadd.f32 %v1956, %v2356
  %v2358 = vpop.f32.mrf.mxu0
  %v2359 = vadd.f32 %v1956, %v2358
  %2360 = vmatmul.bf16.gmra.mxu0 %v1943
  %v2361 = vpop.f32.mrf.mxu0
  %v2362 = vadd.f32 %v1956, %v2361
  %v2363 = vpop.f32.mrf.mxu0
  %v2364 = vadd.f32 %v1956, %v2363
  %2365 = vmatmul.bf16.gmra.mxu0 %v1945
  %v2366 = vpop.f32.mrf.mxu0
  %v2367 = vadd.f32 %v1956, %v2366
  %v2368 = vpop.f32.mrf.mxu0
  %v2369 = vadd.f32 %v1956, %v2368
  %2370 = vmatmul.bf16.gmra.mxu0 %v1947
  %v2371 = vpop.f32.mrf.mxu0
  %v2372 = vadd.f32 %v1956, %v2371
  %v2373 = vpop.f32.mrf.mxu0
  %v2374 = vadd.f32 %v1956, %v2373
  %2375 = vmatmul.bf16.gmra.mxu0 %v1949
  %v2376 = vpop.f32.mrf.mxu0
  %v2377 = vadd.f32 %v1956, %v2376
  %v2378 = vpop.f32.mrf.mxu0
  %v2379 = vadd.f32 %v1956, %v2378
  %2380 = vmatmul.bf16.gmra.mxu0 %v1951
  %v2381 = vpop.f32.mrf.mxu0
  %v2382 = vadd.f32 %v1956, %v2381
  %v2383 = vpop.f32.mrf.mxu0
  %v2384 = vadd.f32 %v1956, %v2383
  %2385 = vdwg.mxu0
  %2386 = vmatpush.bf16.msra.mxu0 %v2086
  %2387 = vmatpush.bf16.msra.mxu0 %v2084
  %2388 = vmatpush.bf16.msra.mxu0 %v2082
  %2389 = vmatpush.bf16.msra.mxu0 %v2080
  %2390 = vmatpush.bf16.msra.mxu0 %v2078
  %2391 = vmatpush.bf16.msra.mxu0 %v2076
  %2392 = vmatpush.bf16.msra.mxu0 %v2074
  %2393 = vmatpush.bf16.msra.mxu0 %v2072
  %2394 = vmatmul.bf16.gmra.mxu0 %v1922
  %v2395 = vpop.f32.mrf.mxu0
  %v2396 = vadd.f32 %v2307, %v2395
  %v2397 = vpop.f32.mrf.mxu0
  %v2398 = vadd.f32 %v2309, %v2397
  %2399 = vmatmul.bf16.gmra.mxu0 %v1924
  %v2400 = vpop.f32.mrf.mxu0
  %v2401 = vadd.f32 %v2312, %v2400
  %v2402 = vpop.f32.mrf.mxu0
  %v2403 = vadd.f32 %v2314, %v2402
  %2404 = vmatmul.bf16.gmra.mxu0 %v1926
  %v2405 = vpop.f32.mrf.mxu0
  %v2406 = vadd.f32 %v2317, %v2405
  %v2407 = vpop.f32.mrf.mxu0
  %v2408 = vadd.f32 %v2319, %v2407
  %2409 = vmatmul.bf16.gmra.mxu0 %v1928
  %v2410 = vpop.f32.mrf.mxu0
  %v2411 = vadd.f32 %v2322, %v2410
  %v2412 = vpop.f32.mrf.mxu0
  %v2413 = vadd.f32 %v2324, %v2412
  %2414 = vmatmul.bf16.gmra.mxu0 %v1930
  %v2415 = vpop.f32.mrf.mxu0
  %v2416 = vadd.f32 %v2327, %v2415
  %v2417 = vpop.f32.mrf.mxu0
  %v2418 = vadd.f32 %v2329, %v2417
  %2419 = vmatmul.bf16.gmra.mxu0 %v1932
  %v2420 = vpop.f32.mrf.mxu0
  %v2421 = vadd.f32 %v2332, %v2420
  %v2422 = vpop.f32.mrf.mxu0
  %v2423 = vadd.f32 %v2334, %v2422
  %2424 = vmatmul.bf16.gmra.mxu0 %v1934
  %v2425 = vpop.f32.mrf.mxu0
  %v2426 = vadd.f32 %v2337, %v2425
  %v2427 = vpop.f32.mrf.mxu0
  %v2428 = vadd.f32 %v2339, %v2427
  %2429 = vmatmul.bf16.gmra.mxu0 %v1936
  %v2430 = vpop.f32.mrf.mxu0
  %v2431 = vadd.f32 %v2342, %v2430
  %v2432 = vpop.f32.mrf.mxu0
  %v2433 = vadd.f32 %v2344, %v2432
  %2434 = vmatmul.bf16.gmra.mxu0 %v1938
  %v2435 = vpop.f32.mrf.mxu0
  %v2436 = vadd.f32 %v2347, %v2435
  %v2437 = vpop.f32.mrf.mxu0
  %v2438 = vadd.f32 %v2349, %v2437
  %2439 = vmatmul.bf16.gmra.mxu0 %v1940
  %v2440 = vpop.f32.mrf.mxu0
  %v2441 = vadd.f32 %v2352, %v2440
  %v2442 = vpop.f32.mrf.mxu0
  %v2443 = vadd.f32 %v2354, %v2442
  %2444 = vmatmul.bf16.gmra.mxu0 %v1942
  %v2445 = vpop.f32.mrf.mxu0
  %v2446 = vadd.f32 %v2357, %v2445
  %v2447 = vpop.f32.mrf.mxu0
  %v2448 = vadd.f32 %v2359, %v2447
  %2449 = vmatmul.bf16.gmra.mxu0 %v1944
  %v2450 = vpop.f32.mrf.mxu0
  %v2451 = vadd.f32 %v2362, %v2450
  %v2452 = vpop.f32.mrf.mxu0
  %v2453 = vadd.f32 %v2364, %v2452
  %2454 = vmatmul.bf16.gmra.mxu0 %v1946
  %v2455 = vpop.f32.mrf.mxu0
  %v2456 = vadd.f32 %v2367, %v2455
  %v2457 = vpop.f32.mrf.mxu0
  %v2458 = vadd.f32 %v2369, %v2457
  %2459 = vmatmul.bf16.gmra.mxu0 %v1948
  %v2460 = vpop.f32.mrf.mxu0
  %v2461 = vadd.f32 %v2372, %v2460
  %v2462 = vpop.f32.mrf.mxu0
  %v2463 = vadd.f32 %v2374, %v2462
  %2464 = vmatmul.bf16.gmra.mxu0 %v1950
  %v2465 = vpop.f32.mrf.mxu0
  %v2466 = vadd.f32 %v2377, %v2465
  %v2467 = vpop.f32.mrf.mxu0
  %v2468 = vadd.f32 %v2379, %v2467
  %2469 = vmatmul.bf16.gmra.mxu0 %v1952
  %v2470 = vpop.f32.mrf.mxu0
  %v2471 = vadd.f32 %v2382, %v2470
  %v2472 = vpop.f32.mrf.mxu0
  %v2473 = vadd.f32 %v2384, %v2472
  %2474 = vdwg.mxu0
  %v2475 = vmax.f32 %v2218, 0.0
  %v2476 = vmax.f32 %v2396, 0.0
  %v2477 = vmax.f32 %v2220, 0.0
  %v2478 = vmax.f32 %v2398, 0.0
  %v2479 = vmax.f32 %v2223, 0.0
  %v2480 = vmax.f32 %v2401, 0.0
  %v2481 = vmax.f32 %v2225, 0.0
  %v2482 = vmax.f32 %v2403, 0.0
  %v2483 = vmax.f32 %v2228, 0.0
  %v2484 = vmax.f32 %v2406, 0.0
  %v2485 = vmax.f32 %v2230, 0.0
  %v2486 = vmax.f32 %v2408, 0.0
  %v2487 = vmax.f32 %v2233, 0.0
  %v2488 = vmax.f32 %v2411, 0.0
  %v2489 = vmax.f32 %v2235, 0.0
  %v2490 = vmax.f32 %v2413, 0.0
  %v2491 = vmax.f32 %v2238, 0.0
  %v2492 = vmax.f32 %v2416, 0.0
  %v2493 = vmax.f32 %v2240, 0.0
  %v2494 = vmax.f32 %v2418, 0.0
  %v2495 = vmax.f32 %v2243, 0.0
  %v2496 = vmax.f32 %v2421, 0.0
  %v2497 = vmax.f32 %v2245, 0.0
  %v2498 = vmax.f32 %v2423, 0.0
  %v2499 = vmax.f32 %v2248, 0.0
  %v2500 = vmax.f32 %v2426, 0.0
  %v2501 = vmax.f32 %v2250, 0.0
  %v2502 = vmax.f32 %v2428, 0.0
  %v2503 = vmax.f32 %v2253, 0.0
  %v2504 = vmax.f32 %v2431, 0.0
  %v2505 = vmax.f32 %v2255, 0.0
  %v2506 = vmax.f32 %v2433, 0.0
  %v2507 = vmax.f32 %v2258, 0.0
  %v2508 = vmax.f32 %v2436, 0.0
  %v2509 = vmax.f32 %v2260, 0.0
  %v2510 = vmax.f32 %v2438, 0.0
  %v2511 = vmax.f32 %v2263, 0.0
  %v2512 = vmax.f32 %v2441, 0.0
  %v2513 = vmax.f32 %v2265, 0.0
  %v2514 = vmax.f32 %v2443, 0.0
  %v2515 = vmax.f32 %v2268, 0.0
  %v2516 = vmax.f32 %v2446, 0.0
  %v2517 = vmax.f32 %v2270, 0.0
  %v2518 = vmax.f32 %v2448, 0.0
  %v2519 = vmax.f32 %v2273, 0.0
  %v2520 = vmax.f32 %v2451, 0.0
  %v2521 = vmax.f32 %v2275, 0.0
  %v2522 = vmax.f32 %v2453, 0.0
  %v2523 = vmax.f32 %v2278, 0.0
  %v2524 = vmax.f32 %v2456, 0.0
  %v2525 = vmax.f32 %v2280, 0.0
  %v2526 = vmax.f32 %v2458, 0.0
  %v2527 = vmax.f32 %v2283, 0.0
  %v2528 = vmax.f32 %v2461, 0.0
  %v2529 = vmax.f32 %v2285, 0.0
  %v2530 = vmax.f32 %v2463, 0.0
  %v2531 = vmax.f32 %v2288, 0.0
  %v2532 = vmax.f32 %v2466, 0.0
  %v2533 = vmax.f32 %v2290, 0.0
  %v2534 = vmax.f32 %v2468, 0.0
  %v2535 = vmax.f32 %v2293, 0.0
  %v2536 = vmax.f32 %v2471, 0.0
  %v2537 = vmax.f32 %v2295, 0.0
  %v2538 = vmax.f32 %v2473, 0.0
  %v2539 = vld [vmem:[%s10] sm:$0xff]
  %v2540 = vld [vmem:[%s10 + $0x8] sm:$0xff]
  %v2541 = vld [vmem:[%s10 + $0x10] sm:$0xff]
  %v2542 = vld [vmem:[%s10 + $0x18] sm:$0xff]
  %v2543 = vld [vmem:[%s10 + $0x20] sm:$0xff]
  %v2544 = vld [vmem:[%s10 + $0x28] sm:$0xff]
  %v2545 = vld [vmem:[%s10 + $0x30] sm:$0xff]
  %v2546 = vld [vmem:[%s10 + $0x38] sm:$0xff]
  %v2547 = vld [vmem:[%s10 + $0x40] sm:$0xff]
  %v2548 = vld [vmem:[%s10 + $0x48] sm:$0xff]
  %v2549 = vld [vmem:[%s10 + $0x50] sm:$0xff]
  %v2550 = vld [vmem:[%s10 + $0x58] sm:$0xff]
  %v2551 = vld [vmem:[%s10 + $0x60] sm:$0xff]
  %v2552 = vld [vmem:[%s10 + $0x68] sm:$0xff]
  %v2553 = vld [vmem:[%s10 + $0x70] sm:$0xff]
  %v2554 = vld [vmem:[%s10 + $0x78] sm:$0xff]
  %v2555 = vld [vmem:[%s10 + $0x80] sm:$0xff]
  %v2556 = vld [vmem:[%s10 + $0x88] sm:$0xff]
  %v2557 = vld [vmem:[%s10 + $0x90] sm:$0xff]
  %v2558 = vld [vmem:[%s10 + $0x98] sm:$0xff]
  %v2559 = vld [vmem:[%s10 + $0xa0] sm:$0xff]
  %v2560 = vld [vmem:[%s10 + $0xa8] sm:$0xff]
  %v2561 = vld [vmem:[%s10 + $0xb0] sm:$0xff]
  %v2562 = vld [vmem:[%s10 + $0xb8] sm:$0xff]
  %v2563 = vld [vmem:[%s10 + $0xc0] sm:$0xff]
  %v2564 = vld [vmem:[%s10 + $0xc8] sm:$0xff]
  %v2565 = vld [vmem:[%s10 + $0xd0] sm:$0xff]
  %v2566 = vld [vmem:[%s10 + $0xd8] sm:$0xff]
  %v2567 = vld [vmem:[%s10 + $0xe0] sm:$0xff]
  %v2568 = vld [vmem:[%s10 + $0xe8] sm:$0xff]
  %v2569 = vld [vmem:[%s10 + $0xf0] sm:$0xff]
  %v2570 = vld [vmem:[%s10 + $0xf8] sm:$0xff]
  %v2571 = vld [vmem:[%s11] sm:$0xff]
  %v2572 = vld [vmem:[%s11 + $0x8] sm:$0xff]
  %v2573 = vld [vmem:[%s11 + $0x10] sm:$0xff]
  %v2574 = vld [vmem:[%s11 + $0x18] sm:$0xff]
  %v2575 = vld [vmem:[%s11 + $0x20] sm:$0xff]
  %v2576 = vld [vmem:[%s11 + $0x28] sm:$0xff]
  %v2577 = vld [vmem:[%s11 + $0x30] sm:$0xff]
  %v2578 = vld [vmem:[%s11 + $0x38] sm:$0xff]
  %v2579 = vpack.c.bf16 %v2477, %v2475
  %v2580 = vpack.c.bf16 %v2478, %v2476
  %v2581 = vpack.c.bf16 %v2481, %v2479
  %v2582 = vpack.c.bf16 %v2482, %v2480
  %v2583 = vpack.c.bf16 %v2485, %v2483
  %v2584 = vpack.c.bf16 %v2486, %v2484
  %v2585 = vpack.c.bf16 %v2489, %v2487
  %v2586 = vpack.c.bf16 %v2490, %v2488
  %v2587 = vpack.c.bf16 %v2493, %v2491
  %v2588 = vpack.c.bf16 %v2494, %v2492
  %v2589 = vpack.c.bf16 %v2497, %v2495
  %v2590 = vpack.c.bf16 %v2498, %v2496
  %v2591 = vpack.c.bf16 %v2501, %v2499
  %v2592 = vpack.c.bf16 %v2502, %v2500
  %v2593 = vpack.c.bf16 %v2505, %v2503
  %v2594 = vpack.c.bf16 %v2506, %v2504
  %v2595 = vpack.c.bf16 %v2509, %v2507
  %v2596 = vpack.c.bf16 %v2510, %v2508
  %v2597 = vpack.c.bf16 %v2513, %v2511
  %v2598 = vpack.c.bf16 %v2514, %v2512
  %v2599 = vpack.c.bf16 %v2517, %v2515
  %v2600 = vpack.c.bf16 %v2518, %v2516
  %v2601 = vpack.c.bf16 %v2521, %v2519
  %v2602 = vpack.c.bf16 %v2522, %v2520
  %v2603 = vpack.c.bf16 %v2525, %v2523
  %v2604 = vpack.c.bf16 %v2526, %v2524
  %v2605 = vpack.c.bf16 %v2529, %v2527
  %v2606 = vpack.c.bf16 %v2530, %v2528
  %v2607 = vpack.c.bf16 %v2533, %v2531
  %v2608 = vpack.c.bf16 %v2534, %v2532
  %v2609 = vpack.c.bf16 %v2537, %v2535
  %v2610 = vpack.c.bf16 %v2538, %v2536
  %v2619 = vunpack.c.l.b16 %v2571
  %v2620 = vunpack.c.h.b16 %v2571
  %v2621 = vunpack.c.l.b16 %v2572
  %v2622 = vunpack.c.h.b16 %v2572
  %v2623 = vunpack.c.l.b16 %v2573
  %v2624 = vunpack.c.h.b16 %v2573
  %v2625 = vunpack.c.l.b16 %v2574
  %v2626 = vunpack.c.h.b16 %v2574
  %v2627 = vunpack.c.l.b16 %v2575
  %v2628 = vunpack.c.h.b16 %v2575
  %v2629 = vunpack.c.l.b16 %v2576
  %v2630 = vunpack.c.h.b16 %v2576
  %v2631 = vunpack.c.l.b16 %v2577
  %v2632 = vunpack.c.h.b16 %v2577
  %v2633 = vunpack.c.l.b16 %v2578
  %v2634 = vunpack.c.h.b16 %v2578
  %v2635 = vpack.c.b16 %v2621, %v2619
  %v2636 = vpack.c.b16 %v2622, %v2620
  %v2637 = vpack.c.b16 %v2625, %v2623
  %v2638 = vpack.c.b16 %v2626, %v2624
  %v2639 = vpack.c.b16 %v2629, %v2627
  %v2640 = vpack.c.b16 %v2630, %v2628
  %v2641 = vpack.c.b16 %v2633, %v2631
  %v2642 = vpack.c.b16 %v2634, %v2632
  %v2650 = vand.u32 %v2641, %v340
  %v2653 = vand.u32 %v2642, %v340
  %2655 = vmatpush.bf16.msra.mxu0 0
  %2656 = vmatpush.bf16.msra.mxu0 0
  %2657 = vmatpush.bf16.msra.mxu0 0
  %2658 = vmatpush.bf16.msra.mxu0 0
  %2659 = vmatpush.bf16.msra.mxu0 %v2650
  %2660 = vmatpush.bf16.msra.mxu0 %v2639
  %2661 = vmatpush.bf16.msra.mxu0 %v2637
  %2662 = vmatpush.bf16.msra.mxu0 %v2635
  %2663 = vmatmul.bf16.gmra.mxu0 %v290
  %v2664 = vpop.f32.mrf.mxu0
  %v2665 = vadd.f32 0.0, %v2664
  %v2666 = vpop.f32.mrf.mxu0
  %v2667 = vadd.f32 0.0, %v2666
  %2668 = vmatmul.bf16.gmra.mxu0 %v293
  %v2669 = vpop.f32.mrf.mxu0
  %v2670 = vadd.f32 0.0, %v2669
  %v2671 = vpop.f32.mrf.mxu0
  %v2672 = vadd.f32 0.0, %v2671
  %2673 = vmatmul.bf16.gmra.mxu0 %v296
  %v2674 = vpop.f32.mrf.mxu0
  %v2675 = vadd.f32 0.0, %v2674
  %v2676 = vpop.f32.mrf.mxu0
  %v2677 = vadd.f32 0.0, %v2676
  %2678 = vmatmul.bf16.gmra.mxu0 %v299
  %v2679 = vpop.f32.mrf.mxu0
  %v2680 = vadd.f32 0.0, %v2679
  %v2681 = vpop.f32.mrf.mxu0
  %v2682 = vadd.f32 0.0, %v2681
  %2683 = vmatmul.bf16.gmra.mxu0 %v302
  %v2684 = vpop.f32.mrf.mxu0
  %v2685 = vadd.f32 0.0, %v2684
  %v2686 = vpop.f32.mrf.mxu0
  %v2687 = vadd.f32 0.0, %v2686
  %2688 = vmatmul.bf16.gmra.mxu0 %v305
  %v2689 = vpop.f32.mrf.mxu0
  %v2690 = vadd.f32 0.0, %v2689
  %v2691 = vpop.f32.mrf.mxu0
  %v2692 = vadd.f32 0.0, %v2691
  %2693 = vmatmul.bf16.gmra.mxu0 %v308
  %v2694 = vpop.f32.mrf.mxu0
  %v2695 = vadd.f32 0.0, %v2694
  %v2696 = vpop.f32.mrf.mxu0
  %v2697 = vadd.f32 0.0, %v2696
  %2698 = vmatmul.bf16.gmra.mxu0 %v311
  %v2699 = vpop.f32.mrf.mxu0
  %v2700 = vadd.f32 0.0, %v2699
  %v2701 = vpop.f32.mrf.mxu0
  %v2702 = vadd.f32 0.0, %v2701
  %2703 = vmatmul.bf16.gmra.mxu0 %v314
  %v2704 = vpop.f32.mrf.mxu0
  %v2705 = vadd.f32 0.0, %v2704
  %v2706 = vpop.f32.mrf.mxu0
  %v2707 = vadd.f32 0.0, %v2706
  %2708 = vmatmul.bf16.gmra.mxu0 %v317
  %v2709 = vpop.f32.mrf.mxu0
  %v2710 = vadd.f32 0.0, %v2709
  %v2711 = vpop.f32.mrf.mxu0
  %v2712 = vadd.f32 0.0, %v2711
  %2713 = vmatmul.bf16.gmra.mxu0 %v320
  %v2714 = vpop.f32.mrf.mxu0
  %v2715 = vadd.f32 0.0, %v2714
  %v2716 = vpop.f32.mrf.mxu0
  %v2717 = vadd.f32 0.0, %v2716
  %2718 = vmatmul.bf16.gmra.mxu0 %v323
  %v2719 = vpop.f32.mrf.mxu0
  %v2720 = vadd.f32 0.0, %v2719
  %v2721 = vpop.f32.mrf.mxu0
  %v2722 = vadd.f32 0.0, %v2721
  %2723 = vmatmul.bf16.gmra.mxu0 %v326
  %v2724 = vpop.f32.mrf.mxu0
  %v2725 = vadd.f32 0.0, %v2724
  %v2726 = vpop.f32.mrf.mxu0
  %v2727 = vadd.f32 0.0, %v2726
  %2728 = vmatmul.bf16.gmra.mxu0 %v329
  %v2729 = vpop.f32.mrf.mxu0
  %v2730 = vadd.f32 0.0, %v2729
  %v2731 = vpop.f32.mrf.mxu0
  %v2732 = vadd.f32 0.0, %v2731
  %2733 = vmatmul.bf16.gmra.mxu0 %v332
  %v2734 = vpop.f32.mrf.mxu0
  %v2735 = vadd.f32 0.0, %v2734
  %v2736 = vpop.f32.mrf.mxu0
  %v2737 = vadd.f32 0.0, %v2736
  %2738 = vmatmul.bf16.gmra.mxu0 %v335
  %v2739 = vpop.f32.mrf.mxu0
  %v2740 = vadd.f32 0.0, %v2739
  %v2741 = vpop.f32.mrf.mxu0
  %v2742 = vadd.f32 0.0, %v2741
  %2743 = vdwg.mxu0
  %2744 = vmatpush.bf16.msra.mxu0 0
  %2745 = vmatpush.bf16.msra.mxu0 0
  %2746 = vmatpush.bf16.msra.mxu0 0
  %2747 = vmatpush.bf16.msra.mxu0 0
  %2748 = vmatpush.bf16.msra.mxu0 %v2653
  %2749 = vmatpush.bf16.msra.mxu0 %v2640
  %2750 = vmatpush.bf16.msra.mxu0 %v2638
  %2751 = vmatpush.bf16.msra.mxu0 %v2636
  %2752 = vmatmul.bf16.gmra.mxu0 %v290
  %v2753 = vpop.f32.mrf.mxu0
  %v2754 = vadd.f32 0.0, %v2753
  %v2755 = vpop.f32.mrf.mxu0
  %v2756 = vadd.f32 0.0, %v2755
  %2757 = vmatmul.bf16.gmra.mxu0 %v293
  %v2758 = vpop.f32.mrf.mxu0
  %v2759 = vadd.f32 0.0, %v2758
  %v2760 = vpop.f32.mrf.mxu0
  %v2761 = vadd.f32 0.0, %v2760
  %2762 = vmatmul.bf16.gmra.mxu0 %v296
  %v2763 = vpop.f32.mrf.mxu0
  %v2764 = vadd.f32 0.0, %v2763
  %v2765 = vpop.f32.mrf.mxu0
  %v2766 = vadd.f32 0.0, %v2765
  %2767 = vmatmul.bf16.gmra.mxu0 %v299
  %v2768 = vpop.f32.mrf.mxu0
  %v2769 = vadd.f32 0.0, %v2768
  %v2770 = vpop.f32.mrf.mxu0
  %v2771 = vadd.f32 0.0, %v2770
  %2772 = vmatmul.bf16.gmra.mxu0 %v302
  %v2773 = vpop.f32.mrf.mxu0
  %v2774 = vadd.f32 0.0, %v2773
  %v2775 = vpop.f32.mrf.mxu0
  %v2776 = vadd.f32 0.0, %v2775
  %2777 = vmatmul.bf16.gmra.mxu0 %v305
  %v2778 = vpop.f32.mrf.mxu0
  %v2779 = vadd.f32 0.0, %v2778
  %v2780 = vpop.f32.mrf.mxu0
  %v2781 = vadd.f32 0.0, %v2780
  %2782 = vmatmul.bf16.gmra.mxu0 %v308
  %v2783 = vpop.f32.mrf.mxu0
  %v2784 = vadd.f32 0.0, %v2783
  %v2785 = vpop.f32.mrf.mxu0
  %v2786 = vadd.f32 0.0, %v2785
  %2787 = vmatmul.bf16.gmra.mxu0 %v311
  %v2788 = vpop.f32.mrf.mxu0
  %v2789 = vadd.f32 0.0, %v2788
  %v2790 = vpop.f32.mrf.mxu0
  %v2791 = vadd.f32 0.0, %v2790
  %2792 = vmatmul.bf16.gmra.mxu0 %v314
  %v2793 = vpop.f32.mrf.mxu0
  %v2794 = vadd.f32 0.0, %v2793
  %v2795 = vpop.f32.mrf.mxu0
  %v2796 = vadd.f32 0.0, %v2795
  %2797 = vmatmul.bf16.gmra.mxu0 %v317
  %v2798 = vpop.f32.mrf.mxu0
  %v2799 = vadd.f32 0.0, %v2798
  %v2800 = vpop.f32.mrf.mxu0
  %v2801 = vadd.f32 0.0, %v2800
  %2802 = vmatmul.bf16.gmra.mxu0 %v320
  %v2803 = vpop.f32.mrf.mxu0
  %v2804 = vadd.f32 0.0, %v2803
  %v2805 = vpop.f32.mrf.mxu0
  %v2806 = vadd.f32 0.0, %v2805
  %2807 = vmatmul.bf16.gmra.mxu0 %v323
  %v2808 = vpop.f32.mrf.mxu0
  %v2809 = vadd.f32 0.0, %v2808
  %v2810 = vpop.f32.mrf.mxu0
  %v2811 = vadd.f32 0.0, %v2810
  %2812 = vmatmul.bf16.gmra.mxu0 %v326
  %v2813 = vpop.f32.mrf.mxu0
  %v2814 = vadd.f32 0.0, %v2813
  %v2815 = vpop.f32.mrf.mxu0
  %v2816 = vadd.f32 0.0, %v2815
  %2817 = vmatmul.bf16.gmra.mxu0 %v329
  %v2818 = vpop.f32.mrf.mxu0
  %v2819 = vadd.f32 0.0, %v2818
  %v2820 = vpop.f32.mrf.mxu0
  %v2821 = vadd.f32 0.0, %v2820
  %2822 = vmatmul.bf16.gmra.mxu0 %v332
  %v2823 = vpop.f32.mrf.mxu0
  %v2824 = vadd.f32 0.0, %v2823
  %v2825 = vpop.f32.mrf.mxu0
  %v2826 = vadd.f32 0.0, %v2825
  %2827 = vmatmul.bf16.gmra.mxu0 %v335
  %v2828 = vpop.f32.mrf.mxu0
  %v2829 = vadd.f32 0.0, %v2828
  %v2830 = vpop.f32.mrf.mxu0
  %v2831 = vadd.f32 0.0, %v2830
  %2832 = vdwg.mxu0
  %v2865 = vunpack.c.l.b16 %v2539
  %v2866 = vunpack.c.h.b16 %v2539
  %v2867 = vunpack.c.l.b16 %v2540
  %v2868 = vunpack.c.h.b16 %v2540
  %v2869 = vunpack.c.l.b16 %v2541
  %v2870 = vunpack.c.h.b16 %v2541
  %v2871 = vunpack.c.l.b16 %v2542
  %v2872 = vunpack.c.h.b16 %v2542
  %v2873 = vunpack.c.l.b16 %v2543
  %v2874 = vunpack.c.h.b16 %v2543
  %v2875 = vunpack.c.l.b16 %v2544
  %v2876 = vunpack.c.h.b16 %v2544
  %v2877 = vunpack.c.l.b16 %v2545
  %v2878 = vunpack.c.h.b16 %v2545
  %v2879 = vunpack.c.l.b16 %v2546
  %v2880 = vunpack.c.h.b16 %v2546
  %v2881 = vunpack.c.l.b16 %v2547
  %v2882 = vunpack.c.h.b16 %v2547
  %v2883 = vunpack.c.l.b16 %v2548
  %v2884 = vunpack.c.h.b16 %v2548
  %v2885 = vunpack.c.l.b16 %v2549
  %v2886 = vunpack.c.h.b16 %v2549
  %v2887 = vunpack.c.l.b16 %v2550
  %v2888 = vunpack.c.h.b16 %v2550
  %v2889 = vunpack.c.l.b16 %v2551
  %v2890 = vunpack.c.h.b16 %v2551
  %v2891 = vunpack.c.l.b16 %v2552
  %v2892 = vunpack.c.h.b16 %v2552
  %v2893 = vunpack.c.l.b16 %v2553
  %v2894 = vunpack.c.h.b16 %v2553
  %v2895 = vunpack.c.l.b16 %v2554
  %v2896 = vunpack.c.h.b16 %v2554
  %v2897 = vunpack.c.l.b16 %v2555
  %v2898 = vunpack.c.h.b16 %v2555
  %v2899 = vunpack.c.l.b16 %v2556
  %v2900 = vunpack.c.h.b16 %v2556
  %v2901 = vunpack.c.l.b16 %v2557
  %v2902 = vunpack.c.h.b16 %v2557
  %v2903 = vunpack.c.l.b16 %v2558
  %v2904 = vunpack.c.h.b16 %v2558
  %v2905 = vunpack.c.l.b16 %v2559
  %v2906 = vunpack.c.h.b16 %v2559
  %v2907 = vunpack.c.l.b16 %v2560
  %v2908 = vunpack.c.h.b16 %v2560
  %v2909 = vunpack.c.l.b16 %v2561
  %v2910 = vunpack.c.h.b16 %v2561
  %v2911 = vunpack.c.l.b16 %v2562
  %v2912 = vunpack.c.h.b16 %v2562
  %v2913 = vunpack.c.l.b16 %v2563
  %v2914 = vunpack.c.h.b16 %v2563
  %v2915 = vunpack.c.l.b16 %v2564
  %v2916 = vunpack.c.h.b16 %v2564
  %v2917 = vunpack.c.l.b16 %v2565
  %v2918 = vunpack.c.h.b16 %v2565
  %v2919 = vunpack.c.l.b16 %v2566
  %v2920 = vunpack.c.h.b16 %v2566
  %v2921 = vunpack.c.l.b16 %v2567
  %v2922 = vunpack.c.h.b16 %v2567
  %v2923 = vunpack.c.l.b16 %v2568
  %v2924 = vunpack.c.h.b16 %v2568
  %v2925 = vunpack.c.l.b16 %v2569
  %v2926 = vunpack.c.h.b16 %v2569
  %v2927 = vunpack.c.l.b16 %v2570
  %v2928 = vunpack.c.h.b16 %v2570
  %v2929 = vpack.c.b16 %v2867, %v2865
  %v2930 = vpack.c.b16 %v2868, %v2866
  %v2931 = vpack.c.b16 %v2871, %v2869
  %v2932 = vpack.c.b16 %v2872, %v2870
  %v2933 = vpack.c.b16 %v2875, %v2873
  %v2934 = vpack.c.b16 %v2876, %v2874
  %v2935 = vpack.c.b16 %v2879, %v2877
  %v2936 = vpack.c.b16 %v2880, %v2878
  %v2937 = vpack.c.b16 %v2883, %v2881
  %v2938 = vpack.c.b16 %v2884, %v2882
  %v2939 = vpack.c.b16 %v2887, %v2885
  %v2940 = vpack.c.b16 %v2888, %v2886
  %v2941 = vpack.c.b16 %v2891, %v2889
  %v2942 = vpack.c.b16 %v2892, %v2890
  %v2943 = vpack.c.b16 %v2895, %v2893
  %v2944 = vpack.c.b16 %v2896, %v2894
  %v2945 = vpack.c.b16 %v2899, %v2897
  %v2946 = vpack.c.b16 %v2900, %v2898
  %v2947 = vpack.c.b16 %v2903, %v2901
  %v2948 = vpack.c.b16 %v2904, %v2902
  %v2949 = vpack.c.b16 %v2907, %v2905
  %v2950 = vpack.c.b16 %v2908, %v2906
  %v2951 = vpack.c.b16 %v2911, %v2909
  %v2952 = vpack.c.b16 %v2912, %v2910
  %v2953 = vpack.c.b16 %v2915, %v2913
  %v2954 = vpack.c.b16 %v2916, %v2914
  %v2955 = vpack.c.b16 %v2919, %v2917
  %v2956 = vpack.c.b16 %v2920, %v2918
  %v2957 = vpack.c.b16 %v2923, %v2921
  %v2958 = vpack.c.b16 %v2924, %v2922
  %v2959 = vpack.c.b16 %v2927, %v2925
  %v2960 = vpack.c.b16 %v2928, %v2926
  %2993 = vmatpush.bf16.msra.mxu0 %v2943
  %2994 = vmatpush.bf16.msra.mxu0 %v2941
  %2995 = vmatpush.bf16.msra.mxu0 %v2939
  %2996 = vmatpush.bf16.msra.mxu0 %v2937
  %2997 = vmatpush.bf16.msra.mxu0 %v2935
  %2998 = vmatpush.bf16.msra.mxu0 %v2933
  %2999 = vmatpush.bf16.msra.mxu0 %v2931
  %3000 = vmatpush.bf16.msra.mxu0 %v2929
  %3001 = vmatmul.bf16.gmra.mxu0 %v2579
  %v3002 = vpop.f32.mrf.mxu0
  %v3003 = vadd.f32 %v2665, %v3002
  %v3004 = vpop.f32.mrf.mxu0
  %v3005 = vadd.f32 %v2667, %v3004
  %3006 = vmatmul.bf16.gmra.mxu0 %v2581
  %v3007 = vpop.f32.mrf.mxu0
  %v3008 = vadd.f32 %v2670, %v3007
  %v3009 = vpop.f32.mrf.mxu0
  %v3010 = vadd.f32 %v2672, %v3009
  %3011 = vmatmul.bf16.gmra.mxu0 %v2583
  %v3012 = vpop.f32.mrf.mxu0
  %v3013 = vadd.f32 %v2675, %v3012
  %v3014 = vpop.f32.mrf.mxu0
  %v3015 = vadd.f32 %v2677, %v3014
  %3016 = vmatmul.bf16.gmra.mxu0 %v2585
  %v3017 = vpop.f32.mrf.mxu0
  %v3018 = vadd.f32 %v2680, %v3017
  %v3019 = vpop.f32.mrf.mxu0
  %v3020 = vadd.f32 %v2682, %v3019
  %3021 = vmatmul.bf16.gmra.mxu0 %v2587
  %v3022 = vpop.f32.mrf.mxu0
  %v3023 = vadd.f32 %v2685, %v3022
  %v3024 = vpop.f32.mrf.mxu0
  %v3025 = vadd.f32 %v2687, %v3024
  %3026 = vmatmul.bf16.gmra.mxu0 %v2589
  %v3027 = vpop.f32.mrf.mxu0
  %v3028 = vadd.f32 %v2690, %v3027
  %v3029 = vpop.f32.mrf.mxu0
  %v3030 = vadd.f32 %v2692, %v3029
  %3031 = vmatmul.bf16.gmra.mxu0 %v2591
  %v3032 = vpop.f32.mrf.mxu0
  %v3033 = vadd.f32 %v2695, %v3032
  %v3034 = vpop.f32.mrf.mxu0
  %v3035 = vadd.f32 %v2697, %v3034
  %3036 = vmatmul.bf16.gmra.mxu0 %v2593
  %v3037 = vpop.f32.mrf.mxu0
  %v3038 = vadd.f32 %v2700, %v3037
  %v3039 = vpop.f32.mrf.mxu0
  %v3040 = vadd.f32 %v2702, %v3039
  %3041 = vmatmul.bf16.gmra.mxu0 %v2595
  %v3042 = vpop.f32.mrf.mxu0
  %v3043 = vadd.f32 %v2705, %v3042
  %v3044 = vpop.f32.mrf.mxu0
  %v3045 = vadd.f32 %v2707, %v3044
  %3046 = vmatmul.bf16.gmra.mxu0 %v2597
  %v3047 = vpop.f32.mrf.mxu0
  %v3048 = vadd.f32 %v2710, %v3047
  %v3049 = vpop.f32.mrf.mxu0
  %v3050 = vadd.f32 %v2712, %v3049
  %3051 = vmatmul.bf16.gmra.mxu0 %v2599
  %v3052 = vpop.f32.mrf.mxu0
  %v3053 = vadd.f32 %v2715, %v3052
  %v3054 = vpop.f32.mrf.mxu0
  %v3055 = vadd.f32 %v2717, %v3054
  %3056 = vmatmul.bf16.gmra.mxu0 %v2601
  %v3057 = vpop.f32.mrf.mxu0
  %v3058 = vadd.f32 %v2720, %v3057
  %v3059 = vpop.f32.mrf.mxu0
  %v3060 = vadd.f32 %v2722, %v3059
  %3061 = vmatmul.bf16.gmra.mxu0 %v2603
  %v3062 = vpop.f32.mrf.mxu0
  %v3063 = vadd.f32 %v2725, %v3062
  %v3064 = vpop.f32.mrf.mxu0
  %v3065 = vadd.f32 %v2727, %v3064
  %3066 = vmatmul.bf16.gmra.mxu0 %v2605
  %v3067 = vpop.f32.mrf.mxu0
  %v3068 = vadd.f32 %v2730, %v3067
  %v3069 = vpop.f32.mrf.mxu0
  %v3070 = vadd.f32 %v2732, %v3069
  %3071 = vmatmul.bf16.gmra.mxu0 %v2607
  %v3072 = vpop.f32.mrf.mxu0
  %v3073 = vadd.f32 %v2735, %v3072
  %v3074 = vpop.f32.mrf.mxu0
  %v3075 = vadd.f32 %v2737, %v3074
  %3076 = vmatmul.bf16.gmra.mxu0 %v2609
  %v3077 = vpop.f32.mrf.mxu0
  %v3078 = vadd.f32 %v2740, %v3077
  %v3079 = vpop.f32.mrf.mxu0
  %v3080 = vadd.f32 %v2742, %v3079
  %3081 = vdwg.mxu0
  %3082 = vmatpush.bf16.msra.mxu0 %v2959
  %3083 = vmatpush.bf16.msra.mxu0 %v2957
  %3084 = vmatpush.bf16.msra.mxu0 %v2955
  %3085 = vmatpush.bf16.msra.mxu0 %v2953
  %3086 = vmatpush.bf16.msra.mxu0 %v2951
  %3087 = vmatpush.bf16.msra.mxu0 %v2949
  %3088 = vmatpush.bf16.msra.mxu0 %v2947
  %3089 = vmatpush.bf16.msra.mxu0 %v2945
  %3090 = vmatmul.bf16.gmra.mxu0 %v2580
  %v3091 = vpop.f32.mrf.mxu0
  %v3092 = vadd.f32 %v3003, %v3091
  %v3093 = vpop.f32.mrf.mxu0
  %v3094 = vadd.f32 %v3005, %v3093
  %3095 = vmatmul.bf16.gmra.mxu0 %v2582
  %v3096 = vpop.f32.mrf.mxu0
  %v3097 = vadd.f32 %v3008, %v3096
  %v3098 = vpop.f32.mrf.mxu0
  %v3099 = vadd.f32 %v3010, %v3098
  %3100 = vmatmul.bf16.gmra.mxu0 %v2584
  %v3101 = vpop.f32.mrf.mxu0
  %v3102 = vadd.f32 %v3013, %v3101
  %v3103 = vpop.f32.mrf.mxu0
  %v3104 = vadd.f32 %v3015, %v3103
  %3105 = vmatmul.bf16.gmra.mxu0 %v2586
  %v3106 = vpop.f32.mrf.mxu0
  %v3107 = vadd.f32 %v3018, %v3106
  %v3108 = vpop.f32.mrf.mxu0
  %v3109 = vadd.f32 %v3020, %v3108
  %3110 = vmatmul.bf16.gmra.mxu0 %v2588
  %v3111 = vpop.f32.mrf.mxu0
  %v3112 = vadd.f32 %v3023, %v3111
  %v3113 = vpop.f32.mrf.mxu0
  %v3114 = vadd.f32 %v3025, %v3113
  %3115 = vmatmul.bf16.gmra.mxu0 %v2590
  %v3116 = vpop.f32.mrf.mxu0
  %v3117 = vadd.f32 %v3028, %v3116
  %v3118 = vpop.f32.mrf.mxu0
  %v3119 = vadd.f32 %v3030, %v3118
  %3120 = vmatmul.bf16.gmra.mxu0 %v2592
  %v3121 = vpop.f32.mrf.mxu0
  %v3122 = vadd.f32 %v3033, %v3121
  %v3123 = vpop.f32.mrf.mxu0
  %v3124 = vadd.f32 %v3035, %v3123
  %3125 = vmatmul.bf16.gmra.mxu0 %v2594
  %v3126 = vpop.f32.mrf.mxu0
  %v3127 = vadd.f32 %v3038, %v3126
  %v3128 = vpop.f32.mrf.mxu0
  %v3129 = vadd.f32 %v3040, %v3128
  %3130 = vmatmul.bf16.gmra.mxu0 %v2596
  %v3131 = vpop.f32.mrf.mxu0
  %v3132 = vadd.f32 %v3043, %v3131
  %v3133 = vpop.f32.mrf.mxu0
  %v3134 = vadd.f32 %v3045, %v3133
  %3135 = vmatmul.bf16.gmra.mxu0 %v2598
  %v3136 = vpop.f32.mrf.mxu0
  %v3137 = vadd.f32 %v3048, %v3136
  %v3138 = vpop.f32.mrf.mxu0
  %v3139 = vadd.f32 %v3050, %v3138
  %3140 = vmatmul.bf16.gmra.mxu0 %v2600
  %v3141 = vpop.f32.mrf.mxu0
  %v3142 = vadd.f32 %v3053, %v3141
  %v3143 = vpop.f32.mrf.mxu0
  %v3144 = vadd.f32 %v3055, %v3143
  %3145 = vmatmul.bf16.gmra.mxu0 %v2602
  %v3146 = vpop.f32.mrf.mxu0
  %v3147 = vadd.f32 %v3058, %v3146
  %v3148 = vpop.f32.mrf.mxu0
  %v3149 = vadd.f32 %v3060, %v3148
  %3150 = vmatmul.bf16.gmra.mxu0 %v2604
  %v3151 = vpop.f32.mrf.mxu0
  %v3152 = vadd.f32 %v3063, %v3151
  %v3153 = vpop.f32.mrf.mxu0
  %v3154 = vadd.f32 %v3065, %v3153
  %3155 = vmatmul.bf16.gmra.mxu0 %v2606
  %v3156 = vpop.f32.mrf.mxu0
  %v3157 = vadd.f32 %v3068, %v3156
  %v3158 = vpop.f32.mrf.mxu0
  %v3159 = vadd.f32 %v3070, %v3158
  %3160 = vmatmul.bf16.gmra.mxu0 %v2608
  %v3161 = vpop.f32.mrf.mxu0
  %v3162 = vadd.f32 %v3073, %v3161
  %v3163 = vpop.f32.mrf.mxu0
  %v3164 = vadd.f32 %v3075, %v3163
  %3165 = vmatmul.bf16.gmra.mxu0 %v2610
  %v3166 = vpop.f32.mrf.mxu0
  %v3167 = vadd.f32 %v3078, %v3166
  %v3168 = vpop.f32.mrf.mxu0
  %v3169 = vadd.f32 %v3080, %v3168
  %3170 = vdwg.mxu0
  %3171 = vmatpush.bf16.msra.mxu0 %v2944
  %3172 = vmatpush.bf16.msra.mxu0 %v2942
  %3173 = vmatpush.bf16.msra.mxu0 %v2940
  %3174 = vmatpush.bf16.msra.mxu0 %v2938
  %3175 = vmatpush.bf16.msra.mxu0 %v2936
  %3176 = vmatpush.bf16.msra.mxu0 %v2934
  %3177 = vmatpush.bf16.msra.mxu0 %v2932
  %3178 = vmatpush.bf16.msra.mxu0 %v2930
  %3179 = vmatmul.bf16.gmra.mxu0 %v2579
  %v3180 = vpop.f32.mrf.mxu0
  %v3181 = vadd.f32 %v2754, %v3180
  %v3182 = vpop.f32.mrf.mxu0
  %v3183 = vadd.f32 %v2756, %v3182
  %3184 = vmatmul.bf16.gmra.mxu0 %v2581
  %v3185 = vpop.f32.mrf.mxu0
  %v3186 = vadd.f32 %v2759, %v3185
  %v3187 = vpop.f32.mrf.mxu0
  %v3188 = vadd.f32 %v2761, %v3187
  %3189 = vmatmul.bf16.gmra.mxu0 %v2583
  %v3190 = vpop.f32.mrf.mxu0
  %v3191 = vadd.f32 %v2764, %v3190
  %v3192 = vpop.f32.mrf.mxu0
  %v3193 = vadd.f32 %v2766, %v3192
  %3194 = vmatmul.bf16.gmra.mxu0 %v2585
  %v3195 = vpop.f32.mrf.mxu0
  %v3196 = vadd.f32 %v2769, %v3195
  %v3197 = vpop.f32.mrf.mxu0
  %v3198 = vadd.f32 %v2771, %v3197
  %3199 = vmatmul.bf16.gmra.mxu0 %v2587
  %v3200 = vpop.f32.mrf.mxu0
  %v3201 = vadd.f32 %v2774, %v3200
  %v3202 = vpop.f32.mrf.mxu0
  %v3203 = vadd.f32 %v2776, %v3202
  %3204 = vmatmul.bf16.gmra.mxu0 %v2589
  %v3205 = vpop.f32.mrf.mxu0
  %v3206 = vadd.f32 %v2779, %v3205
  %v3207 = vpop.f32.mrf.mxu0
  %v3208 = vadd.f32 %v2781, %v3207
  %3209 = vmatmul.bf16.gmra.mxu0 %v2591
  %v3210 = vpop.f32.mrf.mxu0
  %v3211 = vadd.f32 %v2784, %v3210
  %v3212 = vpop.f32.mrf.mxu0
  %v3213 = vadd.f32 %v2786, %v3212
  %3214 = vmatmul.bf16.gmra.mxu0 %v2593
  %v3215 = vpop.f32.mrf.mxu0
  %v3216 = vadd.f32 %v2789, %v3215
  %v3217 = vpop.f32.mrf.mxu0
  %v3218 = vadd.f32 %v2791, %v3217
  %3219 = vmatmul.bf16.gmra.mxu0 %v2595
  %v3220 = vpop.f32.mrf.mxu0
  %v3221 = vadd.f32 %v2794, %v3220
  %v3222 = vpop.f32.mrf.mxu0
  %v3223 = vadd.f32 %v2796, %v3222
  %3224 = vmatmul.bf16.gmra.mxu0 %v2597
  %v3225 = vpop.f32.mrf.mxu0
  %v3226 = vadd.f32 %v2799, %v3225
  %v3227 = vpop.f32.mrf.mxu0
  %v3228 = vadd.f32 %v2801, %v3227
  %3229 = vmatmul.bf16.gmra.mxu0 %v2599
  %v3230 = vpop.f32.mrf.mxu0
  %v3231 = vadd.f32 %v2804, %v3230
  %v3232 = vpop.f32.mrf.mxu0
  %v3233 = vadd.f32 %v2806, %v3232
  %3234 = vmatmul.bf16.gmra.mxu0 %v2601
  %v3235 = vpop.f32.mrf.mxu0
  %v3236 = vadd.f32 %v2809, %v3235
  %v3237 = vpop.f32.mrf.mxu0
  %v3238 = vadd.f32 %v2811, %v3237
  %3239 = vmatmul.bf16.gmra.mxu0 %v2603
  %v3240 = vpop.f32.mrf.mxu0
  %v3241 = vadd.f32 %v2814, %v3240
  %v3242 = vpop.f32.mrf.mxu0
  %v3243 = vadd.f32 %v2816, %v3242
  %3244 = vmatmul.bf16.gmra.mxu0 %v2605
  %v3245 = vpop.f32.mrf.mxu0
  %v3246 = vadd.f32 %v2819, %v3245
  %v3247 = vpop.f32.mrf.mxu0
  %v3248 = vadd.f32 %v2821, %v3247
  %3249 = vmatmul.bf16.gmra.mxu0 %v2607
  %v3250 = vpop.f32.mrf.mxu0
  %v3251 = vadd.f32 %v2824, %v3250
  %v3252 = vpop.f32.mrf.mxu0
  %v3253 = vadd.f32 %v2826, %v3252
  %3254 = vmatmul.bf16.gmra.mxu0 %v2609
  %v3255 = vpop.f32.mrf.mxu0
  %v3256 = vadd.f32 %v2829, %v3255
  %v3257 = vpop.f32.mrf.mxu0
  %v3258 = vadd.f32 %v2831, %v3257
  %3259 = vdwg.mxu0
  %3260 = vmatpush.bf16.msra.mxu0 %v2960
  %3261 = vmatpush.bf16.msra.mxu0 %v2958
  %3262 = vmatpush.bf16.msra.mxu0 %v2956
  %3263 = vmatpush.bf16.msra.mxu0 %v2954
  %3264 = vmatpush.bf16.msra.mxu0 %v2952
  %3265 = vmatpush.bf16.msra.mxu0 %v2950
  %3266 = vmatpush.bf16.msra.mxu0 %v2948
  %3267 = vmatpush.bf16.msra.mxu0 %v2946
  %3268 = vmatmul.bf16.gmra.mxu0 %v2580
  %v3269 = vpop.f32.mrf.mxu0
  %v3270 = vadd.f32 %v3181, %v3269
  %v3271 = vpop.f32.mrf.mxu0
  %v3272 = vadd.f32 %v3183, %v3271
  %3273 = vmatmul.bf16.gmra.mxu0 %v2582
  %v3274 = vpop.f32.mrf.mxu0
  %v3275 = vadd.f32 %v3186, %v3274
  %v3276 = vpop.f32.mrf.mxu0
  %v3277 = vadd.f32 %v3188, %v3276
  %3278 = vmatmul.bf16.gmra.mxu0 %v2584
  %v3279 = vpop.f32.mrf.mxu0
  %v3280 = vadd.f32 %v3191, %v3279
  %v3281 = vpop.f32.mrf.mxu0
  %v3282 = vadd.f32 %v3193, %v3281
  %3283 = vmatmul.bf16.gmra.mxu0 %v2586
  %v3284 = vpop.f32.mrf.mxu0
  %v3285 = vadd.f32 %v3196, %v3284
  %v3286 = vpop.f32.mrf.mxu0
  %v3287 = vadd.f32 %v3198, %v3286
  %3288 = vmatmul.bf16.gmra.mxu0 %v2588
  %v3289 = vpop.f32.mrf.mxu0
  %v3290 = vadd.f32 %v3201, %v3289
  %v3291 = vpop.f32.mrf.mxu0
  %v3292 = vadd.f32 %v3203, %v3291
  %3293 = vmatmul.bf16.gmra.mxu0 %v2590
  %v3294 = vpop.f32.mrf.mxu0
  %v3295 = vadd.f32 %v3206, %v3294
  %v3296 = vpop.f32.mrf.mxu0
  %v3297 = vadd.f32 %v3208, %v3296
  %3298 = vmatmul.bf16.gmra.mxu0 %v2592
  %v3299 = vpop.f32.mrf.mxu0
  %v3300 = vadd.f32 %v3211, %v3299
  %v3301 = vpop.f32.mrf.mxu0
  %v3302 = vadd.f32 %v3213, %v3301
  %3303 = vmatmul.bf16.gmra.mxu0 %v2594
  %v3304 = vpop.f32.mrf.mxu0
  %v3305 = vadd.f32 %v3216, %v3304
  %v3306 = vpop.f32.mrf.mxu0
  %v3307 = vadd.f32 %v3218, %v3306
  %3308 = vmatmul.bf16.gmra.mxu0 %v2596
  %v3309 = vpop.f32.mrf.mxu0
  %v3310 = vadd.f32 %v3221, %v3309
  %v3311 = vpop.f32.mrf.mxu0
  %v3312 = vadd.f32 %v3223, %v3311
  %3313 = vmatmul.bf16.gmra.mxu0 %v2598
  %v3314 = vpop.f32.mrf.mxu0
  %v3315 = vadd.f32 %v3226, %v3314
  %v3316 = vpop.f32.mrf.mxu0
  %v3317 = vadd.f32 %v3228, %v3316
  %3318 = vmatmul.bf16.gmra.mxu0 %v2600
  %v3319 = vpop.f32.mrf.mxu0
  %v3320 = vadd.f32 %v3231, %v3319
  %v3321 = vpop.f32.mrf.mxu0
  %v3322 = vadd.f32 %v3233, %v3321
  %3323 = vmatmul.bf16.gmra.mxu0 %v2602
  %v3324 = vpop.f32.mrf.mxu0
  %v3325 = vadd.f32 %v3236, %v3324
  %v3326 = vpop.f32.mrf.mxu0
  %v3327 = vadd.f32 %v3238, %v3326
  %3328 = vmatmul.bf16.gmra.mxu0 %v2604
  %v3329 = vpop.f32.mrf.mxu0
  %v3330 = vadd.f32 %v3241, %v3329
  %v3331 = vpop.f32.mrf.mxu0
  %v3332 = vadd.f32 %v3243, %v3331
  %3333 = vmatmul.bf16.gmra.mxu0 %v2606
  %v3334 = vpop.f32.mrf.mxu0
  %v3335 = vadd.f32 %v3246, %v3334
  %v3336 = vpop.f32.mrf.mxu0
  %v3337 = vadd.f32 %v3248, %v3336
  %3338 = vmatmul.bf16.gmra.mxu0 %v2608
  %v3339 = vpop.f32.mrf.mxu0
  %v3340 = vadd.f32 %v3251, %v3339
  %v3341 = vpop.f32.mrf.mxu0
  %v3342 = vadd.f32 %v3253, %v3341
  %3343 = vmatmul.bf16.gmra.mxu0 %v2610
  %v3344 = vpop.f32.mrf.mxu0
  %v3345 = vadd.f32 %v3256, %v3344
  %v3346 = vpop.f32.mrf.mxu0
  %v3347 = vadd.f32 %v3258, %v3346
  %3348 = vdwg.mxu0
  %v3349 = vld [vmem:[%s12] sm:$0x3]
  %v3351 = vperm.slane %v3349, 0
  %v3352 = vperm.slane %v3349, 1
  %v3355 = vadd.f32 %v3092, %v3351
  %v3356 = vadd.f32 %v3270, %v3352
  %v3357 = vadd.f32 %v3094, %v3351
  %v3358 = vadd.f32 %v3272, %v3352
  %v3359 = vadd.f32 %v3097, %v3351
  %v3360 = vadd.f32 %v3275, %v3352
  %v3361 = vadd.f32 %v3099, %v3351
  %v3362 = vadd.f32 %v3277, %v3352
  %v3363 = vadd.f32 %v3102, %v3351
  %v3364 = vadd.f32 %v3280, %v3352
  %v3365 = vadd.f32 %v3104, %v3351
  %v3366 = vadd.f32 %v3282, %v3352
  %v3367 = vadd.f32 %v3107, %v3351
  %v3368 = vadd.f32 %v3285, %v3352
  %v3369 = vadd.f32 %v3109, %v3351
  %v3370 = vadd.f32 %v3287, %v3352
  %v3371 = vadd.f32 %v3112, %v3351
  %v3372 = vadd.f32 %v3290, %v3352
  %v3373 = vadd.f32 %v3114, %v3351
  %v3374 = vadd.f32 %v3292, %v3352
  %v3375 = vadd.f32 %v3117, %v3351
  %v3376 = vadd.f32 %v3295, %v3352
  %v3377 = vadd.f32 %v3119, %v3351
  %v3378 = vadd.f32 %v3297, %v3352
  %v3379 = vadd.f32 %v3122, %v3351
  %v3380 = vadd.f32 %v3300, %v3352
  %v3381 = vadd.f32 %v3124, %v3351
  %v3382 = vadd.f32 %v3302, %v3352
  %v3383 = vadd.f32 %v3127, %v3351
  %v3384 = vadd.f32 %v3305, %v3352
  %v3385 = vadd.f32 %v3129, %v3351
  %v3386 = vadd.f32 %v3307, %v3352
  %v3387 = vadd.f32 %v3132, %v3351
  %v3388 = vadd.f32 %v3310, %v3352
  %v3389 = vadd.f32 %v3134, %v3351
  %v3390 = vadd.f32 %v3312, %v3352
  %v3391 = vadd.f32 %v3137, %v3351
  %v3392 = vadd.f32 %v3315, %v3352
  %v3393 = vadd.f32 %v3139, %v3351
  %v3394 = vadd.f32 %v3317, %v3352
  %v3395 = vadd.f32 %v3142, %v3351
  %v3396 = vadd.f32 %v3320, %v3352
  %v3397 = vadd.f32 %v3144, %v3351
  %v3398 = vadd.f32 %v3322, %v3352
  %v3399 = vadd.f32 %v3147, %v3351
  %v3400 = vadd.f32 %v3325, %v3352
  %v3401 = vadd.f32 %v3149, %v3351
  %v3402 = vadd.f32 %v3327, %v3352
  %v3403 = vadd.f32 %v3152, %v3351
  %v3404 = vadd.f32 %v3330, %v3352
  %v3405 = vadd.f32 %v3154, %v3351
  %v3406 = vadd.f32 %v3332, %v3352
  %v3407 = vadd.f32 %v3157, %v3351
  %v3408 = vadd.f32 %v3335, %v3352
  %v3409 = vadd.f32 %v3159, %v3351
  %v3410 = vadd.f32 %v3337, %v3352
  %v3411 = vadd.f32 %v3162, %v3351
  %v3412 = vadd.f32 %v3340, %v3352
  %v3413 = vadd.f32 %v3164, %v3351
  %v3414 = vadd.f32 %v3342, %v3352
  %v3415 = vadd.f32 %v3167, %v3351
  %v3416 = vadd.f32 %v3345, %v3352
  %v3417 = vadd.f32 %v3169, %v3351
  %v3418 = vadd.f32 %v3347, %v3352
  %v3419 = vmax.f32 %v3355, 0.0
  %v3420 = vmax.f32 %v3356, 0.0
  %v3421 = vmax.f32 %v3357, 0.0
  %v3422 = vmax.f32 %v3358, 0.0
  %v3423 = vmax.f32 %v3359, 0.0
  %v3424 = vmax.f32 %v3360, 0.0
  %v3425 = vmax.f32 %v3361, 0.0
  %v3426 = vmax.f32 %v3362, 0.0
  %v3427 = vmax.f32 %v3363, 0.0
  %v3428 = vmax.f32 %v3364, 0.0
  %v3429 = vmax.f32 %v3365, 0.0
  %v3430 = vmax.f32 %v3366, 0.0
  %v3431 = vmax.f32 %v3367, 0.0
  %v3432 = vmax.f32 %v3368, 0.0
  %v3433 = vmax.f32 %v3369, 0.0
  %v3434 = vmax.f32 %v3370, 0.0
  %v3435 = vmax.f32 %v3371, 0.0
  %v3436 = vmax.f32 %v3372, 0.0
  %v3437 = vmax.f32 %v3373, 0.0
  %v3438 = vmax.f32 %v3374, 0.0
  %v3439 = vmax.f32 %v3375, 0.0
  %v3440 = vmax.f32 %v3376, 0.0
  %v3441 = vmax.f32 %v3377, 0.0
  %v3442 = vmax.f32 %v3378, 0.0
  %v3443 = vmax.f32 %v3379, 0.0
  %v3444 = vmax.f32 %v3380, 0.0
  %v3445 = vmax.f32 %v3381, 0.0
  %v3446 = vmax.f32 %v3382, 0.0
  %v3447 = vmax.f32 %v3383, 0.0
  %v3448 = vmax.f32 %v3384, 0.0
  %v3449 = vmax.f32 %v3385, 0.0
  %v3450 = vmax.f32 %v3386, 0.0
  %v3451 = vmax.f32 %v3387, 0.0
  %v3452 = vmax.f32 %v3388, 0.0
  %v3453 = vmax.f32 %v3389, 0.0
  %v3454 = vmax.f32 %v3390, 0.0
  %v3455 = vmax.f32 %v3391, 0.0
  %v3456 = vmax.f32 %v3392, 0.0
  %v3457 = vmax.f32 %v3393, 0.0
  %v3458 = vmax.f32 %v3394, 0.0
  %v3459 = vmax.f32 %v3395, 0.0
  %v3460 = vmax.f32 %v3396, 0.0
  %v3461 = vmax.f32 %v3397, 0.0
  %v3462 = vmax.f32 %v3398, 0.0
  %v3463 = vmax.f32 %v3399, 0.0
  %v3464 = vmax.f32 %v3400, 0.0
  %v3465 = vmax.f32 %v3401, 0.0
  %v3466 = vmax.f32 %v3402, 0.0
  %v3467 = vmax.f32 %v3403, 0.0
  %v3468 = vmax.f32 %v3404, 0.0
  %v3469 = vmax.f32 %v3405, 0.0
  %v3470 = vmax.f32 %v3406, 0.0
  %v3471 = vmax.f32 %v3407, 0.0
  %v3472 = vmax.f32 %v3408, 0.0
  %v3473 = vmax.f32 %v3409, 0.0
  %v3474 = vmax.f32 %v3410, 0.0
  %v3475 = vmax.f32 %v3411, 0.0
  %v3476 = vmax.f32 %v3412, 0.0
  %v3477 = vmax.f32 %v3413, 0.0
  %v3478 = vmax.f32 %v3414, 0.0
  %v3479 = vmax.f32 %v3415, 0.0
  %v3480 = vmax.f32 %v3416, 0.0
  %v3481 = vmax.f32 %v3417, 0.0
  %v3482 = vmax.f32 %v3418, 0.0
  %v3483 = vld [vmem:[%s13] sm:$0xff]
  %v3484 = vld [vmem:[%s13 + $0x8] sm:$0xff]
  %v3485 = vld [vmem:[%s13 + $0x10] sm:$0xff]
  %v3486 = vld [vmem:[%s13 + $0x18] sm:$0xff]
  %v3487 = vld [vmem:[%s13 + $0x20] sm:$0xff]
  %v3488 = vld [vmem:[%s13 + $0x28] sm:$0xff]
  %v3489 = vld [vmem:[%s13 + $0x30] sm:$0xff]
  %v3490 = vld [vmem:[%s13 + $0x38] sm:$0xff]
  %v3491 = vld [vmem:[%s13 + $0x40] sm:$0xff]
  %v3492 = vld [vmem:[%s13 + $0x48] sm:$0xff]
  %v3493 = vld [vmem:[%s13 + $0x50] sm:$0xff]
  %v3494 = vld [vmem:[%s13 + $0x58] sm:$0xff]
  %v3495 = vld [vmem:[%s13 + $0x60] sm:$0xff]
  %v3496 = vld [vmem:[%s13 + $0x68] sm:$0xff]
  %v3497 = vld [vmem:[%s13 + $0x70] sm:$0xff]
  %v3498 = vld [vmem:[%s13 + $0x78] sm:$0xff]
  %v3499 = vld [vmem:[%s13 + $0x80] sm:$0xff]
  %v3500 = vld [vmem:[%s13 + $0x88] sm:$0xff]
  %v3501 = vld [vmem:[%s13 + $0x90] sm:$0xff]
  %v3502 = vld [vmem:[%s13 + $0x98] sm:$0xff]
  %v3503 = vld [vmem:[%s13 + $0xa0] sm:$0xff]
  %v3504 = vld [vmem:[%s13 + $0xa8] sm:$0xff]
  %v3505 = vld [vmem:[%s13 + $0xb0] sm:$0xff]
  %v3506 = vld [vmem:[%s13 + $0xb8] sm:$0xff]
  %v3507 = vld [vmem:[%s13 + $0xc0] sm:$0xff]
  %v3508 = vld [vmem:[%s13 + $0xc8] sm:$0xff]
  %v3509 = vld [vmem:[%s13 + $0xd0] sm:$0xff]
  %v3510 = vld [vmem:[%s13 + $0xd8] sm:$0xff]
  %v3511 = vld [vmem:[%s13 + $0xe0] sm:$0xff]
  %v3512 = vld [vmem:[%s13 + $0xe8] sm:$0xff]
  %v3513 = vld [vmem:[%s13 + $0xf0] sm:$0xff]
  %v3514 = vld [vmem:[%s13 + $0xf8] sm:$0xff]
  %v3515 = vpack.c.bf16 %v3421, %v3419
  %v3516 = vpack.c.bf16 %v3422, %v3420
  %v3517 = vpack.c.bf16 %v3425, %v3423
  %v3518 = vpack.c.bf16 %v3426, %v3424
  %v3519 = vpack.c.bf16 %v3429, %v3427
  %v3520 = vpack.c.bf16 %v3430, %v3428
  %v3521 = vpack.c.bf16 %v3433, %v3431
  %v3522 = vpack.c.bf16 %v3434, %v3432
  %v3523 = vpack.c.bf16 %v3437, %v3435
  %v3524 = vpack.c.bf16 %v3438, %v3436
  %v3525 = vpack.c.bf16 %v3441, %v3439
  %v3526 = vpack.c.bf16 %v3442, %v3440
  %v3527 = vpack.c.bf16 %v3445, %v3443
  %v3528 = vpack.c.bf16 %v3446, %v3444
  %v3529 = vpack.c.bf16 %v3449, %v3447
  %v3530 = vpack.c.bf16 %v3450, %v3448
  %v3531 = vpack.c.bf16 %v3453, %v3451
  %v3532 = vpack.c.bf16 %v3454, %v3452
  %v3533 = vpack.c.bf16 %v3457, %v3455
  %v3534 = vpack.c.bf16 %v3458, %v3456
  %v3535 = vpack.c.bf16 %v3461, %v3459
  %v3536 = vpack.c.bf16 %v3462, %v3460
  %v3537 = vpack.c.bf16 %v3465, %v3463
  %v3538 = vpack.c.bf16 %v3466, %v3464
  %v3539 = vpack.c.bf16 %v3469, %v3467
  %v3540 = vpack.c.bf16 %v3470, %v3468
  %v3541 = vpack.c.bf16 %v3473, %v3471
  %v3542 = vpack.c.bf16 %v3474, %v3472
  %v3543 = vpack.c.bf16 %v3477, %v3475
  %v3544 = vpack.c.bf16 %v3478, %v3476
  %v3545 = vpack.c.bf16 %v3481, %v3479
  %v3546 = vpack.c.bf16 %v3482, %v3480
  %v3547 = vld [vmem:[%s14] sm:$0x3]
  %v3549 = vperm.slane %v3547, 0
  %v3550 = vperm.slane %v3547, 1
  %v3585 = vunpack.c.l.b16 %v3483
  %v3586 = vunpack.c.h.b16 %v3483
  %v3587 = vunpack.c.l.b16 %v3484
  %v3588 = vunpack.c.h.b16 %v3484
  %v3589 = vunpack.c.l.b16 %v3485
  %v3590 = vunpack.c.h.b16 %v3485
  %v3591 = vunpack.c.l.b16 %v3486
  %v3592 = vunpack.c.h.b16 %v3486
  %v3593 = vunpack.c.l.b16 %v3487
  %v3594 = vunpack.c.h.b16 %v3487
  %v3595 = vunpack.c.l.b16 %v3488
  %v3596 = vunpack.c.h.b16 %v3488
  %v3597 = vunpack.c.l.b16 %v3489
  %v3598 = vunpack.c.h.b16 %v3489
  %v3599 = vunpack.c.l.b16 %v3490
  %v3600 = vunpack.c.h.b16 %v3490
  %v3601 = vunpack.c.l.b16 %v3491
  %v3602 = vunpack.c.h.b16 %v3491
  %v3603 = vunpack.c.l.b16 %v3492
  %v3604 = vunpack.c.h.b16 %v3492
  %v3605 = vunpack.c.l.b16 %v3493
  %v3606 = vunpack.c.h.b16 %v3493
  %v3607 = vunpack.c.l.b16 %v3494
  %v3608 = vunpack.c.h.b16 %v3494
  %v3609 = vunpack.c.l.b16 %v3495
  %v3610 = vunpack.c.h.b16 %v3495
  %v3611 = vunpack.c.l.b16 %v3496
  %v3612 = vunpack.c.h.b16 %v3496
  %v3613 = vunpack.c.l.b16 %v3497
  %v3614 = vunpack.c.h.b16 %v3497
  %v3615 = vunpack.c.l.b16 %v3498
  %v3616 = vunpack.c.h.b16 %v3498
  %v3617 = vunpack.c.l.b16 %v3499
  %v3618 = vunpack.c.h.b16 %v3499
  %v3619 = vunpack.c.l.b16 %v3500
  %v3620 = vunpack.c.h.b16 %v3500
  %v3621 = vunpack.c.l.b16 %v3501
  %v3622 = vunpack.c.h.b16 %v3501
  %v3623 = vunpack.c.l.b16 %v3502
  %v3624 = vunpack.c.h.b16 %v3502
  %v3625 = vunpack.c.l.b16 %v3503
  %v3626 = vunpack.c.h.b16 %v3503
  %v3627 = vunpack.c.l.b16 %v3504
  %v3628 = vunpack.c.h.b16 %v3504
  %v3629 = vunpack.c.l.b16 %v3505
  %v3630 = vunpack.c.h.b16 %v3505
  %v3631 = vunpack.c.l.b16 %v3506
  %v3632 = vunpack.c.h.b16 %v3506
  %v3633 = vunpack.c.l.b16 %v3507
  %v3634 = vunpack.c.h.b16 %v3507
  %v3635 = vunpack.c.l.b16 %v3508
  %v3636 = vunpack.c.h.b16 %v3508
  %v3637 = vunpack.c.l.b16 %v3509
  %v3638 = vunpack.c.h.b16 %v3509
  %v3639 = vunpack.c.l.b16 %v3510
  %v3640 = vunpack.c.h.b16 %v3510
  %v3641 = vunpack.c.l.b16 %v3511
  %v3642 = vunpack.c.h.b16 %v3511
  %v3643 = vunpack.c.l.b16 %v3512
  %v3644 = vunpack.c.h.b16 %v3512
  %v3645 = vunpack.c.l.b16 %v3513
  %v3646 = vunpack.c.h.b16 %v3513
  %v3647 = vunpack.c.l.b16 %v3514
  %v3648 = vunpack.c.h.b16 %v3514
  %v3649 = vpack.c.b16 %v3587, %v3585
  %v3650 = vpack.c.b16 %v3588, %v3586
  %v3651 = vpack.c.b16 %v3591, %v3589
  %v3652 = vpack.c.b16 %v3592, %v3590
  %v3653 = vpack.c.b16 %v3595, %v3593
  %v3654 = vpack.c.b16 %v3596, %v3594
  %v3655 = vpack.c.b16 %v3599, %v3597
  %v3656 = vpack.c.b16 %v3600, %v3598
  %v3657 = vpack.c.b16 %v3603, %v3601
  %v3658 = vpack.c.b16 %v3604, %v3602
  %v3659 = vpack.c.b16 %v3607, %v3605
  %v3660 = vpack.c.b16 %v3608, %v3606
  %v3661 = vpack.c.b16 %v3611, %v3609
  %v3662 = vpack.c.b16 %v3612, %v3610
  %v3663 = vpack.c.b16 %v3615, %v3613
  %v3664 = vpack.c.b16 %v3616, %v3614
  %v3665 = vpack.c.b16 %v3619, %v3617
  %v3666 = vpack.c.b16 %v3620, %v3618
  %v3667 = vpack.c.b16 %v3623, %v3621
  %v3668 = vpack.c.b16 %v3624, %v3622
  %v3669 = vpack.c.b16 %v3627, %v3625
  %v3670 = vpack.c.b16 %v3628, %v3626
  %v3671 = vpack.c.b16 %v3631, %v3629
  %v3672 = vpack.c.b16 %v3632, %v3630
  %v3673 = vpack.c.b16 %v3635, %v3633
  %v3674 = vpack.c.b16 %v3636, %v3634
  %v3675 = vpack.c.b16 %v3639, %v3637
  %v3676 = vpack.c.b16 %v3640, %v3638
  %v3677 = vpack.c.b16 %v3643, %v3641
  %v3678 = vpack.c.b16 %v3644, %v3642
  %v3679 = vpack.c.b16 %v3647, %v3645
  %v3680 = vpack.c.b16 %v3648, %v3646
  %3713 = vmatpush.bf16.msra.mxu0 %v3663
  %3714 = vmatpush.bf16.msra.mxu0 %v3661
  %3715 = vmatpush.bf16.msra.mxu0 %v3659
  %3716 = vmatpush.bf16.msra.mxu0 %v3657
  %3717 = vmatpush.bf16.msra.mxu0 %v3655
  %3718 = vmatpush.bf16.msra.mxu0 %v3653
  %3719 = vmatpush.bf16.msra.mxu0 %v3651
  %3720 = vmatpush.bf16.msra.mxu0 %v3649
  %3721 = vmatmul.bf16.gmra.mxu0 %v3515
  %v3722 = vpop.f32.mrf.mxu0
  %v3723 = vadd.f32 %v3549, %v3722
  %v3724 = vpop.f32.mrf.mxu0
  %v3725 = vadd.f32 %v3549, %v3724
  %3726 = vmatmul.bf16.gmra.mxu0 %v3517
  %v3727 = vpop.f32.mrf.mxu0
  %v3728 = vadd.f32 %v3549, %v3727
  %v3729 = vpop.f32.mrf.mxu0
  %v3730 = vadd.f32 %v3549, %v3729
  %3731 = vmatmul.bf16.gmra.mxu0 %v3519
  %v3732 = vpop.f32.mrf.mxu0
  %v3733 = vadd.f32 %v3549, %v3732
  %v3734 = vpop.f32.mrf.mxu0
  %v3735 = vadd.f32 %v3549, %v3734
  %3736 = vmatmul.bf16.gmra.mxu0 %v3521
  %v3737 = vpop.f32.mrf.mxu0
  %v3738 = vadd.f32 %v3549, %v3737
  %v3739 = vpop.f32.mrf.mxu0
  %v3740 = vadd.f32 %v3549, %v3739
  %3741 = vmatmul.bf16.gmra.mxu0 %v3523
  %v3742 = vpop.f32.mrf.mxu0
  %v3743 = vadd.f32 %v3549, %v3742
  %v3744 = vpop.f32.mrf.mxu0
  %v3745 = vadd.f32 %v3549, %v3744
  %3746 = vmatmul.bf16.gmra.mxu0 %v3525
  %v3747 = vpop.f32.mrf.mxu0
  %v3748 = vadd.f32 %v3549, %v3747
  %v3749 = vpop.f32.mrf.mxu0
  %v3750 = vadd.f32 %v3549, %v3749
  %3751 = vmatmul.bf16.gmra.mxu0 %v3527
  %v3752 = vpop.f32.mrf.mxu0
  %v3753 = vadd.f32 %v3549, %v3752
  %v3754 = vpop.f32.mrf.mxu0
  %v3755 = vadd.f32 %v3549, %v3754
  %3756 = vmatmul.bf16.gmra.mxu0 %v3529
  %v3757 = vpop.f32.mrf.mxu0
  %v3758 = vadd.f32 %v3549, %v3757
  %v3759 = vpop.f32.mrf.mxu0
  %v3760 = vadd.f32 %v3549, %v3759
  %3761 = vmatmul.bf16.gmra.mxu0 %v3531
  %v3762 = vpop.f32.mrf.mxu0
  %v3763 = vadd.f32 %v3549, %v3762
  %v3764 = vpop.f32.mrf.mxu0
  %v3765 = vadd.f32 %v3549, %v3764
  %3766 = vmatmul.bf16.gmra.mxu0 %v3533
  %v3767 = vpop.f32.mrf.mxu0
  %v3768 = vadd.f32 %v3549, %v3767
  %v3769 = vpop.f32.mrf.mxu0
  %v3770 = vadd.f32 %v3549, %v3769
  %3771 = vmatmul.bf16.gmra.mxu0 %v3535
  %v3772 = vpop.f32.mrf.mxu0
  %v3773 = vadd.f32 %v3549, %v3772
  %v3774 = vpop.f32.mrf.mxu0
  %v3775 = vadd.f32 %v3549, %v3774
  %3776 = vmatmul.bf16.gmra.mxu0 %v3537
  %v3777 = vpop.f32.mrf.mxu0
  %v3778 = vadd.f32 %v3549, %v3777
  %v3779 = vpop.f32.mrf.mxu0
  %v3780 = vadd.f32 %v3549, %v3779
  %3781 = vmatmul.bf16.gmra.mxu0 %v3539
  %v3782 = vpop.f32.mrf.mxu0
  %v3783 = vadd.f32 %v3549, %v3782
  %v3784 = vpop.f32.mrf.mxu0
  %v3785 = vadd.f32 %v3549, %v3784
  %3786 = vmatmul.bf16.gmra.mxu0 %v3541
  %v3787 = vpop.f32.mrf.mxu0
  %v3788 = vadd.f32 %v3549, %v3787
  %v3789 = vpop.f32.mrf.mxu0
  %v3790 = vadd.f32 %v3549, %v3789
  %3791 = vmatmul.bf16.gmra.mxu0 %v3543
  %v3792 = vpop.f32.mrf.mxu0
  %v3793 = vadd.f32 %v3549, %v3792
  %v3794 = vpop.f32.mrf.mxu0
  %v3795 = vadd.f32 %v3549, %v3794
  %3796 = vmatmul.bf16.gmra.mxu0 %v3545
  %v3797 = vpop.f32.mrf.mxu0
  %v3798 = vadd.f32 %v3549, %v3797
  %v3799 = vpop.f32.mrf.mxu0
  %v3800 = vadd.f32 %v3549, %v3799
  %3801 = vdwg.mxu0
  %3802 = vmatpush.bf16.msra.mxu0 %v3679
  %3803 = vmatpush.bf16.msra.mxu0 %v3677
  %3804 = vmatpush.bf16.msra.mxu0 %v3675
  %3805 = vmatpush.bf16.msra.mxu0 %v3673
  %3806 = vmatpush.bf16.msra.mxu0 %v3671
  %3807 = vmatpush.bf16.msra.mxu0 %v3669
  %3808 = vmatpush.bf16.msra.mxu0 %v3667
  %3809 = vmatpush.bf16.msra.mxu0 %v3665
  %3810 = vmatmul.bf16.gmra.mxu0 %v3516
  %v3811 = vpop.f32.mrf.mxu0
  %v3812 = vadd.f32 %v3723, %v3811
  %v3813 = vpop.f32.mrf.mxu0
  %v3814 = vadd.f32 %v3725, %v3813
  %3815 = vmatmul.bf16.gmra.mxu0 %v3518
  %v3816 = vpop.f32.mrf.mxu0
  %v3817 = vadd.f32 %v3728, %v3816
  %v3818 = vpop.f32.mrf.mxu0
  %v3819 = vadd.f32 %v3730, %v3818
  %3820 = vmatmul.bf16.gmra.mxu0 %v3520
  %v3821 = vpop.f32.mrf.mxu0
  %v3822 = vadd.f32 %v3733, %v3821
  %v3823 = vpop.f32.mrf.mxu0
  %v3824 = vadd.f32 %v3735, %v3823
  %3825 = vmatmul.bf16.gmra.mxu0 %v3522
  %v3826 = vpop.f32.mrf.mxu0
  %v3827 = vadd.f32 %v3738, %v3826
  %v3828 = vpop.f32.mrf.mxu0
  %v3829 = vadd.f32 %v3740, %v3828
  %3830 = vmatmul.bf16.gmra.mxu0 %v3524
  %v3831 = vpop.f32.mrf.mxu0
  %v3832 = vadd.f32 %v3743, %v3831
  %v3833 = vpop.f32.mrf.mxu0
  %v3834 = vadd.f32 %v3745, %v3833
  %3835 = vmatmul.bf16.gmra.mxu0 %v3526
  %v3836 = vpop.f32.mrf.mxu0
  %v3837 = vadd.f32 %v3748, %v3836
  %v3838 = vpop.f32.mrf.mxu0
  %v3839 = vadd.f32 %v3750, %v3838
  %3840 = vmatmul.bf16.gmra.mxu0 %v3528
  %v3841 = vpop.f32.mrf.mxu0
  %v3842 = vadd.f32 %v3753, %v3841
  %v3843 = vpop.f32.mrf.mxu0
  %v3844 = vadd.f32 %v3755, %v3843
  %3845 = vmatmul.bf16.gmra.mxu0 %v3530
  %v3846 = vpop.f32.mrf.mxu0
  %v3847 = vadd.f32 %v3758, %v3846
  %v3848 = vpop.f32.mrf.mxu0
  %v3849 = vadd.f32 %v3760, %v3848
  %3850 = vmatmul.bf16.gmra.mxu0 %v3532
  %v3851 = vpop.f32.mrf.mxu0
  %v3852 = vadd.f32 %v3763, %v3851
  %v3853 = vpop.f32.mrf.mxu0
  %v3854 = vadd.f32 %v3765, %v3853
  %3855 = vmatmul.bf16.gmra.mxu0 %v3534
  %v3856 = vpop.f32.mrf.mxu0
  %v3857 = vadd.f32 %v3768, %v3856
  %v3858 = vpop.f32.mrf.mxu0
  %v3859 = vadd.f32 %v3770, %v3858
  %3860 = vmatmul.bf16.gmra.mxu0 %v3536
  %v3861 = vpop.f32.mrf.mxu0
  %v3862 = vadd.f32 %v3773, %v3861
  %v3863 = vpop.f32.mrf.mxu0
  %v3864 = vadd.f32 %v3775, %v3863
  %3865 = vmatmul.bf16.gmra.mxu0 %v3538
  %v3866 = vpop.f32.mrf.mxu0
  %v3867 = vadd.f32 %v3778, %v3866
  %v3868 = vpop.f32.mrf.mxu0
  %v3869 = vadd.f32 %v3780, %v3868
  %3870 = vmatmul.bf16.gmra.mxu0 %v3540
  %v3871 = vpop.f32.mrf.mxu0
  %v3872 = vadd.f32 %v3783, %v3871
  %v3873 = vpop.f32.mrf.mxu0
  %v3874 = vadd.f32 %v3785, %v3873
  %3875 = vmatmul.bf16.gmra.mxu0 %v3542
  %v3876 = vpop.f32.mrf.mxu0
  %v3877 = vadd.f32 %v3788, %v3876
  %v3878 = vpop.f32.mrf.mxu0
  %v3879 = vadd.f32 %v3790, %v3878
  %3880 = vmatmul.bf16.gmra.mxu0 %v3544
  %v3881 = vpop.f32.mrf.mxu0
  %v3882 = vadd.f32 %v3793, %v3881
  %v3883 = vpop.f32.mrf.mxu0
  %v3884 = vadd.f32 %v3795, %v3883
  %3885 = vmatmul.bf16.gmra.mxu0 %v3546
  %v3886 = vpop.f32.mrf.mxu0
  %v3887 = vadd.f32 %v3798, %v3886
  %v3888 = vpop.f32.mrf.mxu0
  %v3889 = vadd.f32 %v3800, %v3888
  %3890 = vdwg.mxu0
  %3891 = vmatpush.bf16.msra.mxu0 %v3664
  %3892 = vmatpush.bf16.msra.mxu0 %v3662
  %3893 = vmatpush.bf16.msra.mxu0 %v3660
  %3894 = vmatpush.bf16.msra.mxu0 %v3658
  %3895 = vmatpush.bf16.msra.mxu0 %v3656
  %3896 = vmatpush.bf16.msra.mxu0 %v3654
  %3897 = vmatpush.bf16.msra.mxu0 %v3652
  %3898 = vmatpush.bf16.msra.mxu0 %v3650
  %3899 = vmatmul.bf16.gmra.mxu0 %v3515
  %v3900 = vpop.f32.mrf.mxu0
  %v3901 = vadd.f32 %v3550, %v3900
  %v3902 = vpop.f32.mrf.mxu0
  %v3903 = vadd.f32 %v3550, %v3902
  %3904 = vmatmul.bf16.gmra.mxu0 %v3517
  %v3905 = vpop.f32.mrf.mxu0
  %v3906 = vadd.f32 %v3550, %v3905
  %v3907 = vpop.f32.mrf.mxu0
  %v3908 = vadd.f32 %v3550, %v3907
  %3909 = vmatmul.bf16.gmra.mxu0 %v3519
  %v3910 = vpop.f32.mrf.mxu0
  %v3911 = vadd.f32 %v3550, %v3910
  %v3912 = vpop.f32.mrf.mxu0
  %v3913 = vadd.f32 %v3550, %v3912
  %3914 = vmatmul.bf16.gmra.mxu0 %v3521
  %v3915 = vpop.f32.mrf.mxu0
  %v3916 = vadd.f32 %v3550, %v3915
  %v3917 = vpop.f32.mrf.mxu0
  %v3918 = vadd.f32 %v3550, %v3917
  %3919 = vmatmul.bf16.gmra.mxu0 %v3523
  %v3920 = vpop.f32.mrf.mxu0
  %v3921 = vadd.f32 %v3550, %v3920
  %v3922 = vpop.f32.mrf.mxu0
  %v3923 = vadd.f32 %v3550, %v3922
  %3924 = vmatmul.bf16.gmra.mxu0 %v3525
  %v3925 = vpop.f32.mrf.mxu0
  %v3926 = vadd.f32 %v3550, %v3925
  %v3927 = vpop.f32.mrf.mxu0
  %v3928 = vadd.f32 %v3550, %v3927
  %3929 = vmatmul.bf16.gmra.mxu0 %v3527
  %v3930 = vpop.f32.mrf.mxu0
  %v3931 = vadd.f32 %v3550, %v3930
  %v3932 = vpop.f32.mrf.mxu0
  %v3933 = vadd.f32 %v3550, %v3932
  %3934 = vmatmul.bf16.gmra.mxu0 %v3529
  %v3935 = vpop.f32.mrf.mxu0
  %v3936 = vadd.f32 %v3550, %v3935
  %v3937 = vpop.f32.mrf.mxu0
  %v3938 = vadd.f32 %v3550, %v3937
  %3939 = vmatmul.bf16.gmra.mxu0 %v3531
  %v3940 = vpop.f32.mrf.mxu0
  %v3941 = vadd.f32 %v3550, %v3940
  %v3942 = vpop.f32.mrf.mxu0
  %v3943 = vadd.f32 %v3550, %v3942
  %3944 = vmatmul.bf16.gmra.mxu0 %v3533
  %v3945 = vpop.f32.mrf.mxu0
  %v3946 = vadd.f32 %v3550, %v3945
  %v3947 = vpop.f32.mrf.mxu0
  %v3948 = vadd.f32 %v3550, %v3947
  %3949 = vmatmul.bf16.gmra.mxu0 %v3535
  %v3950 = vpop.f32.mrf.mxu0
  %v3951 = vadd.f32 %v3550, %v3950
  %v3952 = vpop.f32.mrf.mxu0
  %v3953 = vadd.f32 %v3550, %v3952
  %3954 = vmatmul.bf16.gmra.mxu0 %v3537
  %v3955 = vpop.f32.mrf.mxu0
  %v3956 = vadd.f32 %v3550, %v3955
  %v3957 = vpop.f32.mrf.mxu0
  %v3958 = vadd.f32 %v3550, %v3957
  %3959 = vmatmul.bf16.gmra.mxu0 %v3539
  %v3960 = vpop.f32.mrf.mxu0
  %v3961 = vadd.f32 %v3550, %v3960
  %v3962 = vpop.f32.mrf.mxu0
  %v3963 = vadd.f32 %v3550, %v3962
  %3964 = vmatmul.bf16.gmra.mxu0 %v3541
  %v3965 = vpop.f32.mrf.mxu0
  %v3966 = vadd.f32 %v3550, %v3965
  %v3967 = vpop.f32.mrf.mxu0
  %v3968 = vadd.f32 %v3550, %v3967
  %3969 = vmatmul.bf16.gmra.mxu0 %v3543
  %v3970 = vpop.f32.mrf.mxu0
  %v3971 = vadd.f32 %v3550, %v3970
  %v3972 = vpop.f32.mrf.mxu0
  %v3973 = vadd.f32 %v3550, %v3972
  %3974 = vmatmul.bf16.gmra.mxu0 %v3545
  %v3975 = vpop.f32.mrf.mxu0
  %v3976 = vadd.f32 %v3550, %v3975
  %v3977 = vpop.f32.mrf.mxu0
  %v3978 = vadd.f32 %v3550, %v3977
  %3979 = vdwg.mxu0
  %3980 = vmatpush.bf16.msra.mxu0 %v3680
  %3981 = vmatpush.bf16.msra.mxu0 %v3678
  %3982 = vmatpush.bf16.msra.mxu0 %v3676
  %3983 = vmatpush.bf16.msra.mxu0 %v3674
  %3984 = vmatpush.bf16.msra.mxu0 %v3672
  %3985 = vmatpush.bf16.msra.mxu0 %v3670
  %3986 = vmatpush.bf16.msra.mxu0 %v3668
  %3987 = vmatpush.bf16.msra.mxu0 %v3666
  %3988 = vmatmul.bf16.gmra.mxu0 %v3516
  %v3989 = vpop.f32.mrf.mxu0
  %v3990 = vadd.f32 %v3901, %v3989
  %v3991 = vpop.f32.mrf.mxu0
  %v3992 = vadd.f32 %v3903, %v3991
  %3993 = vmatmul.bf16.gmra.mxu0 %v3518
  %v3994 = vpop.f32.mrf.mxu0
  %v3995 = vadd.f32 %v3906, %v3994
  %v3996 = vpop.f32.mrf.mxu0
  %v3997 = vadd.f32 %v3908, %v3996
  %3998 = vmatmul.bf16.gmra.mxu0 %v3520
  %v3999 = vpop.f32.mrf.mxu0
  %v4000 = vadd.f32 %v3911, %v3999
  %v4001 = vpop.f32.mrf.mxu0
  %v4002 = vadd.f32 %v3913, %v4001
  %4003 = vmatmul.bf16.gmra.mxu0 %v3522
  %v4004 = vpop.f32.mrf.mxu0
  %v4005 = vadd.f32 %v3916, %v4004
  %v4006 = vpop.f32.mrf.mxu0
  %v4007 = vadd.f32 %v3918, %v4006
  %4008 = vmatmul.bf16.gmra.mxu0 %v3524
  %v4009 = vpop.f32.mrf.mxu0
  %v4010 = vadd.f32 %v3921, %v4009
  %v4011 = vpop.f32.mrf.mxu0
  %v4012 = vadd.f32 %v3923, %v4011
  %4013 = vmatmul.bf16.gmra.mxu0 %v3526
  %v4014 = vpop.f32.mrf.mxu0
  %v4015 = vadd.f32 %v3926, %v4014
  %v4016 = vpop.f32.mrf.mxu0
  %v4017 = vadd.f32 %v3928, %v4016
  %4018 = vmatmul.bf16.gmra.mxu0 %v3528
  %v4019 = vpop.f32.mrf.mxu0
  %v4020 = vadd.f32 %v3931, %v4019
  %v4021 = vpop.f32.mrf.mxu0
  %v4022 = vadd.f32 %v3933, %v4021
  %4023 = vmatmul.bf16.gmra.mxu0 %v3530
  %v4024 = vpop.f32.mrf.mxu0
  %v4025 = vadd.f32 %v3936, %v4024
  %v4026 = vpop.f32.mrf.mxu0
  %v4027 = vadd.f32 %v3938, %v4026
  %4028 = vmatmul.bf16.gmra.mxu0 %v3532
  %v4029 = vpop.f32.mrf.mxu0
  %v4030 = vadd.f32 %v3941, %v4029
  %v4031 = vpop.f32.mrf.mxu0
  %v4032 = vadd.f32 %v3943, %v4031
  %4033 = vmatmul.bf16.gmra.mxu0 %v3534
  %v4034 = vpop.f32.mrf.mxu0
  %v4035 = vadd.f32 %v3946, %v4034
  %v4036 = vpop.f32.mrf.mxu0
  %v4037 = vadd.f32 %v3948, %v4036
  %4038 = vmatmul.bf16.gmra.mxu0 %v3536
  %v4039 = vpop.f32.mrf.mxu0
  %v4040 = vadd.f32 %v3951, %v4039
  %v4041 = vpop.f32.mrf.mxu0
  %v4042 = vadd.f32 %v3953, %v4041
  %4043 = vmatmul.bf16.gmra.mxu0 %v3538
  %v4044 = vpop.f32.mrf.mxu0
  %v4045 = vadd.f32 %v3956, %v4044
  %v4046 = vpop.f32.mrf.mxu0
  %v4047 = vadd.f32 %v3958, %v4046
  %4048 = vmatmul.bf16.gmra.mxu0 %v3540
  %v4049 = vpop.f32.mrf.mxu0
  %v4050 = vadd.f32 %v3961, %v4049
  %v4051 = vpop.f32.mrf.mxu0
  %v4052 = vadd.f32 %v3963, %v4051
  %4053 = vmatmul.bf16.gmra.mxu0 %v3542
  %v4054 = vpop.f32.mrf.mxu0
  %v4055 = vadd.f32 %v3966, %v4054
  %v4056 = vpop.f32.mrf.mxu0
  %v4057 = vadd.f32 %v3968, %v4056
  %4058 = vmatmul.bf16.gmra.mxu0 %v3544
  %v4059 = vpop.f32.mrf.mxu0
  %v4060 = vadd.f32 %v3971, %v4059
  %v4061 = vpop.f32.mrf.mxu0
  %v4062 = vadd.f32 %v3973, %v4061
  %4063 = vmatmul.bf16.gmra.mxu0 %v3546
  %v4064 = vpop.f32.mrf.mxu0
  %v4065 = vadd.f32 %v3976, %v4064
  %v4066 = vpop.f32.mrf.mxu0
  %v4067 = vadd.f32 %v3978, %v4066
  %4068 = vdwg.mxu0
  %v4069 = vmax.f32 %v3812, 0.0
  %v4070 = vmax.f32 %v3990, 0.0
  %v4071 = vmax.f32 %v3814, 0.0
  %v4072 = vmax.f32 %v3992, 0.0
  %v4073 = vmax.f32 %v3817, 0.0
  %v4074 = vmax.f32 %v3995, 0.0
  %v4075 = vmax.f32 %v3819, 0.0
  %v4076 = vmax.f32 %v3997, 0.0
  %v4077 = vmax.f32 %v3822, 0.0
  %v4078 = vmax.f32 %v4000, 0.0
  %v4079 = vmax.f32 %v3824, 0.0
  %v4080 = vmax.f32 %v4002, 0.0
  %v4081 = vmax.f32 %v3827, 0.0
  %v4082 = vmax.f32 %v4005, 0.0
  %v4083 = vmax.f32 %v3829, 0.0
  %v4084 = vmax.f32 %v4007, 0.0
  %v4085 = vmax.f32 %v3832, 0.0
  %v4086 = vmax.f32 %v4010, 0.0
  %v4087 = vmax.f32 %v3834, 0.0
  %v4088 = vmax.f32 %v4012, 0.0
  %v4089 = vmax.f32 %v3837, 0.0
  %v4090 = vmax.f32 %v4015, 0.0
  %v4091 = vmax.f32 %v3839, 0.0
  %v4092 = vmax.f32 %v4017, 0.0
  %v4093 = vmax.f32 %v3842, 0.0
  %v4094 = vmax.f32 %v4020, 0.0
  %v4095 = vmax.f32 %v3844, 0.0
  %v4096 = vmax.f32 %v4022, 0.0
  %v4097 = vmax.f32 %v3847, 0.0
  %v4098 = vmax.f32 %v4025, 0.0
  %v4099 = vmax.f32 %v3849, 0.0
  %v4100 = vmax.f32 %v4027, 0.0
  %v4101 = vmax.f32 %v3852, 0.0
  %v4102 = vmax.f32 %v4030, 0.0
  %v4103 = vmax.f32 %v3854, 0.0
  %v4104 = vmax.f32 %v4032, 0.0
  %v4105 = vmax.f32 %v3857, 0.0
  %v4106 = vmax.f32 %v4035, 0.0
  %v4107 = vmax.f32 %v3859, 0.0
  %v4108 = vmax.f32 %v4037, 0.0
  %v4109 = vmax.f32 %v3862, 0.0
  %v4110 = vmax.f32 %v4040, 0.0
  %v4111 = vmax.f32 %v3864, 0.0
  %v4112 = vmax.f32 %v4042, 0.0
  %v4113 = vmax.f32 %v3867, 0.0
  %v4114 = vmax.f32 %v4045, 0.0
  %v4115 = vmax.f32 %v3869, 0.0
  %v4116 = vmax.f32 %v4047, 0.0
  %v4117 = vmax.f32 %v3872, 0.0
  %v4118 = vmax.f32 %v4050, 0.0
  %v4119 = vmax.f32 %v3874, 0.0
  %v4120 = vmax.f32 %v4052, 0.0
  %v4121 = vmax.f32 %v3877, 0.0
  %v4122 = vmax.f32 %v4055, 0.0
  %v4123 = vmax.f32 %v3879, 0.0
  %v4124 = vmax.f32 %v4057, 0.0
  %v4125 = vmax.f32 %v3882, 0.0
  %v4126 = vmax.f32 %v4060, 0.0
  %v4127 = vmax.f32 %v3884, 0.0
  %v4128 = vmax.f32 %v4062, 0.0
  %v4129 = vmax.f32 %v3887, 0.0
  %v4130 = vmax.f32 %v4065, 0.0
  %v4131 = vmax.f32 %v3889, 0.0
  %v4132 = vmax.f32 %v4067, 0.0
  %v4133 = vld [vmem:[%s15] sm:$0xff]
  %v4134 = vld [vmem:[%s15 + $0x8] sm:$0xff]
  %v4135 = vld [vmem:[%s15 + $0x10] sm:$0xff]
  %v4136 = vld [vmem:[%s15 + $0x18] sm:$0xff]
  %v4137 = vld [vmem:[%s15 + $0x20] sm:$0xff]
  %v4138 = vld [vmem:[%s15 + $0x28] sm:$0xff]
  %v4139 = vld [vmem:[%s15 + $0x30] sm:$0xff]
  %v4140 = vld [vmem:[%s15 + $0x38] sm:$0xff]
  %v4141 = vld [vmem:[%s15 + $0x40] sm:$0xff]
  %v4142 = vld [vmem:[%s15 + $0x48] sm:$0xff]
  %v4143 = vld [vmem:[%s15 + $0x50] sm:$0xff]
  %v4144 = vld [vmem:[%s15 + $0x58] sm:$0xff]
  %v4145 = vld [vmem:[%s15 + $0x60] sm:$0xff]
  %v4146 = vld [vmem:[%s15 + $0x68] sm:$0xff]
  %v4147 = vld [vmem:[%s15 + $0x70] sm:$0xff]
  %v4148 = vld [vmem:[%s15 + $0x78] sm:$0xff]
  %v4149 = vld [vmem:[%s15 + $0x80] sm:$0xff]
  %v4150 = vld [vmem:[%s15 + $0x88] sm:$0xff]
  %v4151 = vld [vmem:[%s15 + $0x90] sm:$0xff]
  %v4152 = vld [vmem:[%s15 + $0x98] sm:$0xff]
  %v4153 = vld [vmem:[%s15 + $0xa0] sm:$0xff]
  %v4154 = vld [vmem:[%s15 + $0xa8] sm:$0xff]
  %v4155 = vld [vmem:[%s15 + $0xb0] sm:$0xff]
  %v4156 = vld [vmem:[%s15 + $0xb8] sm:$0xff]
  %v4157 = vld [vmem:[%s15 + $0xc0] sm:$0xff]
  %v4158 = vld [vmem:[%s15 + $0xc8] sm:$0xff]
  %v4159 = vld [vmem:[%s15 + $0xd0] sm:$0xff]
  %v4160 = vld [vmem:[%s15 + $0xd8] sm:$0xff]
  %v4161 = vld [vmem:[%s15 + $0xe0] sm:$0xff]
  %v4162 = vld [vmem:[%s15 + $0xe8] sm:$0xff]
  %v4163 = vld [vmem:[%s15 + $0xf0] sm:$0xff]
  %v4164 = vld [vmem:[%s15 + $0xf8] sm:$0xff]
  %v4165 = vpack.c.bf16 %v4071, %v4069
  %v4166 = vpack.c.bf16 %v4072, %v4070
  %v4167 = vpack.c.bf16 %v4075, %v4073
  %v4168 = vpack.c.bf16 %v4076, %v4074
  %v4169 = vpack.c.bf16 %v4079, %v4077
  %v4170 = vpack.c.bf16 %v4080, %v4078
  %v4171 = vpack.c.bf16 %v4083, %v4081
  %v4172 = vpack.c.bf16 %v4084, %v4082
  %v4173 = vpack.c.bf16 %v4087, %v4085
  %v4174 = vpack.c.bf16 %v4088, %v4086
  %v4175 = vpack.c.bf16 %v4091, %v4089
  %v4176 = vpack.c.bf16 %v4092, %v4090
  %v4177 = vpack.c.bf16 %v4095, %v4093
  %v4178 = vpack.c.bf16 %v4096, %v4094
  %v4179 = vpack.c.bf16 %v4099, %v4097
  %v4180 = vpack.c.bf16 %v4100, %v4098
  %v4181 = vpack.c.bf16 %v4103, %v4101
  %v4182 = vpack.c.bf16 %v4104, %v4102
  %v4183 = vpack.c.bf16 %v4107, %v4105
  %v4184 = vpack.c.bf16 %v4108, %v4106
  %v4185 = vpack.c.bf16 %v4111, %v4109
  %v4186 = vpack.c.bf16 %v4112, %v4110
  %v4187 = vpack.c.bf16 %v4115, %v4113
  %v4188 = vpack.c.bf16 %v4116, %v4114
  %v4189 = vpack.c.bf16 %v4119, %v4117
  %v4190 = vpack.c.bf16 %v4120, %v4118
  %v4191 = vpack.c.bf16 %v4123, %v4121
  %v4192 = vpack.c.bf16 %v4124, %v4122
  %v4193 = vpack.c.bf16 %v4127, %v4125
  %v4194 = vpack.c.bf16 %v4128, %v4126
  %v4195 = vpack.c.bf16 %v4131, %v4129
  %v4196 = vpack.c.bf16 %v4132, %v4130
  %v4197 = vld [vmem:[%s16] sm:$0x3]
  %v4199 = vperm.slane %v4197, 0
  %v4200 = vperm.slane %v4197, 1
  %v4235 = vunpack.c.l.b16 %v4133
  %v4236 = vunpack.c.h.b16 %v4133
  %v4237 = vunpack.c.l.b16 %v4134
  %v4238 = vunpack.c.h.b16 %v4134
  %v4239 = vunpack.c.l.b16 %v4135
  %v4240 = vunpack.c.h.b16 %v4135
  %v4241 = vunpack.c.l.b16 %v4136
  %v4242 = vunpack.c.h.b16 %v4136
  %v4243 = vunpack.c.l.b16 %v4137
  %v4244 = vunpack.c.h.b16 %v4137
  %v4245 = vunpack.c.l.b16 %v4138
  %v4246 = vunpack.c.h.b16 %v4138
  %v4247 = vunpack.c.l.b16 %v4139
  %v4248 = vunpack.c.h.b16 %v4139
  %v4249 = vunpack.c.l.b16 %v4140
  %v4250 = vunpack.c.h.b16 %v4140
  %v4251 = vunpack.c.l.b16 %v4141
  %v4252 = vunpack.c.h.b16 %v4141
  %v4253 = vunpack.c.l.b16 %v4142
  %v4254 = vunpack.c.h.b16 %v4142
  %v4255 = vunpack.c.l.b16 %v4143
  %v4256 = vunpack.c.h.b16 %v4143
  %v4257 = vunpack.c.l.b16 %v4144
  %v4258 = vunpack.c.h.b16 %v4144
  %v4259 = vunpack.c.l.b16 %v4145
  %v4260 = vunpack.c.h.b16 %v4145
  %v4261 = vunpack.c.l.b16 %v4146
  %v4262 = vunpack.c.h.b16 %v4146
  %v4263 = vunpack.c.l.b16 %v4147
  %v4264 = vunpack.c.h.b16 %v4147
  %v4265 = vunpack.c.l.b16 %v4148
  %v4266 = vunpack.c.h.b16 %v4148
  %v4267 = vunpack.c.l.b16 %v4149
  %v4268 = vunpack.c.h.b16 %v4149
  %v4269 = vunpack.c.l.b16 %v4150
  %v4270 = vunpack.c.h.b16 %v4150
  %v4271 = vunpack.c.l.b16 %v4151
  %v4272 = vunpack.c.h.b16 %v4151
  %v4273 = vunpack.c.l.b16 %v4152
  %v4274 = vunpack.c.h.b16 %v4152
  %v4275 = vunpack.c.l.b16 %v4153
  %v4276 = vunpack.c.h.b16 %v4153
  %v4277 = vunpack.c.l.b16 %v4154
  %v4278 = vunpack.c.h.b16 %v4154
  %v4279 = vunpack.c.l.b16 %v4155
  %v4280 = vunpack.c.h.b16 %v4155
  %v4281 = vunpack.c.l.b16 %v4156
  %v4282 = vunpack.c.h.b16 %v4156
  %v4283 = vunpack.c.l.b16 %v4157
  %v4284 = vunpack.c.h.b16 %v4157
  %v4285 = vunpack.c.l.b16 %v4158
  %v4286 = vunpack.c.h.b16 %v4158
  %v4287 = vunpack.c.l.b16 %v4159
  %v4288 = vunpack.c.h.b16 %v4159
  %v4289 = vunpack.c.l.b16 %v4160
  %v4290 = vunpack.c.h.b16 %v4160
  %v4291 = vunpack.c.l.b16 %v4161
  %v4292 = vunpack.c.h.b16 %v4161
  %v4293 = vunpack.c.l.b16 %v4162
  %v4294 = vunpack.c.h.b16 %v4162
  %v4295 = vunpack.c.l.b16 %v4163
  %v4296 = vunpack.c.h.b16 %v4163
  %v4297 = vunpack.c.l.b16 %v4164
  %v4298 = vunpack.c.h.b16 %v4164
  %v4299 = vpack.c.b16 %v4237, %v4235
  %v4300 = vpack.c.b16 %v4238, %v4236
  %v4301 = vpack.c.b16 %v4241, %v4239
  %v4302 = vpack.c.b16 %v4242, %v4240
  %v4303 = vpack.c.b16 %v4245, %v4243
  %v4304 = vpack.c.b16 %v4246, %v4244
  %v4305 = vpack.c.b16 %v4249, %v4247
  %v4306 = vpack.c.b16 %v4250, %v4248
  %v4307 = vpack.c.b16 %v4253, %v4251
  %v4308 = vpack.c.b16 %v4254, %v4252
  %v4309 = vpack.c.b16 %v4257, %v4255
  %v4310 = vpack.c.b16 %v4258, %v4256
  %v4311 = vpack.c.b16 %v4261, %v4259
  %v4312 = vpack.c.b16 %v4262, %v4260
  %v4313 = vpack.c.b16 %v4265, %v4263
  %v4314 = vpack.c.b16 %v4266, %v4264
  %v4315 = vpack.c.b16 %v4269, %v4267
  %v4316 = vpack.c.b16 %v4270, %v4268
  %v4317 = vpack.c.b16 %v4273, %v4271
  %v4318 = vpack.c.b16 %v4274, %v4272
  %v4319 = vpack.c.b16 %v4277, %v4275
  %v4320 = vpack.c.b16 %v4278, %v4276
  %v4321 = vpack.c.b16 %v4281, %v4279
  %v4322 = vpack.c.b16 %v4282, %v4280
  %v4323 = vpack.c.b16 %v4285, %v4283
  %v4324 = vpack.c.b16 %v4286, %v4284
  %v4325 = vpack.c.b16 %v4289, %v4287
  %v4326 = vpack.c.b16 %v4290, %v4288
  %v4327 = vpack.c.b16 %v4293, %v4291
  %v4328 = vpack.c.b16 %v4294, %v4292
  %v4329 = vpack.c.b16 %v4297, %v4295
  %v4330 = vpack.c.b16 %v4298, %v4296
  %4363 = vmatpush.bf16.msra.mxu0 %v4313
  %4364 = vmatpush.bf16.msra.mxu0 %v4311
  %4365 = vmatpush.bf16.msra.mxu0 %v4309
  %4366 = vmatpush.bf16.msra.mxu0 %v4307
  %4367 = vmatpush.bf16.msra.mxu0 %v4305
  %4368 = vmatpush.bf16.msra.mxu0 %v4303
  %4369 = vmatpush.bf16.msra.mxu0 %v4301
  %4370 = vmatpush.bf16.msra.mxu0 %v4299
  %4371 = vmatmul.bf16.gmra.mxu0 %v4165
  %v4372 = vpop.f32.mrf.mxu0
  %v4373 = vadd.f32 %v4199, %v4372
  %v4374 = vpop.f32.mrf.mxu0
  %v4375 = vadd.f32 %v4199, %v4374
  %4376 = vmatmul.bf16.gmra.mxu0 %v4167
  %v4377 = vpop.f32.mrf.mxu0
  %v4378 = vadd.f32 %v4199, %v4377
  %v4379 = vpop.f32.mrf.mxu0
  %v4380 = vadd.f32 %v4199, %v4379
  %4381 = vmatmul.bf16.gmra.mxu0 %v4169
  %v4382 = vpop.f32.mrf.mxu0
  %v4383 = vadd.f32 %v4199, %v4382
  %v4384 = vpop.f32.mrf.mxu0
  %v4385 = vadd.f32 %v4199, %v4384
  %4386 = vmatmul.bf16.gmra.mxu0 %v4171
  %v4387 = vpop.f32.mrf.mxu0
  %v4388 = vadd.f32 %v4199, %v4387
  %v4389 = vpop.f32.mrf.mxu0
  %v4390 = vadd.f32 %v4199, %v4389
  %4391 = vmatmul.bf16.gmra.mxu0 %v4173
  %v4392 = vpop.f32.mrf.mxu0
  %v4393 = vadd.f32 %v4199, %v4392
  %v4394 = vpop.f32.mrf.mxu0
  %v4395 = vadd.f32 %v4199, %v4394
  %4396 = vmatmul.bf16.gmra.mxu0 %v4175
  %v4397 = vpop.f32.mrf.mxu0
  %v4398 = vadd.f32 %v4199, %v4397
  %v4399 = vpop.f32.mrf.mxu0
  %v4400 = vadd.f32 %v4199, %v4399
  %4401 = vmatmul.bf16.gmra.mxu0 %v4177
  %v4402 = vpop.f32.mrf.mxu0
  %v4403 = vadd.f32 %v4199, %v4402
  %v4404 = vpop.f32.mrf.mxu0
  %v4405 = vadd.f32 %v4199, %v4404
  %4406 = vmatmul.bf16.gmra.mxu0 %v4179
  %v4407 = vpop.f32.mrf.mxu0
  %v4408 = vadd.f32 %v4199, %v4407
  %v4409 = vpop.f32.mrf.mxu0
  %v4410 = vadd.f32 %v4199, %v4409
  %4411 = vmatmul.bf16.gmra.mxu0 %v4181
  %v4412 = vpop.f32.mrf.mxu0
  %v4413 = vadd.f32 %v4199, %v4412
  %v4414 = vpop.f32.mrf.mxu0
  %v4415 = vadd.f32 %v4199, %v4414
  %4416 = vmatmul.bf16.gmra.mxu0 %v4183
  %v4417 = vpop.f32.mrf.mxu0
  %v4418 = vadd.f32 %v4199, %v4417
  %v4419 = vpop.f32.mrf.mxu0
  %v4420 = vadd.f32 %v4199, %v4419
  %4421 = vmatmul.bf16.gmra.mxu0 %v4185
  %v4422 = vpop.f32.mrf.mxu0
  %v4423 = vadd.f32 %v4199, %v4422
  %v4424 = vpop.f32.mrf.mxu0
  %v4425 = vadd.f32 %v4199, %v4424
  %4426 = vmatmul.bf16.gmra.mxu0 %v4187
  %v4427 = vpop.f32.mrf.mxu0
  %v4428 = vadd.f32 %v4199, %v4427
  %v4429 = vpop.f32.mrf.mxu0
  %v4430 = vadd.f32 %v4199, %v4429
  %4431 = vmatmul.bf16.gmra.mxu0 %v4189
  %v4432 = vpop.f32.mrf.mxu0
  %v4433 = vadd.f32 %v4199, %v4432
  %v4434 = vpop.f32.mrf.mxu0
  %v4435 = vadd.f32 %v4199, %v4434
  %4436 = vmatmul.bf16.gmra.mxu0 %v4191
  %v4437 = vpop.f32.mrf.mxu0
  %v4438 = vadd.f32 %v4199, %v4437
  %v4439 = vpop.f32.mrf.mxu0
  %v4440 = vadd.f32 %v4199, %v4439
  %4441 = vmatmul.bf16.gmra.mxu0 %v4193
  %v4442 = vpop.f32.mrf.mxu0
  %v4443 = vadd.f32 %v4199, %v4442
  %v4444 = vpop.f32.mrf.mxu0
  %v4445 = vadd.f32 %v4199, %v4444
  %4446 = vmatmul.bf16.gmra.mxu0 %v4195
  %v4447 = vpop.f32.mrf.mxu0
  %v4448 = vadd.f32 %v4199, %v4447
  %v4449 = vpop.f32.mrf.mxu0
  %v4450 = vadd.f32 %v4199, %v4449
  %4451 = vdwg.mxu0
  %4452 = vmatpush.bf16.msra.mxu0 %v4329
  %4453 = vmatpush.bf16.msra.mxu0 %v4327
  %4454 = vmatpush.bf16.msra.mxu0 %v4325
  %4455 = vmatpush.bf16.msra.mxu0 %v4323
  %4456 = vmatpush.bf16.msra.mxu0 %v4321
  %4457 = vmatpush.bf16.msra.mxu0 %v4319
  %4458 = vmatpush.bf16.msra.mxu0 %v4317
  %4459 = vmatpush.bf16.msra.mxu0 %v4315
  %4460 = vmatmul.bf16.gmra.mxu0 %v4166
  %v4461 = vpop.f32.mrf.mxu0
  %v4462 = vadd.f32 %v4373, %v4461
  %v4463 = vpop.f32.mrf.mxu0
  %v4464 = vadd.f32 %v4375, %v4463
  %4465 = vmatmul.bf16.gmra.mxu0 %v4168
  %v4466 = vpop.f32.mrf.mxu0
  %v4467 = vadd.f32 %v4378, %v4466
  %v4468 = vpop.f32.mrf.mxu0
  %v4469 = vadd.f32 %v4380, %v4468
  %4470 = vmatmul.bf16.gmra.mxu0 %v4170
  %v4471 = vpop.f32.mrf.mxu0
  %v4472 = vadd.f32 %v4383, %v4471
  %v4473 = vpop.f32.mrf.mxu0
  %v4474 = vadd.f32 %v4385, %v4473
  %4475 = vmatmul.bf16.gmra.mxu0 %v4172
  %v4476 = vpop.f32.mrf.mxu0
  %v4477 = vadd.f32 %v4388, %v4476
  %v4478 = vpop.f32.mrf.mxu0
  %v4479 = vadd.f32 %v4390, %v4478
  %4480 = vmatmul.bf16.gmra.mxu0 %v4174
  %v4481 = vpop.f32.mrf.mxu0
  %v4482 = vadd.f32 %v4393, %v4481
  %v4483 = vpop.f32.mrf.mxu0
  %v4484 = vadd.f32 %v4395, %v4483
  %4485 = vmatmul.bf16.gmra.mxu0 %v4176
  %v4486 = vpop.f32.mrf.mxu0
  %v4487 = vadd.f32 %v4398, %v4486
  %v4488 = vpop.f32.mrf.mxu0
  %v4489 = vadd.f32 %v4400, %v4488
  %4490 = vmatmul.bf16.gmra.mxu0 %v4178
  %v4491 = vpop.f32.mrf.mxu0
  %v4492 = vadd.f32 %v4403, %v4491
  %v4493 = vpop.f32.mrf.mxu0
  %v4494 = vadd.f32 %v4405, %v4493
  %4495 = vmatmul.bf16.gmra.mxu0 %v4180
  %v4496 = vpop.f32.mrf.mxu0
  %v4497 = vadd.f32 %v4408, %v4496
  %v4498 = vpop.f32.mrf.mxu0
  %v4499 = vadd.f32 %v4410, %v4498
  %4500 = vmatmul.bf16.gmra.mxu0 %v4182
  %v4501 = vpop.f32.mrf.mxu0
  %v4502 = vadd.f32 %v4413, %v4501
  %v4503 = vpop.f32.mrf.mxu0
  %v4504 = vadd.f32 %v4415, %v4503
  %4505 = vmatmul.bf16.gmra.mxu0 %v4184
  %v4506 = vpop.f32.mrf.mxu0
  %v4507 = vadd.f32 %v4418, %v4506
  %v4508 = vpop.f32.mrf.mxu0
  %v4509 = vadd.f32 %v4420, %v4508
  %4510 = vmatmul.bf16.gmra.mxu0 %v4186
  %v4511 = vpop.f32.mrf.mxu0
  %v4512 = vadd.f32 %v4423, %v4511
  %v4513 = vpop.f32.mrf.mxu0
  %v4514 = vadd.f32 %v4425, %v4513
  %4515 = vmatmul.bf16.gmra.mxu0 %v4188
  %v4516 = vpop.f32.mrf.mxu0
  %v4517 = vadd.f32 %v4428, %v4516
  %v4518 = vpop.f32.mrf.mxu0
  %v4519 = vadd.f32 %v4430, %v4518
  %4520 = vmatmul.bf16.gmra.mxu0 %v4190
  %v4521 = vpop.f32.mrf.mxu0
  %v4522 = vadd.f32 %v4433, %v4521
  %v4523 = vpop.f32.mrf.mxu0
  %v4524 = vadd.f32 %v4435, %v4523
  %4525 = vmatmul.bf16.gmra.mxu0 %v4192
  %v4526 = vpop.f32.mrf.mxu0
  %v4527 = vadd.f32 %v4438, %v4526
  %v4528 = vpop.f32.mrf.mxu0
  %v4529 = vadd.f32 %v4440, %v4528
  %4530 = vmatmul.bf16.gmra.mxu0 %v4194
  %v4531 = vpop.f32.mrf.mxu0
  %v4532 = vadd.f32 %v4443, %v4531
  %v4533 = vpop.f32.mrf.mxu0
  %v4534 = vadd.f32 %v4445, %v4533
  %4535 = vmatmul.bf16.gmra.mxu0 %v4196
  %v4536 = vpop.f32.mrf.mxu0
  %v4537 = vadd.f32 %v4448, %v4536
  %v4538 = vpop.f32.mrf.mxu0
  %v4539 = vadd.f32 %v4450, %v4538
  %4540 = vdwg.mxu0
  %4541 = vmatpush.bf16.msra.mxu0 %v4314
  %4542 = vmatpush.bf16.msra.mxu0 %v4312
  %4543 = vmatpush.bf16.msra.mxu0 %v4310
  %4544 = vmatpush.bf16.msra.mxu0 %v4308
  %4545 = vmatpush.bf16.msra.mxu0 %v4306
  %4546 = vmatpush.bf16.msra.mxu0 %v4304
  %4547 = vmatpush.bf16.msra.mxu0 %v4302
  %4548 = vmatpush.bf16.msra.mxu0 %v4300
  %4549 = vmatmul.bf16.gmra.mxu0 %v4165
  %v4550 = vpop.f32.mrf.mxu0
  %v4551 = vadd.f32 %v4200, %v4550
  %v4552 = vpop.f32.mrf.mxu0
  %v4553 = vadd.f32 %v4200, %v4552
  %4554 = vmatmul.bf16.gmra.mxu0 %v4167
  %v4555 = vpop.f32.mrf.mxu0
  %v4556 = vadd.f32 %v4200, %v4555
  %v4557 = vpop.f32.mrf.mxu0
  %v4558 = vadd.f32 %v4200, %v4557
  %4559 = vmatmul.bf16.gmra.mxu0 %v4169
  %v4560 = vpop.f32.mrf.mxu0
  %v4561 = vadd.f32 %v4200, %v4560
  %v4562 = vpop.f32.mrf.mxu0
  %v4563 = vadd.f32 %v4200, %v4562
  %4564 = vmatmul.bf16.gmra.mxu0 %v4171
  %v4565 = vpop.f32.mrf.mxu0
  %v4566 = vadd.f32 %v4200, %v4565
  %v4567 = vpop.f32.mrf.mxu0
  %v4568 = vadd.f32 %v4200, %v4567
  %4569 = vmatmul.bf16.gmra.mxu0 %v4173
  %v4570 = vpop.f32.mrf.mxu0
  %v4571 = vadd.f32 %v4200, %v4570
  %v4572 = vpop.f32.mrf.mxu0
  %v4573 = vadd.f32 %v4200, %v4572
  %4574 = vmatmul.bf16.gmra.mxu0 %v4175
  %v4575 = vpop.f32.mrf.mxu0
  %v4576 = vadd.f32 %v4200, %v4575
  %v4577 = vpop.f32.mrf.mxu0
  %v4578 = vadd.f32 %v4200, %v4577
  %4579 = vmatmul.bf16.gmra.mxu0 %v4177
  %v4580 = vpop.f32.mrf.mxu0
  %v4581 = vadd.f32 %v4200, %v4580
  %v4582 = vpop.f32.mrf.mxu0
  %v4583 = vadd.f32 %v4200, %v4582
  %4584 = vmatmul.bf16.gmra.mxu0 %v4179
  %v4585 = vpop.f32.mrf.mxu0
  %v4586 = vadd.f32 %v4200, %v4585
  %v4587 = vpop.f32.mrf.mxu0
  %v4588 = vadd.f32 %v4200, %v4587
  %4589 = vmatmul.bf16.gmra.mxu0 %v4181
  %v4590 = vpop.f32.mrf.mxu0
  %v4591 = vadd.f32 %v4200, %v4590
  %v4592 = vpop.f32.mrf.mxu0
  %v4593 = vadd.f32 %v4200, %v4592
  %4594 = vmatmul.bf16.gmra.mxu0 %v4183
  %v4595 = vpop.f32.mrf.mxu0
  %v4596 = vadd.f32 %v4200, %v4595
  %v4597 = vpop.f32.mrf.mxu0
  %v4598 = vadd.f32 %v4200, %v4597
  %4599 = vmatmul.bf16.gmra.mxu0 %v4185
  %v4600 = vpop.f32.mrf.mxu0
  %v4601 = vadd.f32 %v4200, %v4600
  %v4602 = vpop.f32.mrf.mxu0
  %v4603 = vadd.f32 %v4200, %v4602
  %4604 = vmatmul.bf16.gmra.mxu0 %v4187
  %v4605 = vpop.f32.mrf.mxu0
  %v4606 = vadd.f32 %v4200, %v4605
  %v4607 = vpop.f32.mrf.mxu0
  %v4608 = vadd.f32 %v4200, %v4607
  %4609 = vmatmul.bf16.gmra.mxu0 %v4189
  %v4610 = vpop.f32.mrf.mxu0
  %v4611 = vadd.f32 %v4200, %v4610
  %v4612 = vpop.f32.mrf.mxu0
  %v4613 = vadd.f32 %v4200, %v4612
  %4614 = vmatmul.bf16.gmra.mxu0 %v4191
  %v4615 = vpop.f32.mrf.mxu0
  %v4616 = vadd.f32 %v4200, %v4615
  %v4617 = vpop.f32.mrf.mxu0
  %v4618 = vadd.f32 %v4200, %v4617
  %4619 = vmatmul.bf16.gmra.mxu0 %v4193
  %v4620 = vpop.f32.mrf.mxu0
  %v4621 = vadd.f32 %v4200, %v4620
  %v4622 = vpop.f32.mrf.mxu0
  %v4623 = vadd.f32 %v4200, %v4622
  %4624 = vmatmul.bf16.gmra.mxu0 %v4195
  %v4625 = vpop.f32.mrf.mxu0
  %v4626 = vadd.f32 %v4200, %v4625
  %v4627 = vpop.f32.mrf.mxu0
  %v4628 = vadd.f32 %v4200, %v4627
  %4629 = vdwg.mxu0
  %4630 = vmatpush.bf16.msra.mxu0 %v4330
  %4631 = vmatpush.bf16.msra.mxu0 %v4328
  %4632 = vmatpush.bf16.msra.mxu0 %v4326
  %4633 = vmatpush.bf16.msra.mxu0 %v4324
  %4634 = vmatpush.bf16.msra.mxu0 %v4322
  %4635 = vmatpush.bf16.msra.mxu0 %v4320
  %4636 = vmatpush.bf16.msra.mxu0 %v4318
  %4637 = vmatpush.bf16.msra.mxu0 %v4316
  %4638 = vmatmul.bf16.gmra.mxu0 %v4166
  %v4639 = vpop.f32.mrf.mxu0
  %v4640 = vadd.f32 %v4551, %v4639
  %v4641 = vpop.f32.mrf.mxu0
  %v4642 = vadd.f32 %v4553, %v4641
  %4643 = vmatmul.bf16.gmra.mxu0 %v4168
  %v4644 = vpop.f32.mrf.mxu0
  %v4645 = vadd.f32 %v4556, %v4644
  %v4646 = vpop.f32.mrf.mxu0
  %v4647 = vadd.f32 %v4558, %v4646
  %4648 = vmatmul.bf16.gmra.mxu0 %v4170
  %v4649 = vpop.f32.mrf.mxu0
  %v4650 = vadd.f32 %v4561, %v4649
  %v4651 = vpop.f32.mrf.mxu0
  %v4652 = vadd.f32 %v4563, %v4651
  %4653 = vmatmul.bf16.gmra.mxu0 %v4172
  %v4654 = vpop.f32.mrf.mxu0
  %v4655 = vadd.f32 %v4566, %v4654
  %v4656 = vpop.f32.mrf.mxu0
  %v4657 = vadd.f32 %v4568, %v4656
  %4658 = vmatmul.bf16.gmra.mxu0 %v4174
  %v4659 = vpop.f32.mrf.mxu0
  %v4660 = vadd.f32 %v4571, %v4659
  %v4661 = vpop.f32.mrf.mxu0
  %v4662 = vadd.f32 %v4573, %v4661
  %4663 = vmatmul.bf16.gmra.mxu0 %v4176
  %v4664 = vpop.f32.mrf.mxu0
  %v4665 = vadd.f32 %v4576, %v4664
  %v4666 = vpop.f32.mrf.mxu0
  %v4667 = vadd.f32 %v4578, %v4666
  %4668 = vmatmul.bf16.gmra.mxu0 %v4178
  %v4669 = vpop.f32.mrf.mxu0
  %v4670 = vadd.f32 %v4581, %v4669
  %v4671 = vpop.f32.mrf.mxu0
  %v4672 = vadd.f32 %v4583, %v4671
  %4673 = vmatmul.bf16.gmra.mxu0 %v4180
  %v4674 = vpop.f32.mrf.mxu0
  %v4675 = vadd.f32 %v4586, %v4674
  %v4676 = vpop.f32.mrf.mxu0
  %v4677 = vadd.f32 %v4588, %v4676
  %4678 = vmatmul.bf16.gmra.mxu0 %v4182
  %v4679 = vpop.f32.mrf.mxu0
  %v4680 = vadd.f32 %v4591, %v4679
  %v4681 = vpop.f32.mrf.mxu0
  %v4682 = vadd.f32 %v4593, %v4681
  %4683 = vmatmul.bf16.gmra.mxu0 %v4184
  %v4684 = vpop.f32.mrf.mxu0
  %v4685 = vadd.f32 %v4596, %v4684
  %v4686 = vpop.f32.mrf.mxu0
  %v4687 = vadd.f32 %v4598, %v4686
  %4688 = vmatmul.bf16.gmra.mxu0 %v4186
  %v4689 = vpop.f32.mrf.mxu0
  %v4690 = vadd.f32 %v4601, %v4689
  %v4691 = vpop.f32.mrf.mxu0
  %v4692 = vadd.f32 %v4603, %v4691
  %4693 = vmatmul.bf16.gmra.mxu0 %v4188
  %v4694 = vpop.f32.mrf.mxu0
  %v4695 = vadd.f32 %v4606, %v4694
  %v4696 = vpop.f32.mrf.mxu0
  %v4697 = vadd.f32 %v4608, %v4696
  %4698 = vmatmul.bf16.gmra.mxu0 %v4190
  %v4699 = vpop.f32.mrf.mxu0
  %v4700 = vadd.f32 %v4611, %v4699
  %v4701 = vpop.f32.mrf.mxu0
  %v4702 = vadd.f32 %v4613, %v4701
  %4703 = vmatmul.bf16.gmra.mxu0 %v4192
  %v4704 = vpop.f32.mrf.mxu0
  %v4705 = vadd.f32 %v4616, %v4704
  %v4706 = vpop.f32.mrf.mxu0
  %v4707 = vadd.f32 %v4618, %v4706
  %4708 = vmatmul.bf16.gmra.mxu0 %v4194
  %v4709 = vpop.f32.mrf.mxu0
  %v4710 = vadd.f32 %v4621, %v4709
  %v4711 = vpop.f32.mrf.mxu0
  %v4712 = vadd.f32 %v4623, %v4711
  %4713 = vmatmul.bf16.gmra.mxu0 %v4196
  %v4714 = vpop.f32.mrf.mxu0
  %v4715 = vadd.f32 %v4626, %v4714
  %v4716 = vpop.f32.mrf.mxu0
  %v4717 = vadd.f32 %v4628, %v4716
  %4718 = vdwg.mxu0
  %v4719 = vmax.f32 %v4462, 0.0
  %v4720 = vmax.f32 %v4640, 0.0
  %v4721 = vmax.f32 %v4464, 0.0
  %v4722 = vmax.f32 %v4642, 0.0
  %v4723 = vmax.f32 %v4467, 0.0
  %v4724 = vmax.f32 %v4645, 0.0
  %v4725 = vmax.f32 %v4469, 0.0
  %v4726 = vmax.f32 %v4647, 0.0
  %v4727 = vmax.f32 %v4472, 0.0
  %v4728 = vmax.f32 %v4650, 0.0
  %v4729 = vmax.f32 %v4474, 0.0
  %v4730 = vmax.f32 %v4652, 0.0
  %v4731 = vmax.f32 %v4477, 0.0
  %v4732 = vmax.f32 %v4655, 0.0
  %v4733 = vmax.f32 %v4479, 0.0
  %v4734 = vmax.f32 %v4657, 0.0
  %v4735 = vmax.f32 %v4482, 0.0
  %v4736 = vmax.f32 %v4660, 0.0
  %v4737 = vmax.f32 %v4484, 0.0
  %v4738 = vmax.f32 %v4662, 0.0
  %v4739 = vmax.f32 %v4487, 0.0
  %v4740 = vmax.f32 %v4665, 0.0
  %v4741 = vmax.f32 %v4489, 0.0
  %v4742 = vmax.f32 %v4667, 0.0
  %v4743 = vmax.f32 %v4492, 0.0
  %v4744 = vmax.f32 %v4670, 0.0
  %v4745 = vmax.f32 %v4494, 0.0
  %v4746 = vmax.f32 %v4672, 0.0
  %v4747 = vmax.f32 %v4497, 0.0
  %v4748 = vmax.f32 %v4675, 0.0
  %v4749 = vmax.f32 %v4499, 0.0
  %v4750 = vmax.f32 %v4677, 0.0
  %v4751 = vmax.f32 %v4502, 0.0
  %v4752 = vmax.f32 %v4680, 0.0
  %v4753 = vmax.f32 %v4504, 0.0
  %v4754 = vmax.f32 %v4682, 0.0
  %v4755 = vmax.f32 %v4507, 0.0
  %v4756 = vmax.f32 %v4685, 0.0
  %v4757 = vmax.f32 %v4509, 0.0
  %v4758 = vmax.f32 %v4687, 0.0
  %v4759 = vmax.f32 %v4512, 0.0
  %v4760 = vmax.f32 %v4690, 0.0
  %v4761 = vmax.f32 %v4514, 0.0
  %v4762 = vmax.f32 %v4692, 0.0
  %v4763 = vmax.f32 %v4517, 0.0
  %v4764 = vmax.f32 %v4695, 0.0
  %v4765 = vmax.f32 %v4519, 0.0
  %v4766 = vmax.f32 %v4697, 0.0
  %v4767 = vmax.f32 %v4522, 0.0
  %v4768 = vmax.f32 %v4700, 0.0
  %v4769 = vmax.f32 %v4524, 0.0
  %v4770 = vmax.f32 %v4702, 0.0
  %v4771 = vmax.f32 %v4527, 0.0
  %v4772 = vmax.f32 %v4705, 0.0
  %v4773 = vmax.f32 %v4529, 0.0
  %v4774 = vmax.f32 %v4707, 0.0
  %v4775 = vmax.f32 %v4532, 0.0
  %v4776 = vmax.f32 %v4710, 0.0
  %v4777 = vmax.f32 %v4534, 0.0
  %v4778 = vmax.f32 %v4712, 0.0
  %v4779 = vmax.f32 %v4537, 0.0
  %v4780 = vmax.f32 %v4715, 0.0
  %v4781 = vmax.f32 %v4539, 0.0
  %v4782 = vmax.f32 %v4717, 0.0
  %v4783 = vld [vmem:[%s17] sm:$0xff]
  %v4784 = vld [vmem:[%s17 + $0x8] sm:$0xff]
  %v4785 = vld [vmem:[%s17 + $0x10] sm:$0xff]
  %v4786 = vld [vmem:[%s17 + $0x18] sm:$0xff]
  %v4787 = vld [vmem:[%s17 + $0x20] sm:$0xff]
  %v4788 = vld [vmem:[%s17 + $0x28] sm:$0xff]
  %v4789 = vld [vmem:[%s17 + $0x30] sm:$0xff]
  %v4790 = vld [vmem:[%s17 + $0x38] sm:$0xff]
  %v4791 = vld [vmem:[%s17 + $0x40] sm:$0xff]
  %v4792 = vld [vmem:[%s17 + $0x48] sm:$0xff]
  %v4793 = vld [vmem:[%s17 + $0x50] sm:$0xff]
  %v4794 = vld [vmem:[%s17 + $0x58] sm:$0xff]
  %v4795 = vld [vmem:[%s17 + $0x60] sm:$0xff]
  %v4796 = vld [vmem:[%s17 + $0x68] sm:$0xff]
  %v4797 = vld [vmem:[%s17 + $0x70] sm:$0xff]
  %v4798 = vld [vmem:[%s17 + $0x78] sm:$0xff]
  %v4799 = vld [vmem:[%s17 + $0x80] sm:$0xff]
  %v4800 = vld [vmem:[%s17 + $0x88] sm:$0xff]
  %v4801 = vld [vmem:[%s17 + $0x90] sm:$0xff]
  %v4802 = vld [vmem:[%s17 + $0x98] sm:$0xff]
  %v4803 = vld [vmem:[%s17 + $0xa0] sm:$0xff]
  %v4804 = vld [vmem:[%s17 + $0xa8] sm:$0xff]
  %v4805 = vld [vmem:[%s17 + $0xb0] sm:$0xff]
  %v4806 = vld [vmem:[%s17 + $0xb8] sm:$0xff]
  %v4807 = vld [vmem:[%s17 + $0xc0] sm:$0xff]
  %v4808 = vld [vmem:[%s17 + $0xc8] sm:$0xff]
  %v4809 = vld [vmem:[%s17 + $0xd0] sm:$0xff]
  %v4810 = vld [vmem:[%s17 + $0xd8] sm:$0xff]
  %v4811 = vld [vmem:[%s17 + $0xe0] sm:$0xff]
  %v4812 = vld [vmem:[%s17 + $0xe8] sm:$0xff]
  %v4813 = vld [vmem:[%s17 + $0xf0] sm:$0xff]
  %v4814 = vld [vmem:[%s17 + $0xf8] sm:$0xff]
  %v4815 = vpack.c.bf16 %v4721, %v4719
  %v4816 = vpack.c.bf16 %v4722, %v4720
  %v4817 = vpack.c.bf16 %v4725, %v4723
  %v4818 = vpack.c.bf16 %v4726, %v4724
  %v4819 = vpack.c.bf16 %v4729, %v4727
  %v4820 = vpack.c.bf16 %v4730, %v4728
  %v4821 = vpack.c.bf16 %v4733, %v4731
  %v4822 = vpack.c.bf16 %v4734, %v4732
  %v4823 = vpack.c.bf16 %v4737, %v4735
  %v4824 = vpack.c.bf16 %v4738, %v4736
  %v4825 = vpack.c.bf16 %v4741, %v4739
  %v4826 = vpack.c.bf16 %v4742, %v4740
  %v4827 = vpack.c.bf16 %v4745, %v4743
  %v4828 = vpack.c.bf16 %v4746, %v4744
  %v4829 = vpack.c.bf16 %v4749, %v4747
  %v4830 = vpack.c.bf16 %v4750, %v4748
  %v4831 = vpack.c.bf16 %v4753, %v4751
  %v4832 = vpack.c.bf16 %v4754, %v4752
  %v4833 = vpack.c.bf16 %v4757, %v4755
  %v4834 = vpack.c.bf16 %v4758, %v4756
  %v4835 = vpack.c.bf16 %v4761, %v4759
  %v4836 = vpack.c.bf16 %v4762, %v4760
  %v4837 = vpack.c.bf16 %v4765, %v4763
  %v4838 = vpack.c.bf16 %v4766, %v4764
  %v4839 = vpack.c.bf16 %v4769, %v4767
  %v4840 = vpack.c.bf16 %v4770, %v4768
  %v4841 = vpack.c.bf16 %v4773, %v4771
  %v4842 = vpack.c.bf16 %v4774, %v4772
  %v4843 = vpack.c.bf16 %v4777, %v4775
  %v4844 = vpack.c.bf16 %v4778, %v4776
  %v4845 = vpack.c.bf16 %v4781, %v4779
  %v4846 = vpack.c.bf16 %v4782, %v4780
  %v4847 = vld [vmem:[%s18] sm:$0x3]
  %v4849 = vperm.slane %v4847, 0
  %v4850 = vperm.slane %v4847, 1
  %v4885 = vunpack.c.l.b16 %v4783
  %v4886 = vunpack.c.h.b16 %v4783
  %v4887 = vunpack.c.l.b16 %v4784
  %v4888 = vunpack.c.h.b16 %v4784
  %v4889 = vunpack.c.l.b16 %v4785
  %v4890 = vunpack.c.h.b16 %v4785
  %v4891 = vunpack.c.l.b16 %v4786
  %v4892 = vunpack.c.h.b16 %v4786
  %v4893 = vunpack.c.l.b16 %v4787
  %v4894 = vunpack.c.h.b16 %v4787
  %v4895 = vunpack.c.l.b16 %v4788
  %v4896 = vunpack.c.h.b16 %v4788
  %v4897 = vunpack.c.l.b16 %v4789
  %v4898 = vunpack.c.h.b16 %v4789
  %v4899 = vunpack.c.l.b16 %v4790
  %v4900 = vunpack.c.h.b16 %v4790
  %v4901 = vunpack.c.l.b16 %v4791
  %v4902 = vunpack.c.h.b16 %v4791
  %v4903 = vunpack.c.l.b16 %v4792
  %v4904 = vunpack.c.h.b16 %v4792
  %v4905 = vunpack.c.l.b16 %v4793
  %v4906 = vunpack.c.h.b16 %v4793
  %v4907 = vunpack.c.l.b16 %v4794
  %v4908 = vunpack.c.h.b16 %v4794
  %v4909 = vunpack.c.l.b16 %v4795
  %v4910 = vunpack.c.h.b16 %v4795
  %v4911 = vunpack.c.l.b16 %v4796
  %v4912 = vunpack.c.h.b16 %v4796
  %v4913 = vunpack.c.l.b16 %v4797
  %v4914 = vunpack.c.h.b16 %v4797
  %v4915 = vunpack.c.l.b16 %v4798
  %v4916 = vunpack.c.h.b16 %v4798
  %v4917 = vunpack.c.l.b16 %v4799
  %v4918 = vunpack.c.h.b16 %v4799
  %v4919 = vunpack.c.l.b16 %v4800
  %v4920 = vunpack.c.h.b16 %v4800
  %v4921 = vunpack.c.l.b16 %v4801
  %v4922 = vunpack.c.h.b16 %v4801
  %v4923 = vunpack.c.l.b16 %v4802
  %v4924 = vunpack.c.h.b16 %v4802
  %v4925 = vunpack.c.l.b16 %v4803
  %v4926 = vunpack.c.h.b16 %v4803
  %v4927 = vunpack.c.l.b16 %v4804
  %v4928 = vunpack.c.h.b16 %v4804
  %v4929 = vunpack.c.l.b16 %v4805
  %v4930 = vunpack.c.h.b16 %v4805
  %v4931 = vunpack.c.l.b16 %v4806
  %v4932 = vunpack.c.h.b16 %v4806
  %v4933 = vunpack.c.l.b16 %v4807
  %v4934 = vunpack.c.h.b16 %v4807
  %v4935 = vunpack.c.l.b16 %v4808
  %v4936 = vunpack.c.h.b16 %v4808
  %v4937 = vunpack.c.l.b16 %v4809
  %v4938 = vunpack.c.h.b16 %v4809
  %v4939 = vunpack.c.l.b16 %v4810
  %v4940 = vunpack.c.h.b16 %v4810
  %v4941 = vunpack.c.l.b16 %v4811
  %v4942 = vunpack.c.h.b16 %v4811
  %v4943 = vunpack.c.l.b16 %v4812
  %v4944 = vunpack.c.h.b16 %v4812
  %v4945 = vunpack.c.l.b16 %v4813
  %v4946 = vunpack.c.h.b16 %v4813
  %v4947 = vunpack.c.l.b16 %v4814
  %v4948 = vunpack.c.h.b16 %v4814
  %v4949 = vpack.c.b16 %v4887, %v4885
  %v4950 = vpack.c.b16 %v4888, %v4886
  %v4951 = vpack.c.b16 %v4891, %v4889
  %v4952 = vpack.c.b16 %v4892, %v4890
  %v4953 = vpack.c.b16 %v4895, %v4893
  %v4954 = vpack.c.b16 %v4896, %v4894
  %v4955 = vpack.c.b16 %v4899, %v4897
  %v4956 = vpack.c.b16 %v4900, %v4898
  %v4957 = vpack.c.b16 %v4903, %v4901
  %v4958 = vpack.c.b16 %v4904, %v4902
  %v4959 = vpack.c.b16 %v4907, %v4905
  %v4960 = vpack.c.b16 %v4908, %v4906
  %v4961 = vpack.c.b16 %v4911, %v4909
  %v4962 = vpack.c.b16 %v4912, %v4910
  %v4963 = vpack.c.b16 %v4915, %v4913
  %v4964 = vpack.c.b16 %v4916, %v4914
  %v4965 = vpack.c.b16 %v4919, %v4917
  %v4966 = vpack.c.b16 %v4920, %v4918
  %v4967 = vpack.c.b16 %v4923, %v4921
  %v4968 = vpack.c.b16 %v4924, %v4922
  %v4969 = vpack.c.b16 %v4927, %v4925
  %v4970 = vpack.c.b16 %v4928, %v4926
  %v4971 = vpack.c.b16 %v4931, %v4929
  %v4972 = vpack.c.b16 %v4932, %v4930
  %v4973 = vpack.c.b16 %v4935, %v4933
  %v4974 = vpack.c.b16 %v4936, %v4934
  %v4975 = vpack.c.b16 %v4939, %v4937
  %v4976 = vpack.c.b16 %v4940, %v4938
  %v4977 = vpack.c.b16 %v4943, %v4941
  %v4978 = vpack.c.b16 %v4944, %v4942
  %v4979 = vpack.c.b16 %v4947, %v4945
  %v4980 = vpack.c.b16 %v4948, %v4946
  %5013 = vmatpush.bf16.msra.mxu0 %v4963
  %5014 = vmatpush.bf16.msra.mxu0 %v4961
  %5015 = vmatpush.bf16.msra.mxu0 %v4959
  %5016 = vmatpush.bf16.msra.mxu0 %v4957
  %5017 = vmatpush.bf16.msra.mxu0 %v4955
  %5018 = vmatpush.bf16.msra.mxu0 %v4953
  %5019 = vmatpush.bf16.msra.mxu0 %v4951
  %5020 = vmatpush.bf16.msra.mxu0 %v4949
  %5021 = vmatmul.bf16.gmra.mxu0 %v4815
  %v5022 = vpop.f32.mrf.mxu0
  %v5023 = vadd.f32 %v4849, %v5022
  %v5024 = vpop.f32.mrf.mxu0
  %v5025 = vadd.f32 %v4849, %v5024
  %5026 = vmatmul.bf16.gmra.mxu0 %v4817
  %v5027 = vpop.f32.mrf.mxu0
  %v5028 = vadd.f32 %v4849, %v5027
  %v5029 = vpop.f32.mrf.mxu0
  %v5030 = vadd.f32 %v4849, %v5029
  %5031 = vmatmul.bf16.gmra.mxu0 %v4819
  %v5032 = vpop.f32.mrf.mxu0
  %v5033 = vadd.f32 %v4849, %v5032
  %v5034 = vpop.f32.mrf.mxu0
  %v5035 = vadd.f32 %v4849, %v5034
  %5036 = vmatmul.bf16.gmra.mxu0 %v4821
  %v5037 = vpop.f32.mrf.mxu0
  %v5038 = vadd.f32 %v4849, %v5037
  %v5039 = vpop.f32.mrf.mxu0
  %v5040 = vadd.f32 %v4849, %v5039
  %5041 = vmatmul.bf16.gmra.mxu0 %v4823
  %v5042 = vpop.f32.mrf.mxu0
  %v5043 = vadd.f32 %v4849, %v5042
  %v5044 = vpop.f32.mrf.mxu0
  %v5045 = vadd.f32 %v4849, %v5044
  %5046 = vmatmul.bf16.gmra.mxu0 %v4825
  %v5047 = vpop.f32.mrf.mxu0
  %v5048 = vadd.f32 %v4849, %v5047
  %v5049 = vpop.f32.mrf.mxu0
  %v5050 = vadd.f32 %v4849, %v5049
  %5051 = vmatmul.bf16.gmra.mxu0 %v4827
  %v5052 = vpop.f32.mrf.mxu0
  %v5053 = vadd.f32 %v4849, %v5052
  %v5054 = vpop.f32.mrf.mxu0
  %v5055 = vadd.f32 %v4849, %v5054
  %5056 = vmatmul.bf16.gmra.mxu0 %v4829
  %v5057 = vpop.f32.mrf.mxu0
  %v5058 = vadd.f32 %v4849, %v5057
  %v5059 = vpop.f32.mrf.mxu0
  %v5060 = vadd.f32 %v4849, %v5059
  %5061 = vmatmul.bf16.gmra.mxu0 %v4831
  %v5062 = vpop.f32.mrf.mxu0
  %v5063 = vadd.f32 %v4849, %v5062
  %v5064 = vpop.f32.mrf.mxu0
  %v5065 = vadd.f32 %v4849, %v5064
  %5066 = vmatmul.bf16.gmra.mxu0 %v4833
  %v5067 = vpop.f32.mrf.mxu0
  %v5068 = vadd.f32 %v4849, %v5067
  %v5069 = vpop.f32.mrf.mxu0
  %v5070 = vadd.f32 %v4849, %v5069
  %5071 = vmatmul.bf16.gmra.mxu0 %v4835
  %v5072 = vpop.f32.mrf.mxu0
  %v5073 = vadd.f32 %v4849, %v5072
  %v5074 = vpop.f32.mrf.mxu0
  %v5075 = vadd.f32 %v4849, %v5074
  %5076 = vmatmul.bf16.gmra.mxu0 %v4837
  %v5077 = vpop.f32.mrf.mxu0
  %v5078 = vadd.f32 %v4849, %v5077
  %v5079 = vpop.f32.mrf.mxu0
  %v5080 = vadd.f32 %v4849, %v5079
  %5081 = vmatmul.bf16.gmra.mxu0 %v4839
  %v5082 = vpop.f32.mrf.mxu0
  %v5083 = vadd.f32 %v4849, %v5082
  %v5084 = vpop.f32.mrf.mxu0
  %v5085 = vadd.f32 %v4849, %v5084
  %5086 = vmatmul.bf16.gmra.mxu0 %v4841
  %v5087 = vpop.f32.mrf.mxu0
  %v5088 = vadd.f32 %v4849, %v5087
  %v5089 = vpop.f32.mrf.mxu0
  %v5090 = vadd.f32 %v4849, %v5089
  %5091 = vmatmul.bf16.gmra.mxu0 %v4843
  %v5092 = vpop.f32.mrf.mxu0
  %v5093 = vadd.f32 %v4849, %v5092
  %v5094 = vpop.f32.mrf.mxu0
  %v5095 = vadd.f32 %v4849, %v5094
  %5096 = vmatmul.bf16.gmra.mxu0 %v4845
  %v5097 = vpop.f32.mrf.mxu0
  %v5098 = vadd.f32 %v4849, %v5097
  %v5099 = vpop.f32.mrf.mxu0
  %v5100 = vadd.f32 %v4849, %v5099
  %5101 = vdwg.mxu0
  %5102 = vmatpush.bf16.msra.mxu0 %v4979
  %5103 = vmatpush.bf16.msra.mxu0 %v4977
  %5104 = vmatpush.bf16.msra.mxu0 %v4975
  %5105 = vmatpush.bf16.msra.mxu0 %v4973
  %5106 = vmatpush.bf16.msra.mxu0 %v4971
  %5107 = vmatpush.bf16.msra.mxu0 %v4969
  %5108 = vmatpush.bf16.msra.mxu0 %v4967
  %5109 = vmatpush.bf16.msra.mxu0 %v4965
  %5110 = vmatmul.bf16.gmra.mxu0 %v4816
  %v5111 = vpop.f32.mrf.mxu0
  %v5112 = vadd.f32 %v5023, %v5111
  %v5113 = vpop.f32.mrf.mxu0
  %v5114 = vadd.f32 %v5025, %v5113
  %5115 = vmatmul.bf16.gmra.mxu0 %v4818
  %v5116 = vpop.f32.mrf.mxu0
  %v5117 = vadd.f32 %v5028, %v5116
  %v5118 = vpop.f32.mrf.mxu0
  %v5119 = vadd.f32 %v5030, %v5118
  %5120 = vmatmul.bf16.gmra.mxu0 %v4820
  %v5121 = vpop.f32.mrf.mxu0
  %v5122 = vadd.f32 %v5033, %v5121
  %v5123 = vpop.f32.mrf.mxu0
  %v5124 = vadd.f32 %v5035, %v5123
  %5125 = vmatmul.bf16.gmra.mxu0 %v4822
  %v5126 = vpop.f32.mrf.mxu0
  %v5127 = vadd.f32 %v5038, %v5126
  %v5128 = vpop.f32.mrf.mxu0
  %v5129 = vadd.f32 %v5040, %v5128
  %5130 = vmatmul.bf16.gmra.mxu0 %v4824
  %v5131 = vpop.f32.mrf.mxu0
  %v5132 = vadd.f32 %v5043, %v5131
  %v5133 = vpop.f32.mrf.mxu0
  %v5134 = vadd.f32 %v5045, %v5133
  %5135 = vmatmul.bf16.gmra.mxu0 %v4826
  %v5136 = vpop.f32.mrf.mxu0
  %v5137 = vadd.f32 %v5048, %v5136
  %v5138 = vpop.f32.mrf.mxu0
  %v5139 = vadd.f32 %v5050, %v5138
  %5140 = vmatmul.bf16.gmra.mxu0 %v4828
  %v5141 = vpop.f32.mrf.mxu0
  %v5142 = vadd.f32 %v5053, %v5141
  %v5143 = vpop.f32.mrf.mxu0
  %v5144 = vadd.f32 %v5055, %v5143
  %5145 = vmatmul.bf16.gmra.mxu0 %v4830
  %v5146 = vpop.f32.mrf.mxu0
  %v5147 = vadd.f32 %v5058, %v5146
  %v5148 = vpop.f32.mrf.mxu0
  %v5149 = vadd.f32 %v5060, %v5148
  %5150 = vmatmul.bf16.gmra.mxu0 %v4832
  %v5151 = vpop.f32.mrf.mxu0
  %v5152 = vadd.f32 %v5063, %v5151
  %v5153 = vpop.f32.mrf.mxu0
  %v5154 = vadd.f32 %v5065, %v5153
  %5155 = vmatmul.bf16.gmra.mxu0 %v4834
  %v5156 = vpop.f32.mrf.mxu0
  %v5157 = vadd.f32 %v5068, %v5156
  %v5158 = vpop.f32.mrf.mxu0
  %v5159 = vadd.f32 %v5070, %v5158
  %5160 = vmatmul.bf16.gmra.mxu0 %v4836
  %v5161 = vpop.f32.mrf.mxu0
  %v5162 = vadd.f32 %v5073, %v5161
  %v5163 = vpop.f32.mrf.mxu0
  %v5164 = vadd.f32 %v5075, %v5163
  %5165 = vmatmul.bf16.gmra.mxu0 %v4838
  %v5166 = vpop.f32.mrf.mxu0
  %v5167 = vadd.f32 %v5078, %v5166
  %v5168 = vpop.f32.mrf.mxu0
  %v5169 = vadd.f32 %v5080, %v5168
  %5170 = vmatmul.bf16.gmra.mxu0 %v4840
  %v5171 = vpop.f32.mrf.mxu0
  %v5172 = vadd.f32 %v5083, %v5171
  %v5173 = vpop.f32.mrf.mxu0
  %v5174 = vadd.f32 %v5085, %v5173
  %5175 = vmatmul.bf16.gmra.mxu0 %v4842
  %v5176 = vpop.f32.mrf.mxu0
  %v5177 = vadd.f32 %v5088, %v5176
  %v5178 = vpop.f32.mrf.mxu0
  %v5179 = vadd.f32 %v5090, %v5178
  %5180 = vmatmul.bf16.gmra.mxu0 %v4844
  %v5181 = vpop.f32.mrf.mxu0
  %v5182 = vadd.f32 %v5093, %v5181
  %v5183 = vpop.f32.mrf.mxu0
  %v5184 = vadd.f32 %v5095, %v5183
  %5185 = vmatmul.bf16.gmra.mxu0 %v4846
  %v5186 = vpop.f32.mrf.mxu0
  %v5187 = vadd.f32 %v5098, %v5186
  %v5188 = vpop.f32.mrf.mxu0
  %v5189 = vadd.f32 %v5100, %v5188
  %5190 = vdwg.mxu0
  %5191 = vmatpush.bf16.msra.mxu0 %v4964
  %5192 = vmatpush.bf16.msra.mxu0 %v4962
  %5193 = vmatpush.bf16.msra.mxu0 %v4960
  %5194 = vmatpush.bf16.msra.mxu0 %v4958
  %5195 = vmatpush.bf16.msra.mxu0 %v4956
  %5196 = vmatpush.bf16.msra.mxu0 %v4954
  %5197 = vmatpush.bf16.msra.mxu0 %v4952
  %5198 = vmatpush.bf16.msra.mxu0 %v4950
  %5199 = vmatmul.bf16.gmra.mxu0 %v4815
  %v5200 = vpop.f32.mrf.mxu0
  %v5201 = vadd.f32 %v4850, %v5200
  %v5202 = vpop.f32.mrf.mxu0
  %v5203 = vadd.f32 %v4850, %v5202
  %5204 = vmatmul.bf16.gmra.mxu0 %v4817
  %v5205 = vpop.f32.mrf.mxu0
  %v5206 = vadd.f32 %v4850, %v5205
  %v5207 = vpop.f32.mrf.mxu0
  %v5208 = vadd.f32 %v4850, %v5207
  %5209 = vmatmul.bf16.gmra.mxu0 %v4819
  %v5210 = vpop.f32.mrf.mxu0
  %v5211 = vadd.f32 %v4850, %v5210
  %v5212 = vpop.f32.mrf.mxu0
  %v5213 = vadd.f32 %v4850, %v5212
  %5214 = vmatmul.bf16.gmra.mxu0 %v4821
  %v5215 = vpop.f32.mrf.mxu0
  %v5216 = vadd.f32 %v4850, %v5215
  %v5217 = vpop.f32.mrf.mxu0
  %v5218 = vadd.f32 %v4850, %v5217
  %5219 = vmatmul.bf16.gmra.mxu0 %v4823
  %v5220 = vpop.f32.mrf.mxu0
  %v5221 = vadd.f32 %v4850, %v5220
  %v5222 = vpop.f32.mrf.mxu0
  %v5223 = vadd.f32 %v4850, %v5222
  %5224 = vmatmul.bf16.gmra.mxu0 %v4825
  %v5225 = vpop.f32.mrf.mxu0
  %v5226 = vadd.f32 %v4850, %v5225
  %v5227 = vpop.f32.mrf.mxu0
  %v5228 = vadd.f32 %v4850, %v5227
  %5229 = vmatmul.bf16.gmra.mxu0 %v4827
  %v5230 = vpop.f32.mrf.mxu0
  %v5231 = vadd.f32 %v4850, %v5230
  %v5232 = vpop.f32.mrf.mxu0
  %v5233 = vadd.f32 %v4850, %v5232
  %5234 = vmatmul.bf16.gmra.mxu0 %v4829
  %v5235 = vpop.f32.mrf.mxu0
  %v5236 = vadd.f32 %v4850, %v5235
  %v5237 = vpop.f32.mrf.mxu0
  %v5238 = vadd.f32 %v4850, %v5237
  %5239 = vmatmul.bf16.gmra.mxu0 %v4831
  %v5240 = vpop.f32.mrf.mxu0
  %v5241 = vadd.f32 %v4850, %v5240
  %v5242 = vpop.f32.mrf.mxu0
  %v5243 = vadd.f32 %v4850, %v5242
  %5244 = vmatmul.bf16.gmra.mxu0 %v4833
  %v5245 = vpop.f32.mrf.mxu0
  %v5246 = vadd.f32 %v4850, %v5245
  %v5247 = vpop.f32.mrf.mxu0
  %v5248 = vadd.f32 %v4850, %v5247
  %5249 = vmatmul.bf16.gmra.mxu0 %v4835
  %v5250 = vpop.f32.mrf.mxu0
  %v5251 = vadd.f32 %v4850, %v5250
  %v5252 = vpop.f32.mrf.mxu0
  %v5253 = vadd.f32 %v4850, %v5252
  %5254 = vmatmul.bf16.gmra.mxu0 %v4837
  %v5255 = vpop.f32.mrf.mxu0
  %v5256 = vadd.f32 %v4850, %v5255
  %v5257 = vpop.f32.mrf.mxu0
  %v5258 = vadd.f32 %v4850, %v5257
  %5259 = vmatmul.bf16.gmra.mxu0 %v4839
  %v5260 = vpop.f32.mrf.mxu0
  %v5261 = vadd.f32 %v4850, %v5260
  %v5262 = vpop.f32.mrf.mxu0
  %v5263 = vadd.f32 %v4850, %v5262
  %5264 = vmatmul.bf16.gmra.mxu0 %v4841
  %v5265 = vpop.f32.mrf.mxu0
  %v5266 = vadd.f32 %v4850, %v5265
  %v5267 = vpop.f32.mrf.mxu0
  %v5268 = vadd.f32 %v4850, %v5267
  %5269 = vmatmul.bf16.gmra.mxu0 %v4843
  %v5270 = vpop.f32.mrf.mxu0
  %v5271 = vadd.f32 %v4850, %v5270
  %v5272 = vpop.f32.mrf.mxu0
  %v5273 = vadd.f32 %v4850, %v5272
  %5274 = vmatmul.bf16.gmra.mxu0 %v4845
  %v5275 = vpop.f32.mrf.mxu0
  %v5276 = vadd.f32 %v4850, %v5275
  %v5277 = vpop.f32.mrf.mxu0
  %v5278 = vadd.f32 %v4850, %v5277
  %5279 = vdwg.mxu0
  %5280 = vmatpush.bf16.msra.mxu0 %v4980
  %5281 = vmatpush.bf16.msra.mxu0 %v4978
  %5282 = vmatpush.bf16.msra.mxu0 %v4976
  %5283 = vmatpush.bf16.msra.mxu0 %v4974
  %5284 = vmatpush.bf16.msra.mxu0 %v4972
  %5285 = vmatpush.bf16.msra.mxu0 %v4970
  %5286 = vmatpush.bf16.msra.mxu0 %v4968
  %5287 = vmatpush.bf16.msra.mxu0 %v4966
  %5288 = vmatmul.bf16.gmra.mxu0 %v4816
  %v5289 = vpop.f32.mrf.mxu0
  %v5290 = vadd.f32 %v5201, %v5289
  %v5291 = vpop.f32.mrf.mxu0
  %v5292 = vadd.f32 %v5203, %v5291
  %5293 = vmatmul.bf16.gmra.mxu0 %v4818
  %v5294 = vpop.f32.mrf.mxu0
  %v5295 = vadd.f32 %v5206, %v5294
  %v5296 = vpop.f32.mrf.mxu0
  %v5297 = vadd.f32 %v5208, %v5296
  %5298 = vmatmul.bf16.gmra.mxu0 %v4820
  %v5299 = vpop.f32.mrf.mxu0
  %v5300 = vadd.f32 %v5211, %v5299
  %v5301 = vpop.f32.mrf.mxu0
  %v5302 = vadd.f32 %v5213, %v5301
  %5303 = vmatmul.bf16.gmra.mxu0 %v4822
  %v5304 = vpop.f32.mrf.mxu0
  %v5305 = vadd.f32 %v5216, %v5304
  %v5306 = vpop.f32.mrf.mxu0
  %v5307 = vadd.f32 %v5218, %v5306
  %5308 = vmatmul.bf16.gmra.mxu0 %v4824
  %v5309 = vpop.f32.mrf.mxu0
  %v5310 = vadd.f32 %v5221, %v5309
  %v5311 = vpop.f32.mrf.mxu0
  %v5312 = vadd.f32 %v5223, %v5311
  %5313 = vmatmul.bf16.gmra.mxu0 %v4826
  %v5314 = vpop.f32.mrf.mxu0
  %v5315 = vadd.f32 %v5226, %v5314
  %v5316 = vpop.f32.mrf.mxu0
  %v5317 = vadd.f32 %v5228, %v5316
  %5318 = vmatmul.bf16.gmra.mxu0 %v4828
  %v5319 = vpop.f32.mrf.mxu0
  %v5320 = vadd.f32 %v5231, %v5319
  %v5321 = vpop.f32.mrf.mxu0
  %v5322 = vadd.f32 %v5233, %v5321
  %5323 = vmatmul.bf16.gmra.mxu0 %v4830
  %v5324 = vpop.f32.mrf.mxu0
  %v5325 = vadd.f32 %v5236, %v5324
  %v5326 = vpop.f32.mrf.mxu0
  %v5327 = vadd.f32 %v5238, %v5326
  %5328 = vmatmul.bf16.gmra.mxu0 %v4832
  %v5329 = vpop.f32.mrf.mxu0
  %v5330 = vadd.f32 %v5241, %v5329
  %v5331 = vpop.f32.mrf.mxu0
  %v5332 = vadd.f32 %v5243, %v5331
  %5333 = vmatmul.bf16.gmra.mxu0 %v4834
  %v5334 = vpop.f32.mrf.mxu0
  %v5335 = vadd.f32 %v5246, %v5334
  %v5336 = vpop.f32.mrf.mxu0
  %v5337 = vadd.f32 %v5248, %v5336
  %5338 = vmatmul.bf16.gmra.mxu0 %v4836
  %v5339 = vpop.f32.mrf.mxu0
  %v5340 = vadd.f32 %v5251, %v5339
  %v5341 = vpop.f32.mrf.mxu0
  %v5342 = vadd.f32 %v5253, %v5341
  %5343 = vmatmul.bf16.gmra.mxu0 %v4838
  %v5344 = vpop.f32.mrf.mxu0
  %v5345 = vadd.f32 %v5256, %v5344
  %v5346 = vpop.f32.mrf.mxu0
  %v5347 = vadd.f32 %v5258, %v5346
  %5348 = vmatmul.bf16.gmra.mxu0 %v4840
  %v5349 = vpop.f32.mrf.mxu0
  %v5350 = vadd.f32 %v5261, %v5349
  %v5351 = vpop.f32.mrf.mxu0
  %v5352 = vadd.f32 %v5263, %v5351
  %5353 = vmatmul.bf16.gmra.mxu0 %v4842
  %v5354 = vpop.f32.mrf.mxu0
  %v5355 = vadd.f32 %v5266, %v5354
  %v5356 = vpop.f32.mrf.mxu0
  %v5357 = vadd.f32 %v5268, %v5356
  %5358 = vmatmul.bf16.gmra.mxu0 %v4844
  %v5359 = vpop.f32.mrf.mxu0
  %v5360 = vadd.f32 %v5271, %v5359
  %v5361 = vpop.f32.mrf.mxu0
  %v5362 = vadd.f32 %v5273, %v5361
  %5363 = vmatmul.bf16.gmra.mxu0 %v4846
  %v5364 = vpop.f32.mrf.mxu0
  %v5365 = vadd.f32 %v5276, %v5364
  %v5366 = vpop.f32.mrf.mxu0
  %v5367 = vadd.f32 %v5278, %v5366
  %5368 = vdwg.mxu0
  %v5369 = vld [vmem:[%s19] sm:$0xff]
  %v5370 = vld [vmem:[%s19 + $0x8] sm:$0xff]
  %v5371 = vld [vmem:[%s19 + $0x10] sm:$0xff]
  %v5372 = vld [vmem:[%s19 + $0x18] sm:$0xff]
  %v5373 = vld [vmem:[%s19 + $0x20] sm:$0xff]
  %v5374 = vld [vmem:[%s19 + $0x28] sm:$0xff]
  %v5375 = vld [vmem:[%s19 + $0x30] sm:$0xff]
  %v5376 = vld [vmem:[%s19 + $0x38] sm:$0xff]
  %v5377 = vld [vmem:[%s19 + $0x40] sm:$0xff]
  %v5378 = vld [vmem:[%s19 + $0x48] sm:$0xff]
  %v5379 = vld [vmem:[%s19 + $0x50] sm:$0xff]
  %v5380 = vld [vmem:[%s19 + $0x58] sm:$0xff]
  %v5381 = vld [vmem:[%s19 + $0x60] sm:$0xff]
  %v5382 = vld [vmem:[%s19 + $0x68] sm:$0xff]
  %v5383 = vld [vmem:[%s19 + $0x70] sm:$0xff]
  %v5384 = vld [vmem:[%s19 + $0x78] sm:$0xff]
  %v5385 = vld [vmem:[%s19 + $0x80] sm:$0xff]
  %v5386 = vld [vmem:[%s19 + $0x88] sm:$0xff]
  %v5387 = vld [vmem:[%s19 + $0x90] sm:$0xff]
  %v5388 = vld [vmem:[%s19 + $0x98] sm:$0xff]
  %v5389 = vld [vmem:[%s19 + $0xa0] sm:$0xff]
  %v5390 = vld [vmem:[%s19 + $0xa8] sm:$0xff]
  %v5391 = vld [vmem:[%s19 + $0xb0] sm:$0xff]
  %v5392 = vld [vmem:[%s19 + $0xb8] sm:$0xff]
  %v5393 = vld [vmem:[%s19 + $0xc0] sm:$0xff]
  %v5394 = vld [vmem:[%s19 + $0xc8] sm:$0xff]
  %v5395 = vld [vmem:[%s19 + $0xd0] sm:$0xff]
  %v5396 = vld [vmem:[%s19 + $0xd8] sm:$0xff]
  %v5397 = vld [vmem:[%s19 + $0xe0] sm:$0xff]
  %v5398 = vld [vmem:[%s19 + $0xe8] sm:$0xff]
  %v5399 = vld [vmem:[%s19 + $0xf0] sm:$0xff]
  %v5400 = vld [vmem:[%s19 + $0xf8] sm:$0xff]
  %v5401 = vpack.c.bf16 %v5114, %v5112
  %v5402 = vpack.c.bf16 %v5292, %v5290
  %v5403 = vpack.c.bf16 %v5119, %v5117
  %v5404 = vpack.c.bf16 %v5297, %v5295
  %v5405 = vpack.c.bf16 %v5124, %v5122
  %v5406 = vpack.c.bf16 %v5302, %v5300
  %v5407 = vpack.c.bf16 %v5129, %v5127
  %v5408 = vpack.c.bf16 %v5307, %v5305
  %v5409 = vpack.c.bf16 %v5134, %v5132
  %v5410 = vpack.c.bf16 %v5312, %v5310
  %v5411 = vpack.c.bf16 %v5139, %v5137
  %v5412 = vpack.c.bf16 %v5317, %v5315
  %v5413 = vpack.c.bf16 %v5144, %v5142
  %v5414 = vpack.c.bf16 %v5322, %v5320
  %v5415 = vpack.c.bf16 %v5149, %v5147
  %v5416 = vpack.c.bf16 %v5327, %v5325
  %v5417 = vpack.c.bf16 %v5154, %v5152
  %v5418 = vpack.c.bf16 %v5332, %v5330
  %v5419 = vpack.c.bf16 %v5159, %v5157
  %v5420 = vpack.c.bf16 %v5337, %v5335
  %v5421 = vpack.c.bf16 %v5164, %v5162
  %v5422 = vpack.c.bf16 %v5342, %v5340
  %v5423 = vpack.c.bf16 %v5169, %v5167
  %v5424 = vpack.c.bf16 %v5347, %v5345
  %v5425 = vpack.c.bf16 %v5174, %v5172
  %v5426 = vpack.c.bf16 %v5352, %v5350
  %v5427 = vpack.c.bf16 %v5179, %v5177
  %v5428 = vpack.c.bf16 %v5357, %v5355
  %v5429 = vpack.c.bf16 %v5184, %v5182
  %v5430 = vpack.c.bf16 %v5362, %v5360
  %v5431 = vpack.c.bf16 %v5189, %v5187
  %v5432 = vpack.c.bf16 %v5367, %v5365
  %v5433 = vld [vmem:[%s20] sm:$0x3]
  %v5435 = vperm.slane %v5433, 0
  %v5436 = vperm.slane %v5433, 1
  %v5471 = vunpack.c.l.b16 %v5369
  %v5472 = vunpack.c.h.b16 %v5369
  %v5473 = vunpack.c.l.b16 %v5370
  %v5474 = vunpack.c.h.b16 %v5370
  %v5475 = vunpack.c.l.b16 %v5371
  %v5476 = vunpack.c.h.b16 %v5371
  %v5477 = vunpack.c.l.b16 %v5372
  %v5478 = vunpack.c.h.b16 %v5372
  %v5479 = vunpack.c.l.b16 %v5373
  %v5480 = vunpack.c.h.b16 %v5373
  %v5481 = vunpack.c.l.b16 %v5374
  %v5482 = vunpack.c.h.b16 %v5374
  %v5483 = vunpack.c.l.b16 %v5375
  %v5484 = vunpack.c.h.b16 %v5375
  %v5485 = vunpack.c.l.b16 %v5376
  %v5486 = vunpack.c.h.b16 %v5376
  %v5487 = vunpack.c.l.b16 %v5377
  %v5488 = vunpack.c.h.b16 %v5377
  %v5489 = vunpack.c.l.b16 %v5378
  %v5490 = vunpack.c.h.b16 %v5378
  %v5491 = vunpack.c.l.b16 %v5379
  %v5492 = vunpack.c.h.b16 %v5379
  %v5493 = vunpack.c.l.b16 %v5380
  %v5494 = vunpack.c.h.b16 %v5380
  %v5495 = vunpack.c.l.b16 %v5381
  %v5496 = vunpack.c.h.b16 %v5381
  %v5497 = vunpack.c.l.b16 %v5382
  %v5498 = vunpack.c.h.b16 %v5382
  %v5499 = vunpack.c.l.b16 %v5383
  %v5500 = vunpack.c.h.b16 %v5383
  %v5501 = vunpack.c.l.b16 %v5384
  %v5502 = vunpack.c.h.b16 %v5384
  %v5503 = vunpack.c.l.b16 %v5385
  %v5504 = vunpack.c.h.b16 %v5385
  %v5505 = vunpack.c.l.b16 %v5386
  %v5506 = vunpack.c.h.b16 %v5386
  %v5507 = vunpack.c.l.b16 %v5387
  %v5508 = vunpack.c.h.b16 %v5387
  %v5509 = vunpack.c.l.b16 %v5388
  %v5510 = vunpack.c.h.b16 %v5388
  %v5511 = vunpack.c.l.b16 %v5389
  %v5512 = vunpack.c.h.b16 %v5389
  %v5513 = vunpack.c.l.b16 %v5390
  %v5514 = vunpack.c.h.b16 %v5390
  %v5515 = vunpack.c.l.b16 %v5391
  %v5516 = vunpack.c.h.b16 %v5391
  %v5517 = vunpack.c.l.b16 %v5392
  %v5518 = vunpack.c.h.b16 %v5392
  %v5519 = vunpack.c.l.b16 %v5393
  %v5520 = vunpack.c.h.b16 %v5393
  %v5521 = vunpack.c.l.b16 %v5394
  %v5522 = vunpack.c.h.b16 %v5394
  %v5523 = vunpack.c.l.b16 %v5395
  %v5524 = vunpack.c.h.b16 %v5395
  %v5525 = vunpack.c.l.b16 %v5396
  %v5526 = vunpack.c.h.b16 %v5396
  %v5527 = vunpack.c.l.b16 %v5397
  %v5528 = vunpack.c.h.b16 %v5397
  %v5529 = vunpack.c.l.b16 %v5398
  %v5530 = vunpack.c.h.b16 %v5398
  %v5531 = vunpack.c.l.b16 %v5399
  %v5532 = vunpack.c.h.b16 %v5399
  %v5533 = vunpack.c.l.b16 %v5400
  %v5534 = vunpack.c.h.b16 %v5400
  %v5535 = vpack.c.b16 %v5473, %v5471
  %v5536 = vpack.c.b16 %v5474, %v5472
  %v5537 = vpack.c.b16 %v5477, %v5475
  %v5538 = vpack.c.b16 %v5478, %v5476
  %v5539 = vpack.c.b16 %v5481, %v5479
  %v5540 = vpack.c.b16 %v5482, %v5480
  %v5541 = vpack.c.b16 %v5485, %v5483
  %v5542 = vpack.c.b16 %v5486, %v5484
  %v5543 = vpack.c.b16 %v5489, %v5487
  %v5544 = vpack.c.b16 %v5490, %v5488
  %v5545 = vpack.c.b16 %v5493, %v5491
  %v5546 = vpack.c.b16 %v5494, %v5492
  %v5547 = vpack.c.b16 %v5497, %v5495
  %v5548 = vpack.c.b16 %v5498, %v5496
  %v5549 = vpack.c.b16 %v5501, %v5499
  %v5550 = vpack.c.b16 %v5502, %v5500
  %v5551 = vpack.c.b16 %v5505, %v5503
  %v5552 = vpack.c.b16 %v5506, %v5504
  %v5553 = vpack.c.b16 %v5509, %v5507
  %v5554 = vpack.c.b16 %v5510, %v5508
  %v5555 = vpack.c.b16 %v5513, %v5511
  %v5556 = vpack.c.b16 %v5514, %v5512
  %v5557 = vpack.c.b16 %v5517, %v5515
  %v5558 = vpack.c.b16 %v5518, %v5516
  %v5559 = vpack.c.b16 %v5521, %v5519
  %v5560 = vpack.c.b16 %v5522, %v5520
  %v5561 = vpack.c.b16 %v5525, %v5523
  %v5562 = vpack.c.b16 %v5526, %v5524
  %v5563 = vpack.c.b16 %v5529, %v5527
  %v5564 = vpack.c.b16 %v5530, %v5528
  %v5565 = vpack.c.b16 %v5533, %v5531
  %v5566 = vpack.c.b16 %v5534, %v5532
  %5599 = vmatpush.bf16.msra.mxu0 %v5549
  %5600 = vmatpush.bf16.msra.mxu0 %v5547
  %5601 = vmatpush.bf16.msra.mxu0 %v5545
  %5602 = vmatpush.bf16.msra.mxu0 %v5543
  %5603 = vmatpush.bf16.msra.mxu0 %v5541
  %5604 = vmatpush.bf16.msra.mxu0 %v5539
  %5605 = vmatpush.bf16.msra.mxu0 %v5537
  %5606 = vmatpush.bf16.msra.mxu0 %v5535
  %5607 = vmatmul.bf16.gmra.mxu0 %v5401
  %v5608 = vpop.f32.mrf.mxu0
  %v5609 = vadd.f32 %v5435, %v5608
  %v5610 = vpop.f32.mrf.mxu0
  %v5611 = vadd.f32 %v5435, %v5610
  %5612 = vmatmul.bf16.gmra.mxu0 %v5403
  %v5613 = vpop.f32.mrf.mxu0
  %v5614 = vadd.f32 %v5435, %v5613
  %v5615 = vpop.f32.mrf.mxu0
  %v5616 = vadd.f32 %v5435, %v5615
  %5617 = vmatmul.bf16.gmra.mxu0 %v5405
  %v5618 = vpop.f32.mrf.mxu0
  %v5619 = vadd.f32 %v5435, %v5618
  %v5620 = vpop.f32.mrf.mxu0
  %v5621 = vadd.f32 %v5435, %v5620
  %5622 = vmatmul.bf16.gmra.mxu0 %v5407
  %v5623 = vpop.f32.mrf.mxu0
  %v5624 = vadd.f32 %v5435, %v5623
  %v5625 = vpop.f32.mrf.mxu0
  %v5626 = vadd.f32 %v5435, %v5625
  %5627 = vmatmul.bf16.gmra.mxu0 %v5409
  %v5628 = vpop.f32.mrf.mxu0
  %v5629 = vadd.f32 %v5435, %v5628
  %v5630 = vpop.f32.mrf.mxu0
  %v5631 = vadd.f32 %v5435, %v5630
  %5632 = vmatmul.bf16.gmra.mxu0 %v5411
  %v5633 = vpop.f32.mrf.mxu0
  %v5634 = vadd.f32 %v5435, %v5633
  %v5635 = vpop.f32.mrf.mxu0
  %v5636 = vadd.f32 %v5435, %v5635
  %5637 = vmatmul.bf16.gmra.mxu0 %v5413
  %v5638 = vpop.f32.mrf.mxu0
  %v5639 = vadd.f32 %v5435, %v5638
  %v5640 = vpop.f32.mrf.mxu0
  %v5641 = vadd.f32 %v5435, %v5640
  %5642 = vmatmul.bf16.gmra.mxu0 %v5415
  %v5643 = vpop.f32.mrf.mxu0
  %v5644 = vadd.f32 %v5435, %v5643
  %v5645 = vpop.f32.mrf.mxu0
  %v5646 = vadd.f32 %v5435, %v5645
  %5647 = vmatmul.bf16.gmra.mxu0 %v5417
  %v5648 = vpop.f32.mrf.mxu0
  %v5649 = vadd.f32 %v5435, %v5648
  %v5650 = vpop.f32.mrf.mxu0
  %v5651 = vadd.f32 %v5435, %v5650
  %5652 = vmatmul.bf16.gmra.mxu0 %v5419
  %v5653 = vpop.f32.mrf.mxu0
  %v5654 = vadd.f32 %v5435, %v5653
  %v5655 = vpop.f32.mrf.mxu0
  %v5656 = vadd.f32 %v5435, %v5655
  %5657 = vmatmul.bf16.gmra.mxu0 %v5421
  %v5658 = vpop.f32.mrf.mxu0
  %v5659 = vadd.f32 %v5435, %v5658
  %v5660 = vpop.f32.mrf.mxu0
  %v5661 = vadd.f32 %v5435, %v5660
  %5662 = vmatmul.bf16.gmra.mxu0 %v5423
  %v5663 = vpop.f32.mrf.mxu0
  %v5664 = vadd.f32 %v5435, %v5663
  %v5665 = vpop.f32.mrf.mxu0
  %v5666 = vadd.f32 %v5435, %v5665
  %5667 = vmatmul.bf16.gmra.mxu0 %v5425
  %v5668 = vpop.f32.mrf.mxu0
  %v5669 = vadd.f32 %v5435, %v5668
  %v5670 = vpop.f32.mrf.mxu0
  %v5671 = vadd.f32 %v5435, %v5670
  %5672 = vmatmul.bf16.gmra.mxu0 %v5427
  %v5673 = vpop.f32.mrf.mxu0
  %v5674 = vadd.f32 %v5435, %v5673
  %v5675 = vpop.f32.mrf.mxu0
  %v5676 = vadd.f32 %v5435, %v5675
  %5677 = vmatmul.bf16.gmra.mxu0 %v5429
  %v5678 = vpop.f32.mrf.mxu0
  %v5679 = vadd.f32 %v5435, %v5678
  %v5680 = vpop.f32.mrf.mxu0
  %v5681 = vadd.f32 %v5435, %v5680
  %5682 = vmatmul.bf16.gmra.mxu0 %v5431
  %v5683 = vpop.f32.mrf.mxu0
  %v5684 = vadd.f32 %v5435, %v5683
  %v5685 = vpop.f32.mrf.mxu0
  %v5686 = vadd.f32 %v5435, %v5685
  %5687 = vdwg.mxu0
  %5688 = vmatpush.bf16.msra.mxu0 %v5565
  %5689 = vmatpush.bf16.msra.mxu0 %v5563
  %5690 = vmatpush.bf16.msra.mxu0 %v5561
  %5691 = vmatpush.bf16.msra.mxu0 %v5559
  %5692 = vmatpush.bf16.msra.mxu0 %v5557
  %5693 = vmatpush.bf16.msra.mxu0 %v5555
  %5694 = vmatpush.bf16.msra.mxu0 %v5553
  %5695 = vmatpush.bf16.msra.mxu0 %v5551
  %5696 = vmatmul.bf16.gmra.mxu0 %v5402
  %v5697 = vpop.f32.mrf.mxu0
  %v5698 = vadd.f32 %v5609, %v5697
  %v5699 = vpop.f32.mrf.mxu0
  %v5700 = vadd.f32 %v5611, %v5699
  %5701 = vmatmul.bf16.gmra.mxu0 %v5404
  %v5702 = vpop.f32.mrf.mxu0
  %v5703 = vadd.f32 %v5614, %v5702
  %v5704 = vpop.f32.mrf.mxu0
  %v5705 = vadd.f32 %v5616, %v5704
  %5706 = vmatmul.bf16.gmra.mxu0 %v5406
  %v5707 = vpop.f32.mrf.mxu0
  %v5708 = vadd.f32 %v5619, %v5707
  %v5709 = vpop.f32.mrf.mxu0
  %v5710 = vadd.f32 %v5621, %v5709
  %5711 = vmatmul.bf16.gmra.mxu0 %v5408
  %v5712 = vpop.f32.mrf.mxu0
  %v5713 = vadd.f32 %v5624, %v5712
  %v5714 = vpop.f32.mrf.mxu0
  %v5715 = vadd.f32 %v5626, %v5714
  %5716 = vmatmul.bf16.gmra.mxu0 %v5410
  %v5717 = vpop.f32.mrf.mxu0
  %v5718 = vadd.f32 %v5629, %v5717
  %v5719 = vpop.f32.mrf.mxu0
  %v5720 = vadd.f32 %v5631, %v5719
  %5721 = vmatmul.bf16.gmra.mxu0 %v5412
  %v5722 = vpop.f32.mrf.mxu0
  %v5723 = vadd.f32 %v5634, %v5722
  %v5724 = vpop.f32.mrf.mxu0
  %v5725 = vadd.f32 %v5636, %v5724
  %5726 = vmatmul.bf16.gmra.mxu0 %v5414
  %v5727 = vpop.f32.mrf.mxu0
  %v5728 = vadd.f32 %v5639, %v5727
  %v5729 = vpop.f32.mrf.mxu0
  %v5730 = vadd.f32 %v5641, %v5729
  %5731 = vmatmul.bf16.gmra.mxu0 %v5416
  %v5732 = vpop.f32.mrf.mxu0
  %v5733 = vadd.f32 %v5644, %v5732
  %v5734 = vpop.f32.mrf.mxu0
  %v5735 = vadd.f32 %v5646, %v5734
  %5736 = vmatmul.bf16.gmra.mxu0 %v5418
  %v5737 = vpop.f32.mrf.mxu0
  %v5738 = vadd.f32 %v5649, %v5737
  %v5739 = vpop.f32.mrf.mxu0
  %v5740 = vadd.f32 %v5651, %v5739
  %5741 = vmatmul.bf16.gmra.mxu0 %v5420
  %v5742 = vpop.f32.mrf.mxu0
  %v5743 = vadd.f32 %v5654, %v5742
  %v5744 = vpop.f32.mrf.mxu0
  %v5745 = vadd.f32 %v5656, %v5744
  %5746 = vmatmul.bf16.gmra.mxu0 %v5422
  %v5747 = vpop.f32.mrf.mxu0
  %v5748 = vadd.f32 %v5659, %v5747
  %v5749 = vpop.f32.mrf.mxu0
  %v5750 = vadd.f32 %v5661, %v5749
  %5751 = vmatmul.bf16.gmra.mxu0 %v5424
  %v5752 = vpop.f32.mrf.mxu0
  %v5753 = vadd.f32 %v5664, %v5752
  %v5754 = vpop.f32.mrf.mxu0
  %v5755 = vadd.f32 %v5666, %v5754
  %5756 = vmatmul.bf16.gmra.mxu0 %v5426
  %v5757 = vpop.f32.mrf.mxu0
  %v5758 = vadd.f32 %v5669, %v5757
  %v5759 = vpop.f32.mrf.mxu0
  %v5760 = vadd.f32 %v5671, %v5759
  %5761 = vmatmul.bf16.gmra.mxu0 %v5428
  %v5762 = vpop.f32.mrf.mxu0
  %v5763 = vadd.f32 %v5674, %v5762
  %v5764 = vpop.f32.mrf.mxu0
  %v5765 = vadd.f32 %v5676, %v5764
  %5766 = vmatmul.bf16.gmra.mxu0 %v5430
  %v5767 = vpop.f32.mrf.mxu0
  %v5768 = vadd.f32 %v5679, %v5767
  %v5769 = vpop.f32.mrf.mxu0
  %v5770 = vadd.f32 %v5681, %v5769
  %5771 = vmatmul.bf16.gmra.mxu0 %v5432
  %v5772 = vpop.f32.mrf.mxu0
  %v5773 = vadd.f32 %v5684, %v5772
  %v5774 = vpop.f32.mrf.mxu0
  %v5775 = vadd.f32 %v5686, %v5774
  %5776 = vdwg.mxu0
  %5777 = vmatpush.bf16.msra.mxu0 %v5550
  %5778 = vmatpush.bf16.msra.mxu0 %v5548
  %5779 = vmatpush.bf16.msra.mxu0 %v5546
  %5780 = vmatpush.bf16.msra.mxu0 %v5544
  %5781 = vmatpush.bf16.msra.mxu0 %v5542
  %5782 = vmatpush.bf16.msra.mxu0 %v5540
  %5783 = vmatpush.bf16.msra.mxu0 %v5538
  %5784 = vmatpush.bf16.msra.mxu0 %v5536
  %5785 = vmatmul.bf16.gmra.mxu0 %v5401
  %v5786 = vpop.f32.mrf.mxu0
  %v5787 = vadd.f32 %v5436, %v5786
  %v5788 = vpop.f32.mrf.mxu0
  %v5789 = vadd.f32 %v5436, %v5788
  %5790 = vmatmul.bf16.gmra.mxu0 %v5403
  %v5791 = vpop.f32.mrf.mxu0
  %v5792 = vadd.f32 %v5436, %v5791
  %v5793 = vpop.f32.mrf.mxu0
  %v5794 = vadd.f32 %v5436, %v5793
  %5795 = vmatmul.bf16.gmra.mxu0 %v5405
  %v5796 = vpop.f32.mrf.mxu0
  %v5797 = vadd.f32 %v5436, %v5796
  %v5798 = vpop.f32.mrf.mxu0
  %v5799 = vadd.f32 %v5436, %v5798
  %5800 = vmatmul.bf16.gmra.mxu0 %v5407
  %v5801 = vpop.f32.mrf.mxu0
  %v5802 = vadd.f32 %v5436, %v5801
  %v5803 = vpop.f32.mrf.mxu0
  %v5804 = vadd.f32 %v5436, %v5803
  %5805 = vmatmul.bf16.gmra.mxu0 %v5409
  %v5806 = vpop.f32.mrf.mxu0
  %v5807 = vadd.f32 %v5436, %v5806
  %v5808 = vpop.f32.mrf.mxu0
  %v5809 = vadd.f32 %v5436, %v5808
  %5810 = vmatmul.bf16.gmra.mxu0 %v5411
  %v5811 = vpop.f32.mrf.mxu0
  %v5812 = vadd.f32 %v5436, %v5811
  %v5813 = vpop.f32.mrf.mxu0
  %v5814 = vadd.f32 %v5436, %v5813
  %5815 = vmatmul.bf16.gmra.mxu0 %v5413
  %v5816 = vpop.f32.mrf.mxu0
  %v5817 = vadd.f32 %v5436, %v5816
  %v5818 = vpop.f32.mrf.mxu0
  %v5819 = vadd.f32 %v5436, %v5818
  %5820 = vmatmul.bf16.gmra.mxu0 %v5415
  %v5821 = vpop.f32.mrf.mxu0
  %v5822 = vadd.f32 %v5436, %v5821
  %v5823 = vpop.f32.mrf.mxu0
  %v5824 = vadd.f32 %v5436, %v5823
  %5825 = vmatmul.bf16.gmra.mxu0 %v5417
  %v5826 = vpop.f32.mrf.mxu0
  %v5827 = vadd.f32 %v5436, %v5826
  %v5828 = vpop.f32.mrf.mxu0
  %v5829 = vadd.f32 %v5436, %v5828
  %5830 = vmatmul.bf16.gmra.mxu0 %v5419
  %v5831 = vpop.f32.mrf.mxu0
  %v5832 = vadd.f32 %v5436, %v5831
  %v5833 = vpop.f32.mrf.mxu0
  %v5834 = vadd.f32 %v5436, %v5833
  %5835 = vmatmul.bf16.gmra.mxu0 %v5421
  %v5836 = vpop.f32.mrf.mxu0
  %v5837 = vadd.f32 %v5436, %v5836
  %v5838 = vpop.f32.mrf.mxu0
  %v5839 = vadd.f32 %v5436, %v5838
  %5840 = vmatmul.bf16.gmra.mxu0 %v5423
  %v5841 = vpop.f32.mrf.mxu0
  %v5842 = vadd.f32 %v5436, %v5841
  %v5843 = vpop.f32.mrf.mxu0
  %v5844 = vadd.f32 %v5436, %v5843
  %5845 = vmatmul.bf16.gmra.mxu0 %v5425
  %v5846 = vpop.f32.mrf.mxu0
  %v5847 = vadd.f32 %v5436, %v5846
  %v5848 = vpop.f32.mrf.mxu0
  %v5849 = vadd.f32 %v5436, %v5848
  %5850 = vmatmul.bf16.gmra.mxu0 %v5427
  %v5851 = vpop.f32.mrf.mxu0
  %v5852 = vadd.f32 %v5436, %v5851
  %v5853 = vpop.f32.mrf.mxu0
  %v5854 = vadd.f32 %v5436, %v5853
  %5855 = vmatmul.bf16.gmra.mxu0 %v5429
  %v5856 = vpop.f32.mrf.mxu0
  %v5857 = vadd.f32 %v5436, %v5856
  %v5858 = vpop.f32.mrf.mxu0
  %v5859 = vadd.f32 %v5436, %v5858
  %5860 = vmatmul.bf16.gmra.mxu0 %v5431
  %v5861 = vpop.f32.mrf.mxu0
  %v5862 = vadd.f32 %v5436, %v5861
  %v5863 = vpop.f32.mrf.mxu0
  %v5864 = vadd.f32 %v5436, %v5863
  %5865 = vdwg.mxu0
  %5866 = vmatpush.bf16.msra.mxu0 %v5566
  %5867 = vmatpush.bf16.msra.mxu0 %v5564
  %5868 = vmatpush.bf16.msra.mxu0 %v5562
  %5869 = vmatpush.bf16.msra.mxu0 %v5560
  %5870 = vmatpush.bf16.msra.mxu0 %v5558
  %5871 = vmatpush.bf16.msra.mxu0 %v5556
  %5872 = vmatpush.bf16.msra.mxu0 %v5554
  %5873 = vmatpush.bf16.msra.mxu0 %v5552
  %5874 = vmatmul.bf16.gmra.mxu0 %v5402
  %v5875 = vpop.f32.mrf.mxu0
  %v5876 = vadd.f32 %v5787, %v5875
  %v5877 = vpop.f32.mrf.mxu0
  %v5878 = vadd.f32 %v5789, %v5877
  %5879 = vmatmul.bf16.gmra.mxu0 %v5404
  %v5880 = vpop.f32.mrf.mxu0
  %v5881 = vadd.f32 %v5792, %v5880
  %v5882 = vpop.f32.mrf.mxu0
  %v5883 = vadd.f32 %v5794, %v5882
  %5884 = vmatmul.bf16.gmra.mxu0 %v5406
  %v5885 = vpop.f32.mrf.mxu0
  %v5886 = vadd.f32 %v5797, %v5885
  %v5887 = vpop.f32.mrf.mxu0
  %v5888 = vadd.f32 %v5799, %v5887
  %5889 = vmatmul.bf16.gmra.mxu0 %v5408
  %v5890 = vpop.f32.mrf.mxu0
  %v5891 = vadd.f32 %v5802, %v5890
  %v5892 = vpop.f32.mrf.mxu0
  %v5893 = vadd.f32 %v5804, %v5892
  %5894 = vmatmul.bf16.gmra.mxu0 %v5410
  %v5895 = vpop.f32.mrf.mxu0
  %v5896 = vadd.f32 %v5807, %v5895
  %v5897 = vpop.f32.mrf.mxu0
  %v5898 = vadd.f32 %v5809, %v5897
  %5899 = vmatmul.bf16.gmra.mxu0 %v5412
  %v5900 = vpop.f32.mrf.mxu0
  %v5901 = vadd.f32 %v5812, %v5900
  %v5902 = vpop.f32.mrf.mxu0
  %v5903 = vadd.f32 %v5814, %v5902
  %5904 = vmatmul.bf16.gmra.mxu0 %v5414
  %v5905 = vpop.f32.mrf.mxu0
  %v5906 = vadd.f32 %v5817, %v5905
  %v5907 = vpop.f32.mrf.mxu0
  %v5908 = vadd.f32 %v5819, %v5907
  %5909 = vmatmul.bf16.gmra.mxu0 %v5416
  %v5910 = vpop.f32.mrf.mxu0
  %v5911 = vadd.f32 %v5822, %v5910
  %v5912 = vpop.f32.mrf.mxu0
  %v5913 = vadd.f32 %v5824, %v5912
  %5914 = vmatmul.bf16.gmra.mxu0 %v5418
  %v5915 = vpop.f32.mrf.mxu0
  %v5916 = vadd.f32 %v5827, %v5915
  %v5917 = vpop.f32.mrf.mxu0
  %v5918 = vadd.f32 %v5829, %v5917
  %5919 = vmatmul.bf16.gmra.mxu0 %v5420
  %v5920 = vpop.f32.mrf.mxu0
  %v5921 = vadd.f32 %v5832, %v5920
  %v5922 = vpop.f32.mrf.mxu0
  %v5923 = vadd.f32 %v5834, %v5922
  %5924 = vmatmul.bf16.gmra.mxu0 %v5422
  %v5925 = vpop.f32.mrf.mxu0
  %v5926 = vadd.f32 %v5837, %v5925
  %v5927 = vpop.f32.mrf.mxu0
  %v5928 = vadd.f32 %v5839, %v5927
  %5929 = vmatmul.bf16.gmra.mxu0 %v5424
  %v5930 = vpop.f32.mrf.mxu0
  %v5931 = vadd.f32 %v5842, %v5930
  %v5932 = vpop.f32.mrf.mxu0
  %v5933 = vadd.f32 %v5844, %v5932
  %5934 = vmatmul.bf16.gmra.mxu0 %v5426
  %v5935 = vpop.f32.mrf.mxu0
  %v5936 = vadd.f32 %v5847, %v5935
  %v5937 = vpop.f32.mrf.mxu0
  %v5938 = vadd.f32 %v5849, %v5937
  %5939 = vmatmul.bf16.gmra.mxu0 %v5428
  %v5940 = vpop.f32.mrf.mxu0
  %v5941 = vadd.f32 %v5852, %v5940
  %v5942 = vpop.f32.mrf.mxu0
  %v5943 = vadd.f32 %v5854, %v5942
  %5944 = vmatmul.bf16.gmra.mxu0 %v5430
  %v5945 = vpop.f32.mrf.mxu0
  %v5946 = vadd.f32 %v5857, %v5945
  %v5947 = vpop.f32.mrf.mxu0
  %v5948 = vadd.f32 %v5859, %v5947
  %5949 = vmatmul.bf16.gmra.mxu0 %v5432
  %v5950 = vpop.f32.mrf.mxu0
  %v5951 = vadd.f32 %v5862, %v5950
  %v5952 = vpop.f32.mrf.mxu0
  %v5953 = vadd.f32 %v5864, %v5952
  %5954 = vdwg.mxu0
  %v5955 = vld [vmem:[%s21] sm:$0xf]
  %v5956 = vld [vmem:[%s21 + $0x4] sm:$0xf]
  %v5957 = vld [vmem:[%s21 + $0x8] sm:$0xf]
  %v5958 = vld [vmem:[%s21 + $0xc] sm:$0xf]
  %v5959 = vld [vmem:[%s21 + $0x10] sm:$0xf]
  %v5960 = vld [vmem:[%s21 + $0x14] sm:$0xf]
  %v5961 = vld [vmem:[%s21 + $0x18] sm:$0xf]
  %v5962 = vld [vmem:[%s21 + $0x1c] sm:$0xf]
  %v5963 = vld [vmem:[%s21 + $0x20] sm:$0xf]
  %v5964 = vld [vmem:[%s21 + $0x24] sm:$0xf]
  %v5965 = vld [vmem:[%s21 + $0x28] sm:$0xf]
  %v5966 = vld [vmem:[%s21 + $0x2c] sm:$0xf]
  %v5967 = vld [vmem:[%s21 + $0x30] sm:$0xf]
  %v5968 = vld [vmem:[%s21 + $0x34] sm:$0xf]
  %v5969 = vld [vmem:[%s21 + $0x38] sm:$0xf]
  %v5970 = vld [vmem:[%s21 + $0x3c] sm:$0xf]
  %v5971 = vld [vmem:[%s21 + $0x40] sm:$0xf]
  %v5972 = vld [vmem:[%s21 + $0x44] sm:$0xf]
  %v5973 = vld [vmem:[%s21 + $0x48] sm:$0xf]
  %v5974 = vld [vmem:[%s21 + $0x4c] sm:$0xf]
  %v5975 = vld [vmem:[%s21 + $0x50] sm:$0xf]
  %v5976 = vld [vmem:[%s21 + $0x54] sm:$0xf]
  %v5977 = vld [vmem:[%s21 + $0x58] sm:$0xf]
  %v5978 = vld [vmem:[%s21 + $0x5c] sm:$0xf]
  %v5979 = vld [vmem:[%s21 + $0x60] sm:$0xf]
  %v5980 = vld [vmem:[%s21 + $0x64] sm:$0xf]
  %v5981 = vld [vmem:[%s21 + $0x68] sm:$0xf]
  %v5982 = vld [vmem:[%s21 + $0x6c] sm:$0xf]
  %v5983 = vld [vmem:[%s21 + $0x70] sm:$0xf]
  %v5984 = vld [vmem:[%s21 + $0x74] sm:$0xf]
  %v5985 = vld [vmem:[%s21 + $0x78] sm:$0xf]
  %v5986 = vld [vmem:[%s21 + $0x7c] sm:$0xf]
  %v5987 = vld [vmem:[#allocation2] sm:$0x1]
  %v5989 = vperm.slane %v5987, 0
  %v6023 = vunpack.c.l.b16 %v5955
  %v6024 = vunpack.c.l.b16 %v5956
  %v6025 = vunpack.c.l.b16 %v5957
  %v6026 = vunpack.c.l.b16 %v5958
  %v6027 = vunpack.c.l.b16 %v5959
  %v6028 = vunpack.c.l.b16 %v5960
  %v6029 = vunpack.c.l.b16 %v5961
  %v6030 = vunpack.c.l.b16 %v5962
  %v6031 = vunpack.c.l.b16 %v5963
  %v6032 = vunpack.c.l.b16 %v5964
  %v6033 = vunpack.c.l.b16 %v5965
  %v6034 = vunpack.c.l.b16 %v5966
  %v6035 = vunpack.c.l.b16 %v5967
  %v6036 = vunpack.c.l.b16 %v5968
  %v6037 = vunpack.c.l.b16 %v5969
  %v6038 = vunpack.c.l.b16 %v5970
  %v6039 = vunpack.c.l.b16 %v5971
  %v6040 = vunpack.c.l.b16 %v5972
  %v6041 = vunpack.c.l.b16 %v5973
  %v6042 = vunpack.c.l.b16 %v5974
  %v6043 = vunpack.c.l.b16 %v5975
  %v6044 = vunpack.c.l.b16 %v5976
  %v6045 = vunpack.c.l.b16 %v5977
  %v6046 = vunpack.c.l.b16 %v5978
  %v6047 = vunpack.c.l.b16 %v5979
  %v6048 = vunpack.c.l.b16 %v5980
  %v6049 = vunpack.c.l.b16 %v5981
  %v6050 = vunpack.c.l.b16 %v5982
  %v6051 = vunpack.c.l.b16 %v5983
  %v6052 = vunpack.c.l.b16 %v5984
  %v6053 = vunpack.c.l.b16 %v5985
  %v6054 = vunpack.c.l.b16 %v5986
  %v6055 = vpack.c.b16 %v6024, %v6023
  %v6056 = vpack.c.b16 %v6026, %v6025
  %v6057 = vpack.c.b16 %v6028, %v6027
  %v6058 = vpack.c.b16 %v6030, %v6029
  %v6059 = vpack.c.b16 %v6032, %v6031
  %v6060 = vpack.c.b16 %v6034, %v6033
  %v6061 = vpack.c.b16 %v6036, %v6035
  %v6062 = vpack.c.b16 %v6038, %v6037
  %v6063 = vpack.c.b16 %v6040, %v6039
  %v6064 = vpack.c.b16 %v6042, %v6041
  %v6065 = vpack.c.b16 %v6044, %v6043
  %v6066 = vpack.c.b16 %v6046, %v6045
  %v6067 = vpack.c.b16 %v6048, %v6047
  %v6068 = vpack.c.b16 %v6050, %v6049
  %v6069 = vpack.c.b16 %v6052, %v6051
  %v6070 = vpack.c.b16 %v6054, %v6053
  %6087 = vmatpush.bf16.msra.mxu0 %v6062
  %6088 = vmatpush.bf16.msra.mxu0 %v6061
  %6089 = vmatpush.bf16.msra.mxu0 %v6060
  %6090 = vmatpush.bf16.msra.mxu0 %v6059
  %6091 = vmatpush.bf16.msra.mxu0 %v6058
  %6092 = vmatpush.bf16.msra.mxu0 %v6057
  %6093 = vmatpush.bf16.msra.mxu0 %v6056
  %6094 = vmatpush.bf16.msra.mxu0 %v6055
  %6095 = vmatmul.bf16.gmra.mxu0 %v5401
  %v6096 = vpop.f32.mrf.mxu0
  %v6097 = vadd.f32 %v5989, %v6096
  %v6098 = vpop.f32.mrf.mxu0
  %v6099 = vadd.f32 %v5989, %v6098
  %6100 = vmatmul.bf16.gmra.mxu0 %v5403
  %v6101 = vpop.f32.mrf.mxu0
  %v6102 = vadd.f32 %v5989, %v6101
  %v6103 = vpop.f32.mrf.mxu0
  %v6104 = vadd.f32 %v5989, %v6103
  %6105 = vmatmul.bf16.gmra.mxu0 %v5405
  %v6106 = vpop.f32.mrf.mxu0
  %v6107 = vadd.f32 %v5989, %v6106
  %v6108 = vpop.f32.mrf.mxu0
  %v6109 = vadd.f32 %v5989, %v6108
  %6110 = vmatmul.bf16.gmra.mxu0 %v5407
  %v6111 = vpop.f32.mrf.mxu0
  %v6112 = vadd.f32 %v5989, %v6111
  %v6113 = vpop.f32.mrf.mxu0
  %v6114 = vadd.f32 %v5989, %v6113
  %6115 = vmatmul.bf16.gmra.mxu0 %v5409
  %v6116 = vpop.f32.mrf.mxu0
  %v6117 = vadd.f32 %v5989, %v6116
  %v6118 = vpop.f32.mrf.mxu0
  %v6119 = vadd.f32 %v5989, %v6118
  %6120 = vmatmul.bf16.gmra.mxu0 %v5411
  %v6121 = vpop.f32.mrf.mxu0
  %v6122 = vadd.f32 %v5989, %v6121
  %v6123 = vpop.f32.mrf.mxu0
  %v6124 = vadd.f32 %v5989, %v6123
  %6125 = vmatmul.bf16.gmra.mxu0 %v5413
  %v6126 = vpop.f32.mrf.mxu0
  %v6127 = vadd.f32 %v5989, %v6126
  %v6128 = vpop.f32.mrf.mxu0
  %v6129 = vadd.f32 %v5989, %v6128
  %6130 = vmatmul.bf16.gmra.mxu0 %v5415
  %v6131 = vpop.f32.mrf.mxu0
  %v6132 = vadd.f32 %v5989, %v6131
  %v6133 = vpop.f32.mrf.mxu0
  %v6134 = vadd.f32 %v5989, %v6133
  %6135 = vmatmul.bf16.gmra.mxu0 %v5417
  %v6136 = vpop.f32.mrf.mxu0
  %v6137 = vadd.f32 %v5989, %v6136
  %v6138 = vpop.f32.mrf.mxu0
  %v6139 = vadd.f32 %v5989, %v6138
  %6140 = vmatmul.bf16.gmra.mxu0 %v5419
  %v6141 = vpop.f32.mrf.mxu0
  %v6142 = vadd.f32 %v5989, %v6141
  %v6143 = vpop.f32.mrf.mxu0
  %v6144 = vadd.f32 %v5989, %v6143
  %6145 = vmatmul.bf16.gmra.mxu0 %v5421
  %v6146 = vpop.f32.mrf.mxu0
  %v6147 = vadd.f32 %v5989, %v6146
  %v6148 = vpop.f32.mrf.mxu0
  %v6149 = vadd.f32 %v5989, %v6148
  %6150 = vmatmul.bf16.gmra.mxu0 %v5423
  %v6151 = vpop.f32.mrf.mxu0
  %v6152 = vadd.f32 %v5989, %v6151
  %v6153 = vpop.f32.mrf.mxu0
  %v6154 = vadd.f32 %v5989, %v6153
  %6155 = vmatmul.bf16.gmra.mxu0 %v5425
  %v6156 = vpop.f32.mrf.mxu0
  %v6157 = vadd.f32 %v5989, %v6156
  %v6158 = vpop.f32.mrf.mxu0
  %v6159 = vadd.f32 %v5989, %v6158
  %6160 = vmatmul.bf16.gmra.mxu0 %v5427
  %v6161 = vpop.f32.mrf.mxu0
  %v6162 = vadd.f32 %v5989, %v6161
  %v6163 = vpop.f32.mrf.mxu0
  %v6164 = vadd.f32 %v5989, %v6163
  %6165 = vmatmul.bf16.gmra.mxu0 %v5429
  %v6166 = vpop.f32.mrf.mxu0
  %v6167 = vadd.f32 %v5989, %v6166
  %v6168 = vpop.f32.mrf.mxu0
  %v6169 = vadd.f32 %v5989, %v6168
  %6170 = vmatmul.bf16.gmra.mxu0 %v5431
  %v6171 = vpop.f32.mrf.mxu0
  %v6172 = vadd.f32 %v5989, %v6171
  %v6173 = vpop.f32.mrf.mxu0
  %v6174 = vadd.f32 %v5989, %v6173
  %6175 = vdwg.mxu0
  %6176 = vmatpush.bf16.msra.mxu0 %v6070
  %6177 = vmatpush.bf16.msra.mxu0 %v6069
  %6178 = vmatpush.bf16.msra.mxu0 %v6068
  %6179 = vmatpush.bf16.msra.mxu0 %v6067
  %6180 = vmatpush.bf16.msra.mxu0 %v6066
  %6181 = vmatpush.bf16.msra.mxu0 %v6065
  %6182 = vmatpush.bf16.msra.mxu0 %v6064
  %6183 = vmatpush.bf16.msra.mxu0 %v6063
  %6184 = vmatmul.bf16.gmra.mxu0 %v5402
  %v6185 = vpop.f32.mrf.mxu0
  %v6186 = vadd.f32 %v6097, %v6185
  %v6187 = vpop.f32.mrf.mxu0
  %v6188 = vadd.f32 %v6099, %v6187
  %6189 = vmatmul.bf16.gmra.mxu0 %v5404
  %v6190 = vpop.f32.mrf.mxu0
  %v6191 = vadd.f32 %v6102, %v6190
  %v6192 = vpop.f32.mrf.mxu0
  %v6193 = vadd.f32 %v6104, %v6192
  %6194 = vmatmul.bf16.gmra.mxu0 %v5406
  %v6195 = vpop.f32.mrf.mxu0
  %v6196 = vadd.f32 %v6107, %v6195
  %v6197 = vpop.f32.mrf.mxu0
  %v6198 = vadd.f32 %v6109, %v6197
  %6199 = vmatmul.bf16.gmra.mxu0 %v5408
  %v6200 = vpop.f32.mrf.mxu0
  %v6201 = vadd.f32 %v6112, %v6200
  %v6202 = vpop.f32.mrf.mxu0
  %v6203 = vadd.f32 %v6114, %v6202
  %6204 = vmatmul.bf16.gmra.mxu0 %v5410
  %v6205 = vpop.f32.mrf.mxu0
  %v6206 = vadd.f32 %v6117, %v6205
  %v6207 = vpop.f32.mrf.mxu0
  %v6208 = vadd.f32 %v6119, %v6207
  %6209 = vmatmul.bf16.gmra.mxu0 %v5412
  %v6210 = vpop.f32.mrf.mxu0
  %v6211 = vadd.f32 %v6122, %v6210
  %v6212 = vpop.f32.mrf.mxu0
  %v6213 = vadd.f32 %v6124, %v6212
  %6214 = vmatmul.bf16.gmra.mxu0 %v5414
  %v6215 = vpop.f32.mrf.mxu0
  %v6216 = vadd.f32 %v6127, %v6215
  %v6217 = vpop.f32.mrf.mxu0
  %v6218 = vadd.f32 %v6129, %v6217
  %6219 = vmatmul.bf16.gmra.mxu0 %v5416
  %v6220 = vpop.f32.mrf.mxu0
  %v6221 = vadd.f32 %v6132, %v6220
  %v6222 = vpop.f32.mrf.mxu0
  %v6223 = vadd.f32 %v6134, %v6222
  %6224 = vmatmul.bf16.gmra.mxu0 %v5418
  %v6225 = vpop.f32.mrf.mxu0
  %v6226 = vadd.f32 %v6137, %v6225
  %v6227 = vpop.f32.mrf.mxu0
  %v6228 = vadd.f32 %v6139, %v6227
  %6229 = vmatmul.bf16.gmra.mxu0 %v5420
  %v6230 = vpop.f32.mrf.mxu0
  %v6231 = vadd.f32 %v6142, %v6230
  %v6232 = vpop.f32.mrf.mxu0
  %v6233 = vadd.f32 %v6144, %v6232
  %6234 = vmatmul.bf16.gmra.mxu0 %v5422
  %v6235 = vpop.f32.mrf.mxu0
  %v6236 = vadd.f32 %v6147, %v6235
  %v6237 = vpop.f32.mrf.mxu0
  %v6238 = vadd.f32 %v6149, %v6237
  %6239 = vmatmul.bf16.gmra.mxu0 %v5424
  %v6240 = vpop.f32.mrf.mxu0
  %v6241 = vadd.f32 %v6152, %v6240
  %v6242 = vpop.f32.mrf.mxu0
  %v6243 = vadd.f32 %v6154, %v6242
  %6244 = vmatmul.bf16.gmra.mxu0 %v5426
  %v6245 = vpop.f32.mrf.mxu0
  %v6246 = vadd.f32 %v6157, %v6245
  %v6247 = vpop.f32.mrf.mxu0
  %v6248 = vadd.f32 %v6159, %v6247
  %6249 = vmatmul.bf16.gmra.mxu0 %v5428
  %v6250 = vpop.f32.mrf.mxu0
  %v6251 = vadd.f32 %v6162, %v6250
  %v6252 = vpop.f32.mrf.mxu0
  %v6253 = vadd.f32 %v6164, %v6252
  %6254 = vmatmul.bf16.gmra.mxu0 %v5430
  %v6255 = vpop.f32.mrf.mxu0
  %v6256 = vadd.f32 %v6167, %v6255
  %v6257 = vpop.f32.mrf.mxu0
  %v6258 = vadd.f32 %v6169, %v6257
  %6259 = vmatmul.bf16.gmra.mxu0 %v5432
  %v6260 = vpop.f32.mrf.mxu0
  %v6261 = vadd.f32 %v6172, %v6260
  %v6262 = vpop.f32.mrf.mxu0
  %v6263 = vadd.f32 %v6174, %v6262
  %6264 = vdwg.mxu0
  %v6265 = vmax.f32 %v6186, 0.0
  %v6266 = vmax.f32 %v6188, 0.0
  %v6267 = vmax.f32 %v6191, 0.0
  %v6268 = vmax.f32 %v6193, 0.0
  %v6269 = vmax.f32 %v6196, 0.0
  %v6270 = vmax.f32 %v6198, 0.0
  %v6271 = vmax.f32 %v6201, 0.0
  %v6272 = vmax.f32 %v6203, 0.0
  %v6273 = vmax.f32 %v6206, 0.0
  %v6274 = vmax.f32 %v6208, 0.0
  %v6275 = vmax.f32 %v6211, 0.0
  %v6276 = vmax.f32 %v6213, 0.0
  %v6277 = vmax.f32 %v6216, 0.0
  %v6278 = vmax.f32 %v6218, 0.0
  %v6279 = vmax.f32 %v6221, 0.0
  %v6280 = vmax.f32 %v6223, 0.0
  %v6281 = vmax.f32 %v6226, 0.0
  %v6282 = vmax.f32 %v6228, 0.0
  %v6283 = vmax.f32 %v6231, 0.0
  %v6284 = vmax.f32 %v6233, 0.0
  %v6285 = vmax.f32 %v6236, 0.0
  %v6286 = vmax.f32 %v6238, 0.0
  %v6287 = vmax.f32 %v6241, 0.0
  %v6288 = vmax.f32 %v6243, 0.0
  %v6289 = vmax.f32 %v6246, 0.0
  %v6290 = vmax.f32 %v6248, 0.0
  %v6291 = vmax.f32 %v6251, 0.0
  %v6292 = vmax.f32 %v6253, 0.0
  %v6293 = vmax.f32 %v6256, 0.0
  %v6294 = vmax.f32 %v6258, 0.0
  %v6295 = vmax.f32 %v6261, 0.0
  %v6296 = vmax.f32 %v6263, 0.0
  %v6297 = vld [vmem:[%s23] sm:$0xf]
  %v6298 = vld [vmem:[%s23 + $0x4] sm:$0xf]
  %v6299 = vld [vmem:[%s23 + $0x8] sm:$0xf]
  %v6300 = vld [vmem:[%s23 + $0xc] sm:$0xf]
  %v6301 = vld [vmem:[%s23 + $0x10] sm:$0xf]
  %v6302 = vld [vmem:[%s23 + $0x14] sm:$0xf]
  %v6303 = vld [vmem:[%s23 + $0x18] sm:$0xf]
  %v6304 = vld [vmem:[%s23 + $0x1c] sm:$0xf]
  %v6305 = vld [vmem:[%s23 + $0x20] sm:$0xf]
  %v6306 = vld [vmem:[%s23 + $0x24] sm:$0xf]
  %v6307 = vld [vmem:[%s23 + $0x28] sm:$0xf]
  %v6308 = vld [vmem:[%s23 + $0x2c] sm:$0xf]
  %v6309 = vld [vmem:[%s23 + $0x30] sm:$0xf]
  %v6310 = vld [vmem:[%s23 + $0x34] sm:$0xf]
  %v6311 = vld [vmem:[%s23 + $0x38] sm:$0xf]
  %v6312 = vld [vmem:[%s23 + $0x3c] sm:$0xf]
  %v6313 = vld [vmem:[%s23 + $0x40] sm:$0xf]
  %v6314 = vld [vmem:[%s23 + $0x44] sm:$0xf]
  %v6315 = vld [vmem:[%s23 + $0x48] sm:$0xf]
  %v6316 = vld [vmem:[%s23 + $0x4c] sm:$0xf]
  %v6317 = vld [vmem:[%s23 + $0x50] sm:$0xf]
  %v6318 = vld [vmem:[%s23 + $0x54] sm:$0xf]
  %v6319 = vld [vmem:[%s23 + $0x58] sm:$0xf]
  %v6320 = vld [vmem:[%s23 + $0x5c] sm:$0xf]
  %v6321 = vld [vmem:[%s23 + $0x60] sm:$0xf]
  %v6322 = vld [vmem:[%s23 + $0x64] sm:$0xf]
  %v6323 = vld [vmem:[%s23 + $0x68] sm:$0xf]
  %v6324 = vld [vmem:[%s23 + $0x6c] sm:$0xf]
  %v6325 = vld [vmem:[%s23 + $0x70] sm:$0xf]
  %v6326 = vld [vmem:[%s23 + $0x74] sm:$0xf]
  %v6327 = vld [vmem:[%s23 + $0x78] sm:$0xf]
  %v6328 = vld [vmem:[%s23 + $0x7c] sm:$0xf]
  %v6329 = vld [vmem:[%s24] sm:$0xf]
  %v6330 = vld [vmem:[%s24 + $0x4] sm:$0xf]
  %v6331 = vld [vmem:[%s24 + $0x8] sm:$0xf]
  %v6332 = vld [vmem:[%s24 + $0xc] sm:$0x3]
  %v6333 = vpack.c.bf16 %v5700, %v5698
  %v6334 = vpack.c.bf16 %v5878, %v5876
  %v6335 = vpack.c.bf16 %v5705, %v5703
  %v6336 = vpack.c.bf16 %v5883, %v5881
  %v6337 = vpack.c.bf16 %v5710, %v5708
  %v6338 = vpack.c.bf16 %v5888, %v5886
  %v6339 = vpack.c.bf16 %v5715, %v5713
  %v6340 = vpack.c.bf16 %v5893, %v5891
  %v6341 = vpack.c.bf16 %v5720, %v5718
  %v6342 = vpack.c.bf16 %v5898, %v5896
  %v6343 = vpack.c.bf16 %v5725, %v5723
  %v6344 = vpack.c.bf16 %v5903, %v5901
  %v6345 = vpack.c.bf16 %v5730, %v5728
  %v6346 = vpack.c.bf16 %v5908, %v5906
  %v6347 = vpack.c.bf16 %v5735, %v5733
  %v6348 = vpack.c.bf16 %v5913, %v5911
  %v6349 = vpack.c.bf16 %v5740, %v5738
  %v6350 = vpack.c.bf16 %v5918, %v5916
  %v6351 = vpack.c.bf16 %v5745, %v5743
  %v6352 = vpack.c.bf16 %v5923, %v5921
  %v6353 = vpack.c.bf16 %v5750, %v5748
  %v6354 = vpack.c.bf16 %v5928, %v5926
  %v6355 = vpack.c.bf16 %v5755, %v5753
  %v6356 = vpack.c.bf16 %v5933, %v5931
  %v6357 = vpack.c.bf16 %v5760, %v5758
  %v6358 = vpack.c.bf16 %v5938, %v5936
  %v6359 = vpack.c.bf16 %v5765, %v5763
  %v6360 = vpack.c.bf16 %v5943, %v5941
  %v6361 = vpack.c.bf16 %v5770, %v5768
  %v6362 = vpack.c.bf16 %v5948, %v5946
  %v6363 = vpack.c.bf16 %v5775, %v5773
  %v6364 = vpack.c.bf16 %v5953, %v5951
  %v6397 = vunpack.c.l.b16 %v124
  %v6398 = vunpack.c.l.b16 %v125
  %v6399 = vunpack.c.l.b16 %v126
  %v6400 = vunpack.c.l.b16 %v127
  %v6401 = vunpack.c.l.b16 %v128
  %v6402 = vunpack.c.l.b16 %v129
  %v6403 = vunpack.c.l.b16 %v130
  %v6404 = vunpack.c.l.b16 %v131
  %v6405 = vunpack.c.l.b16 %v132
  %v6406 = vunpack.c.l.b16 %v133
  %v6407 = vunpack.c.l.b16 %v134
  %v6408 = vunpack.c.l.b16 %v135
  %v6409 = vunpack.c.l.b16 %v136
  %v6410 = vunpack.c.l.b16 %v137
  %v6411 = vunpack.c.l.b16 %v138
  %v6412 = vunpack.c.l.b16 %v139
  %v6413 = vunpack.c.l.b16 %v140
  %v6414 = vunpack.c.l.b16 %v141
  %v6415 = vunpack.c.l.b16 %v142
  %v6416 = vunpack.c.l.b16 %v143
  %v6417 = vunpack.c.l.b16 %v144
  %v6418 = vunpack.c.l.b16 %v145
  %v6419 = vunpack.c.l.b16 %v146
  %v6420 = vunpack.c.l.b16 %v147
  %v6421 = vunpack.c.l.b16 %v148
  %v6422 = vunpack.c.l.b16 %v149
  %v6423 = vunpack.c.l.b16 %v150
  %v6424 = vunpack.c.l.b16 %v151
  %v6425 = vunpack.c.l.b16 %v152
  %v6426 = vunpack.c.l.b16 %v153
  %v6427 = vunpack.c.l.b16 %v154
  %v6428 = vunpack.c.l.b16 %v155
  %v6429 = vpack.c.b16 %v6398, %v6397
  %v6430 = vpack.c.b16 %v6400, %v6399
  %v6431 = vpack.c.b16 %v6402, %v6401
  %v6432 = vpack.c.b16 %v6404, %v6403
  %v6433 = vpack.c.b16 %v6406, %v6405
  %v6434 = vpack.c.b16 %v6408, %v6407
  %v6435 = vpack.c.b16 %v6410, %v6409
  %v6436 = vpack.c.b16 %v6412, %v6411
  %v6437 = vpack.c.b16 %v6414, %v6413
  %v6438 = vpack.c.b16 %v6416, %v6415
  %v6439 = vpack.c.b16 %v6418, %v6417
  %v6440 = vpack.c.b16 %v6420, %v6419
  %v6441 = vpack.c.b16 %v6422, %v6421
  %v6442 = vpack.c.b16 %v6424, %v6423
  %v6443 = vpack.c.b16 %v6426, %v6425
  %v6444 = vpack.c.b16 %v6428, %v6427
  %v6449 = vunpack.c.l.b16 %v6329
  %v6450 = vunpack.c.l.b16 %v6330
  %v6451 = vunpack.c.l.b16 %v6331
  %v6452 = vunpack.c.l.b16 %v6332
  %v6453 = vpack.c.b16 %v6450, %v6449
  %v6454 = vpack.c.b16 %v6452, %v6451
  %vm6456 = vcmask 220160
  %v6458 = vsel %vm6456, %v6429, 0
  %v6461 = vsel %vm6456, %v6430, 0
  %v6464 = vsel %vm6456, %v6431, 0
  %v6467 = vsel %vm6456, %v6432, 0
  %v6470 = vsel %vm6456, %v6433, 0
  %v6473 = vsel %vm6456, %v6434, 0
  %v6476 = vsel %vm6456, %v6435, 0
  %v6479 = vsel %vm6456, %v6436, 0
  %v6482 = vsel %vm6456, %v6437, 0
  %v6485 = vsel %vm6456, %v6438, 0
  %v6488 = vsel %vm6456, %v6439, 0
  %v6491 = vsel %vm6456, %v6440, 0
  %v6494 = vsel %vm6456, %v6441, 0
  %v6497 = vsel %vm6456, %v6442, 0
  %v6500 = vsel %vm6456, %v6443, 0
  %v6503 = vsel %vm6456, %v6444, 0
  %vm6505 = vcmask 1044480
  %vm6506 = vcmask 1045504
  %v6507 = vsel %vm6505, 4294967295, 65535
  %v6508 = vsel %vm6506, %v6507, 0
  %v6510 = vand.u32 %v6454, %v6508
  %6512 = vmatpush.bf16.msra.mxu0 0
  %6513 = vmatpush.bf16.msra.mxu0 0
  %6514 = vmatpush.bf16.msra.mxu0 0
  %6515 = vmatpush.bf16.msra.mxu0 0
  %6516 = vmatpush.bf16.msra.mxu0 0
  %6517 = vmatpush.bf16.msra.mxu0 0
  %6518 = vmatpush.bf16.msra.mxu0 %v6510
  %6519 = vmatpush.bf16.msra.mxu0 %v6453
  %6520 = vmatmul.bf16.gmra.mxu0 %v6458
  %v6521 = vpop.f32.mrf.mxu0
  %v6522 = vadd.f32 0.0, %v6521
  %v6523 = vpop.f32.mrf.mxu0
  %v6524 = vadd.f32 0.0, %v6523
  %6525 = vmatmul.bf16.gmra.mxu0 %v6461
  %v6526 = vpop.f32.mrf.mxu0
  %v6527 = vadd.f32 0.0, %v6526
  %v6528 = vpop.f32.mrf.mxu0
  %v6529 = vadd.f32 0.0, %v6528
  %6530 = vmatmul.bf16.gmra.mxu0 %v6464
  %v6531 = vpop.f32.mrf.mxu0
  %v6532 = vadd.f32 0.0, %v6531
  %v6533 = vpop.f32.mrf.mxu0
  %v6534 = vadd.f32 0.0, %v6533
  %6535 = vmatmul.bf16.gmra.mxu0 %v6467
  %v6536 = vpop.f32.mrf.mxu0
  %v6537 = vadd.f32 0.0, %v6536
  %v6538 = vpop.f32.mrf.mxu0
  %v6539 = vadd.f32 0.0, %v6538
  %6540 = vmatmul.bf16.gmra.mxu0 %v6470
  %v6541 = vpop.f32.mrf.mxu0
  %v6542 = vadd.f32 0.0, %v6541
  %v6543 = vpop.f32.mrf.mxu0
  %v6544 = vadd.f32 0.0, %v6543
  %6545 = vmatmul.bf16.gmra.mxu0 %v6473
  %v6546 = vpop.f32.mrf.mxu0
  %v6547 = vadd.f32 0.0, %v6546
  %v6548 = vpop.f32.mrf.mxu0
  %v6549 = vadd.f32 0.0, %v6548
  %6550 = vmatmul.bf16.gmra.mxu0 %v6476
  %v6551 = vpop.f32.mrf.mxu0
  %v6552 = vadd.f32 0.0, %v6551
  %v6553 = vpop.f32.mrf.mxu0
  %v6554 = vadd.f32 0.0, %v6553
  %6555 = vmatmul.bf16.gmra.mxu0 %v6479
  %v6556 = vpop.f32.mrf.mxu0
  %v6557 = vadd.f32 0.0, %v6556
  %v6558 = vpop.f32.mrf.mxu0
  %v6559 = vadd.f32 0.0, %v6558
  %6560 = vmatmul.bf16.gmra.mxu0 %v6482
  %v6561 = vpop.f32.mrf.mxu0
  %v6562 = vadd.f32 0.0, %v6561
  %v6563 = vpop.f32.mrf.mxu0
  %v6564 = vadd.f32 0.0, %v6563
  %6565 = vmatmul.bf16.gmra.mxu0 %v6485
  %v6566 = vpop.f32.mrf.mxu0
  %v6567 = vadd.f32 0.0, %v6566
  %v6568 = vpop.f32.mrf.mxu0
  %v6569 = vadd.f32 0.0, %v6568
  %6570 = vmatmul.bf16.gmra.mxu0 %v6488
  %v6571 = vpop.f32.mrf.mxu0
  %v6572 = vadd.f32 0.0, %v6571
  %v6573 = vpop.f32.mrf.mxu0
  %v6574 = vadd.f32 0.0, %v6573
  %6575 = vmatmul.bf16.gmra.mxu0 %v6491
  %v6576 = vpop.f32.mrf.mxu0
  %v6577 = vadd.f32 0.0, %v6576
  %v6578 = vpop.f32.mrf.mxu0
  %v6579 = vadd.f32 0.0, %v6578
  %6580 = vmatmul.bf16.gmra.mxu0 %v6494
  %v6581 = vpop.f32.mrf.mxu0
  %v6582 = vadd.f32 0.0, %v6581
  %v6583 = vpop.f32.mrf.mxu0
  %v6584 = vadd.f32 0.0, %v6583
  %6585 = vmatmul.bf16.gmra.mxu0 %v6497
  %v6586 = vpop.f32.mrf.mxu0
  %v6587 = vadd.f32 0.0, %v6586
  %v6588 = vpop.f32.mrf.mxu0
  %v6589 = vadd.f32 0.0, %v6588
  %6590 = vmatmul.bf16.gmra.mxu0 %v6500
  %v6591 = vpop.f32.mrf.mxu0
  %v6592 = vadd.f32 0.0, %v6591
  %v6593 = vpop.f32.mrf.mxu0
  %v6594 = vadd.f32 0.0, %v6593
  %6595 = vmatmul.bf16.gmra.mxu0 %v6503
  %v6596 = vpop.f32.mrf.mxu0
  %v6597 = vadd.f32 0.0, %v6596
  %v6598 = vpop.f32.mrf.mxu0
  %v6599 = vadd.f32 0.0, %v6598
  %6600 = vdwg.mxu0
  %v6633 = vunpack.c.l.b16 %v6297
  %v6634 = vunpack.c.l.b16 %v6298
  %v6635 = vunpack.c.l.b16 %v6299
  %v6636 = vunpack.c.l.b16 %v6300
  %v6637 = vunpack.c.l.b16 %v6301
  %v6638 = vunpack.c.l.b16 %v6302
  %v6639 = vunpack.c.l.b16 %v6303
  %v6640 = vunpack.c.l.b16 %v6304
  %v6641 = vunpack.c.l.b16 %v6305
  %v6642 = vunpack.c.l.b16 %v6306
  %v6643 = vunpack.c.l.b16 %v6307
  %v6644 = vunpack.c.l.b16 %v6308
  %v6645 = vunpack.c.l.b16 %v6309
  %v6646 = vunpack.c.l.b16 %v6310
  %v6647 = vunpack.c.l.b16 %v6311
  %v6648 = vunpack.c.l.b16 %v6312
  %v6649 = vunpack.c.l.b16 %v6313
  %v6650 = vunpack.c.l.b16 %v6314
  %v6651 = vunpack.c.l.b16 %v6315
  %v6652 = vunpack.c.l.b16 %v6316
  %v6653 = vunpack.c.l.b16 %v6317
  %v6654 = vunpack.c.l.b16 %v6318
  %v6655 = vunpack.c.l.b16 %v6319
  %v6656 = vunpack.c.l.b16 %v6320
  %v6657 = vunpack.c.l.b16 %v6321
  %v6658 = vunpack.c.l.b16 %v6322
  %v6659 = vunpack.c.l.b16 %v6323
  %v6660 = vunpack.c.l.b16 %v6324
  %v6661 = vunpack.c.l.b16 %v6325
  %v6662 = vunpack.c.l.b16 %v6326
  %v6663 = vunpack.c.l.b16 %v6327
  %v6664 = vunpack.c.l.b16 %v6328
  %v6665 = vpack.c.b16 %v6634, %v6633
  %v6666 = vpack.c.b16 %v6636, %v6635
  %v6667 = vpack.c.b16 %v6638, %v6637
  %v6668 = vpack.c.b16 %v6640, %v6639
  %v6669 = vpack.c.b16 %v6642, %v6641
  %v6670 = vpack.c.b16 %v6644, %v6643
  %v6671 = vpack.c.b16 %v6646, %v6645
  %v6672 = vpack.c.b16 %v6648, %v6647
  %v6673 = vpack.c.b16 %v6650, %v6649
  %v6674 = vpack.c.b16 %v6652, %v6651
  %v6675 = vpack.c.b16 %v6654, %v6653
  %v6676 = vpack.c.b16 %v6656, %v6655
  %v6677 = vpack.c.b16 %v6658, %v6657
  %v6678 = vpack.c.b16 %v6660, %v6659
  %v6679 = vpack.c.b16 %v6662, %v6661
  %v6680 = vpack.c.b16 %v6664, %v6663
  %6697 = vmatpush.bf16.msra.mxu0 %v6672
  %6698 = vmatpush.bf16.msra.mxu0 %v6671
  %6699 = vmatpush.bf16.msra.mxu0 %v6670
  %6700 = vmatpush.bf16.msra.mxu0 %v6669
  %6701 = vmatpush.bf16.msra.mxu0 %v6668
  %6702 = vmatpush.bf16.msra.mxu0 %v6667
  %6703 = vmatpush.bf16.msra.mxu0 %v6666
  %6704 = vmatpush.bf16.msra.mxu0 %v6665
  %6705 = vmatmul.bf16.gmra.mxu0 %v6333
  %v6706 = vpop.f32.mrf.mxu0
  %v6707 = vadd.f32 %v6522, %v6706
  %v6708 = vpop.f32.mrf.mxu0
  %v6709 = vadd.f32 %v6524, %v6708
  %6710 = vmatmul.bf16.gmra.mxu0 %v6335
  %v6711 = vpop.f32.mrf.mxu0
  %v6712 = vadd.f32 %v6527, %v6711
  %v6713 = vpop.f32.mrf.mxu0
  %v6714 = vadd.f32 %v6529, %v6713
  %6715 = vmatmul.bf16.gmra.mxu0 %v6337
  %v6716 = vpop.f32.mrf.mxu0
  %v6717 = vadd.f32 %v6532, %v6716
  %v6718 = vpop.f32.mrf.mxu0
  %v6719 = vadd.f32 %v6534, %v6718
  %6720 = vmatmul.bf16.gmra.mxu0 %v6339
  %v6721 = vpop.f32.mrf.mxu0
  %v6722 = vadd.f32 %v6537, %v6721
  %v6723 = vpop.f32.mrf.mxu0
  %v6724 = vadd.f32 %v6539, %v6723
  %6725 = vmatmul.bf16.gmra.mxu0 %v6341
  %v6726 = vpop.f32.mrf.mxu0
  %v6727 = vadd.f32 %v6542, %v6726
  %v6728 = vpop.f32.mrf.mxu0
  %v6729 = vadd.f32 %v6544, %v6728
  %6730 = vmatmul.bf16.gmra.mxu0 %v6343
  %v6731 = vpop.f32.mrf.mxu0
  %v6732 = vadd.f32 %v6547, %v6731
  %v6733 = vpop.f32.mrf.mxu0
  %v6734 = vadd.f32 %v6549, %v6733
  %6735 = vmatmul.bf16.gmra.mxu0 %v6345
  %v6736 = vpop.f32.mrf.mxu0
  %v6737 = vadd.f32 %v6552, %v6736
  %v6738 = vpop.f32.mrf.mxu0
  %v6739 = vadd.f32 %v6554, %v6738
  %6740 = vmatmul.bf16.gmra.mxu0 %v6347
  %v6741 = vpop.f32.mrf.mxu0
  %v6742 = vadd.f32 %v6557, %v6741
  %v6743 = vpop.f32.mrf.mxu0
  %v6744 = vadd.f32 %v6559, %v6743
  %6745 = vmatmul.bf16.gmra.mxu0 %v6349
  %v6746 = vpop.f32.mrf.mxu0
  %v6747 = vadd.f32 %v6562, %v6746
  %v6748 = vpop.f32.mrf.mxu0
  %v6749 = vadd.f32 %v6564, %v6748
  %6750 = vmatmul.bf16.gmra.mxu0 %v6351
  %v6751 = vpop.f32.mrf.mxu0
  %v6752 = vadd.f32 %v6567, %v6751
  %v6753 = vpop.f32.mrf.mxu0
  %v6754 = vadd.f32 %v6569, %v6753
  %6755 = vmatmul.bf16.gmra.mxu0 %v6353
  %v6756 = vpop.f32.mrf.mxu0
  %v6757 = vadd.f32 %v6572, %v6756
  %v6758 = vpop.f32.mrf.mxu0
  %v6759 = vadd.f32 %v6574, %v6758
  %6760 = vmatmul.bf16.gmra.mxu0 %v6355
  %v6761 = vpop.f32.mrf.mxu0
  %v6762 = vadd.f32 %v6577, %v6761
  %v6763 = vpop.f32.mrf.mxu0
  %v6764 = vadd.f32 %v6579, %v6763
  %6765 = vmatmul.bf16.gmra.mxu0 %v6357
  %v6766 = vpop.f32.mrf.mxu0
  %v6767 = vadd.f32 %v6582, %v6766
  %v6768 = vpop.f32.mrf.mxu0
  %v6769 = vadd.f32 %v6584, %v6768
  %6770 = vmatmul.bf16.gmra.mxu0 %v6359
  %v6771 = vpop.f32.mrf.mxu0
  %v6772 = vadd.f32 %v6587, %v6771
  %v6773 = vpop.f32.mrf.mxu0
  %v6774 = vadd.f32 %v6589, %v6773
  %6775 = vmatmul.bf16.gmra.mxu0 %v6361
  %v6776 = vpop.f32.mrf.mxu0
  %v6777 = vadd.f32 %v6592, %v6776
  %v6778 = vpop.f32.mrf.mxu0
  %v6779 = vadd.f32 %v6594, %v6778
  %6780 = vmatmul.bf16.gmra.mxu0 %v6363
  %v6781 = vpop.f32.mrf.mxu0
  %v6782 = vadd.f32 %v6597, %v6781
  %v6783 = vpop.f32.mrf.mxu0
  %v6784 = vadd.f32 %v6599, %v6783
  %6785 = vdwg.mxu0
  %6786 = vmatpush.bf16.msra.mxu0 %v6680
  %6787 = vmatpush.bf16.msra.mxu0 %v6679
  %6788 = vmatpush.bf16.msra.mxu0 %v6678
  %6789 = vmatpush.bf16.msra.mxu0 %v6677
  %6790 = vmatpush.bf16.msra.mxu0 %v6676
  %6791 = vmatpush.bf16.msra.mxu0 %v6675
  %6792 = vmatpush.bf16.msra.mxu0 %v6674
  %6793 = vmatpush.bf16.msra.mxu0 %v6673
  %6794 = vmatmul.bf16.gmra.mxu0 %v6334
  %v6795 = vpop.f32.mrf.mxu0
  %v6796 = vadd.f32 %v6707, %v6795
  %v6797 = vpop.f32.mrf.mxu0
  %v6798 = vadd.f32 %v6709, %v6797
  %6799 = vmatmul.bf16.gmra.mxu0 %v6336
  %v6800 = vpop.f32.mrf.mxu0
  %v6801 = vadd.f32 %v6712, %v6800
  %v6802 = vpop.f32.mrf.mxu0
  %v6803 = vadd.f32 %v6714, %v6802
  %6804 = vmatmul.bf16.gmra.mxu0 %v6338
  %v6805 = vpop.f32.mrf.mxu0
  %v6806 = vadd.f32 %v6717, %v6805
  %v6807 = vpop.f32.mrf.mxu0
  %v6808 = vadd.f32 %v6719, %v6807
  %6809 = vmatmul.bf16.gmra.mxu0 %v6340
  %v6810 = vpop.f32.mrf.mxu0
  %v6811 = vadd.f32 %v6722, %v6810
  %v6812 = vpop.f32.mrf.mxu0
  %v6813 = vadd.f32 %v6724, %v6812
  %6814 = vmatmul.bf16.gmra.mxu0 %v6342
  %v6815 = vpop.f32.mrf.mxu0
  %v6816 = vadd.f32 %v6727, %v6815
  %v6817 = vpop.f32.mrf.mxu0
  %v6818 = vadd.f32 %v6729, %v6817
  %6819 = vmatmul.bf16.gmra.mxu0 %v6344
  %v6820 = vpop.f32.mrf.mxu0
  %v6821 = vadd.f32 %v6732, %v6820
  %v6822 = vpop.f32.mrf.mxu0
  %v6823 = vadd.f32 %v6734, %v6822
  %6824 = vmatmul.bf16.gmra.mxu0 %v6346
  %v6825 = vpop.f32.mrf.mxu0
  %v6826 = vadd.f32 %v6737, %v6825
  %v6827 = vpop.f32.mrf.mxu0
  %v6828 = vadd.f32 %v6739, %v6827
  %6829 = vmatmul.bf16.gmra.mxu0 %v6348
  %v6830 = vpop.f32.mrf.mxu0
  %v6831 = vadd.f32 %v6742, %v6830
  %v6832 = vpop.f32.mrf.mxu0
  %v6833 = vadd.f32 %v6744, %v6832
  %6834 = vmatmul.bf16.gmra.mxu0 %v6350
  %v6835 = vpop.f32.mrf.mxu0
  %v6836 = vadd.f32 %v6747, %v6835
  %v6837 = vpop.f32.mrf.mxu0
  %v6838 = vadd.f32 %v6749, %v6837
  %6839 = vmatmul.bf16.gmra.mxu0 %v6352
  %v6840 = vpop.f32.mrf.mxu0
  %v6841 = vadd.f32 %v6752, %v6840
  %v6842 = vpop.f32.mrf.mxu0
  %v6843 = vadd.f32 %v6754, %v6842
  %6844 = vmatmul.bf16.gmra.mxu0 %v6354
  %v6845 = vpop.f32.mrf.mxu0
  %v6846 = vadd.f32 %v6757, %v6845
  %v6847 = vpop.f32.mrf.mxu0
  %v6848 = vadd.f32 %v6759, %v6847
  %6849 = vmatmul.bf16.gmra.mxu0 %v6356
  %v6850 = vpop.f32.mrf.mxu0
  %v6851 = vadd.f32 %v6762, %v6850
  %v6852 = vpop.f32.mrf.mxu0
  %v6853 = vadd.f32 %v6764, %v6852
  %6854 = vmatmul.bf16.gmra.mxu0 %v6358
  %v6855 = vpop.f32.mrf.mxu0
  %v6856 = vadd.f32 %v6767, %v6855
  %v6857 = vpop.f32.mrf.mxu0
  %v6858 = vadd.f32 %v6769, %v6857
  %6859 = vmatmul.bf16.gmra.mxu0 %v6360
  %v6860 = vpop.f32.mrf.mxu0
  %v6861 = vadd.f32 %v6772, %v6860
  %v6862 = vpop.f32.mrf.mxu0
  %v6863 = vadd.f32 %v6774, %v6862
  %6864 = vmatmul.bf16.gmra.mxu0 %v6362
  %v6865 = vpop.f32.mrf.mxu0
  %v6866 = vadd.f32 %v6777, %v6865
  %v6867 = vpop.f32.mrf.mxu0
  %v6868 = vadd.f32 %v6779, %v6867
  %6869 = vmatmul.bf16.gmra.mxu0 %v6364
  %v6870 = vpop.f32.mrf.mxu0
  %v6871 = vadd.f32 %v6782, %v6870
  %v6872 = vpop.f32.mrf.mxu0
  %v6873 = vadd.f32 %v6784, %v6872
  %6874 = vdwg.mxu0
  %v6875 = vld [vmem:[%s25] sm:$0x1]
  %v6877 = vperm.slane %v6875, 0
  %v6879 = vadd.f32 %v6796, %v6877
  %v6880 = vadd.f32 %v6798, %v6877
  %v6881 = vadd.f32 %v6801, %v6877
  %v6882 = vadd.f32 %v6803, %v6877
  %v6883 = vadd.f32 %v6806, %v6877
  %v6884 = vadd.f32 %v6808, %v6877
  %v6885 = vadd.f32 %v6811, %v6877
  %v6886 = vadd.f32 %v6813, %v6877
  %v6887 = vadd.f32 %v6816, %v6877
  %v6888 = vadd.f32 %v6818, %v6877
  %v6889 = vadd.f32 %v6821, %v6877
  %v6890 = vadd.f32 %v6823, %v6877
  %v6891 = vadd.f32 %v6826, %v6877
  %v6892 = vadd.f32 %v6828, %v6877
  %v6893 = vadd.f32 %v6831, %v6877
  %v6894 = vadd.f32 %v6833, %v6877
  %v6895 = vadd.f32 %v6836, %v6877
  %v6896 = vadd.f32 %v6838, %v6877
  %v6897 = vadd.f32 %v6841, %v6877
  %v6898 = vadd.f32 %v6843, %v6877
  %v6899 = vadd.f32 %v6846, %v6877
  %v6900 = vadd.f32 %v6848, %v6877
  %v6901 = vadd.f32 %v6851, %v6877
  %v6902 = vadd.f32 %v6853, %v6877
  %v6903 = vadd.f32 %v6856, %v6877
  %v6904 = vadd.f32 %v6858, %v6877
  %v6905 = vadd.f32 %v6861, %v6877
  %v6906 = vadd.f32 %v6863, %v6877
  %v6907 = vadd.f32 %v6866, %v6877
  %v6908 = vadd.f32 %v6868, %v6877
  %v6909 = vadd.f32 %v6871, %v6877
  %v6910 = vadd.f32 %v6873, %v6877
  %v6911 = vmax.f32 %v6879, 0.0
  %v6912 = vmax.f32 %v6880, 0.0
  %v6913 = vmax.f32 %v6881, 0.0
  %v6914 = vmax.f32 %v6882, 0.0
  %v6915 = vmax.f32 %v6883, 0.0
  %v6916 = vmax.f32 %v6884, 0.0
  %v6917 = vmax.f32 %v6885, 0.0
  %v6918 = vmax.f32 %v6886, 0.0
  %v6919 = vmax.f32 %v6887, 0.0
  %v6920 = vmax.f32 %v6888, 0.0
  %v6921 = vmax.f32 %v6889, 0.0
  %v6922 = vmax.f32 %v6890, 0.0
  %v6923 = vmax.f32 %v6891, 0.0
  %v6924 = vmax.f32 %v6892, 0.0
  %v6925 = vmax.f32 %v6893, 0.0
  %v6926 = vmax.f32 %v6894, 0.0
  %v6927 = vmax.f32 %v6895, 0.0
  %v6928 = vmax.f32 %v6896, 0.0
  %v6929 = vmax.f32 %v6897, 0.0
  %v6930 = vmax.f32 %v6898, 0.0
  %v6931 = vmax.f32 %v6899, 0.0
  %v6932 = vmax.f32 %v6900, 0.0
  %v6933 = vmax.f32 %v6901, 0.0
  %v6934 = vmax.f32 %v6902, 0.0
  %v6935 = vmax.f32 %v6903, 0.0
  %v6936 = vmax.f32 %v6904, 0.0
  %v6937 = vmax.f32 %v6905, 0.0
  %v6938 = vmax.f32 %v6906, 0.0
  %v6939 = vmax.f32 %v6907, 0.0
  %v6940 = vmax.f32 %v6908, 0.0
  %v6941 = vmax.f32 %v6909, 0.0
  %v6942 = vmax.f32 %v6910, 0.0
  %v6943 = vld [vmem:[%s26] sm:$0xf]
  %v6944 = vld [vmem:[%s26 + $0x4] sm:$0xf]
  %v6945 = vld [vmem:[%s26 + $0x8] sm:$0xf]
  %v6946 = vld [vmem:[%s26 + $0xc] sm:$0xf]
  %v6947 = vld [vmem:[%s26 + $0x10] sm:$0xf]
  %v6948 = vld [vmem:[%s26 + $0x14] sm:$0xf]
  %v6949 = vld [vmem:[%s26 + $0x18] sm:$0xf]
  %v6950 = vld [vmem:[%s26 + $0x1c] sm:$0xf]
  %v6951 = vld [vmem:[%s26 + $0x20] sm:$0xf]
  %v6952 = vld [vmem:[%s26 + $0x24] sm:$0xf]
  %v6953 = vld [vmem:[%s26 + $0x28] sm:$0xf]
  %v6954 = vld [vmem:[%s26 + $0x2c] sm:$0xf]
  %v6955 = vld [vmem:[%s26 + $0x30] sm:$0xf]
  %v6956 = vld [vmem:[%s26 + $0x34] sm:$0xf]
  %v6957 = vld [vmem:[%s26 + $0x38] sm:$0xf]
  %v6958 = vld [vmem:[%s26 + $0x3c] sm:$0xf]
  %v6959 = vpack.c.bf16 %v6912, %v6911
  %v6960 = vpack.c.bf16 %v6914, %v6913
  %v6961 = vpack.c.bf16 %v6916, %v6915
  %v6962 = vpack.c.bf16 %v6918, %v6917
  %v6963 = vpack.c.bf16 %v6920, %v6919
  %v6964 = vpack.c.bf16 %v6922, %v6921
  %v6965 = vpack.c.bf16 %v6924, %v6923
  %v6966 = vpack.c.bf16 %v6926, %v6925
  %v6967 = vpack.c.bf16 %v6928, %v6927
  %v6968 = vpack.c.bf16 %v6930, %v6929
  %v6969 = vpack.c.bf16 %v6932, %v6931
  %v6970 = vpack.c.bf16 %v6934, %v6933
  %v6971 = vpack.c.bf16 %v6936, %v6935
  %v6972 = vpack.c.bf16 %v6938, %v6937
  %v6973 = vpack.c.bf16 %v6940, %v6939
  %v6974 = vpack.c.bf16 %v6942, %v6941
  %v6975 = vld [vmem:[%s27] sm:$0x1]
  %v6977 = vperm.slane %v6975, 0
  %v6995 = vunpack.c.l.b16 %v6943
  %v6996 = vunpack.c.l.b16 %v6944
  %v6997 = vunpack.c.l.b16 %v6945
  %v6998 = vunpack.c.l.b16 %v6946
  %v6999 = vunpack.c.l.b16 %v6947
  %v7000 = vunpack.c.l.b16 %v6948
  %v7001 = vunpack.c.l.b16 %v6949
  %v7002 = vunpack.c.l.b16 %v6950
  %v7003 = vunpack.c.l.b16 %v6951
  %v7004 = vunpack.c.l.b16 %v6952
  %v7005 = vunpack.c.l.b16 %v6953
  %v7006 = vunpack.c.l.b16 %v6954
  %v7007 = vunpack.c.l.b16 %v6955
  %v7008 = vunpack.c.l.b16 %v6956
  %v7009 = vunpack.c.l.b16 %v6957
  %v7010 = vunpack.c.l.b16 %v6958
  %v7011 = vpack.c.b16 %v6996, %v6995
  %v7012 = vpack.c.b16 %v6998, %v6997
  %v7013 = vpack.c.b16 %v7000, %v6999
  %v7014 = vpack.c.b16 %v7002, %v7001
  %v7015 = vpack.c.b16 %v7004, %v7003
  %v7016 = vpack.c.b16 %v7006, %v7005
  %v7017 = vpack.c.b16 %v7008, %v7007
  %v7018 = vpack.c.b16 %v7010, %v7009
  %7027 = vmatpush.bf16.msra.mxu0 %v7018
  %7028 = vmatpush.bf16.msra.mxu0 %v7017
  %7029 = vmatpush.bf16.msra.mxu0 %v7016
  %7030 = vmatpush.bf16.msra.mxu0 %v7015
  %7031 = vmatpush.bf16.msra.mxu0 %v7014
  %7032 = vmatpush.bf16.msra.mxu0 %v7013
  %7033 = vmatpush.bf16.msra.mxu0 %v7012
  %7034 = vmatpush.bf16.msra.mxu0 %v7011
  %7035 = vmatmul.bf16.gmra.mxu0 %v6959
  %v7036 = vpop.f32.mrf.mxu0
  %v7037 = vadd.f32 %v6977, %v7036
  %v7038 = vpop.f32.mrf.mxu0
  %v7039 = vadd.f32 %v6977, %v7038
  %7040 = vmatmul.bf16.gmra.mxu0 %v6960
  %v7041 = vpop.f32.mrf.mxu0
  %v7042 = vadd.f32 %v6977, %v7041
  %v7043 = vpop.f32.mrf.mxu0
  %v7044 = vadd.f32 %v6977, %v7043
  %7045 = vmatmul.bf16.gmra.mxu0 %v6961
  %v7046 = vpop.f32.mrf.mxu0
  %v7047 = vadd.f32 %v6977, %v7046
  %v7048 = vpop.f32.mrf.mxu0
  %v7049 = vadd.f32 %v6977, %v7048
  %7050 = vmatmul.bf16.gmra.mxu0 %v6962
  %v7051 = vpop.f32.mrf.mxu0
  %v7052 = vadd.f32 %v6977, %v7051
  %v7053 = vpop.f32.mrf.mxu0
  %v7054 = vadd.f32 %v6977, %v7053
  %7055 = vmatmul.bf16.gmra.mxu0 %v6963
  %v7056 = vpop.f32.mrf.mxu0
  %v7057 = vadd.f32 %v6977, %v7056
  %v7058 = vpop.f32.mrf.mxu0
  %v7059 = vadd.f32 %v6977, %v7058
  %7060 = vmatmul.bf16.gmra.mxu0 %v6964
  %v7061 = vpop.f32.mrf.mxu0
  %v7062 = vadd.f32 %v6977, %v7061
  %v7063 = vpop.f32.mrf.mxu0
  %v7064 = vadd.f32 %v6977, %v7063
  %7065 = vmatmul.bf16.gmra.mxu0 %v6965
  %v7066 = vpop.f32.mrf.mxu0
  %v7067 = vadd.f32 %v6977, %v7066
  %v7068 = vpop.f32.mrf.mxu0
  %v7069 = vadd.f32 %v6977, %v7068
  %7070 = vmatmul.bf16.gmra.mxu0 %v6966
  %v7071 = vpop.f32.mrf.mxu0
  %v7072 = vadd.f32 %v6977, %v7071
  %v7073 = vpop.f32.mrf.mxu0
  %v7074 = vadd.f32 %v6977, %v7073
  %7075 = vmatmul.bf16.gmra.mxu0 %v6967
  %v7076 = vpop.f32.mrf.mxu0
  %v7077 = vadd.f32 %v6977, %v7076
  %v7078 = vpop.f32.mrf.mxu0
  %v7079 = vadd.f32 %v6977, %v7078
  %7080 = vmatmul.bf16.gmra.mxu0 %v6968
  %v7081 = vpop.f32.mrf.mxu0
  %v7082 = vadd.f32 %v6977, %v7081
  %v7083 = vpop.f32.mrf.mxu0
  %v7084 = vadd.f32 %v6977, %v7083
  %7085 = vmatmul.bf16.gmra.mxu0 %v6969
  %v7086 = vpop.f32.mrf.mxu0
  %v7087 = vadd.f32 %v6977, %v7086
  %v7088 = vpop.f32.mrf.mxu0
  %v7089 = vadd.f32 %v6977, %v7088
  %7090 = vmatmul.bf16.gmra.mxu0 %v6970
  %v7091 = vpop.f32.mrf.mxu0
  %v7092 = vadd.f32 %v6977, %v7091
  %v7093 = vpop.f32.mrf.mxu0
  %v7094 = vadd.f32 %v6977, %v7093
  %7095 = vmatmul.bf16.gmra.mxu0 %v6971
  %v7096 = vpop.f32.mrf.mxu0
  %v7097 = vadd.f32 %v6977, %v7096
  %v7098 = vpop.f32.mrf.mxu0
  %v7099 = vadd.f32 %v6977, %v7098
  %7100 = vmatmul.bf16.gmra.mxu0 %v6972
  %v7101 = vpop.f32.mrf.mxu0
  %v7102 = vadd.f32 %v6977, %v7101
  %v7103 = vpop.f32.mrf.mxu0
  %v7104 = vadd.f32 %v6977, %v7103
  %7105 = vmatmul.bf16.gmra.mxu0 %v6973
  %v7106 = vpop.f32.mrf.mxu0
  %v7107 = vadd.f32 %v6977, %v7106
  %v7108 = vpop.f32.mrf.mxu0
  %v7109 = vadd.f32 %v6977, %v7108
  %7110 = vmatmul.bf16.gmra.mxu0 %v6974
  %v7111 = vpop.f32.mrf.mxu0
  %v7112 = vadd.f32 %v6977, %v7111
  %v7113 = vpop.f32.mrf.mxu0
  %v7114 = vadd.f32 %v6977, %v7113
  %7115 = vdwg.mxu0
  %v7116 = vxor.u32 %v7037, 2147483648
  %v7117 = vxor.u32 %v7039, 2147483648
  %v7118 = vxor.u32 %v7042, 2147483648
  %v7119 = vxor.u32 %v7044, 2147483648
  %v7120 = vxor.u32 %v7047, 2147483648
  %v7121 = vxor.u32 %v7049, 2147483648
  %v7122 = vxor.u32 %v7052, 2147483648
  %v7123 = vxor.u32 %v7054, 2147483648
  %v7124 = vxor.u32 %v7057, 2147483648
  %v7125 = vxor.u32 %v7059, 2147483648
  %v7126 = vxor.u32 %v7062, 2147483648
  %v7127 = vxor.u32 %v7064, 2147483648
  %v7128 = vxor.u32 %v7067, 2147483648
  %v7129 = vxor.u32 %v7069, 2147483648
  %v7130 = vxor.u32 %v7072, 2147483648
  %v7131 = vxor.u32 %v7074, 2147483648
  %v7132 = vxor.u32 %v7077, 2147483648
  %v7133 = vxor.u32 %v7079, 2147483648
  %v7134 = vxor.u32 %v7082, 2147483648
  %v7135 = vxor.u32 %v7084, 2147483648
  %v7136 = vxor.u32 %v7087, 2147483648
  %v7137 = vxor.u32 %v7089, 2147483648
  %v7138 = vxor.u32 %v7092, 2147483648
  %v7139 = vxor.u32 %v7094, 2147483648
  %v7140 = vxor.u32 %v7097, 2147483648
  %v7141 = vxor.u32 %v7099, 2147483648
  %v7142 = vxor.u32 %v7102, 2147483648
  %v7143 = vxor.u32 %v7104, 2147483648
  %v7144 = vxor.u32 %v7107, 2147483648
  %v7145 = vxor.u32 %v7109, 2147483648
  %v7146 = vxor.u32 %v7112, 2147483648
  %v7147 = vxor.u32 %v7114, 2147483648
  %v7148 = vmul.f32 %v7116, 1.442695
  %v7149 = vpow.pop %v7148
  %v7150 = vmul.f32 %v7117, 1.442695
  %v7151 = vpow.pop %v7150
  %v7152 = vmul.f32 %v7118, 1.442695
  %v7153 = vpow.pop %v7152
  %v7154 = vmul.f32 %v7119, 1.442695
  %v7155 = vpow.pop %v7154
  %v7156 = vmul.f32 %v7120, 1.442695
  %v7157 = vpow.pop %v7156
  %v7158 = vmul.f32 %v7121, 1.442695
  %v7159 = vpow.pop %v7158
  %v7160 = vmul.f32 %v7122, 1.442695
  %v7161 = vpow.pop %v7160
  %v7162 = vmul.f32 %v7123, 1.442695
  %v7163 = vpow.pop %v7162
  %v7164 = vmul.f32 %v7124, 1.442695
  %v7165 = vpow.pop %v7164
  %v7166 = vmul.f32 %v7125, 1.442695
  %v7167 = vpow.pop %v7166
  %v7168 = vmul.f32 %v7126, 1.442695
  %v7169 = vpow.pop %v7168
  %v7170 = vmul.f32 %v7127, 1.442695
  %v7171 = vpow.pop %v7170
  %v7172 = vmul.f32 %v7128, 1.442695
  %v7173 = vpow.pop %v7172
  %v7174 = vmul.f32 %v7129, 1.442695
  %v7175 = vpow.pop %v7174
  %v7176 = vmul.f32 %v7130, 1.442695
  %v7177 = vpow.pop %v7176
  %v7178 = vmul.f32 %v7131, 1.442695
  %v7179 = vpow.pop %v7178
  %v7180 = vmul.f32 %v7132, 1.442695
  %v7181 = vpow.pop %v7180
  %v7182 = vmul.f32 %v7133, 1.442695
  %v7183 = vpow.pop %v7182
  %v7184 = vmul.f32 %v7134, 1.442695
  %v7185 = vpow.pop %v7184
  %v7186 = vmul.f32 %v7135, 1.442695
  %v7187 = vpow.pop %v7186
  %v7188 = vmul.f32 %v7136, 1.442695
  %v7189 = vpow.pop %v7188
  %v7190 = vmul.f32 %v7137, 1.442695
  %v7191 = vpow.pop %v7190
  %v7192 = vmul.f32 %v7138, 1.442695
  %v7193 = vpow.pop %v7192
  %v7194 = vmul.f32 %v7139, 1.442695
  %v7195 = vpow.pop %v7194
  %v7196 = vmul.f32 %v7140, 1.442695
  %v7197 = vpow.pop %v7196
  %v7198 = vmul.f32 %v7141, 1.442695
  %v7199 = vpow.pop %v7198
  %v7200 = vmul.f32 %v7142, 1.442695
  %v7201 = vpow.pop %v7200
  %v7202 = vmul.f32 %v7143, 1.442695
  %v7203 = vpow.pop %v7202
  %v7204 = vmul.f32 %v7144, 1.442695
  %v7205 = vpow.pop %v7204
  %v7206 = vmul.f32 %v7145, 1.442695
  %v7207 = vpow.pop %v7206
  %v7208 = vmul.f32 %v7146, 1.442695
  %v7209 = vpow.pop %v7208
  %v7210 = vmul.f32 %v7147, 1.442695
  %v7211 = vpow.pop %v7210
  %v7212 = vadd.f32 %v7149, 1.0
  %v7213 = vadd.f32 %v7151, 1.0
  %v7214 = vadd.f32 %v7153, 1.0
  %v7215 = vadd.f32 %v7155, 1.0
  %v7216 = vadd.f32 %v7157, 1.0
  %v7217 = vadd.f32 %v7159, 1.0
  %v7218 = vadd.f32 %v7161, 1.0
  %v7219 = vadd.f32 %v7163, 1.0
  %v7220 = vadd.f32 %v7165, 1.0
  %v7221 = vadd.f32 %v7167, 1.0
  %v7222 = vadd.f32 %v7169, 1.0
  %v7223 = vadd.f32 %v7171, 1.0
  %v7224 = vadd.f32 %v7173, 1.0
  %v7225 = vadd.f32 %v7175, 1.0
  %v7226 = vadd.f32 %v7177, 1.0
  %v7227 = vadd.f32 %v7179, 1.0
  %v7228 = vadd.f32 %v7181, 1.0
  %v7229 = vadd.f32 %v7183, 1.0
  %v7230 = vadd.f32 %v7185, 1.0
  %v7231 = vadd.f32 %v7187, 1.0
  %v7232 = vadd.f32 %v7189, 1.0
  %v7233 = vadd.f32 %v7191, 1.0
  %v7234 = vadd.f32 %v7193, 1.0
  %v7235 = vadd.f32 %v7195, 1.0
  %v7236 = vadd.f32 %v7197, 1.0
  %v7237 = vadd.f32 %v7199, 1.0
  %v7238 = vadd.f32 %v7201, 1.0
  %v7239 = vadd.f32 %v7203, 1.0
  %v7240 = vadd.f32 %v7205, 1.0
  %v7241 = vadd.f32 %v7207, 1.0
  %v7242 = vadd.f32 %v7209, 1.0
  %v7243 = vadd.f32 %v7211, 1.0
  %v7244 = vrcp.pop %v7212
  %v7245 = vmul.f32 %v7212, %v7244
  %v7246 = vsub.f32 1.0, %v7245
  %v7247 = vmul.f32 %v7244, %v7246
  %v7248 = vadd.f32 %v7244, %v7247
  %vm7249 = vweird.f32 %v7212
  %vm7250 = vweird.f32 %v7244
  %vm7251 = vmor %vm7249, %vm7250
  %v7252 = vsel %vm7251, %v7244, %v7248
  %v7253 = vand.u32 2147483647, %v7212
  %vm7254 = vcmp.eq.f32.partialorder %v7253, 8.507059e+37
  %v7255 = vand.u32 %v7212, 2147483648
  %v7256 = vor.u32 1.1754944e-38, %v7255
  %v7257 = vsel %vm7254, %v7256, %v7252
  %v7258 = vmul.f32 1.0, %v7257
  %v7259 = vrcp.pop %v7213
  %v7260 = vmul.f32 %v7213, %v7259
  %v7261 = vsub.f32 1.0, %v7260
  %v7262 = vmul.f32 %v7259, %v7261
  %v7263 = vadd.f32 %v7259, %v7262
  %vm7264 = vweird.f32 %v7213
  %vm7265 = vweird.f32 %v7259
  %vm7266 = vmor %vm7264, %vm7265
  %v7267 = vsel %vm7266, %v7259, %v7263
  %v7268 = vand.u32 2147483647, %v7213
  %vm7269 = vcmp.eq.f32.partialorder %v7268, 8.507059e+37
  %v7270 = vand.u32 %v7213, 2147483648
  %v7271 = vor.u32 1.1754944e-38, %v7270
  %v7272 = vsel %vm7269, %v7271, %v7267
  %v7273 = vmul.f32 1.0, %v7272
  %v7274 = vrcp.pop %v7214
  %v7275 = vmul.f32 %v7214, %v7274
  %v7276 = vsub.f32 1.0, %v7275
  %v7277 = vmul.f32 %v7274, %v7276
  %v7278 = vadd.f32 %v7274, %v7277
  %vm7279 = vweird.f32 %v7214
  %vm7280 = vweird.f32 %v7274
  %vm7281 = vmor %vm7279, %vm7280
  %v7282 = vsel %vm7281, %v7274, %v7278
  %v7283 = vand.u32 2147483647, %v7214
  %vm7284 = vcmp.eq.f32.partialorder %v7283, 8.507059e+37
  %v7285 = vand.u32 %v7214, 2147483648
  %v7286 = vor.u32 1.1754944e-38, %v7285
  %v7287 = vsel %vm7284, %v7286, %v7282
  %v7288 = vmul.f32 1.0, %v7287
  %v7289 = vrcp.pop %v7215
  %v7290 = vmul.f32 %v7215, %v7289
  %v7291 = vsub.f32 1.0, %v7290
  %v7292 = vmul.f32 %v7289, %v7291
  %v7293 = vadd.f32 %v7289, %v7292
  %vm7294 = vweird.f32 %v7215
  %vm7295 = vweird.f32 %v7289
  %vm7296 = vmor %vm7294, %vm7295
  %v7297 = vsel %vm7296, %v7289, %v7293
  %v7298 = vand.u32 2147483647, %v7215
  %vm7299 = vcmp.eq.f32.partialorder %v7298, 8.507059e+37
  %v7300 = vand.u32 %v7215, 2147483648
  %v7301 = vor.u32 1.1754944e-38, %v7300
  %v7302 = vsel %vm7299, %v7301, %v7297
  %v7303 = vmul.f32 1.0, %v7302
  %v7304 = vrcp.pop %v7216
  %v7305 = vmul.f32 %v7216, %v7304
  %v7306 = vsub.f32 1.0, %v7305
  %v7307 = vmul.f32 %v7304, %v7306
  %v7308 = vadd.f32 %v7304, %v7307
  %vm7309 = vweird.f32 %v7216
  %vm7310 = vweird.f32 %v7304
  %vm7311 = vmor %vm7309, %vm7310
  %v7312 = vsel %vm7311, %v7304, %v7308
  %v7313 = vand.u32 2147483647, %v7216
  %vm7314 = vcmp.eq.f32.partialorder %v7313, 8.507059e+37
  %v7315 = vand.u32 %v7216, 2147483648
  %v7316 = vor.u32 1.1754944e-38, %v7315
  %v7317 = vsel %vm7314, %v7316, %v7312
  %v7318 = vmul.f32 1.0, %v7317
  %v7319 = vrcp.pop %v7217
  %v7320 = vmul.f32 %v7217, %v7319
  %v7321 = vsub.f32 1.0, %v7320
  %v7322 = vmul.f32 %v7319, %v7321
  %v7323 = vadd.f32 %v7319, %v7322
  %vm7324 = vweird.f32 %v7217
  %vm7325 = vweird.f32 %v7319
  %vm7326 = vmor %vm7324, %vm7325
  %v7327 = vsel %vm7326, %v7319, %v7323
  %v7328 = vand.u32 2147483647, %v7217
  %vm7329 = vcmp.eq.f32.partialorder %v7328, 8.507059e+37
  %v7330 = vand.u32 %v7217, 2147483648
  %v7331 = vor.u32 1.1754944e-38, %v7330
  %v7332 = vsel %vm7329, %v7331, %v7327
  %v7333 = vmul.f32 1.0, %v7332
  %v7334 = vrcp.pop %v7218
  %v7335 = vmul.f32 %v7218, %v7334
  %v7336 = vsub.f32 1.0, %v7335
  %v7337 = vmul.f32 %v7334, %v7336
  %v7338 = vadd.f32 %v7334, %v7337
  %vm7339 = vweird.f32 %v7218
  %vm7340 = vweird.f32 %v7334
  %vm7341 = vmor %vm7339, %vm7340
  %v7342 = vsel %vm7341, %v7334, %v7338
  %v7343 = vand.u32 2147483647, %v7218
  %vm7344 = vcmp.eq.f32.partialorder %v7343, 8.507059e+37
  %v7345 = vand.u32 %v7218, 2147483648
  %v7346 = vor.u32 1.1754944e-38, %v7345
  %v7347 = vsel %vm7344, %v7346, %v7342
  %v7348 = vmul.f32 1.0, %v7347
  %v7349 = vrcp.pop %v7219
  %v7350 = vmul.f32 %v7219, %v7349
  %v7351 = vsub.f32 1.0, %v7350
  %v7352 = vmul.f32 %v7349, %v7351
  %v7353 = vadd.f32 %v7349, %v7352
  %vm7354 = vweird.f32 %v7219
  %vm7355 = vweird.f32 %v7349
  %vm7356 = vmor %vm7354, %vm7355
  %v7357 = vsel %vm7356, %v7349, %v7353
  %v7358 = vand.u32 2147483647, %v7219
  %vm7359 = vcmp.eq.f32.partialorder %v7358, 8.507059e+37
  %v7360 = vand.u32 %v7219, 2147483648
  %v7361 = vor.u32 1.1754944e-38, %v7360
  %v7362 = vsel %vm7359, %v7361, %v7357
  %v7363 = vmul.f32 1.0, %v7362
  %v7364 = vrcp.pop %v7220
  %v7365 = vmul.f32 %v7220, %v7364
  %v7366 = vsub.f32 1.0, %v7365
  %v7367 = vmul.f32 %v7364, %v7366
  %v7368 = vadd.f32 %v7364, %v7367
  %vm7369 = vweird.f32 %v7220
  %vm7370 = vweird.f32 %v7364
  %vm7371 = vmor %vm7369, %vm7370
  %v7372 = vsel %vm7371, %v7364, %v7368
  %v7373 = vand.u32 2147483647, %v7220
  %vm7374 = vcmp.eq.f32.partialorder %v7373, 8.507059e+37
  %v7375 = vand.u32 %v7220, 2147483648
  %v7376 = vor.u32 1.1754944e-38, %v7375
  %v7377 = vsel %vm7374, %v7376, %v7372
  %v7378 = vmul.f32 1.0, %v7377
  %v7379 = vrcp.pop %v7221
  %v7380 = vmul.f32 %v7221, %v7379
  %v7381 = vsub.f32 1.0, %v7380
  %v7382 = vmul.f32 %v7379, %v7381
  %v7383 = vadd.f32 %v7379, %v7382
  %vm7384 = vweird.f32 %v7221
  %vm7385 = vweird.f32 %v7379
  %vm7386 = vmor %vm7384, %vm7385
  %v7387 = vsel %vm7386, %v7379, %v7383
  %v7388 = vand.u32 2147483647, %v7221
  %vm7389 = vcmp.eq.f32.partialorder %v7388, 8.507059e+37
  %v7390 = vand.u32 %v7221, 2147483648
  %v7391 = vor.u32 1.1754944e-38, %v7390
  %v7392 = vsel %vm7389, %v7391, %v7387
  %v7393 = vmul.f32 1.0, %v7392
  %v7394 = vrcp.pop %v7222
  %v7395 = vmul.f32 %v7222, %v7394
  %v7396 = vsub.f32 1.0, %v7395
  %v7397 = vmul.f32 %v7394, %v7396
  %v7398 = vadd.f32 %v7394, %v7397
  %vm7399 = vweird.f32 %v7222
  %vm7400 = vweird.f32 %v7394
  %vm7401 = vmor %vm7399, %vm7400
  %v7402 = vsel %vm7401, %v7394, %v7398
  %v7403 = vand.u32 2147483647, %v7222
  %vm7404 = vcmp.eq.f32.partialorder %v7403, 8.507059e+37
  %v7405 = vand.u32 %v7222, 2147483648
  %v7406 = vor.u32 1.1754944e-38, %v7405
  %v7407 = vsel %vm7404, %v7406, %v7402
  %v7408 = vmul.f32 1.0, %v7407
  %v7409 = vrcp.pop %v7223
  %v7410 = vmul.f32 %v7223, %v7409
  %v7411 = vsub.f32 1.0, %v7410
  %v7412 = vmul.f32 %v7409, %v7411
  %v7413 = vadd.f32 %v7409, %v7412
  %vm7414 = vweird.f32 %v7223
  %vm7415 = vweird.f32 %v7409
  %vm7416 = vmor %vm7414, %vm7415
  %v7417 = vsel %vm7416, %v7409, %v7413
  %v7418 = vand.u32 2147483647, %v7223
  %vm7419 = vcmp.eq.f32.partialorder %v7418, 8.507059e+37
  %v7420 = vand.u32 %v7223, 2147483648
  %v7421 = vor.u32 1.1754944e-38, %v7420
  %v7422 = vsel %vm7419, %v7421, %v7417
  %v7423 = vmul.f32 1.0, %v7422
  %v7424 = vrcp.pop %v7224
  %v7425 = vmul.f32 %v7224, %v7424
  %v7426 = vsub.f32 1.0, %v7425
  %v7427 = vmul.f32 %v7424, %v7426
  %v7428 = vadd.f32 %v7424, %v7427
  %vm7429 = vweird.f32 %v7224
  %vm7430 = vweird.f32 %v7424
  %vm7431 = vmor %vm7429, %vm7430
  %v7432 = vsel %vm7431, %v7424, %v7428
  %v7433 = vand.u32 2147483647, %v7224
  %vm7434 = vcmp.eq.f32.partialorder %v7433, 8.507059e+37
  %v7435 = vand.u32 %v7224, 2147483648
  %v7436 = vor.u32 1.1754944e-38, %v7435
  %v7437 = vsel %vm7434, %v7436, %v7432
  %v7438 = vmul.f32 1.0, %v7437
  %v7439 = vrcp.pop %v7225
  %v7440 = vmul.f32 %v7225, %v7439
  %v7441 = vsub.f32 1.0, %v7440
  %v7442 = vmul.f32 %v7439, %v7441
  %v7443 = vadd.f32 %v7439, %v7442
  %vm7444 = vweird.f32 %v7225
  %vm7445 = vweird.f32 %v7439
  %vm7446 = vmor %vm7444, %vm7445
  %v7447 = vsel %vm7446, %v7439, %v7443
  %v7448 = vand.u32 2147483647, %v7225
  %vm7449 = vcmp.eq.f32.partialorder %v7448, 8.507059e+37
  %v7450 = vand.u32 %v7225, 2147483648
  %v7451 = vor.u32 1.1754944e-38, %v7450
  %v7452 = vsel %vm7449, %v7451, %v7447
  %v7453 = vmul.f32 1.0, %v7452
  %v7454 = vrcp.pop %v7226
  %v7455 = vmul.f32 %v7226, %v7454
  %v7456 = vsub.f32 1.0, %v7455
  %v7457 = vmul.f32 %v7454, %v7456
  %v7458 = vadd.f32 %v7454, %v7457
  %vm7459 = vweird.f32 %v7226
  %vm7460 = vweird.f32 %v7454
  %vm7461 = vmor %vm7459, %vm7460
  %v7462 = vsel %vm7461, %v7454, %v7458
  %v7463 = vand.u32 2147483647, %v7226
  %vm7464 = vcmp.eq.f32.partialorder %v7463, 8.507059e+37
  %v7465 = vand.u32 %v7226, 2147483648
  %v7466 = vor.u32 1.1754944e-38, %v7465
  %v7467 = vsel %vm7464, %v7466, %v7462
  %v7468 = vmul.f32 1.0, %v7467
  %v7469 = vrcp.pop %v7227
  %v7470 = vmul.f32 %v7227, %v7469
  %v7471 = vsub.f32 1.0, %v7470
  %v7472 = vmul.f32 %v7469, %v7471
  %v7473 = vadd.f32 %v7469, %v7472
  %vm7474 = vweird.f32 %v7227
  %vm7475 = vweird.f32 %v7469
  %vm7476 = vmor %vm7474, %vm7475
  %v7477 = vsel %vm7476, %v7469, %v7473
  %v7478 = vand.u32 2147483647, %v7227
  %vm7479 = vcmp.eq.f32.partialorder %v7478, 8.507059e+37
  %v7480 = vand.u32 %v7227, 2147483648
  %v7481 = vor.u32 1.1754944e-38, %v7480
  %v7482 = vsel %vm7479, %v7481, %v7477
  %v7483 = vmul.f32 1.0, %v7482
  %v7484 = vrcp.pop %v7228
  %v7485 = vmul.f32 %v7228, %v7484
  %v7486 = vsub.f32 1.0, %v7485
  %v7487 = vmul.f32 %v7484, %v7486
  %v7488 = vadd.f32 %v7484, %v7487
  %vm7489 = vweird.f32 %v7228
  %vm7490 = vweird.f32 %v7484
  %vm7491 = vmor %vm7489, %vm7490
  %v7492 = vsel %vm7491, %v7484, %v7488
  %v7493 = vand.u32 2147483647, %v7228
  %vm7494 = vcmp.eq.f32.partialorder %v7493, 8.507059e+37
  %v7495 = vand.u32 %v7228, 2147483648
  %v7496 = vor.u32 1.1754944e-38, %v7495
  %v7497 = vsel %vm7494, %v7496, %v7492
  %v7498 = vmul.f32 1.0, %v7497
  %v7499 = vrcp.pop %v7229
  %v7500 = vmul.f32 %v7229, %v7499
  %v7501 = vsub.f32 1.0, %v7500
  %v7502 = vmul.f32 %v7499, %v7501
  %v7503 = vadd.f32 %v7499, %v7502
  %vm7504 = vweird.f32 %v7229
  %vm7505 = vweird.f32 %v7499
  %vm7506 = vmor %vm7504, %vm7505
  %v7507 = vsel %vm7506, %v7499, %v7503
  %v7508 = vand.u32 2147483647, %v7229
  %vm7509 = vcmp.eq.f32.partialorder %v7508, 8.507059e+37
  %v7510 = vand.u32 %v7229, 2147483648
  %v7511 = vor.u32 1.1754944e-38, %v7510
  %v7512 = vsel %vm7509, %v7511, %v7507
  %v7513 = vmul.f32 1.0, %v7512
  %v7514 = vrcp.pop %v7230
  %v7515 = vmul.f32 %v7230, %v7514
  %v7516 = vsub.f32 1.0, %v7515
  %v7517 = vmul.f32 %v7514, %v7516
  %v7518 = vadd.f32 %v7514, %v7517
  %vm7519 = vweird.f32 %v7230
  %vm7520 = vweird.f32 %v7514
  %vm7521 = vmor %vm7519, %vm7520
  %v7522 = vsel %vm7521, %v7514, %v7518
  %v7523 = vand.u32 2147483647, %v7230
  %vm7524 = vcmp.eq.f32.partialorder %v7523, 8.507059e+37
  %v7525 = vand.u32 %v7230, 2147483648
  %v7526 = vor.u32 1.1754944e-38, %v7525
  %v7527 = vsel %vm7524, %v7526, %v7522
  %v7528 = vmul.f32 1.0, %v7527
  %v7529 = vrcp.pop %v7231
  %v7530 = vmul.f32 %v7231, %v7529
  %v7531 = vsub.f32 1.0, %v7530
  %v7532 = vmul.f32 %v7529, %v7531
  %v7533 = vadd.f32 %v7529, %v7532
  %vm7534 = vweird.f32 %v7231
  %vm7535 = vweird.f32 %v7529
  %vm7536 = vmor %vm7534, %vm7535
  %v7537 = vsel %vm7536, %v7529, %v7533
  %v7538 = vand.u32 2147483647, %v7231
  %vm7539 = vcmp.eq.f32.partialorder %v7538, 8.507059e+37
  %v7540 = vand.u32 %v7231, 2147483648
  %v7541 = vor.u32 1.1754944e-38, %v7540
  %v7542 = vsel %vm7539, %v7541, %v7537
  %v7543 = vmul.f32 1.0, %v7542
  %v7544 = vrcp.pop %v7232
  %v7545 = vmul.f32 %v7232, %v7544
  %v7546 = vsub.f32 1.0, %v7545
  %v7547 = vmul.f32 %v7544, %v7546
  %v7548 = vadd.f32 %v7544, %v7547
  %vm7549 = vweird.f32 %v7232
  %vm7550 = vweird.f32 %v7544
  %vm7551 = vmor %vm7549, %vm7550
  %v7552 = vsel %vm7551, %v7544, %v7548
  %v7553 = vand.u32 2147483647, %v7232
  %vm7554 = vcmp.eq.f32.partialorder %v7553, 8.507059e+37
  %v7555 = vand.u32 %v7232, 2147483648
  %v7556 = vor.u32 1.1754944e-38, %v7555
  %v7557 = vsel %vm7554, %v7556, %v7552
  %v7558 = vmul.f32 1.0, %v7557
  %v7559 = vrcp.pop %v7233
  %v7560 = vmul.f32 %v7233, %v7559
  %v7561 = vsub.f32 1.0, %v7560
  %v7562 = vmul.f32 %v7559, %v7561
  %v7563 = vadd.f32 %v7559, %v7562
  %vm7564 = vweird.f32 %v7233
  %vm7565 = vweird.f32 %v7559
  %vm7566 = vmor %vm7564, %vm7565
  %v7567 = vsel %vm7566, %v7559, %v7563
  %v7568 = vand.u32 2147483647, %v7233
  %vm7569 = vcmp.eq.f32.partialorder %v7568, 8.507059e+37
  %v7570 = vand.u32 %v7233, 2147483648
  %v7571 = vor.u32 1.1754944e-38, %v7570
  %v7572 = vsel %vm7569, %v7571, %v7567
  %v7573 = vmul.f32 1.0, %v7572
  %v7574 = vrcp.pop %v7234
  %v7575 = vmul.f32 %v7234, %v7574
  %v7576 = vsub.f32 1.0, %v7575
  %v7577 = vmul.f32 %v7574, %v7576
  %v7578 = vadd.f32 %v7574, %v7577
  %vm7579 = vweird.f32 %v7234
  %vm7580 = vweird.f32 %v7574
  %vm7581 = vmor %vm7579, %vm7580
  %v7582 = vsel %vm7581, %v7574, %v7578
  %v7583 = vand.u32 2147483647, %v7234
  %vm7584 = vcmp.eq.f32.partialorder %v7583, 8.507059e+37
  %v7585 = vand.u32 %v7234, 2147483648
  %v7586 = vor.u32 1.1754944e-38, %v7585
  %v7587 = vsel %vm7584, %v7586, %v7582
  %v7588 = vmul.f32 1.0, %v7587
  %v7589 = vrcp.pop %v7235
  %v7590 = vmul.f32 %v7235, %v7589
  %v7591 = vsub.f32 1.0, %v7590
  %v7592 = vmul.f32 %v7589, %v7591
  %v7593 = vadd.f32 %v7589, %v7592
  %vm7594 = vweird.f32 %v7235
  %vm7595 = vweird.f32 %v7589
  %vm7596 = vmor %vm7594, %vm7595
  %v7597 = vsel %vm7596, %v7589, %v7593
  %v7598 = vand.u32 2147483647, %v7235
  %vm7599 = vcmp.eq.f32.partialorder %v7598, 8.507059e+37
  %v7600 = vand.u32 %v7235, 2147483648
  %v7601 = vor.u32 1.1754944e-38, %v7600
  %v7602 = vsel %vm7599, %v7601, %v7597
  %v7603 = vmul.f32 1.0, %v7602
  %v7604 = vrcp.pop %v7236
  %v7605 = vmul.f32 %v7236, %v7604
  %v7606 = vsub.f32 1.0, %v7605
  %v7607 = vmul.f32 %v7604, %v7606
  %v7608 = vadd.f32 %v7604, %v7607
  %vm7609 = vweird.f32 %v7236
  %vm7610 = vweird.f32 %v7604
  %vm7611 = vmor %vm7609, %vm7610
  %v7612 = vsel %vm7611, %v7604, %v7608
  %v7613 = vand.u32 2147483647, %v7236
  %vm7614 = vcmp.eq.f32.partialorder %v7613, 8.507059e+37
  %v7615 = vand.u32 %v7236, 2147483648
  %v7616 = vor.u32 1.1754944e-38, %v7615
  %v7617 = vsel %vm7614, %v7616, %v7612
  %v7618 = vmul.f32 1.0, %v7617
  %v7619 = vrcp.pop %v7237
  %v7620 = vmul.f32 %v7237, %v7619
  %v7621 = vsub.f32 1.0, %v7620
  %v7622 = vmul.f32 %v7619, %v7621
  %v7623 = vadd.f32 %v7619, %v7622
  %vm7624 = vweird.f32 %v7237
  %vm7625 = vweird.f32 %v7619
  %vm7626 = vmor %vm7624, %vm7625
  %v7627 = vsel %vm7626, %v7619, %v7623
  %v7628 = vand.u32 2147483647, %v7237
  %vm7629 = vcmp.eq.f32.partialorder %v7628, 8.507059e+37
  %v7630 = vand.u32 %v7237, 2147483648
  %v7631 = vor.u32 1.1754944e-38, %v7630
  %v7632 = vsel %vm7629, %v7631, %v7627
  %v7633 = vmul.f32 1.0, %v7632
  %v7634 = vrcp.pop %v7238
  %v7635 = vmul.f32 %v7238, %v7634
  %v7636 = vsub.f32 1.0, %v7635
  %v7637 = vmul.f32 %v7634, %v7636
  %v7638 = vadd.f32 %v7634, %v7637
  %vm7639 = vweird.f32 %v7238
  %vm7640 = vweird.f32 %v7634
  %vm7641 = vmor %vm7639, %vm7640
  %v7642 = vsel %vm7641, %v7634, %v7638
  %v7643 = vand.u32 2147483647, %v7238
  %vm7644 = vcmp.eq.f32.partialorder %v7643, 8.507059e+37
  %v7645 = vand.u32 %v7238, 2147483648
  %v7646 = vor.u32 1.1754944e-38, %v7645
  %v7647 = vsel %vm7644, %v7646, %v7642
  %v7648 = vmul.f32 1.0, %v7647
  %v7649 = vrcp.pop %v7239
  %v7650 = vmul.f32 %v7239, %v7649
  %v7651 = vsub.f32 1.0, %v7650
  %v7652 = vmul.f32 %v7649, %v7651
  %v7653 = vadd.f32 %v7649, %v7652
  %vm7654 = vweird.f32 %v7239
  %vm7655 = vweird.f32 %v7649
  %vm7656 = vmor %vm7654, %vm7655
  %v7657 = vsel %vm7656, %v7649, %v7653
  %v7658 = vand.u32 2147483647, %v7239
  %vm7659 = vcmp.eq.f32.partialorder %v7658, 8.507059e+37
  %v7660 = vand.u32 %v7239, 2147483648
  %v7661 = vor.u32 1.1754944e-38, %v7660
  %v7662 = vsel %vm7659, %v7661, %v7657
  %v7663 = vmul.f32 1.0, %v7662
  %v7664 = vrcp.pop %v7240
  %v7665 = vmul.f32 %v7240, %v7664
  %v7666 = vsub.f32 1.0, %v7665
  %v7667 = vmul.f32 %v7664, %v7666
  %v7668 = vadd.f32 %v7664, %v7667
  %vm7669 = vweird.f32 %v7240
  %vm7670 = vweird.f32 %v7664
  %vm7671 = vmor %vm7669, %vm7670
  %v7672 = vsel %vm7671, %v7664, %v7668
  %v7673 = vand.u32 2147483647, %v7240
  %vm7674 = vcmp.eq.f32.partialorder %v7673, 8.507059e+37
  %v7675 = vand.u32 %v7240, 2147483648
  %v7676 = vor.u32 1.1754944e-38, %v7675
  %v7677 = vsel %vm7674, %v7676, %v7672
  %v7678 = vmul.f32 1.0, %v7677
  %v7679 = vrcp.pop %v7241
  %v7680 = vmul.f32 %v7241, %v7679
  %v7681 = vsub.f32 1.0, %v7680
  %v7682 = vmul.f32 %v7679, %v7681
  %v7683 = vadd.f32 %v7679, %v7682
  %vm7684 = vweird.f32 %v7241
  %vm7685 = vweird.f32 %v7679
  %vm7686 = vmor %vm7684, %vm7685
  %v7687 = vsel %vm7686, %v7679, %v7683
  %v7688 = vand.u32 2147483647, %v7241
  %vm7689 = vcmp.eq.f32.partialorder %v7688, 8.507059e+37
  %v7690 = vand.u32 %v7241, 2147483648
  %v7691 = vor.u32 1.1754944e-38, %v7690
  %v7692 = vsel %vm7689, %v7691, %v7687
  %v7693 = vmul.f32 1.0, %v7692
  %v7694 = vrcp.pop %v7242
  %v7695 = vmul.f32 %v7242, %v7694
  %v7696 = vsub.f32 1.0, %v7695
  %v7697 = vmul.f32 %v7694, %v7696
  %v7698 = vadd.f32 %v7694, %v7697
  %vm7699 = vweird.f32 %v7242
  %vm7700 = vweird.f32 %v7694
  %vm7701 = vmor %vm7699, %vm7700
  %v7702 = vsel %vm7701, %v7694, %v7698
  %v7703 = vand.u32 2147483647, %v7242
  %vm7704 = vcmp.eq.f32.partialorder %v7703, 8.507059e+37
  %v7705 = vand.u32 %v7242, 2147483648
  %v7706 = vor.u32 1.1754944e-38, %v7705
  %v7707 = vsel %vm7704, %v7706, %v7702
  %v7708 = vmul.f32 1.0, %v7707
  %v7709 = vrcp.pop %v7243
  %v7710 = vmul.f32 %v7243, %v7709
  %v7711 = vsub.f32 1.0, %v7710
  %v7712 = vmul.f32 %v7709, %v7711
  %v7713 = vadd.f32 %v7709, %v7712
  %vm7714 = vweird.f32 %v7243
  %vm7715 = vweird.f32 %v7709
  %vm7716 = vmor %vm7714, %vm7715
  %v7717 = vsel %vm7716, %v7709, %v7713
  %v7718 = vand.u32 2147483647, %v7243
  %vm7719 = vcmp.eq.f32.partialorder %v7718, 8.507059e+37
  %v7720 = vand.u32 %v7243, 2147483648
  %v7721 = vor.u32 1.1754944e-38, %v7720
  %v7722 = vsel %vm7719, %v7721, %v7717
  %v7723 = vmul.f32 1.0, %v7722
  %vm7724 = vcmask 23552
  %7725 = vst.msk [vmem:[%s28] sm:$0xff] %vm7724, %v7258
  %7726 = vst.msk [vmem:[%s28 + $0x8] sm:$0xff] %vm7724, %v7273
  %7727 = vst.msk [vmem:[%s28 + $0x10] sm:$0xff] %vm7724, %v7288
  %7728 = vst.msk [vmem:[%s28 + $0x18] sm:$0xff] %vm7724, %v7303
  %7729 = vst.msk [vmem:[%s28 + $0x20] sm:$0xff] %vm7724, %v7318
  %7730 = vst.msk [vmem:[%s28 + $0x28] sm:$0xff] %vm7724, %v7333
  %7731 = vst.msk [vmem:[%s28 + $0x30] sm:$0xff] %vm7724, %v7348
  %7732 = vst.msk [vmem:[%s28 + $0x38] sm:$0xff] %vm7724, %v7363
  %7733 = vst.msk [vmem:[%s28 + $0x40] sm:$0xff] %vm7724, %v7378
  %7734 = vst.msk [vmem:[%s28 + $0x48] sm:$0xff] %vm7724, %v7393
  %7735 = vst.msk [vmem:[%s28 + $0x50] sm:$0xff] %vm7724, %v7408
  %7736 = vst.msk [vmem:[%s28 + $0x58] sm:$0xff] %vm7724, %v7423
  %7737 = vst.msk [vmem:[%s28 + $0x60] sm:$0xff] %vm7724, %v7438
  %7738 = vst.msk [vmem:[%s28 + $0x68] sm:$0xff] %vm7724, %v7453
  %7739 = vst.msk [vmem:[%s28 + $0x70] sm:$0xff] %vm7724, %v7468
  %7740 = vst.msk [vmem:[%s28 + $0x78] sm:$0xff] %vm7724, %v7483
  %7741 = vst.msk [vmem:[%s28 + $0x80] sm:$0xff] %vm7724, %v7498
  %7742 = vst.msk [vmem:[%s28 + $0x88] sm:$0xff] %vm7724, %v7513
  %7743 = vst.msk [vmem:[%s28 + $0x90] sm:$0xff] %vm7724, %v7528
  %7744 = vst.msk [vmem:[%s28 + $0x98] sm:$0xff] %vm7724, %v7543
  %7745 = vst.msk [vmem:[%s28 + $0xa0] sm:$0xff] %vm7724, %v7558
  %7746 = vst.msk [vmem:[%s28 + $0xa8] sm:$0xff] %vm7724, %v7573
  %7747 = vst.msk [vmem:[%s28 + $0xb0] sm:$0xff] %vm7724, %v7588
  %7748 = vst.msk [vmem:[%s28 + $0xb8] sm:$0xff] %vm7724, %v7603
  %7749 = vst.msk [vmem:[%s28 + $0xc0] sm:$0xff] %vm7724, %v7618
  %7750 = vst.msk [vmem:[%s28 + $0xc8] sm:$0xff] %vm7724, %v7633
  %7751 = vst.msk [vmem:[%s28 + $0xd0] sm:$0xff] %vm7724, %v7648
  %7752 = vst.msk [vmem:[%s28 + $0xd8] sm:$0xff] %vm7724, %v7663
  %7753 = vst.msk [vmem:[%s28 + $0xe0] sm:$0xff] %vm7724, %v7678
  %7754 = vst.msk [vmem:[%s28 + $0xe8] sm:$0xff] %vm7724, %v7693
  %7755 = vst.msk [vmem:[%s28 + $0xf0] sm:$0xff] %vm7724, %v7708
  %7756 = vst.msk [vmem:[%s28 + $0xf8] sm:$0xff] %vm7724, %v7723
  %7789 = vrot.lane.b32.xlu0 %v6265, 3
  %v7790 = vpop.permute.xlu0 %7789
  %7791 = vrot.lane.b32.xlu0 %v6266, 3
  %v7792 = vpop.permute.xlu0 %7791
  %7793 = vrot.lane.b32.xlu0 %v6267, 3
  %v7794 = vpop.permute.xlu0 %7793
  %7795 = vrot.lane.b32.xlu0 %v6268, 3
  %v7796 = vpop.permute.xlu0 %7795
  %7797 = vrot.lane.b32.xlu0 %v6269, 3
  %v7798 = vpop.permute.xlu0 %7797
  %7799 = vrot.lane.b32.xlu0 %v6270, 3
  %v7800 = vpop.permute.xlu0 %7799
  %7801 = vrot.lane.b32.xlu0 %v6271, 3
  %v7802 = vpop.permute.xlu0 %7801
  %7803 = vrot.lane.b32.xlu0 %v6272, 3
  %v7804 = vpop.permute.xlu0 %7803
  %7805 = vrot.lane.b32.xlu0 %v6273, 3
  %v7806 = vpop.permute.xlu0 %7805
  %7807 = vrot.lane.b32.xlu0 %v6274, 3
  %v7808 = vpop.permute.xlu0 %7807
  %7809 = vrot.lane.b32.xlu0 %v6275, 3
  %v7810 = vpop.permute.xlu0 %7809
  %7811 = vrot.lane.b32.xlu0 %v6276, 3
  %v7812 = vpop.permute.xlu0 %7811
  %7813 = vrot.lane.b32.xlu0 %v6277, 3
  %v7814 = vpop.permute.xlu0 %7813
  %7815 = vrot.lane.b32.xlu0 %v6278, 3
  %v7816 = vpop.permute.xlu0 %7815
  %7817 = vrot.lane.b32.xlu0 %v6279, 3
  %v7818 = vpop.permute.xlu0 %7817
  %7819 = vrot.lane.b32.xlu0 %v6280, 3
  %v7820 = vpop.permute.xlu0 %7819
  %7821 = vrot.lane.b32.xlu0 %v6281, 3
  %v7822 = vpop.permute.xlu0 %7821
  %7823 = vrot.lane.b32.xlu0 %v6282, 3
  %v7824 = vpop.permute.xlu0 %7823
  %7825 = vrot.lane.b32.xlu0 %v6283, 3
  %v7826 = vpop.permute.xlu0 %7825
  %7827 = vrot.lane.b32.xlu0 %v6284, 3
  %v7828 = vpop.permute.xlu0 %7827
  %7829 = vrot.lane.b32.xlu0 %v6285, 3
  %v7830 = vpop.permute.xlu0 %7829
  %7831 = vrot.lane.b32.xlu0 %v6286, 3
  %v7832 = vpop.permute.xlu0 %7831
  %7833 = vrot.lane.b32.xlu0 %v6287, 3
  %v7834 = vpop.permute.xlu0 %7833
  %7835 = vrot.lane.b32.xlu0 %v6288, 3
  %v7836 = vpop.permute.xlu0 %7835
  %7837 = vrot.lane.b32.xlu0 %v6289, 3
  %v7838 = vpop.permute.xlu0 %7837
  %7839 = vrot.lane.b32.xlu0 %v6290, 3
  %v7840 = vpop.permute.xlu0 %7839
  %7841 = vrot.lane.b32.xlu0 %v6291, 3
  %v7842 = vpop.permute.xlu0 %7841
  %7843 = vrot.lane.b32.xlu0 %v6292, 3
  %v7844 = vpop.permute.xlu0 %7843
  %7845 = vrot.lane.b32.xlu0 %v6293, 3
  %v7846 = vpop.permute.xlu0 %7845
  %7847 = vrot.lane.b32.xlu0 %v6294, 3
  %v7848 = vpop.permute.xlu0 %7847
  %7849 = vrot.lane.b32.xlu0 %v6295, 3
  %v7850 = vpop.permute.xlu0 %7849
  %7851 = vrot.lane.b32.xlu0 %v6296, 3
  %v7852 = vpop.permute.xlu0 %7851
  %vm7885 = vcmask 31768
  %7886 = vst.msk [vmem:[%s28] sm:$0xff] %vm7885, %v7790
  %7887 = vst.msk [vmem:[%s28 + $0x8] sm:$0xff] %vm7885, %v7792
  %7888 = vst.msk [vmem:[%s28 + $0x10] sm:$0xff] %vm7885, %v7794
  %7889 = vst.msk [vmem:[%s28 + $0x18] sm:$0xff] %vm7885, %v7796
  %7890 = vst.msk [vmem:[%s28 + $0x20] sm:$0xff] %vm7885, %v7798
  %7891 = vst.msk [vmem:[%s28 + $0x28] sm:$0xff] %vm7885, %v7800
  %7892 = vst.msk [vmem:[%s28 + $0x30] sm:$0xff] %vm7885, %v7802
  %7893 = vst.msk [vmem:[%s28 + $0x38] sm:$0xff] %vm7885, %v7804
  %7894 = vst.msk [vmem:[%s28 + $0x40] sm:$0xff] %vm7885, %v7806
  %7895 = vst.msk [vmem:[%s28 + $0x48] sm:$0xff] %vm7885, %v7808
  %7896 = vst.msk [vmem:[%s28 + $0x50] sm:$0xff] %vm7885, %v7810
  %7897 = vst.msk [vmem:[%s28 + $0x58] sm:$0xff] %vm7885, %v7812
  %7898 = vst.msk [vmem:[%s28 + $0x60] sm:$0xff] %vm7885, %v7814
  %7899 = vst.msk [vmem:[%s28 + $0x68] sm:$0xff] %vm7885, %v7816
  %7900 = vst.msk [vmem:[%s28 + $0x70] sm:$0xff] %vm7885, %v7818
  %7901 = vst.msk [vmem:[%s28 + $0x78] sm:$0xff] %vm7885, %v7820
  %7902 = vst.msk [vmem:[%s28 + $0x80] sm:$0xff] %vm7885, %v7822
  %7903 = vst.msk [vmem:[%s28 + $0x88] sm:$0xff] %vm7885, %v7824
  %7904 = vst.msk [vmem:[%s28 + $0x90] sm:$0xff] %vm7885, %v7826
  %7905 = vst.msk [vmem:[%s28 + $0x98] sm:$0xff] %vm7885, %v7828
  %7906 = vst.msk [vmem:[%s28 + $0xa0] sm:$0xff] %vm7885, %v7830
  %7907 = vst.msk [vmem:[%s28 + $0xa8] sm:$0xff] %vm7885, %v7832
  %7908 = vst.msk [vmem:[%s28 + $0xb0] sm:$0xff] %vm7885, %v7834
  %7909 = vst.msk [vmem:[%s28 + $0xb8] sm:$0xff] %vm7885, %v7836
  %7910 = vst.msk [vmem:[%s28 + $0xc0] sm:$0xff] %vm7885, %v7838
  %7911 = vst.msk [vmem:[%s28 + $0xc8] sm:$0xff] %vm7885, %v7840
  %7912 = vst.msk [vmem:[%s28 + $0xd0] sm:$0xff] %vm7885, %v7842
  %7913 = vst.msk [vmem:[%s28 + $0xd8] sm:$0xff] %vm7885, %v7844
  %7914 = vst.msk [vmem:[%s28 + $0xe0] sm:$0xff] %vm7885, %v7846
  %7915 = vst.msk [vmem:[%s28 + $0xe8] sm:$0xff] %vm7885, %v7848
  %7916 = vst.msk [vmem:[%s28 + $0xf0] sm:$0xff] %vm7885, %v7850
  %7917 = vst.msk [vmem:[%s28 + $0xf8] sm:$0xff] %vm7885, %v7852
  // Predicated region
  $region114: #{nerf_forward.1} parent=0 // pred_check
    _
  $region115: #{nerf_forward.1} parent=0 // pred_check_branch
    %7919 = sbr.rel (0) target = $region117
  $region116: #{nerf_forward.1} parent=0 // pred_region
    _
  $region117: #{nerf_forward.1} parent=0 // pred_fallthru
    _
  // Predicated region
  $region118: #{nerf_forward.1} parent=0 // pred_check
    _
  $region119: #{nerf_forward.1} parent=0 // pred_check_branch
    %7921 = sbr.rel (0) target = $region121
  $region120: #{nerf_forward.1} parent=0 // pred_region
    _
  $region121: #{nerf_forward.1} parent=0 // pred_fallthru
    _

</llo_original>
